<compile_context>
chip_gen: v7x
topology: tpu7x:2x2x1
jax: 0.10.0
libtpu: 0.0.40
codegen_flags: <defaults>
</compile_context>

<pallas_src>
import functools

import numpy as np
import jax
import jax.numpy as jnp
from jax.experimental import pallas as pl
from jax.experimental.pallas import tpu as pltpu


# ----------------------------------------------------------------------------
# In-kernel math helpers (all ops are Mosaic-friendly: matmul/elementwise)
# ----------------------------------------------------------------------------
_SQRT1_2 = 0.7071067811865476


def _erf_approx(x):
    # Abramowitz & Stegun 7.1.26 (|err| <= 1.5e-7); uses only exp/abs/where.
    p = 0.3275911
    a1, a2, a3, a4, a5 = 0.254829592, -0.284496736, 1.421413741, -1.453152027, 1.061405429
    s = jnp.where(x >= 0.0, 1.0, -1.0)
    ax = jnp.abs(x)
    t = 1.0 / (1.0 + p * ax)
    poly = ((((a5 * t + a4) * t + a3) * t + a2) * t + a1) * t
    return s * (1.0 - poly * jnp.exp(-ax * ax))


def _gelu(x):
    # TODO(synk): torch.nn.GELU() uses exact erf; this is a ~1e-7 approximation.
    return 0.5 * x * (1.0 + _erf_approx(x * _SQRT1_2))


def _sigmoid(x):
    return 1.0 / (1.0 + jnp.exp(-x))


def _ln_cm(v, g, b, eps):
    """channels_first LayerNorm in (C, M) layout (reduce over channel axis)."""
    c = v.shape[0]
    w = jnp.full((1, c), 1.0 / c, dtype=jnp.float32)
    u = jnp.dot(w, v, preferred_element_type=jnp.float32)        # (1, M) mean
    d = v - u
    s = jnp.dot(w, d * d, preferred_element_type=jnp.float32)    # (1, M) biased var
    return d * jax.lax.rsqrt(s + eps) * g + b


def _conv3x3_cm(z, w9_ref, t9_ref):
    """3x3 conv (stride 1, pad 1) in (Cin, M) layout.

    w9_ref: (9, Cout, Cin) per-tap weights.
    t9_ref: (9, M, M) constant shift + boundary-mask matrices
            (T_t[src, dst] = 1 iff src = dst + tap offset and tap in-bounds).
    """
    cout = w9_ref.shape[1]
    m = z.shape[1]
    acc = jnp.zeros((cout, m), jnp.float32)
    for t in range(9):
        u = jnp.dot(w9_ref[t], z, preferred_element_type=jnp.float32)        # (Cout, M)
        acc = acc + jnp.dot(u, t9_ref[t], preferred_element_type=jnp.float32)
    return acc


# ----------------------------------------------------------------------------
# Pallas kernels
# ----------------------------------------------------------------------------
def _matmul_bias_kernel(w_ref, x_ref, b_ref, o_ref):
    o_ref[...] = (jnp.dot(w_ref[...], x_ref[...], preferred_element_type=jnp.float32)
                  + b_ref[...])


def _to_img_kernel(y_ref, f_ref, w9_ref, b_ref, t9_ref, o_ref):
    # fused global residual (feats(x)+x) followed by the to_img 3x3 conv.
    s = y_ref[...] + f_ref[...]
    o_ref[...] = _conv3x3_cm(s, w9_ref, t9_ref) + b_ref[...]


def _att_block_kernel(x_ref,
                      n1g_ref, n1b_ref,
                      lw1_ref, lb1_ref, lw2_ref, lb2_ref,
                      gw1_ref, gb1_ref, gw2_ref, gb2_ref, w3blk_ref, b3row_ref,
                      cwl_ref, cwg_ref, cb_ref,
                      n2g_ref, n2b_ref,
                      fw1_ref, fb1_ref, fw2_ref, fb2_ref,
                      pool_ref, scat_ref, r1_ref, r2_ref, t9_ref,
                      o_ref, *, eps):
    x = x_ref[...]                                               # (C, M)

    # ---- LayerNorm 1 (channels-first) -------------------------------------
    y = _ln_cm(x, n1g_ref[...], n1b_ref[...], eps)

    # ---- Local branch: avg-pool -> 1x1 -> relu -> 1x1 -> sigmoid -> gate ---
    pooled = jnp.dot(y, pool_ref[...], preferred_element_type=jnp.float32)   # (C, B)
    z = jnp.dot(lw1_ref[...], pooled, preferred_element_type=jnp.float32) + lb1_ref[...]
    z = jnp.maximum(z, 0.0)
    z = jnp.dot(lw2_ref[...], z, preferred_element_type=jnp.float32) + lb2_ref[...]
    z = _sigmoid(z)                                              # (C, B)
    # broadcast the gate over the spatial/batch pixel axis inside the kernel
    y_l = y * jnp.dot(z, scat_ref[...], preferred_element_type=jnp.float32)  # (C, M)

    # ---- Global branch ------------------------------------------------------
    # resize (H,W)->(C,C) folded into constant R1; permutes + conv3 folded into
    # the block-diagonal kron(I, W3^T); resize back folded into constant R2.
    g0 = jnp.dot(y, r1_ref[...], preferred_element_type=jnp.float32)         # (C, B*C*C)
    a1 = _gelu(jnp.dot(gw1_ref[...], g0, preferred_element_type=jnp.float32) + gb1_ref[...])
    a2 = _gelu(jnp.dot(gw2_ref[...], a1, preferred_element_type=jnp.float32) + gb2_ref[...])
    a3 = _sigmoid(jnp.dot(a2, w3blk_ref[...], preferred_element_type=jnp.float32)
                  + b3row_ref[...])                              # (C, B*C*C)
    y_g = y * jnp.dot(a3, r2_ref[...], preferred_element_type=jnp.float32)   # (C, M)

    # ---- Fuse: 1x1 conv over channel-concat([y_l, y_g]) + residual ----------
    y2 = (jnp.dot(cwl_ref[...], y_l, preferred_element_type=jnp.float32)
          + jnp.dot(cwg_ref[...], y_g, preferred_element_type=jnp.float32)
          + cb_ref[...] + x)

    # ---- FC: LN2 -> 3x3 conv -> GELU -> 1x1 conv -> residual ----------------
    z2 = _ln_cm(y2, n2g_ref[...], n2b_ref[...], eps)
    h = _gelu(_conv3x3_cm(z2, fw1_ref, t9_ref) + fb1_ref[...])   # (hid_fc, M)
    o_ref[...] = (jnp.dot(fw2_ref[...], h, preferred_element_type=jnp.float32)
                  + fb2_ref[...] + y2)


# ----------------------------------------------------------------------------
# pallas_call wrappers
# ----------------------------------------------------------------------------
def _fullspec(shape):
    nd = len(shape)
    return pl.BlockSpec(shape, lambda i, _nd=nd: (0,) * _nd)


_COMPILER_PARAMS = pltpu.CompilerParams(dimension_semantics=("arbitrary",))


def matmul_bias(w, x, b):
    co = w.shape[0]
    m = x.shape[1]
    return pl.pallas_call(
        _matmul_bias_kernel,
        out_shape=jax.ShapeDtypeStruct((co, m), jnp.float32),
        grid=(1,),
        in_specs=[_fullspec(w.shape), _fullspec(x.shape), _fullspec(b.shape)],
        out_specs=_fullspec((co, m)),
        compiler_params=_COMPILER_PARAMS,
    )(w, x, b)


def to_img_conv(y_cm, f_cm, w9, b, t9):
    co = w9.shape[1]
    m = y_cm.shape[1]
    args = (y_cm, f_cm, w9, b, t9)
    return pl.pallas_call(
        _to_img_kernel,
        out_shape=jax.ShapeDtypeStruct((co, m), jnp.float32),
        grid=(1,),
        in_specs=[_fullspec(a.shape) for a in args],
        out_specs=_fullspec((co, m)),
        compiler_params=_COMPILER_PARAMS,
    )(*args)


def att_block(blk, y_cm, consts, *, B):
    C, M = y_cm.shape
    BC2 = B * C * C
    hid_fc = blk['fc_w1'].shape[1]

    # weight-dependent constants for the fused global branch
    w3blk = jnp.kron(jnp.eye(B * C, dtype=jnp.float32), blk['g_w3'].T)   # (BC2, BC2)
    b3row = jnp.tile(blk['g_b3'].reshape(1, C), (1, B * C))              # (1, BC2)
    cwl = blk['cat_w'][:, :C]
    cwg = blk['cat_w'][:, C:]

    args = (y_cm,
            blk['n1_g'], blk['n1_b'],
            blk['loc_w1'], blk['loc_b1'], blk['loc_w2'], blk['loc_b2'],
            blk['g_w1'], blk['g_b1'], blk['g_w2'], blk['g_b2'], w3blk, b3row,
            cwl, cwg, blk['cat_b'],
            blk['n2_g'], blk['n2_b'],
            blk['fc_w1'], blk['fc_b1'], blk['fc_w2'], blk['fc_b2'],
            consts['pool'], consts['scat'], consts['r1'], consts['r2'], consts['t9'])

    flops = 2 * (2 * C * M * BC2            # the two folded resizes
                 + 2 * C * C * BC2          # global conv1 / conv2
                 + C * BC2 * BC2            # block-diagonal conv3
                 + 9 * (hid_fc * C * M + hid_fc * M * M)   # 3x3 conv
                 + C * hid_fc * M + 2 * C * C * M)         # fc2 + cat conv
    bytes_accessed = int((sum(int(np.prod(a.shape)) for a in args) + C * M) * 4)
    cost = pl.CostEstimate(flops=int(flops),
                           transcendentals=int(3 * C * BC2 + hid_fc * M),
                           bytes_accessed=bytes_accessed)

    return pl.pallas_call(
        functools.partial(_att_block_kernel, eps=1e-6),
        out_shape=jax.ShapeDtypeStruct((C, M), jnp.float32),
        grid=(1,),
        in_specs=[_fullspec(a.shape) for a in args],
        out_specs=_fullspec((C, M)),
        compiler_params=_COMPILER_PARAMS,
        cost_estimate=cost,
    )(*args)


# ----------------------------------------------------------------------------
# Host-side constants (built once from static shapes) and layout glue
# ----------------------------------------------------------------------------
def _interp_matrix(n_in, n_out):
    # bilinear, align_corners=True interpolation matrix (n_out, n_in)
    if n_in == 1:
        return np.ones((n_out, 1), np.float32)
    if n_out == 1:
        src = np.zeros((1,), np.float64)
    else:
        src = np.arange(n_out, dtype=np.float64) * ((n_in - 1) / (n_out - 1))
    lo = np.clip(np.floor(src).astype(np.int64), 0, n_in - 2)
    frac = (src - lo).astype(np.float32)
    A = np.zeros((n_out, n_in), np.float32)
    rows = np.arange(n_out)
    A[rows, lo] += 1.0 - frac
    A[rows, lo + 1] += frac
    return A


def make_constants(B, C, H, W):
    """Shape-only constants shared by all AttBlocks (and to_img)."""
    HW = H * W
    M = B * HW
    # batch membership: pooling matrix (M,B) and gate-scatter matrix (B,M)
    bidx = np.repeat(np.arange(B), HW)
    scat = (bidx[None, :] == np.arange(B)[:, None]).astype(np.float32)   # (B, M)
    pool = scat.T / float(HW)                                            # (M, B)
    # separable bilinear align_corners=True resizes folded into block-diagonal
    # operators on the flattened (b,h,w) pixel axis.
    Ah = _interp_matrix(H, C)        # H -> C,  (C, H)
    Aw = _interp_matrix(W, C)        # W -> C,  (C, W)
    Ah2 = _interp_matrix(C, H)       # C -> H,  (H, C)
    Aw2 = _interp_matrix(C, W)       # C -> W,  (W, C)
    r1_b = np.einsum('ph,qw->hwqp', Ah, Aw).reshape(HW, C * C)           # rows (h,w), cols (q,p)
    r2_b = np.einsum('hi,wq->qihw', Ah2, Aw2).reshape(C * C, HW)         # rows (q,i), cols (h,w)
    r1 = np.kron(np.eye(B, dtype=np.float32), r1_b)                      # (M, B*C*C)
    r2 = np.kron(np.eye(B, dtype=np.float32), r2_b)                      # (B*C*C, M)
    # 3x3-conv tap shift (+boundary mask) matrices on the flattened pixel axis
    idx = np.arange(M)
    h = (idx % HW) // W
    w = idx % W
    t9 = np.zeros((9, M, M), np.float32)
    for t in range(9):
        dy, dx = t // 3 - 1, t % 3 - 1
        valid = (h + dy >= 0) & (h + dy < H) & (w + dx >= 0) & (w + dx < W)
        src = idx + dy * W + dx
        t9[t, src[valid], idx[valid]] = 1.0
    return {'pool': jnp.asarray(pool), 'scat': jnp.asarray(scat),
            'r1': jnp.asarray(r1), 'r2': jnp.asarray(r2), 't9': jnp.asarray(t9)}


def _nchw_to_cm(x):
    B, C, H, W = x.shape
    return x.transpose(1, 0, 2, 3).reshape(C, B * H * W)


def _cm_to_nchw(x_cm, B, H, W):
    C = x_cm.shape[0]
    return x_cm.reshape(C, B, H, W).transpose(1, 0, 2, 3)


def _pixel_unshuffle(x, r):
    B, C, H, W = x.shape
    x = x.reshape(B, C, H // r, r, W // r, r).transpose(0, 1, 3, 5, 2, 4)
    return x.reshape(B, C * r * r, H // r, W // r)


def _pixel_shuffle(x, r):
    B, Crr, H, W = x.shape
    C = Crr // (r * r)
    x = x.reshape(B, C, r, r, H, W).transpose(0, 1, 4, 2, 5, 3)
    return x.reshape(B, C, H * r, W * r)


def _im2col_3x3(x_nchw):
    # tiny host-side im2col used only for the 3-channel entry conv.
    B, C, H, W = x_nchw.shape
    xp = jnp.pad(x_nchw, ((0, 0), (0, 0), (1, 1), (1, 1)))
    taps = [xp[:, :, dy:dy + H, dx:dx + W] for dy in range(3) for dx in range(3)]
    st = jnp.stack(taps, axis=0)                                  # (9, B, C, H, W)
    return st.transpose(0, 2, 1, 3, 4).reshape(9 * C, B * H * W)  # rows (t, cin)


# ----------------------------------------------------------------------------
# Parameters (deterministic in-script init; shapes mirror the PyTorch module)
# ----------------------------------------------------------------------------
def _conv_init(key, cout, cin, kh, kw):
    k1, k2 = jax.random.split(key)
    bound = 1.0 / float(np.sqrt(cin * kh * kw))
    if kh == 1 and kw == 1:
        w = jax.random.uniform(k1, (cout, cin), jnp.float32, -bound, bound)
    else:
        w = jax.random.uniform(k1, (kh * kw, cout, cin), jnp.float32, -bound, bound)
    b = jax.random.uniform(k2, (cout, 1), jnp.float32, -bound, bound)
    return w, b


def init_params(key, dim=8, n_blocks=2, ffn_scale=2.0, upscaling_factor=2):
    r = upscaling_factor
    C = dim * r
    hid_fc = int(C * ffn_scale)
    hid_loc = int(C // ffn_scale)
    keys = jax.random.split(key, 2 + n_blocks)
    p = {}
    p['to_feat_w'], p['to_feat_b'] = _conv_init(keys[0], dim // r, 3, 3, 3)
    p['to_img_w'], p['to_img_b'] = _conv_init(keys[1], 3 * r * r, C, 3, 3)
    blocks = []
    for i in range(n_blocks):
        bk = jax.random.split(keys[2 + i], 8)
        blk = {
            'n1_g': jnp.ones((C, 1), jnp.float32), 'n1_b': jnp.zeros((C, 1), jnp.float32),
            'n2_g': jnp.ones((C, 1), jnp.float32), 'n2_b': jnp.zeros((C, 1), jnp.float32),
        }
        blk['loc_w1'], blk['loc_b1'] = _conv_init(bk[0], hid_loc, C, 1, 1)
        blk['loc_w2'], blk['loc_b2'] = _conv_init(bk[1], C, hid_loc, 1, 1)
        blk['g_w1'], blk['g_b1'] = _conv_init(bk[2], C, C, 1, 1)
        blk['g_w2'], blk['g_b2'] = _conv_init(bk[3], C, C, 1, 1)
        blk['g_w3'], blk['g_b3'] = _conv_init(bk[4], C, C, 1, 1)
        blk['cat_w'], blk['cat_b'] = _conv_init(bk[5], C, 2 * C, 1, 1)
        blk['fc_w1'], blk['fc_b1'] = _conv_init(bk[6], hid_fc, C, 3, 3)
        blk['fc_w2'], blk['fc_b2'] = _conv_init(bk[7], C, hid_fc, 1, 1)
        blocks.append(blk)
    p['blocks'] = blocks
    return p


# ----------------------------------------------------------------------------
# Forward pass
# ----------------------------------------------------------------------------
def safmn_forward(params, consts, x_nchw, *, dim, upscaling_factor):
    r = upscaling_factor
    x = x_nchw.astype(jnp.float32)
    B, _, Hin, Win = x.shape
    H, W = Hin // r, Win // r
    C = dim * r

    # --- to_feat: 3x3 conv (Cin=3, tiny host im2col -> one matmul kernel)
    x9 = _im2col_3x3(x)                                            # (27, B*Hin*Win)
    w_flat = params['to_feat_w'].transpose(1, 0, 2).reshape(dim // r, 27)
    f_full = matmul_bias(w_flat, x9, params['to_feat_b'])          # (dim//r, B*Hin*Win)
    f_nchw = _cm_to_nchw(f_full, B, Hin, Win)
    f_cm = _nchw_to_cm(_pixel_unshuffle(f_nchw, r))                # (C, B*H*W)

    # --- AttBlocks: one fused Pallas kernel each
    y = f_cm
    for blk in params['blocks']:
        y = att_block(blk, y, consts, B=B)

    # --- residual + to_img 3x3 conv (fused) + PixelShuffle
    out_cm = to_img_conv(y, f_cm, params['to_img_w'], params['to_img_b'], consts['t9'])
    out_nchw = _cm_to_nchw(out_cm, B, H, W)                        # (B, 3*r*r, H, W)
    return _pixel_shuffle(out_nchw, r)                             # (B, 3, Hin, Win)


# ----------------------------------------------------------------------------
if __name__ == "__main__":
    key = jax.random.PRNGKey(0)
    kp, kx = jax.random.split(key)

    dim, n_blocks, ffn_scale, upscale = 8, 2, 2.0, 2
    params = init_params(kp, dim, n_blocks, ffn_scale, upscale)

    x = jax.random.normal(kx, (2, 3, 16, 16), jnp.float32)         # NCHW like PyTorch

    B, _, Hin, Win = x.shape
    consts = make_constants(B, dim * upscale, Hin // upscale, Win // upscale)

    fwd = jax.jit(functools.partial(safmn_forward, dim=dim, upscaling_factor=upscale))
    out = fwd(params, consts, x)
    jax.block_until_ready(out)
    assert out.shape == (2, 3, 16, 16) and out.dtype == jnp.float32
    print("KERNEL_OK")
</pallas_src>

<mosaic_0001>
module attributes {stable_mosaic.version = 11 : i64} {
  func.func @_matmul_bias_kernel(%arg0: i32, %arg1: memref<4x27xf32, #tpu.memory_space<vmem>>, %arg2: memref<27x512xf32, #tpu.memory_space<vmem>>, %arg3: memref<4x1xf32, #tpu.memory_space<vmem>>, %arg4: memref<4x512xf32, #tpu.memory_space<vmem>>) attributes {dimension_semantics = [#tpu.dimension_semantics<arbitrary>], iteration_bounds = array<i64: 1>, scalar_prefetch = 0 : i64, scratch_operands = 0 : i64, tpu.core_type = #tpu.core_type<tc>, window_params = [{pipeline_mode = #tpu.pipeline_mode<synchronous>, transform_indices = @transform_0, window_bounds = array<i64: 4, 27>}, {pipeline_mode = #tpu.pipeline_mode<synchronous>, transform_indices = @transform_1, window_bounds = array<i64: 27, 512>}, {pipeline_mode = #tpu.pipeline_mode<synchronous>, transform_indices = @transform_2, window_bounds = array<i64: 4, 1>}, {pipeline_mode = #tpu.pipeline_mode<synchronous>, transform_indices = @transform_3, window_bounds = array<i64: 4, 512>}]} {
    %c0 = arith.constant 0 : index
    %c0_0 = arith.constant 0 : index
    %0 = vector.load %arg1[%c0, %c0_0] : memref<4x27xf32, #tpu.memory_space<vmem>>, vector<4x27xf32>
    %c0_1 = arith.constant 0 : index
    %c0_2 = arith.constant 0 : index
    %1 = vector.load %arg2[%c0_1, %c0_2] : memref<27x512xf32, #tpu.memory_space<vmem>>, vector<27x512xf32>
    %cst = arith.constant dense<0.000000e+00> : vector<4x512xf32>
    %2 = tpu.matmul %0, %1, %cst {dimension_numbers = #tpu.dot_dimension_numbers<[1], [0], [0], [1], [0, 0, 1, 1], [], []>} : vector<4x27xf32>, vector<27x512xf32>, vector<4x512xf32> -> vector<4x512xf32>
    %c0_3 = arith.constant 0 : index
    %c0_4 = arith.constant 0 : index
    %3 = vector.load %arg3[%c0_3, %c0_4] : memref<4x1xf32, #tpu.memory_space<vmem>>, vector<4x1xf32>
    %4 = vector.broadcast %3 : vector<4x1xf32> to vector<4x512xf32>
    %5 = arith.addf %2, %4 : vector<4x512xf32>
    %c0_5 = arith.constant 0 : index
    %c0_6 = arith.constant 0 : index
    %6 = vector.load %arg4[%c0_5, %c0_6] : memref<4x512xf32, #tpu.memory_space<vmem>>, vector<4x512xf32>
    tpu.vector_store %arg4[%c0_5, %c0_6], %5 {strides = array<i32>} : memref<4x512xf32, #tpu.memory_space<vmem>>, vector<4x512xf32>,
    return
  }
  func.func @transform_0(%arg0: i32) -> (i32, i32) {
    %c0_i32 = arith.constant 0 : i32
    %c0_i32_0 = arith.constant 0 : i32
    %c0_i32_1 = arith.constant 0 : i32
    return %c0_i32, %c0_i32_0 : i32, i32
  }
  func.func @transform_1(%arg0: i32) -> (i32, i32) {
    %c0_i32 = arith.constant 0 : i32
    %c0_i32_0 = arith.constant 0 : i32
    %c0_i32_1 = arith.constant 0 : i32
    return %c0_i32, %c0_i32_0 : i32, i32
  }
  func.func @transform_2(%arg0: i32) -> (i32, i32) {
    %c0_i32 = arith.constant 0 : i32
    %c0_i32_0 = arith.constant 0 : i32
    %c0_i32_1 = arith.constant 0 : i32
    return %c0_i32, %c0_i32_0 : i32, i32
  }
  func.func @transform_3(%arg0: i32) -> (i32, i32) {
    %c0_i32 = arith.constant 0 : i32
    %c0_i32_0 = arith.constant 0 : i32
    %c0_i32_1 = arith.constant 0 : i32
    return %c0_i32, %c0_i32_0 : i32, i32
  }
}

module attributes {stable_mosaic.version = 11 : i64} {
  func.func @_to_img_kernel(%arg0: i32, %arg1: memref<16x128xf32, #tpu.memory_space<vmem>>, %arg2: memref<16x128xf32, #tpu.memory_space<vmem>>, %arg3: memref<9x12x16xf32, #tpu.memory_space<vmem>>, %arg4: memref<12x1xf32, #tpu.memory_space<vmem>>, %arg5: memref<9x128x128xf32, #tpu.memory_space<vmem>>, %arg6: memref<12x128xf32, #tpu.memory_space<vmem>>) attributes {dimension_semantics = [#tpu.dimension_semantics<arbitrary>], iteration_bounds = array<i64: 1>, scalar_prefetch = 0 : i64, scratch_operands = 0 : i64, tpu.core_type = #tpu.core_type<tc>, window_params = [{pipeline_mode = #tpu.pipeline_mode<synchronous>, transform_indices = @transform_0, window_bounds = array<i64: 16, 128>}, {pipeline_mode = #tpu.pipeline_mode<synchronous>, transform_indices = @transform_1, window_bounds = array<i64: 16, 128>}, {pipeline_mode = #tpu.pipeline_mode<synchronous>, transform_indices = @transform_2, window_bounds = array<i64: 9, 12, 16>}, {pipeline_mode = #tpu.pipeline_mode<synchronous>, transform_indices = @transform_3, window_bounds = array<i64: 12, 1>}, {pipeline_mode = #tpu.pipeline_mode<synchronous>, transform_indices = @transform_4, window_bounds = array<i64: 9, 128, 128>}, {pipeline_mode = #tpu.pipeline_mode<synchronous>, transform_indices = @transform_5, window_bounds = array<i64: 12, 128>}]} {
    %c0 = arith.constant 0 : index
    %c0_0 = arith.constant 0 : index
    %0 = vector.load %arg1[%c0, %c0_0] : memref<16x128xf32, #tpu.memory_space<vmem>>, vector<16x128xf32>
    %c0_1 = arith.constant 0 : index
    %c0_2 = arith.constant 0 : index
    %1 = vector.load %arg2[%c0_1, %c0_2] : memref<16x128xf32, #tpu.memory_space<vmem>>, vector<16x128xf32>
    %2 = arith.addf %0, %1 : vector<16x128xf32>
    %cst = arith.constant 0.000000e+00 : f32
    %3 = vector.broadcast %cst : f32 to vector<12x128xf32>
    %c0_3 = arith.constant 0 : index
    %c0_4 = arith.constant 0 : index
    %c0_5 = arith.constant 0 : index
    %4 = vector.load %arg3[%c0_3, %c0_4, %c0_5] : memref<9x12x16xf32, #tpu.memory_space<vmem>>, vector<1x12x16xf32>
    %5 = vector.shape_cast %4 : vector<1x12x16xf32> to vector<12x16xf32>
    %cst_6 = arith.constant dense<0.000000e+00> : vector<12x128xf32>
    %6 = tpu.matmul %5, %2, %cst_6 {dimension_numbers = #tpu.dot_dimension_numbers<[1], [0], [0], [1], [0, 0, 1, 1], [], []>} : vector<12x16xf32>, vector<16x128xf32>, vector<12x128xf32> -> vector<12x128xf32>
    %c0_7 = arith.constant 0 : index
    %c0_8 = arith.constant 0 : index
    %c0_9 = arith.constant 0 : index
    %7 = vector.load %arg5[%c0_7, %c0_8, %c0_9] : memref<9x128x128xf32, #tpu.memory_space<vmem>>, vector<1x128x128xf32>
    %8 = vector.shape_cast %7 : vector<1x128x128xf32> to vector<128x128xf32>
    %cst_10 = arith.constant dense<0.000000e+00> : vector<12x128xf32>
    %9 = tpu.matmul %6, %8, %cst_10 {dimension_numbers = #tpu.dot_dimension_numbers<[1], [0], [0], [1], [0, 0, 1, 1], [], []>} : vector<12x128xf32>, vector<128x128xf32>, vector<12x128xf32> -> vector<12x128xf32>
    %10 = arith.addf %3, %9 : vector<12x128xf32>
    %c1 = arith.constant 1 : index
    %c0_11 = arith.constant 0 : index
    %c0_12 = arith.constant 0 : index
    %11 = vector.load %arg3[%c1, %c0_11, %c0_12] : memref<9x12x16xf32, #tpu.memory_space<vmem>>, vector<1x12x16xf32>
    %12 = vector.shape_cast %11 : vector<1x12x16xf32> to vector<12x16xf32>
    %cst_13 = arith.constant dense<0.000000e+00> : vector<12x128xf32>
    %13 = tpu.matmul %12, %2, %cst_13 {dimension_numbers = #tpu.dot_dimension_numbers<[1], [0], [0], [1], [0, 0, 1, 1], [], []>} : vector<12x16xf32>, vector<16x128xf32>, vector<12x128xf32> -> vector<12x128xf32>
    %c1_14 = arith.constant 1 : index
    %c0_15 = arith.constant 0 : index
    %c0_16 = arith.constant 0 : index
    %14 = vector.load %arg5[%c1_14, %c0_15, %c0_16] : memref<9x128x128xf32, #tpu.memory_space<vmem>>, vector<1x128x128xf32>
    %15 = vector.shape_cast %14 : vector<1x128x128xf32> to vector<128x128xf32>
    %cst_17 = arith.constant dense<0.000000e+00> : vector<12x128xf32>
    %16 = tpu.matmul %13, %15, %cst_17 {dimension_numbers = #tpu.dot_dimension_numbers<[1], [0], [0], [1], [0, 0, 1, 1], [], []>} : vector<12x128xf32>, vector<128x128xf32>, vector<12x128xf32> -> vector<12x128xf32>
    %17 = arith.addf %10, %16 : vector<12x128xf32>
    %c2 = arith.constant 2 : index
    %c0_18 = arith.constant 0 : index
    %c0_19 = arith.constant 0 : index
    %18 = vector.load %arg3[%c2, %c0_18, %c0_19] : memref<9x12x16xf32, #tpu.memory_space<vmem>>, vector<1x12x16xf32>
    %19 = vector.shape_cast %18 : vector<1x12x16xf32> to vector<12x16xf32>
    %cst_20 = arith.constant dense<0.000000e+00> : vector<12x128xf32>
    %20 = tpu.matmul %19, %2, %cst_20 {dimension_numbers = #tpu.dot_dimension_numbers<[1], [0], [0], [1], [0, 0, 1, 1], [], []>} : vector<12x16xf32>, vector<16x128xf32>, vector<12x128xf32> -> vector<12x128xf32>
    %c2_21 = arith.constant 2 : index
    %c0_22 = arith.constant 0 : index
    %c0_23 = arith.constant 0 : index
    %21 = vector.load %arg5[%c2_21, %c0_22, %c0_23] : memref<9x128x128xf32, #tpu.memory_space<vmem>>, vector<1x128x128xf32>
    %22 = vector.shape_cast %21 : vector<1x128x128xf32> to vector<128x128xf32>
    %cst_24 = arith.constant dense<0.000000e+00> : vector<12x128xf32>
    %23 = tpu.matmul %20, %22, %cst_24 {dimension_numbers = #tpu.dot_dimension_numbers<[1], [0], [0], [1], [0, 0, 1, 1], [], []>} : vector<12x128xf32>, vector<128x128xf32>, vector<12x128xf32> -> vector<12x128xf32>
    %24 = arith.addf %17, %23 : vector<12x128xf32>
    %c3 = arith.constant 3 : index
    %c0_25 = arith.constant 0 : index
    %c0_26 = arith.constant 0 : index
    %25 = vector.load %arg3[%c3, %c0_25, %c0_26] : memref<9x12x16xf32, #tpu.memory_space<vmem>>, vector<1x12x16xf32>
    %26 = vector.shape_cast %25 : vector<1x12x16xf32> to vector<12x16xf32>
    %cst_27 = arith.constant dense<0.000000e+00> : vector<12x128xf32>
    %27 = tpu.matmul %26, %2, %cst_27 {dimension_numbers = #tpu.dot_dimension_numbers<[1], [0], [0], [1], [0, 0, 1, 1], [], []>} : vector<12x16xf32>, vector<16x128xf32>, vector<12x128xf32> -> vector<12x128xf32>
    %c3_28 = arith.constant 3 : index
    %c0_29 = arith.constant 0 : index
    %c0_30 = arith.constant 0 : index
    %28 = vector.load %arg5[%c3_28, %c0_29, %c0_30] : memref<9x128x128xf32, #tpu.memory_space<vmem>>, vector<1x128x128xf32>
    %29 = vector.shape_cast %28 : vector<1x128x128xf32> to vector<128x128xf32>
    %cst_31 = arith.constant dense<0.000000e+00> : vector<12x128xf32>
    %30 = tpu.matmul %27, %29, %cst_31 {dimension_numbers = #tpu.dot_dimension_numbers<[1], [0], [0], [1], [0, 0, 1, 1], [], []>} : vector<12x128xf32>, vector<128x128xf32>, vector<12x128xf32> -> vector<12x128xf32>
    %31 = arith.addf %24, %30 : vector<12x128xf32>
    %c4 = arith.constant 4 : index
    %c0_32 = arith.constant 0 : index
    %c0_33 = arith.constant 0 : index
    %32 = vector.load %arg3[%c4, %c0_32, %c0_33] : memref<9x12x16xf32, #tpu.memory_space<vmem>>, vector<1x12x16xf32>
    %33 = vector.shape_cast %32 : vector<1x12x16xf32> to vector<12x16xf32>
    %cst_34 = arith.constant dense<0.000000e+00> : vector<12x128xf32>
    %34 = tpu.matmul %33, %2, %cst_34 {dimension_numbers = #tpu.dot_dimension_numbers<[1], [0], [0], [1], [0, 0, 1, 1], [], []>} : vector<12x16xf32>, vector<16x128xf32>, vector<12x128xf32> -> vector<12x128xf32>
    %c4_35 = arith.constant 4 : index
    %c0_36 = arith.constant 0 : index
    %c0_37 = arith.constant 0 : index
    %35 = vector.load %arg5[%c4_35, %c0_36, %c0_37] : memref<9x128x128xf32, #tpu.memory_space<vmem>>, vector<1x128x128xf32>
    %36 = vector.shape_cast %35 : vector<1x128x128xf32> to vector<128x128xf32>
    %cst_38 = arith.constant dense<0.000000e+00> : vector<12x128xf32>
    %37 = tpu.matmul %34, %36, %cst_38 {dimension_numbers = #tpu.dot_dimension_numbers<[1], [0], [0], [1], [0, 0, 1, 1], [], []>} : vector<12x128xf32>, vector<128x128xf32>, vector<12x128xf32> -> vector<12x128xf32>
    %38 = arith.addf %31, %37 : vector<12x128xf32>
    %c5 = arith.constant 5 : index
    %c0_39 = arith.constant 0 : index
    %c0_40 = arith.constant 0 : index
    %39 = vector.load %arg3[%c5, %c0_39, %c0_40] : memref<9x12x16xf32, #tpu.memory_space<vmem>>, vector<1x12x16xf32>
    %40 = vector.shape_cast %39 : vector<1x12x16xf32> to vector<12x16xf32>
    %cst_41 = arith.constant dense<0.000000e+00> : vector<12x128xf32>
    %41 = tpu.matmul %40, %2, %cst_41 {dimension_numbers = #tpu.dot_dimension_numbers<[1], [0], [0], [1], [0, 0, 1, 1], [], []>} : vector<12x16xf32>, vector<16x128xf32>, vector<12x128xf32> -> vector<12x128xf32>
    %c5_42 = arith.constant 5 : index
    %c0_43 = arith.constant 0 : index
    %c0_44 = arith.constant 0 : index
    %42 = vector.load %arg5[%c5_42, %c0_43, %c0_44] : memref<9x128x128xf32, #tpu.memory_space<vmem>>, vector<1x128x128xf32>
    %43 = vector.shape_cast %42 : vector<1x128x128xf32> to vector<128x128xf32>
    %cst_45 = arith.constant dense<0.000000e+00> : vector<12x128xf32>
    %44 = tpu.matmul %41, %43, %cst_45 {dimension_numbers = #tpu.dot_dimension_numbers<[1], [0], [0], [1], [0, 0, 1, 1], [], []>} : vector<12x128xf32>, vector<128x128xf32>, vector<12x128xf32> -> vector<12x128xf32>
    %45 = arith.addf %38, %44 : vector<12x128xf32>
    %c6 = arith.constant 6 : index
    %c0_46 = arith.constant 0 : index
    %c0_47 = arith.constant 0 : index
    %46 = vector.load %arg3[%c6, %c0_46, %c0_47] : memref<9x12x16xf32, #tpu.memory_space<vmem>>, vector<1x12x16xf32>
    %47 = vector.shape_cast %46 : vector<1x12x16xf32> to vector<12x16xf32>
    %cst_48 = arith.constant dense<0.000000e+00> : vector<12x128xf32>
    %48 = tpu.matmul %47, %2, %cst_48 {dimension_numbers = #tpu.dot_dimension_numbers<[1], [0], [0], [1], [0, 0, 1, 1], [], []>} : vector<12x16xf32>, vector<16x128xf32>, vector<12x128xf32> -> vector<12x128xf32>
    %c6_49 = arith.constant 6 : index
    %c0_50 = arith.constant 0 : index
    %c0_51 = arith.constant 0 : index
    %49 = vector.load %arg5[%c6_49, %c0_50, %c0_51] : memref<9x128x128xf32, #tpu.memory_space<vmem>>, vector<1x128x128xf32>
    %50 = vector.shape_cast %49 : vector<1x128x128xf32> to vector<128x128xf32>
    %cst_52 = arith.constant dense<0.000000e+00> : vector<12x128xf32>
    %51 = tpu.matmul %48, %50, %cst_52 {dimension_numbers = #tpu.dot_dimension_numbers<[1], [0], [0], [1], [0, 0, 1, 1], [], []>} : vector<12x128xf32>, vector<128x128xf32>, vector<12x128xf32> -> vector<12x128xf32>
    %52 = arith.addf %45, %51 : vector<12x128xf32>
    %c7 = arith.constant 7 : index
    %c0_53 = arith.constant 0 : index
    %c0_54 = arith.constant 0 : index
    %53 = vector.load %arg3[%c7, %c0_53, %c0_54] : memref<9x12x16xf32, #tpu.memory_space<vmem>>, vector<1x12x16xf32>
    %54 = vector.shape_cast %53 : vector<1x12x16xf32> to vector<12x16xf32>
    %cst_55 = arith.constant dense<0.000000e+00> : vector<12x128xf32>
    %55 = tpu.matmul %54, %2, %cst_55 {dimension_numbers = #tpu.dot_dimension_numbers<[1], [0], [0], [1], [0, 0, 1, 1], [], []>} : vector<12x16xf32>, vector<16x128xf32>, vector<12x128xf32> -> vector<12x128xf32>
    %c7_56 = arith.constant 7 : index
    %c0_57 = arith.constant 0 : index
    %c0_58 = arith.constant 0 : index
    %56 = vector.load %arg5[%c7_56, %c0_57, %c0_58] : memref<9x128x128xf32, #tpu.memory_space<vmem>>, vector<1x128x128xf32>
    %57 = vector.shape_cast %56 : vector<1x128x128xf32> to vector<128x128xf32>
    %cst_59 = arith.constant dense<0.000000e+00> : vector<12x128xf32>
    %58 = tpu.matmul %55, %57, %cst_59 {dimension_numbers = #tpu.dot_dimension_numbers<[1], [0], [0], [1], [0, 0, 1, 1], [], []>} : vector<12x128xf32>, vector<128x128xf32>, vector<12x128xf32> -> vector<12x128xf32>
    %59 = arith.addf %52, %58 : vector<12x128xf32>
    %c8 = arith.constant 8 : index
    %c0_60 = arith.constant 0 : index
    %c0_61 = arith.constant 0 : index
    %60 = vector.load %arg3[%c8, %c0_60, %c0_61] : memref<9x12x16xf32, #tpu.memory_space<vmem>>, vector<1x12x16xf32>
    %61 = vector.shape_cast %60 : vector<1x12x16xf32> to vector<12x16xf32>
    %cst_62 = arith.constant dense<0.000000e+00> : vector<12x128xf32>
    %62 = tpu.matmul %61, %2, %cst_62 {dimension_numbers = #tpu.dot_dimension_numbers<[1], [0], [0], [1], [0, 0, 1, 1], [], []>} : vector<12x16xf32>, vector<16x128xf32>, vector<12x128xf32> -> vector<12x128xf32>
    %c8_63 = arith.constant 8 : index
    %c0_64 = arith.constant 0 : index
    %c0_65 = arith.constant 0 : index
    %63 = vector.load %arg5[%c8_63, %c0_64, %c0_65] : memref<9x128x128xf32, #tpu.memory_space<vmem>>, vector<1x128x128xf32>
    %64 = vector.shape_cast %63 : vector<1x128x128xf32> to vector<128x128xf32>
    %cst_66 = arith.constant dense<0.000000e+00> : vector<12x128xf32>
    %65 = tpu.matmul %62, %64, %cst_66 {dimension_numbers = #tpu.dot_dimension_numbers<[1], [0], [0], [1], [0, 0, 1, 1], [], []>} : vector<12x128xf32>, vector<128x128xf32>, vector<12x128xf32> -> vector<12x128xf32>
    %66 = arith.addf %59, %65 : vector<12x128xf32>
    %c0_67 = arith.constant 0 : index
    %c0_68 = arith.constant 0 : index
    %67 = vector.load %arg4[%c0_67, %c0_68] : memref<12x1xf32, #tpu.memory_space<vmem>>, vector<12x1xf32>
    %68 = vector.broadcast %67 : vector<12x1xf32> to vector<12x128xf32>
    %69 = arith.addf %66, %68 : vector<12x128xf32>
    %c0_69 = arith.constant 0 : index
    %c0_70 = arith.constant 0 : index
    %70 = vector.load %arg6[%c0_69, %c0_70] : memref<12x128xf32, #tpu.memory_space<vmem>>, vector<12x128xf32>
    tpu.vector_store %arg6[%c0_69, %c0_70], %69 {strides = array<i32>} : memref<12x128xf32, #tpu.memory_space<vmem>>, vector<12x128xf32>,
    return
  }
  func.func @transform_0(%arg0: i32) -> (i32, i32) {
    %c0_i32 = arith.constant 0 : i32
    %c0_i32_0 = arith.constant 0 : i32
    %c0_i32_1 = arith.constant 0 : i32
    return %c0_i32, %c0_i32_0 : i32, i32
  }
  func.func @transform_1(%arg0: i32) -> (i32, i32) {
    %c0_i32 = arith.constant 0 : i32
    %c0_i32_0 = arith.constant 0 : i32
    %c0_i32_1 = arith.constant 0 : i32
    return %c0_i32, %c0_i32_0 : i32, i32
  }
  func.func @transform_2(%arg0: i32) -> (i32, i32, i32) {
    %c0_i32 = arith.constant 0 : i32
    %c0_i32_0 = arith.constant 0 : i32
    %c0_i32_1 = arith.constant 0 : i32
    %c0_i32_2 = arith.constant 0 : i32
    return %c0_i32, %c0_i32_0, %c0_i32_1 : i32, i32, i32
  }
  func.func @transform_3(%arg0: i32) -> (i32, i32) {
    %c0_i32 = arith.constant 0 : i32
    %c0_i32_0 = arith.constant 0 : i32
    %c0_i32_1 = arith.constant 0 : i32
    return %c0_i32, %c0_i32_0 : i32, i32
  }
  func.func @transform_4(%arg0: i32) -> (i32, i32, i32) {
    %c0_i32 = arith.constant 0 : i32
    %c0_i32_0 = arith.constant 0 : i32
    %c0_i32_1 = arith.constant 0 : i32
    %c0_i32_2 = arith.constant 0 : i32
    return %c0_i32, %c0_i32_0, %c0_i32_1 : i32, i32, i32
  }
  func.func @transform_5(%arg0: i32) -> (i32, i32) {
    %c0_i32 = arith.constant 0 : i32
    %c0_i32_0 = arith.constant 0 : i32
    %c0_i32_1 = arith.constant 0 : i32
    return %c0_i32, %c0_i32_0 : i32, i32
  }
}

module attributes {stable_mosaic.version = 11 : i64} {
  func.func @_att_block_kernel(%arg0: i32, %arg1: memref<16x128xf32, #tpu.memory_space<vmem>>, %arg2: memref<16x1xf32, #tpu.memory_space<vmem>>, %arg3: memref<16x1xf32, #tpu.memory_space<vmem>>, %arg4: memref<8x16xf32, #tpu.memory_space<vmem>>, %arg5: memref<8x1xf32, #tpu.memory_space<vmem>>, %arg6: memref<16x8xf32, #tpu.memory_space<vmem>>, %arg7: memref<16x1xf32, #tpu.memory_space<vmem>>, %arg8: memref<16x16xf32, #tpu.memory_space<vmem>>, %arg9: memref<16x1xf32, #tpu.memory_space<vmem>>, %arg10: memref<16x16xf32, #tpu.memory_space<vmem>>, %arg11: memref<16x1xf32, #tpu.memory_space<vmem>>, %arg12: memref<512x512xf32, #tpu.memory_space<vmem>>, %arg13: memref<1x512xf32, #tpu.memory_space<vmem>>, %arg14: memref<16x16xf32, #tpu.memory_space<vmem>>, %arg15: memref<16x16xf32, #tpu.memory_space<vmem>>, %arg16: memref<16x1xf32, #tpu.memory_space<vmem>>, %arg17: memref<16x1xf32, #tpu.memory_space<vmem>>, %arg18: memref<16x1xf32, #tpu.memory_space<vmem>>, %arg19: memref<9x32x16xf32, #tpu.memory_space<vmem>>, %arg20: memref<32x1xf32, #tpu.memory_space<vmem>>, %arg21: memref<16x32xf32, #tpu.memory_space<vmem>>, %arg22: memref<16x1xf32, #tpu.memory_space<vmem>>, %arg23: memref<128x2xf32, #tpu.memory_space<vmem>>, %arg24: memref<2x128xf32, #tpu.memory_space<vmem>>, %arg25: memref<128x512xf32, #tpu.memory_space<vmem>>, %arg26: memref<512x128xf32, #tpu.memory_space<vmem>>, %arg27: memref<9x128x128xf32, #tpu.memory_space<vmem>>, %arg28: memref<16x128xf32, #tpu.memory_space<vmem>>) attributes {dimension_semantics = [#tpu.dimension_semantics<arbitrary>], iteration_bounds = array<i64: 1>, scalar_prefetch = 0 : i64, scratch_operands = 0 : i64, tpu.core_type = #tpu.core_type<tc>, window_params = [{pipeline_mode = #tpu.pipeline_mode<synchronous>, transform_indices = @transform_0, window_bounds = array<i64: 16, 128>}, {pipeline_mode = #tpu.pipeline_mode<synchronous>, transform_indices = @transform_1, window_bounds = array<i64: 16, 1>}, {pipeline_mode = #tpu.pipeline_mode<synchronous>, transform_indices = @transform_2, window_bounds = array<i64: 16, 1>}, {pipeline_mode = #tpu.pipeline_mode<synchronous>, transform_indices = @transform_3, window_bounds = array<i64: 8, 16>}, {pipeline_mode = #tpu.pipeline_mode<synchronous>, transform_indices = @transform_4, window_bounds = array<i64: 8, 1>}, {pipeline_mode = #tpu.pipeline_mode<synchronous>, transform_indices = @transform_5, window_bounds = array<i64: 16, 8>}, {pipeline_mode = #tpu.pipeline_mode<synchronous>, transform_indices = @transform_6, window_bounds = array<i64: 16, 1>}, {pipeline_mode = #tpu.pipeline_mode<synchronous>, transform_indices = @transform_7, window_bounds = array<i64: 16, 16>}, {pipeline_mode = #tpu.pipeline_mode<synchronous>, transform_indices = @transform_8, window_bounds = array<i64: 16, 1>}, {pipeline_mode = #tpu.pipeline_mode<synchronous>, transform_indices = @transform_9, window_bounds = array<i64: 16, 16>}, {pipeline_mode = #tpu.pipeline_mode<synchronous>, transform_indices = @transform_10, window_bounds = array<i64: 16, 1>}, {pipeline_mode = #tpu.pipeline_mode<synchronous>, transform_indices = @transform_11, window_bounds = array<i64: 512, 512>}, {pipeline_mode = #tpu.pipeline_mode<synchronous>, transform_indices = @transform_12, window_bounds = array<i64: 1, 512>}, {pipeline_mode = #tpu.pipeline_mode<synchronous>, transform_indices = @transform_13, window_bounds = array<i64: 16, 16>}, {pipeline_mode = #tpu.pipeline_mode<synchronous>, transform_indices = @transform_14, window_bounds = array<i64: 16, 16>}, {pipeline_mode = #tpu.pipeline_mode<synchronous>, transform_indices = @transform_15, window_bounds = array<i64: 16, 1>}, {pipeline_mode = #tpu.pipeline_mode<synchronous>, transform_indices = @transform_16, window_bounds = array<i64: 16, 1>}, {pipeline_mode = #tpu.pipeline_mode<synchronous>, transform_indices = @transform_17, window_bounds = array<i64: 16, 1>}, {pipeline_mode = #tpu.pipeline_mode<synchronous>, transform_indices = @transform_18, window_bounds = array<i64: 9, 32, 16>}, {pipeline_mode = #tpu.pipeline_mode<synchronous>, transform_indices = @transform_19, window_bounds = array<i64: 32, 1>}, {pipeline_mode = #tpu.pipeline_mode<synchronous>, transform_indices = @transform_20, window_bounds = array<i64: 16, 32>}, {pipeline_mode = #tpu.pipeline_mode<synchronous>, transform_indices = @transform_21, window_bounds = array<i64: 16, 1>}, {pipeline_mode = #tpu.pipeline_mode<synchronous>, transform_indices = @transform_22, window_bounds = array<i64: 128, 2>}, {pipeline_mode = #tpu.pipeline_mode<synchronous>, transform_indices = @transform_23, window_bounds = array<i64: 2, 128>}, {pipeline_mode = #tpu.pipeline_mode<synchronous>, transform_indices = @transform_24, window_bounds = array<i64: 128, 512>}, {pipeline_mode = #tpu.pipeline_mode<synchronous>, transform_indices = @transform_25, window_bounds = array<i64: 512, 128>}, {pipeline_mode = #tpu.pipeline_mode<synchronous>, transform_indices = @transform_26, window_bounds = array<i64: 9, 128, 128>}, {pipeline_mode = #tpu.pipeline_mode<synchronous>, transform_indices = @transform_27, window_bounds = array<i64: 16, 128>}]} {
    %c0 = arith.constant 0 : index
    %c0_0 = arith.constant 0 : index
    %0 = vector.load %arg1[%c0, %c0_0] : memref<16x128xf32, #tpu.memory_space<vmem>>, vector<16x128xf32>
    %c0_1 = arith.constant 0 : index
    %c0_2 = arith.constant 0 : index
    %1 = vector.load %arg2[%c0_1, %c0_2] : memref<16x1xf32, #tpu.memory_space<vmem>>, vector<16x1xf32>
    %c0_3 = arith.constant 0 : index
    %c0_4 = arith.constant 0 : index
    %2 = vector.load %arg3[%c0_3, %c0_4] : memref<16x1xf32, #tpu.memory_space<vmem>>, vector<16x1xf32>
    %cst = arith.constant 6.250000e-02 : f32
    %3 = vector.broadcast %cst : f32 to vector<1x16xf32>
    %cst_5 = arith.constant dense<0.000000e+00> : vector<1x128xf32>
    %4 = tpu.matmul %3, %0, %cst_5 {dimension_numbers = #tpu.dot_dimension_numbers<[1], [0], [0], [1], [0, 0, 1, 1], [], []>} : vector<1x16xf32>, vector<16x128xf32>, vector<1x128xf32> -> vector<1x128xf32>
    %5 = vector.broadcast %4 : vector<1x128xf32> to vector<16x128xf32>
    %6 = arith.subf %0, %5 : vector<16x128xf32>
    %7 = arith.mulf %6, %6 : vector<16x128xf32>
    %cst_6 = arith.constant dense<0.000000e+00> : vector<1x128xf32>
    %8 = tpu.matmul %3, %7, %cst_6 {dimension_numbers = #tpu.dot_dimension_numbers<[1], [0], [0], [1], [0, 0, 1, 1], [], []>} : vector<1x16xf32>, vector<16x128xf32>, vector<1x128xf32> -> vector<1x128xf32>
    %cst_7 = arith.constant 9.99999997E-7 : f32
    %9 = vector.broadcast %cst_7 : f32 to vector<1x128xf32>
    %10 = arith.addf %8, %9 : vector<1x128xf32>
    %11 = math.rsqrt %10 : vector<1x128xf32>
    %12 = vector.broadcast %11 : vector<1x128xf32> to vector<16x128xf32>
    %13 = arith.mulf %6, %12 : vector<16x128xf32>
    %14 = vector.broadcast %1 : vector<16x1xf32> to vector<16x128xf32>
    %15 = arith.mulf %13, %14 : vector<16x128xf32>
    %16 = vector.broadcast %2 : vector<16x1xf32> to vector<16x128xf32>
    %17 = arith.addf %15, %16 : vector<16x128xf32>
    %c0_8 = arith.constant 0 : index
    %c0_9 = arith.constant 0 : index
    %18 = vector.load %arg23[%c0_8, %c0_9] : memref<128x2xf32, #tpu.memory_space<vmem>>, vector<128x2xf32>
    %cst_10 = arith.constant dense<0.000000e+00> : vector<16x2xf32>
    %19 = tpu.matmul %17, %18, %cst_10 {dimension_numbers = #tpu.dot_dimension_numbers<[1], [0], [0], [1], [0, 0, 1, 1], [], []>} : vector<16x128xf32>, vector<128x2xf32>, vector<16x2xf32> -> vector<16x2xf32>
    %c0_11 = arith.constant 0 : index
    %c0_12 = arith.constant 0 : index
    %20 = vector.load %arg4[%c0_11, %c0_12] : memref<8x16xf32, #tpu.memory_space<vmem>>, vector<8x16xf32>
    %cst_13 = arith.constant dense<0.000000e+00> : vector<8x2xf32>
    %21 = tpu.matmul %20, %19, %cst_13 {dimension_numbers = #tpu.dot_dimension_numbers<[1], [0], [0], [1], [0, 0, 1, 1], [], []>} : vector<8x16xf32>, vector<16x2xf32>, vector<8x2xf32> -> vector<8x2xf32>
    %c0_14 = arith.constant 0 : index
    %c0_15 = arith.constant 0 : index
    %22 = vector.load %arg5[%c0_14, %c0_15] : memref<8x1xf32, #tpu.memory_space<vmem>>, vector<8x1xf32>
    %23 = vector.broadcast %22 : vector<8x1xf32> to vector<8x2xf32>
    %24 = arith.addf %21, %23 : vector<8x2xf32>
    %cst_16 = arith.constant 0.000000e+00 : f32
    %25 = vector.broadcast %cst_16 : f32 to vector<8x2xf32>
    %26 = arith.maximumf %24, %25 : vector<8x2xf32>
    %c0_17 = arith.constant 0 : index
    %c0_18 = arith.constant 0 : index
    %27 = vector.load %arg6[%c0_17, %c0_18] : memref<16x8xf32, #tpu.memory_space<vmem>>, vector<16x8xf32>
    %cst_19 = arith.constant dense<0.000000e+00> : vector<16x2xf32>
    %28 = tpu.matmul %27, %26, %cst_19 {dimension_numbers = #tpu.dot_dimension_numbers<[1], [0], [0], [1], [0, 0, 1, 1], [], []>} : vector<16x8xf32>, vector<8x2xf32>, vector<16x2xf32> -> vector<16x2xf32>
    %c0_20 = arith.constant 0 : index
    %c0_21 = arith.constant 0 : index
    %29 = vector.load %arg7[%c0_20, %c0_21] : memref<16x1xf32, #tpu.memory_space<vmem>>, vector<16x1xf32>
    %30 = vector.broadcast %29 : vector<16x1xf32> to vector<16x2xf32>
    %31 = arith.addf %28, %30 : vector<16x2xf32>
    %cst_22 = arith.constant 0.000000e+00 : f32
    %32 = vector.broadcast %cst_22 : f32 to vector<16x2xf32>
    %33 = arith.subf %32, %31 : vector<16x2xf32>
    %34 = math.exp %33 : vector<16x2xf32>
    %cst_23 = arith.constant 1.000000e+00 : f32
    %35 = vector.broadcast %cst_23 : f32 to vector<16x2xf32>
    %36 = arith.addf %35, %34 : vector<16x2xf32>
    %cst_24 = arith.constant 1.000000e+00 : f32
    %37 = vector.broadcast %cst_24 : f32 to vector<16x2xf32>
    %38 = arith.divf %37, %36 : vector<16x2xf32>
    %c0_25 = arith.constant 0 : index
    %c0_26 = arith.constant 0 : index
    %39 = vector.load %arg24[%c0_25, %c0_26] : memref<2x128xf32, #tpu.memory_space<vmem>>, vector<2x128xf32>
    %cst_27 = arith.constant dense<0.000000e+00> : vector<16x128xf32>
    %40 = tpu.matmul %38, %39, %cst_27 {dimension_numbers = #tpu.dot_dimension_numbers<[1], [0], [0], [1], [0, 0, 1, 1], [], []>} : vector<16x2xf32>, vector<2x128xf32>, vector<16x128xf32> -> vector<16x128xf32>
    %41 = arith.mulf %17, %40 : vector<16x128xf32>
    %c0_28 = arith.constant 0 : index
    %c0_29 = arith.constant 0 : index
    %42 = vector.load %arg25[%c0_28, %c0_29] : memref<128x512xf32, #tpu.memory_space<vmem>>, vector<128x512xf32>
    %cst_30 = arith.constant dense<0.000000e+00> : vector<16x512xf32>
    %43 = tpu.matmul %17, %42, %cst_30 {dimension_numbers = #tpu.dot_dimension_numbers<[1], [0], [0], [1], [0, 0, 1, 1], [], []>} : vector<16x128xf32>, vector<128x512xf32>, vector<16x512xf32> -> vector<16x512xf32>
    %c0_31 = arith.constant 0 : index
    %c0_32 = arith.constant 0 : index
    %44 = vector.load %arg8[%c0_31, %c0_32] : memref<16x16xf32, #tpu.memory_space<vmem>>, vector<16x16xf32>
    %cst_33 = arith.constant dense<0.000000e+00> : vector<16x512xf32>
    %45 = tpu.matmul %44, %43, %cst_33 {dimension_numbers = #tpu.dot_dimension_numbers<[1], [0], [0], [1], [0, 0, 1, 1], [], []>} : vector<16x16xf32>, vector<16x512xf32>, vector<16x512xf32> -> vector<16x512xf32>
    %c0_34 = arith.constant 0 : index
    %c0_35 = arith.constant 0 : index
    %46 = vector.load %arg9[%c0_34, %c0_35] : memref<16x1xf32, #tpu.memory_space<vmem>>, vector<16x1xf32>
    %47 = vector.broadcast %46 : vector<16x1xf32> to vector<16x512xf32>
    %48 = arith.addf %45, %47 : vector<16x512xf32>
    %cst_36 = arith.constant 5.000000e-01 : f32
    %49 = vector.broadcast %cst_36 : f32 to vector<16x512xf32>
    %50 = arith.mulf %49, %48 : vector<16x512xf32>
    %cst_37 = arith.constant 0.707106769 : f32
    %51 = vector.broadcast %cst_37 : f32 to vector<16x512xf32>
    %52 = arith.mulf %48, %51 : vector<16x512xf32>
    %cst_38 = arith.constant 0.000000e+00 : f32
    %53 = vector.broadcast %cst_38 : f32 to vector<16x512xf32>
    %54 = arith.cmpf oge, %52, %53 : vector<16x512xf32>
    %cst_39 = arith.constant 1.000000e+00 : f32
    %cst_40 = arith.constant -1.000000e+00 : f32
    %55 = vector.broadcast %cst_39 : f32 to vector<16x512xf32>
    %56 = vector.broadcast %cst_40 : f32 to vector<16x512xf32>
    %57 = arith.select %54, %55, %56 : vector<16x512xi1>, vector<16x512xf32>
    %58 = math.absf %52 : vector<16x512xf32>
    %cst_41 = arith.constant 0.327591091 : f32
    %59 = vector.broadcast %cst_41 : f32 to vector<16x512xf32>
    %60 = arith.mulf %59, %58 : vector<16x512xf32>
    %cst_42 = arith.constant 1.000000e+00 : f32
    %61 = vector.broadcast %cst_42 : f32 to vector<16x512xf32>
    %62 = arith.addf %61, %60 : vector<16x512xf32>
    %cst_43 = arith.constant 1.000000e+00 : f32
    %63 = vector.broadcast %cst_43 : f32 to vector<16x512xf32>
    %64 = arith.divf %63, %62 : vector<16x512xf32>
    %cst_44 = arith.constant 1.06140542 : f32
    %65 = vector.broadcast %cst_44 : f32 to vector<16x512xf32>
    %66 = arith.mulf %65, %64 : vector<16x512xf32>
    %cst_45 = arith.constant -1.45315206 : f32
    %67 = vector.broadcast %cst_45 : f32 to vector<16x512xf32>
    %68 = arith.addf %66, %67 : vector<16x512xf32>
    %69 = arith.mulf %68, %64 : vector<16x512xf32>
    %cst_46 = arith.constant 1.42141378 : f32
    %70 = vector.broadcast %cst_46 : f32 to vector<16x512xf32>
    %71 = arith.addf %69, %70 : vector<16x512xf32>
    %72 = arith.mulf %71, %64 : vector<16x512xf32>
    %cst_47 = arith.constant -0.284496725 : f32
    %73 = vector.broadcast %cst_47 : f32 to vector<16x512xf32>
    %74 = arith.addf %72, %73 : vector<16x512xf32>
    %75 = arith.mulf %74, %64 : vector<16x512xf32>
    %cst_48 = arith.constant 0.254829586 : f32
    %76 = vector.broadcast %cst_48 : f32 to vector<16x512xf32>
    %77 = arith.addf %75, %76 : vector<16x512xf32>
    %78 = arith.mulf %77, %64 : vector<16x512xf32>
    %cst_49 = arith.constant 0.000000e+00 : f32
    %79 = vector.broadcast %cst_49 : f32 to vector<16x512xf32>
    %80 = arith.subf %79, %58 : vector<16x512xf32>
    %81 = arith.mulf %80, %58 : vector<16x512xf32>
    %82 = math.exp %81 : vector<16x512xf32>
    %83 = arith.mulf %78, %82 : vector<16x512xf32>
    %cst_50 = arith.constant 1.000000e+00 : f32
    %84 = vector.broadcast %cst_50 : f32 to vector<16x512xf32>
    %85 = arith.subf %84, %83 : vector<16x512xf32>
    %86 = arith.mulf %57, %85 : vector<16x512xf32>
    %cst_51 = arith.constant 1.000000e+00 : f32
    %87 = vector.broadcast %cst_51 : f32 to vector<16x512xf32>
    %88 = arith.addf %87, %86 : vector<16x512xf32>
    %89 = arith.mulf %50, %88 : vector<16x512xf32>
    %c0_52 = arith.constant 0 : index
    %c0_53 = arith.constant 0 : index
    %90 = vector.load %arg10[%c0_52, %c0_53] : memref<16x16xf32, #tpu.memory_space<vmem>>, vector<16x16xf32>
    %cst_54 = arith.constant dense<0.000000e+00> : vector<16x512xf32>
    %91 = tpu.matmul %90, %89, %cst_54 {dimension_numbers = #tpu.dot_dimension_numbers<[1], [0], [0], [1], [0, 0, 1, 1], [], []>} : vector<16x16xf32>, vector<16x512xf32>, vector<16x512xf32> -> vector<16x512xf32>
    %c0_55 = arith.constant 0 : index
    %c0_56 = arith.constant 0 : index
    %92 = vector.load %arg11[%c0_55, %c0_56] : memref<16x1xf32, #tpu.memory_space<vmem>>, vector<16x1xf32>
    %93 = vector.broadcast %92 : vector<16x1xf32> to vector<16x512xf32>
    %94 = arith.addf %91, %93 : vector<16x512xf32>
    %cst_57 = arith.constant 5.000000e-01 : f32
    %95 = vector.broadcast %cst_57 : f32 to vector<16x512xf32>
    %96 = arith.mulf %95, %94 : vector<16x512xf32>
    %cst_58 = arith.constant 0.707106769 : f32
    %97 = vector.broadcast %cst_58 : f32 to vector<16x512xf32>
    %98 = arith.mulf %94, %97 : vector<16x512xf32>
    %cst_59 = arith.constant 0.000000e+00 : f32
    %99 = vector.broadcast %cst_59 : f32 to vector<16x512xf32>
    %100 = arith.cmpf oge, %98, %99 : vector<16x512xf32>
    %cst_60 = arith.constant 1.000000e+00 : f32
    %cst_61 = arith.constant -1.000000e+00 : f32
    %101 = vector.broadcast %cst_60 : f32 to vector<16x512xf32>
    %102 = vector.broadcast %cst_61 : f32 to vector<16x512xf32>
    %103 = arith.select %100, %101, %102 : vector<16x512xi1>, vector<16x512xf32>
    %104 = math.absf %98 : vector<16x512xf32>
    %cst_62 = arith.constant 0.327591091 : f32
    %105 = vector.broadcast %cst_62 : f32 to vector<16x512xf32>
    %106 = arith.mulf %105, %104 : vector<16x512xf32>
    %cst_63 = arith.constant 1.000000e+00 : f32
    %107 = vector.broadcast %cst_63 : f32 to vector<16x512xf32>
    %108 = arith.addf %107, %106 : vector<16x512xf32>
    %cst_64 = arith.constant 1.000000e+00 : f32
    %109 = vector.broadcast %cst_64 : f32 to vector<16x512xf32>
    %110 = arith.divf %109, %108 : vector<16x512xf32>
    %cst_65 = arith.constant 1.06140542 : f32
    %111 = vector.broadcast %cst_65 : f32 to vector<16x512xf32>
    %112 = arith.mulf %111, %110 : vector<16x512xf32>
    %cst_66 = arith.constant -1.45315206 : f32
    %113 = vector.broadcast %cst_66 : f32 to vector<16x512xf32>
    %114 = arith.addf %112, %113 : vector<16x512xf32>
    %115 = arith.mulf %114, %110 : vector<16x512xf32>
    %cst_67 = arith.constant 1.42141378 : f32
    %116 = vector.broadcast %cst_67 : f32 to vector<16x512xf32>
    %117 = arith.addf %115, %116 : vector<16x512xf32>
    %118 = arith.mulf %117, %110 : vector<16x512xf32>
    %cst_68 = arith.constant -0.284496725 : f32
    %119 = vector.broadcast %cst_68 : f32 to vector<16x512xf32>
    %120 = arith.addf %118, %119 : vector<16x512xf32>
    %121 = arith.mulf %120, %110 : vector<16x512xf32>
    %cst_69 = arith.constant 0.254829586 : f32
    %122 = vector.broadcast %cst_69 : f32 to vector<16x512xf32>
    %123 = arith.addf %121, %122 : vector<16x512xf32>
    %124 = arith.mulf %123, %110 : vector<16x512xf32>
    %cst_70 = arith.constant 0.000000e+00 : f32
    %125 = vector.broadcast %cst_70 : f32 to vector<16x512xf32>
    %126 = arith.subf %125, %104 : vector<16x512xf32>
    %127 = arith.mulf %126, %104 : vector<16x512xf32>
    %128 = math.exp %127 : vector<16x512xf32>
    %129 = arith.mulf %124, %128 : vector<16x512xf32>
    %cst_71 = arith.constant 1.000000e+00 : f32
    %130 = vector.broadcast %cst_71 : f32 to vector<16x512xf32>
    %131 = arith.subf %130, %129 : vector<16x512xf32>
    %132 = arith.mulf %103, %131 : vector<16x512xf32>
    %cst_72 = arith.constant 1.000000e+00 : f32
    %133 = vector.broadcast %cst_72 : f32 to vector<16x512xf32>
    %134 = arith.addf %133, %132 : vector<16x512xf32>
    %135 = arith.mulf %96, %134 : vector<16x512xf32>
    %c0_73 = arith.constant 0 : index
    %c0_74 = arith.constant 0 : index
    %136 = vector.load %arg12[%c0_73, %c0_74] : memref<512x512xf32, #tpu.memory_space<vmem>>, vector<512x512xf32>
    %cst_75 = arith.constant dense<0.000000e+00> : vector<16x512xf32>
    %137 = tpu.matmul %135, %136, %cst_75 {dimension_numbers = #tpu.dot_dimension_numbers<[1], [0], [0], [1], [0, 0, 1, 1], [], []>} : vector<16x512xf32>, vector<512x512xf32>, vector<16x512xf32> -> vector<16x512xf32>
    %c0_76 = arith.constant 0 : index
    %c0_77 = arith.constant 0 : index
    %138 = vector.load %arg13[%c0_76, %c0_77] : memref<1x512xf32, #tpu.memory_space<vmem>>, vector<1x512xf32>
    %139 = vector.broadcast %138 : vector<1x512xf32> to vector<16x512xf32>
    %140 = arith.addf %137, %139 : vector<16x512xf32>
    %cst_78 = arith.constant 0.000000e+00 : f32
    %141 = vector.broadcast %cst_78 : f32 to vector<16x512xf32>
    %142 = arith.subf %141, %140 : vector<16x512xf32>
    %143 = math.exp %142 : vector<16x512xf32>
    %cst_79 = arith.constant 1.000000e+00 : f32
    %144 = vector.broadcast %cst_79 : f32 to vector<16x512xf32>
    %145 = arith.addf %144, %143 : vector<16x512xf32>
    %cst_80 = arith.constant 1.000000e+00 : f32
    %146 = vector.broadcast %cst_80 : f32 to vector<16x512xf32>
    %147 = arith.divf %146, %145 : vector<16x512xf32>
    %c0_81 = arith.constant 0 : index
    %c0_82 = arith.constant 0 : index
    %148 = vector.load %arg26[%c0_81, %c0_82] : memref<512x128xf32, #tpu.memory_space<vmem>>, vector<512x128xf32>
    %cst_83 = arith.constant dense<0.000000e+00> : vector<16x128xf32>
    %149 = tpu.matmul %147, %148, %cst_83 {dimension_numbers = #tpu.dot_dimension_numbers<[1], [0], [0], [1], [0, 0, 1, 1], [], []>} : vector<16x512xf32>, vector<512x128xf32>, vector<16x128xf32> -> vector<16x128xf32>
    %150 = arith.mulf %17, %149 : vector<16x128xf32>
    %c0_84 = arith.constant 0 : index
    %c0_85 = arith.constant 0 : index
    %151 = vector.load %arg14[%c0_84, %c0_85] : memref<16x16xf32, #tpu.memory_space<vmem>>, vector<16x16xf32>
    %cst_86 = arith.constant dense<0.000000e+00> : vector<16x128xf32>
    %152 = tpu.matmul %151, %41, %cst_86 {dimension_numbers = #tpu.dot_dimension_numbers<[1], [0], [0], [1], [0, 0, 1, 1], [], []>} : vector<16x16xf32>, vector<16x128xf32>, vector<16x128xf32> -> vector<16x128xf32>
    %c0_87 = arith.constant 0 : index
    %c0_88 = arith.constant 0 : index
    %153 = vector.load %arg15[%c0_87, %c0_88] : memref<16x16xf32, #tpu.memory_space<vmem>>, vector<16x16xf32>
    %cst_89 = arith.constant dense<0.000000e+00> : vector<16x128xf32>
    %154 = tpu.matmul %153, %150, %cst_89 {dimension_numbers = #tpu.dot_dimension_numbers<[1], [0], [0], [1], [0, 0, 1, 1], [], []>} : vector<16x16xf32>, vector<16x128xf32>, vector<16x128xf32> -> vector<16x128xf32>
    %155 = arith.addf %152, %154 : vector<16x128xf32>
    %c0_90 = arith.constant 0 : index
    %c0_91 = arith.constant 0 : index
    %156 = vector.load %arg16[%c0_90, %c0_91] : memref<16x1xf32, #tpu.memory_space<vmem>>, vector<16x1xf32>
    %157 = vector.broadcast %156 : vector<16x1xf32> to vector<16x128xf32>
    %158 = arith.addf %155, %157 : vector<16x128xf32>
    %159 = arith.addf %158, %0 : vector<16x128xf32>
    %c0_92 = arith.constant 0 : index
    %c0_93 = arith.constant 0 : index
    %160 = vector.load %arg17[%c0_92, %c0_93] : memref<16x1xf32, #tpu.memory_space<vmem>>, vector<16x1xf32>
    %c0_94 = arith.constant 0 : index
    %c0_95 = arith.constant 0 : index
    %161 = vector.load %arg18[%c0_94, %c0_95] : memref<16x1xf32, #tpu.memory_space<vmem>>, vector<16x1xf32>
    %cst_96 = arith.constant 6.250000e-02 : f32
    %162 = vector.broadcast %cst_96 : f32 to vector<1x16xf32>
    %cst_97 = arith.constant dense<0.000000e+00> : vector<1x128xf32>
    %163 = tpu.matmul %162, %159, %cst_97 {dimension_numbers = #tpu.dot_dimension_numbers<[1], [0], [0], [1], [0, 0, 1, 1], [], []>} : vector<1x16xf32>, vector<16x128xf32>, vector<1x128xf32> -> vector<1x128xf32>
    %164 = vector.broadcast %163 : vector<1x128xf32> to vector<16x128xf32>
    %165 = arith.subf %159, %164 : vector<16x128xf32>
    %166 = arith.mulf %165, %165 : vector<16x128xf32>
    %cst_98 = arith.constant dense<0.000000e+00> : vector<1x128xf32>
    %167 = tpu.matmul %162, %166, %cst_98 {dimension_numbers = #tpu.dot_dimension_numbers<[1], [0], [0], [1], [0, 0, 1, 1], [], []>} : vector<1x16xf32>, vector<16x128xf32>, vector<1x128xf32> -> vector<1x128xf32>
    %cst_99 = arith.constant 9.99999997E-7 : f32
    %168 = vector.broadcast %cst_99 : f32 to vector<1x128xf32>
    %169 = arith.addf %167, %168 : vector<1x128xf32>
    %170 = math.rsqrt %169 : vector<1x128xf32>
    %171 = vector.broadcast %170 : vector<1x128xf32> to vector<16x128xf32>
    %172 = arith.mulf %165, %171 : vector<16x128xf32>
    %173 = vector.broadcast %160 : vector<16x1xf32> to vector<16x128xf32>
    %174 = arith.mulf %172, %173 : vector<16x128xf32>
    %175 = vector.broadcast %161 : vector<16x1xf32> to vector<16x128xf32>
    %176 = arith.addf %174, %175 : vector<16x128xf32>
    %cst_100 = arith.constant 0.000000e+00 : f32
    %177 = vector.broadcast %cst_100 : f32 to vector<32x128xf32>
    %c0_101 = arith.constant 0 : index
    %c0_102 = arith.constant 0 : index
    %c0_103 = arith.constant 0 : index
    %178 = vector.load %arg19[%c0_101, %c0_102, %c0_103] : memref<9x32x16xf32, #tpu.memory_space<vmem>>, vector<1x32x16xf32>
    %179 = vector.shape_cast %178 : vector<1x32x16xf32> to vector<32x16xf32>
    %cst_104 = arith.constant dense<0.000000e+00> : vector<32x128xf32>
    %180 = tpu.matmul %179, %176, %cst_104 {dimension_numbers = #tpu.dot_dimension_numbers<[1], [0], [0], [1], [0, 0, 1, 1], [], []>} : vector<32x16xf32>, vector<16x128xf32>, vector<32x128xf32> -> vector<32x128xf32>
    %c0_105 = arith.constant 0 : index
    %c0_106 = arith.constant 0 : index
    %c0_107 = arith.constant 0 : index
    %181 = vector.load %arg27[%c0_105, %c0_106, %c0_107] : memref<9x128x128xf32, #tpu.memory_space<vmem>>, vector<1x128x128xf32>
    %182 = vector.shape_cast %181 : vector<1x128x128xf32> to vector<128x128xf32>
    %cst_108 = arith.constant dense<0.000000e+00> : vector<32x128xf32>
    %183 = tpu.matmul %180, %182, %cst_108 {dimension_numbers = #tpu.dot_dimension_numbers<[1], [0], [0], [1], [0, 0, 1, 1], [], []>} : vector<32x128xf32>, vector<128x128xf32>, vector<32x128xf32> -> vector<32x128xf32>
    %184 = arith.addf %177, %183 : vector<32x128xf32>
    %c1 = arith.constant 1 : index
    %c0_109 = arith.constant 0 : index
    %c0_110 = arith.constant 0 : index
    %185 = vector.load %arg19[%c1, %c0_109, %c0_110] : memref<9x32x16xf32, #tpu.memory_space<vmem>>, vector<1x32x16xf32>
    %186 = vector.shape_cast %185 : vector<1x32x16xf32> to vector<32x16xf32>
    %cst_111 = arith.constant dense<0.000000e+00> : vector<32x128xf32>
    %187 = tpu.matmul %186, %176, %cst_111 {dimension_numbers = #tpu.dot_dimension_numbers<[1], [0], [0], [1], [0, 0, 1, 1], [], []>} : vector<32x16xf32>, vector<16x128xf32>, vector<32x128xf32> -> vector<32x128xf32>
    %c1_112 = arith.constant 1 : index
    %c0_113 = arith.constant 0 : index
    %c0_114 = arith.constant 0 : index
    %188 = vector.load %arg27[%c1_112, %c0_113, %c0_114] : memref<9x128x128xf32, #tpu.memory_space<vmem>>, vector<1x128x128xf32>
    %189 = vector.shape_cast %188 : vector<1x128x128xf32> to vector<128x128xf32>
    %cst_115 = arith.constant dense<0.000000e+00> : vector<32x128xf32>
    %190 = tpu.matmul %187, %189, %cst_115 {dimension_numbers = #tpu.dot_dimension_numbers<[1], [0], [0], [1], [0, 0, 1, 1], [], []>} : vector<32x128xf32>, vector<128x128xf32>, vector<32x128xf32> -> vector<32x128xf32>
    %191 = arith.addf %184, %190 : vector<32x128xf32>
    %c2 = arith.constant 2 : index
    %c0_116 = arith.constant 0 : index
    %c0_117 = arith.constant 0 : index
    %192 = vector.load %arg19[%c2, %c0_116, %c0_117] : memref<9x32x16xf32, #tpu.memory_space<vmem>>, vector<1x32x16xf32>
    %193 = vector.shape_cast %192 : vector<1x32x16xf32> to vector<32x16xf32>
    %cst_118 = arith.constant dense<0.000000e+00> : vector<32x128xf32>
    %194 = tpu.matmul %193, %176, %cst_118 {dimension_numbers = #tpu.dot_dimension_numbers<[1], [0], [0], [1], [0, 0, 1, 1], [], []>} : vector<32x16xf32>, vector<16x128xf32>, vector<32x128xf32> -> vector<32x128xf32>
    %c2_119 = arith.constant 2 : index
    %c0_120 = arith.constant 0 : index
    %c0_121 = arith.constant 0 : index
    %195 = vector.load %arg27[%c2_119, %c0_120, %c0_121] : memref<9x128x128xf32, #tpu.memory_space<vmem>>, vector<1x128x128xf32>
    %196 = vector.shape_cast %195 : vector<1x128x128xf32> to vector<128x128xf32>
    %cst_122 = arith.constant dense<0.000000e+00> : vector<32x128xf32>
    %197 = tpu.matmul %194, %196, %cst_122 {dimension_numbers = #tpu.dot_dimension_numbers<[1], [0], [0], [1], [0, 0, 1, 1], [], []>} : vector<32x128xf32>, vector<128x128xf32>, vector<32x128xf32> -> vector<32x128xf32>
    %198 = arith.addf %191, %197 : vector<32x128xf32>
    %c3 = arith.constant 3 : index
    %c0_123 = arith.constant 0 : index
    %c0_124 = arith.constant 0 : index
    %199 = vector.load %arg19[%c3, %c0_123, %c0_124] : memref<9x32x16xf32, #tpu.memory_space<vmem>>, vector<1x32x16xf32>
    %200 = vector.shape_cast %199 : vector<1x32x16xf32> to vector<32x16xf32>
    %cst_125 = arith.constant dense<0.000000e+00> : vector<32x128xf32>
    %201 = tpu.matmul %200, %176, %cst_125 {dimension_numbers = #tpu.dot_dimension_numbers<[1], [0], [0], [1], [0, 0, 1, 1], [], []>} : vector<32x16xf32>, vector<16x128xf32>, vector<32x128xf32> -> vector<32x128xf32>
    %c3_126 = arith.constant 3 : index
    %c0_127 = arith.constant 0 : index
    %c0_128 = arith.constant 0 : index
    %202 = vector.load %arg27[%c3_126, %c0_127, %c0_128] : memref<9x128x128xf32, #tpu.memory_space<vmem>>, vector<1x128x128xf32>
    %203 = vector.shape_cast %202 : vector<1x128x128xf32> to vector<128x128xf32>
    %cst_129 = arith.constant dense<0.000000e+00> : vector<32x128xf32>
    %204 = tpu.matmul %201, %203, %cst_129 {dimension_numbers = #tpu.dot_dimension_numbers<[1], [0], [0], [1], [0, 0, 1, 1], [], []>} : vector<32x128xf32>, vector<128x128xf32>, vector<32x128xf32> -> vector<32x128xf32>
    %205 = arith.addf %198, %204 : vector<32x128xf32>
    %c4 = arith.constant 4 : index
    %c0_130 = arith.constant 0 : index
    %c0_131 = arith.constant 0 : index
    %206 = vector.load %arg19[%c4, %c0_130, %c0_131] : memref<9x32x16xf32, #tpu.memory_space<vmem>>, vector<1x32x16xf32>
    %207 = vector.shape_cast %206 : vector<1x32x16xf32> to vector<32x16xf32>
    %cst_132 = arith.constant dense<0.000000e+00> : vector<32x128xf32>
    %208 = tpu.matmul %207, %176, %cst_132 {dimension_numbers = #tpu.dot_dimension_numbers<[1], [0], [0], [1], [0, 0, 1, 1], [], []>} : vector<32x16xf32>, vector<16x128xf32>, vector<32x128xf32> -> vector<32x128xf32>
    %c4_133 = arith.constant 4 : index
    %c0_134 = arith.constant 0 : index
    %c0_135 = arith.constant 0 : index
    %209 = vector.load %arg27[%c4_133, %c0_134, %c0_135] : memref<9x128x128xf32, #tpu.memory_space<vmem>>, vector<1x128x128xf32>
    %210 = vector.shape_cast %209 : vector<1x128x128xf32> to vector<128x128xf32>
    %cst_136 = arith.constant dense<0.000000e+00> : vector<32x128xf32>
    %211 = tpu.matmul %208, %210, %cst_136 {dimension_numbers = #tpu.dot_dimension_numbers<[1], [0], [0], [1], [0, 0, 1, 1], [], []>} : vector<32x128xf32>, vector<128x128xf32>, vector<32x128xf32> -> vector<32x128xf32>
    %212 = arith.addf %205, %211 : vector<32x128xf32>
    %c5 = arith.constant 5 : index
    %c0_137 = arith.constant 0 : index
    %c0_138 = arith.constant 0 : index
    %213 = vector.load %arg19[%c5, %c0_137, %c0_138] : memref<9x32x16xf32, #tpu.memory_space<vmem>>, vector<1x32x16xf32>
    %214 = vector.shape_cast %213 : vector<1x32x16xf32> to vector<32x16xf32>
    %cst_139 = arith.constant dense<0.000000e+00> : vector<32x128xf32>
    %215 = tpu.matmul %214, %176, %cst_139 {dimension_numbers = #tpu.dot_dimension_numbers<[1], [0], [0], [1], [0, 0, 1, 1], [], []>} : vector<32x16xf32>, vector<16x128xf32>, vector<32x128xf32> -> vector<32x128xf32>
    %c5_140 = arith.constant 5 : index
    %c0_141 = arith.constant 0 : index
    %c0_142 = arith.constant 0 : index
    %216 = vector.load %arg27[%c5_140, %c0_141, %c0_142] : memref<9x128x128xf32, #tpu.memory_space<vmem>>, vector<1x128x128xf32>
    %217 = vector.shape_cast %216 : vector<1x128x128xf32> to vector<128x128xf32>
    %cst_143 = arith.constant dense<0.000000e+00> : vector<32x128xf32>
    %218 = tpu.matmul %215, %217, %cst_143 {dimension_numbers = #tpu.dot_dimension_numbers<[1], [0], [0], [1], [0, 0, 1, 1], [], []>} : vector<32x128xf32>, vector<128x128xf32>, vector<32x128xf32> -> vector<32x128xf32>
    %219 = arith.addf %212, %218 : vector<32x128xf32>
    %c6 = arith.constant 6 : index
    %c0_144 = arith.constant 0 : index
    %c0_145 = arith.constant 0 : index
    %220 = vector.load %arg19[%c6, %c0_144, %c0_145] : memref<9x32x16xf32, #tpu.memory_space<vmem>>, vector<1x32x16xf32>
    %221 = vector.shape_cast %220 : vector<1x32x16xf32> to vector<32x16xf32>
    %cst_146 = arith.constant dense<0.000000e+00> : vector<32x128xf32>
    %222 = tpu.matmul %221, %176, %cst_146 {dimension_numbers = #tpu.dot_dimension_numbers<[1], [0], [0], [1], [0, 0, 1, 1], [], []>} : vector<32x16xf32>, vector<16x128xf32>, vector<32x128xf32> -> vector<32x128xf32>
    %c6_147 = arith.constant 6 : index
    %c0_148 = arith.constant 0 : index
    %c0_149 = arith.constant 0 : index
    %223 = vector.load %arg27[%c6_147, %c0_148, %c0_149] : memref<9x128x128xf32, #tpu.memory_space<vmem>>, vector<1x128x128xf32>
    %224 = vector.shape_cast %223 : vector<1x128x128xf32> to vector<128x128xf32>
    %cst_150 = arith.constant dense<0.000000e+00> : vector<32x128xf32>
    %225 = tpu.matmul %222, %224, %cst_150 {dimension_numbers = #tpu.dot_dimension_numbers<[1], [0], [0], [1], [0, 0, 1, 1], [], []>} : vector<32x128xf32>, vector<128x128xf32>, vector<32x128xf32> -> vector<32x128xf32>
    %226 = arith.addf %219, %225 : vector<32x128xf32>
    %c7 = arith.constant 7 : index
    %c0_151 = arith.constant 0 : index
    %c0_152 = arith.constant 0 : index
    %227 = vector.load %arg19[%c7, %c0_151, %c0_152] : memref<9x32x16xf32, #tpu.memory_space<vmem>>, vector<1x32x16xf32>
    %228 = vector.shape_cast %227 : vector<1x32x16xf32> to vector<32x16xf32>
    %cst_153 = arith.constant dense<0.000000e+00> : vector<32x128xf32>
    %229 = tpu.matmul %228, %176, %cst_153 {dimension_numbers = #tpu.dot_dimension_numbers<[1], [0], [0], [1], [0, 0, 1, 1], [], []>} : vector<32x16xf32>, vector<16x128xf32>, vector<32x128xf32> -> vector<32x128xf32>
    %c7_154 = arith.constant 7 : index
    %c0_155 = arith.constant 0 : index
    %c0_156 = arith.constant 0 : index
    %230 = vector.load %arg27[%c7_154, %c0_155, %c0_156] : memref<9x128x128xf32, #tpu.memory_space<vmem>>, vector<1x128x128xf32>
    %231 = vector.shape_cast %230 : vector<1x128x128xf32> to vector<128x128xf32>
    %cst_157 = arith.constant dense<0.000000e+00> : vector<32x128xf32>
    %232 = tpu.matmul %229, %231, %cst_157 {dimension_numbers = #tpu.dot_dimension_numbers<[1], [0], [0], [1], [0, 0, 1, 1], [], []>} : vector<32x128xf32>, vector<128x128xf32>, vector<32x128xf32> -> vector<32x128xf32>
    %233 = arith.addf %226, %232 : vector<32x128xf32>
    %c8 = arith.constant 8 : index
    %c0_158 = arith.constant 0 : index
    %c0_159 = arith.constant 0 : index
    %234 = vector.load %arg19[%c8, %c0_158, %c0_159] : memref<9x32x16xf32, #tpu.memory_space<vmem>>, vector<1x32x16xf32>
    %235 = vector.shape_cast %234 : vector<1x32x16xf32> to vector<32x16xf32>
    %cst_160 = arith.constant dense<0.000000e+00> : vector<32x128xf32>
    %236 = tpu.matmul %235, %176, %cst_160 {dimension_numbers = #tpu.dot_dimension_numbers<[1], [0], [0], [1], [0, 0, 1, 1], [], []>} : vector<32x16xf32>, vector<16x128xf32>, vector<32x128xf32> -> vector<32x128xf32>
    %c8_161 = arith.constant 8 : index
    %c0_162 = arith.constant 0 : index
    %c0_163 = arith.constant 0 : index
    %237 = vector.load %arg27[%c8_161, %c0_162, %c0_163] : memref<9x128x128xf32, #tpu.memory_space<vmem>>, vector<1x128x128xf32>
    %238 = vector.shape_cast %237 : vector<1x128x128xf32> to vector<128x128xf32>
    %cst_164 = arith.constant dense<0.000000e+00> : vector<32x128xf32>
    %239 = tpu.matmul %236, %238, %cst_164 {dimension_numbers = #tpu.dot_dimension_numbers<[1], [0], [0], [1], [0, 0, 1, 1], [], []>} : vector<32x128xf32>, vector<128x128xf32>, vector<32x128xf32> -> vector<32x128xf32>
    %240 = arith.addf %233, %239 : vector<32x128xf32>
    %c0_165 = arith.constant 0 : index
    %c0_166 = arith.constant 0 : index
    %241 = vector.load %arg20[%c0_165, %c0_166] : memref<32x1xf32, #tpu.memory_space<vmem>>, vector<32x1xf32>
    %242 = vector.broadcast %241 : vector<32x1xf32> to vector<32x128xf32>
    %243 = arith.addf %240, %242 : vector<32x128xf32>
    %cst_167 = arith.constant 5.000000e-01 : f32
    %244 = vector.broadcast %cst_167 : f32 to vector<32x128xf32>
    %245 = arith.mulf %244, %243 : vector<32x128xf32>
    %cst_168 = arith.constant 0.707106769 : f32
    %246 = vector.broadcast %cst_168 : f32 to vector<32x128xf32>
    %247 = arith.mulf %243, %246 : vector<32x128xf32>
    %cst_169 = arith.constant 0.000000e+00 : f32
    %248 = vector.broadcast %cst_169 : f32 to vector<32x128xf32>
    %249 = arith.cmpf oge, %247, %248 : vector<32x128xf32>
    %cst_170 = arith.constant 1.000000e+00 : f32
    %cst_171 = arith.constant -1.000000e+00 : f32
    %250 = vector.broadcast %cst_170 : f32 to vector<32x128xf32>
    %251 = vector.broadcast %cst_171 : f32 to vector<32x128xf32>
    %252 = arith.select %249, %250, %251 : vector<32x128xi1>, vector<32x128xf32>
    %253 = math.absf %247 : vector<32x128xf32>
    %cst_172 = arith.constant 0.327591091 : f32
    %254 = vector.broadcast %cst_172 : f32 to vector<32x128xf32>
    %255 = arith.mulf %254, %253 : vector<32x128xf32>
    %cst_173 = arith.constant 1.000000e+00 : f32
    %256 = vector.broadcast %cst_173 : f32 to vector<32x128xf32>
    %257 = arith.addf %256, %255 : vector<32x128xf32>
    %cst_174 = arith.constant 1.000000e+00 : f32
    %258 = vector.broadcast %cst_174 : f32 to vector<32x128xf32>
    %259 = arith.divf %258, %257 : vector<32x128xf32>
    %cst_175 = arith.constant 1.06140542 : f32
    %260 = vector.broadcast %cst_175 : f32 to vector<32x128xf32>
    %261 = arith.mulf %260, %259 : vector<32x128xf32>
    %cst_176 = arith.constant -1.45315206 : f32
    %262 = vector.broadcast %cst_176 : f32 to vector<32x128xf32>
    %263 = arith.addf %261, %262 : vector<32x128xf32>
    %264 = arith.mulf %263, %259 : vector<32x128xf32>
    %cst_177 = arith.constant 1.42141378 : f32
    %265 = vector.broadcast %cst_177 : f32 to vector<32x128xf32>
    %266 = arith.addf %264, %265 : vector<32x128xf32>
    %267 = arith.mulf %266, %259 : vector<32x128xf32>
    %cst_178 = arith.constant -0.284496725 : f32
    %268 = vector.broadcast %cst_178 : f32 to vector<32x128xf32>
    %269 = arith.addf %267, %268 : vector<32x128xf32>
    %270 = arith.mulf %269, %259 : vector<32x128xf32>
    %cst_179 = arith.constant 0.254829586 : f32
    %271 = vector.broadcast %cst_179 : f32 to vector<32x128xf32>
    %272 = arith.addf %270, %271 : vector<32x128xf32>
    %273 = arith.mulf %272, %259 : vector<32x128xf32>
    %cst_180 = arith.constant 0.000000e+00 : f32
    %274 = vector.broadcast %cst_180 : f32 to vector<32x128xf32>
    %275 = arith.subf %274, %253 : vector<32x128xf32>
    %276 = arith.mulf %275, %253 : vector<32x128xf32>
    %277 = math.exp %276 : vector<32x128xf32>
    %278 = arith.mulf %273, %277 : vector<32x128xf32>
    %cst_181 = arith.constant 1.000000e+00 : f32
    %279 = vector.broadcast %cst_181 : f32 to vector<32x128xf32>
    %280 = arith.subf %279, %278 : vector<32x128xf32>
    %281 = arith.mulf %252, %280 : vector<32x128xf32>
    %cst_182 = arith.constant 1.000000e+00 : f32
    %282 = vector.broadcast %cst_182 : f32 to vector<32x128xf32>
    %283 = arith.addf %282, %281 : vector<32x128xf32>
    %284 = arith.mulf %245, %283 : vector<32x128xf32>
    %c0_183 = arith.constant 0 : index
    %c0_184 = arith.constant 0 : index
    %285 = vector.load %arg21[%c0_183, %c0_184] : memref<16x32xf32, #tpu.memory_space<vmem>>, vector<16x32xf32>
    %cst_185 = arith.constant dense<0.000000e+00> : vector<16x128xf32>
    %286 = tpu.matmul %285, %284, %cst_185 {dimension_numbers = #tpu.dot_dimension_numbers<[1], [0], [0], [1], [0, 0, 1, 1], [], []>} : vector<16x32xf32>, vector<32x128xf32>, vector<16x128xf32> -> vector<16x128xf32>
    %c0_186 = arith.constant 0 : index
    %c0_187 = arith.constant 0 : index
    %287 = vector.load %arg22[%c0_186, %c0_187] : memref<16x1xf32, #tpu.memory_space<vmem>>, vector<16x1xf32>
    %288 = vector.broadcast %287 : vector<16x1xf32> to vector<16x128xf32>
    %289 = arith.addf %286, %288 : vector<16x128xf32>
    %290 = arith.addf %289, %159 : vector<16x128xf32>
    %c0_188 = arith.constant 0 : index
    %c0_189 = arith.constant 0 : index
    %291 = vector.load %arg28[%c0_188, %c0_189] : memref<16x128xf32, #tpu.memory_space<vmem>>, vector<16x128xf32>
    tpu.vector_store %arg28[%c0_188, %c0_189], %290 {strides = array<i32>} : memref<16x128xf32, #tpu.memory_space<vmem>>, vector<16x128xf32>,
    return
  }
  func.func @transform_0(%arg0: i32) -> (i32, i32) {
    %c0_i32 = arith.constant 0 : i32
    %c0_i32_0 = arith.constant 0 : i32
    %c0_i32_1 = arith.constant 0 : i32
    return %c0_i32, %c0_i32_0 : i32, i32
  }
  func.func @transform_1(%arg0: i32) -> (i32, i32) {
    %c0_i32 = arith.constant 0 : i32
    %c0_i32_0 = arith.constant 0 : i32
    %c0_i32_1 = arith.constant 0 : i32
    return %c0_i32, %c0_i32_0 : i32, i32
  }
  func.func @transform_2(%arg0: i32) -> (i32, i32) {
    %c0_i32 = arith.constant 0 : i32
    %c0_i32_0 = arith.constant 0 : i32
    %c0_i32_1 = arith.constant 0 : i32
    return %c0_i32, %c0_i32_0 : i32, i32
  }
  func.func @transform_3(%arg0: i32) -> (i32, i32) {
    %c0_i32 = arith.constant 0 : i32
    %c0_i32_0 = arith.constant 0 : i32
    %c0_i32_1 = arith.constant 0 : i32
    return %c0_i32, %c0_i32_0 : i32, i32
  }
  func.func @transform_4(%arg0: i32) -> (i32, i32) {
    %c0_i32 = arith.constant 0 : i32
    %c0_i32_0 = arith.constant 0 : i32
    %c0_i32_1 = arith.constant 0 : i32
    return %c0_i32, %c0_i32_0 : i32, i32
  }
  func.func @transform_5(%arg0: i32) -> (i32, i32) {
    %c0_i32 = arith.constant 0 : i32
    %c0_i32_0 = arith.constant 0 : i32
    %c0_i32_1 = arith.constant 0 : i32
    return %c0_i32, %c0_i32_0 : i32, i32
  }
  func.func @transform_6(%arg0: i32) -> (i32, i32) {
    %c0_i32 = arith.constant 0 : i32
    %c0_i32_0 = arith.constant 0 : i32
    %c0_i32_1 = arith.constant 0 : i32
    return %c0_i32, %c0_i32_0 : i32, i32
  }
  func.func @transform_7(%arg0: i32) -> (i32, i32) {
    %c0_i32 = arith.constant 0 : i32
    %c0_i32_0 = arith.constant 0 : i32
    %c0_i32_1 = arith.constant 0 : i32
    return %c0_i32, %c0_i32_0 : i32, i32
  }
  func.func @transform_8(%arg0: i32) -> (i32, i32) {
    %c0_i32 = arith.constant 0 : i32
    %c0_i32_0 = arith.constant 0 : i32
    %c0_i32_1 = arith.constant 0 : i32
    return %c0_i32, %c0_i32_0 : i32, i32
  }
  func.func @transform_9(%arg0: i32) -> (i32, i32) {
    %c0_i32 = arith.constant 0 : i32
    %c0_i32_0 = arith.constant 0 : i32
    %c0_i32_1 = arith.constant 0 : i32
    return %c0_i32, %c0_i32_0 : i32, i32
  }
  func.func @transform_10(%arg0: i32) -> (i32, i32) {
    %c0_i32 = arith.constant 0 : i32
    %c0_i32_0 = arith.constant 0 : i32
    %c0_i32_1 = arith.constant 0 : i32
    return %c0_i32, %c0_i32_0 : i32, i32
  }
  func.func @transform_11(%arg0: i32) -> (i32, i32) {
    %c0_i32 = arith.constant 0 : i32
    %c0_i32_0 = arith.constant 0 : i32
    %c0_i32_1 = arith.constant 0 : i32
    return %c0_i32, %c0_i32_0 : i32, i32
  }
  func.func @transform_12(%arg0: i32) -> (i32, i32) {
    %c0_i32 = arith.constant 0 : i32
    %c0_i32_0 = arith.constant 0 : i32
    %c0_i32_1 = arith.constant 0 : i32
    return %c0_i32, %c0_i32_0 : i32, i32
  }
  func.func @transform_13(%arg0: i32) -> (i32, i32) {
    %c0_i32 = arith.constant 0 : i32
    %c0_i32_0 = arith.constant 0 : i32
    %c0_i32_1 = arith.constant 0 : i32
    return %c0_i32, %c0_i32_0 : i32, i32
  }
  func.func @transform_14(%arg0: i32) -> (i32, i32) {
    %c0_i32 = arith.constant 0 : i32
    %c0_i32_0 = arith.constant 0 : i32
    %c0_i32_1 = arith.constant 0 : i32
    return %c0_i32, %c0_i32_0 : i32, i32
  }
  func.func @transform_15(%arg0: i32) -> (i32, i32) {
    %c0_i32 = arith.constant 0 : i32
    %c0_i32_0 = arith.constant 0 : i32
    %c0_i32_1 = arith.constant 0 : i32
    return %c0_i32, %c0_i32_0 : i32, i32
  }
  func.func @transform_16(%arg0: i32) -> (i32, i32) {
    %c0_i32 = arith.constant 0 : i32
    %c0_i32_0 = arith.constant 0 : i32
    %c0_i32_1 = arith.constant 0 : i32
    return %c0_i32, %c0_i32_0 : i32, i32
  }
  func.func @transform_17(%arg0: i32) -> (i32, i32) {
    %c0_i32 = arith.constant 0 : i32
    %c0_i32_0 = arith.constant 0 : i32
    %c0_i32_1 = arith.constant 0 : i32
    return %c0_i32, %c0_i32_0 : i32, i32
  }
  func.func @transform_18(%arg0: i32) -> (i32, i32, i32) {
    %c0_i32 = arith.constant 0 : i32
    %c0_i32_0 = arith.constant 0 : i32
    %c0_i32_1 = arith.constant 0 : i32
    %c0_i32_2 = arith.constant 0 : i32
    return %c0_i32, %c0_i32_0, %c0_i32_1 : i32, i32, i32
  }
  func.func @transform_19(%arg0: i32) -> (i32, i32) {
    %c0_i32 = arith.constant 0 : i32
    %c0_i32_0 = arith.constant 0 : i32
    %c0_i32_1 = arith.constant 0 : i32
    return %c0_i32, %c0_i32_0 : i32, i32
  }
  func.func @transform_20(%arg0: i32) -> (i32, i32) {
    %c0_i32 = arith.constant 0 : i32
    %c0_i32_0 = arith.constant 0 : i32
    %c0_i32_1 = arith.constant 0 : i32
    return %c0_i32, %c0_i32_0 : i32, i32
  }
  func.func @transform_21(%arg0: i32) -> (i32, i32) {
    %c0_i32 = arith.constant 0 : i32
    %c0_i32_0 = arith.constant 0 : i32
    %c0_i32_1 = arith.constant 0 : i32
    return %c0_i32, %c0_i32_0 : i32, i32
  }
  func.func @transform_22(%arg0: i32) -> (i32, i32) {
    %c0_i32 = arith.constant 0 : i32
    %c0_i32_0 = arith.constant 0 : i32
    %c0_i32_1 = arith.constant 0 : i32
    return %c0_i32, %c0_i32_0 : i32, i32
  }
  func.func @transform_23(%arg0: i32) -> (i32, i32) {
    %c0_i32 = arith.constant 0 : i32
    %c0_i32_0 = arith.constant 0 : i32
    %c0_i32_1 = arith.constant 0 : i32
    return %c0_i32, %c0_i32_0 : i32, i32
  }
  func.func @transform_24(%arg0: i32) -> (i32, i32) {
    %c0_i32 = arith.constant 0 : i32
    %c0_i32_0 = arith.constant 0 : i32
    %c0_i32_1 = arith.constant 0 : i32
    return %c0_i32, %c0_i32_0 : i32, i32
  }
  func.func @transform_25(%arg0: i32) -> (i32, i32) {
    %c0_i32 = arith.constant 0 : i32
    %c0_i32_0 = arith.constant 0 : i32
    %c0_i32_1 = arith.constant 0 : i32
    return %c0_i32, %c0_i32_0 : i32, i32
  }
  func.func @transform_26(%arg0: i32) -> (i32, i32, i32) {
    %c0_i32 = arith.constant 0 : i32
    %c0_i32_0 = arith.constant 0 : i32
    %c0_i32_1 = arith.constant 0 : i32
    %c0_i32_2 = arith.constant 0 : i32
    return %c0_i32, %c0_i32_0, %c0_i32_1 : i32, i32, i32
  }
  func.func @transform_27(%arg0: i32) -> (i32, i32) {
    %c0_i32 = arith.constant 0 : i32
    %c0_i32_0 = arith.constant 0 : i32
    %c0_i32_1 = arith.constant 0 : i32
    return %c0_i32, %c0_i32_0 : i32, i32
  }
}

</mosaic_0001>

<llo_original>
// kernel: safmn_forward.4
$region0: #{safmn_forward.4}
  #allocation0 [shape = 'u32[]', space=smem, size = 0x4, offset = 0x4, fixed_abs, tag = 'smem constant byte address 0x4 - core index']
  #allocation1 [shape = 'u32[144,128]{1,0:T(1,128)}', space=vmem, size = 0x12000, scoped, tag = 'internal scratch']
  %s0 = inlined_call_operand.vmem [shape: f32[4,27], index: 0, kind: input, shape index: {}]
  %s1 = inlined_call_operand.vmem [shape: f32[27,512], index: 1, kind: input, shape index: {}]
  %s2 = inlined_call_operand.vmem [shape: f32[4,1], index: 2, kind: input, shape index: {}]
  %s3 = inlined_call_operand.vmem [shape: f32[4,512], index: 3, kind: output, shape index: {}]
  %s4 = sld [smem:[#allocation0]]
  $region22: #{safmn_forward.4} parent=0
    _
  %s6 = ssub.s32 1, %s4
  %s7 = scalar_select 0, %s6, %s4
  // Predicated region
  $region2: #{safmn_forward.4} parent=0 // pred_check
    _
  $region3: #{safmn_forward.4} parent=0 // pred_check_branch
    %9 = sbr.rel (0) target = $region5
  $region4: #{safmn_forward.4} parent=0 // pred_region
    _
  $region5: #{safmn_forward.4} parent=0 // pred_fallthru
    _
  // Predicated region
  $region6: #{safmn_forward.4} parent=0 // pred_check
    _
  $region7: #{safmn_forward.4} parent=0 // pred_check_branch
    %11 = sbr.rel (0) target = $region9
  $region8: #{safmn_forward.4} parent=0 // pred_region
    _
  $region9: #{safmn_forward.4} parent=0 // pred_fallthru
    _
  // Predicated region
  $region10: #{safmn_forward.4} parent=0 // pred_check
    _
  $region11: #{safmn_forward.4} parent=0 // pred_check_branch
    %13 = sbr.rel (0) target = $region13
  $region12: #{safmn_forward.4} parent=0 // pred_region
    _
  $region13: #{safmn_forward.4} parent=0 // pred_fallthru
    _
  %v14 = vld [vmem:[%s0] sm:$0xf]
  %v15 = vld [vmem:[%s1] sm:$0xff]
  %v16 = vld [vmem:[%s1 + $0x8] sm:$0xff]
  %v17 = vld [vmem:[%s1 + $0x10] sm:$0xff]
  %v18 = vld [vmem:[%s1 + $0x18] sm:$0xff]
  %v19 = vld [vmem:[%s1 + $0x20] sm:$0xff]
  %v20 = vld [vmem:[%s1 + $0x28] sm:$0xff]
  %v21 = vld [vmem:[%s1 + $0x30] sm:$0xff]
  %v22 = vld [vmem:[%s1 + $0x38] sm:$0xff]
  %v23 = vld [vmem:[%s1 + $0x40] sm:$0xff]
  %v24 = vld [vmem:[%s1 + $0x48] sm:$0xff]
  %v25 = vld [vmem:[%s1 + $0x50] sm:$0xff]
  %v26 = vld [vmem:[%s1 + $0x58] sm:$0xff]
  %v27 = vld [vmem:[%s1 + $0x60] sm:$0x7]
  %v28 = vld [vmem:[%s1 + $0x68] sm:$0x7]
  %v29 = vld [vmem:[%s1 + $0x70] sm:$0x7]
  %v30 = vld [vmem:[%s1 + $0x78] sm:$0x7]
  %v31 = vld [vmem:[%s2] sm:$0xf]
  %33 = vset.pattern.permute.xlu0 0
  %34 = vperm.xlu0 %33, %v31
  %v35 = vpop.permute.xlu0 %34
  %vm37 = vcmask 220160
  %v39 = vsel %vm37, %v14, 0
  %vm41 = vcmask 1042432
  %v43 = vsel %vm41, %v27, 0
  %v46 = vsel %vm41, %v28, 0
  %v49 = vsel %vm41, %v29, 0
  %v52 = vsel %vm41, %v30, 0
  %54 = vmatprep.subr.mxu0 %v16
  %55 = vmatpush1.msra.mxu0 %v15
  %56 = vmatprep.subr.mxu0 %v20
  %57 = vmatpush1.msra.mxu0 %v19
  %58 = vmatprep.subr.mxu0 %v24
  %59 = vmatpush1.msra.mxu0 %v23
  %60 = vmatprep.subr.mxu0 %v46
  %61 = vmatpush1.msra.mxu0 %v43
  %62 = vmatprep.subr.mxu0 0.0
  %63 = vmatpush1.msra.mxu0 0.0
  %64 = vmatprep.subr.mxu0 0.0
  %65 = vmatpush1.msra.mxu0 0.0
  %66 = vmatprep.subr.mxu0 0.0
  %67 = vmatpush1.msra.mxu0 0.0
  %68 = vmatprep.subr.mxu0 0.0
  %69 = vmatpush1.msra.mxu0 0.0
  %70 = vmatprep.subr.mxu0 0.0
  %71 = vmatpush1.msra.mxu0 0.0
  %72 = vmatprep.subr.mxu0 0.0
  %73 = vmatpush1.msra.mxu0 0.0
  %74 = vmatprep.subr.mxu0 0.0
  %75 = vmatpush1.msra.mxu0 0.0
  %76 = vmatprep.subr.mxu0 0.0
  %77 = vmatpush1.msra.mxu0 0.0
  %78 = vmatprep.subr.mxu0 0.0
  %79 = vmatpush1.msra.mxu0 0.0
  %80 = vmatprep.subr.mxu0 0.0
  %81 = vmatpush1.msra.mxu0 0.0
  %82 = vmatprep.subr.mxu0 0.0
  %83 = vmatpush1.msra.mxu0 0.0
  %84 = vmatprep.subr.mxu0 0.0
  %85 = vmatpush1.msra.mxu0 0.0
  %86 = vmatprep.subr.mxu0 0.0
  %87 = vmatpush1.msra.mxu0 0.0
  %88 = vmatprep.subr.mxu0 0.0
  %89 = vmatpush1.msra.mxu0 0.0
  %90 = vmatprep.subr.mxu0 0.0
  %91 = vmatpush1.msra.mxu0 0.0
  %92 = vmatprep.subr.mxu0 0.0
  %93 = vmatpush1.msra.mxu0 0.0
  %94 = vmatprep.subr.mxu0 0.0
  %95 = vmatpush1.msra.mxu0 0.0
  %96 = vmatprep.subr.mxu0 0.0
  %97 = vmatpush1.msra.mxu0 0.0
  %98 = vmatprep.subr.mxu0 0.0
  %99 = vmatpush1.msra.mxu0 0.0
  %100 = vmatprep.subr.mxu0 0.0
  %101 = vmatpush1.msra.mxu0 0.0
  %102 = vmatprep.subr.mxu0 0.0
  %103 = vmatpush1.msra.mxu0 0.0
  %104 = vmatprep.subr.mxu0 0.0
  %105 = vmatpush1.msra.mxu0 0.0
  %106 = vmatprep.subr.mxu0 0.0
  %107 = vmatpush1.msra.mxu0 0.0
  %108 = vmatprep.subr.mxu0 0.0
  %109 = vmatpush1.msra.mxu0 0.0
  %110 = vmatprep.subr.mxu0 0.0
  %111 = vmatpush1.msra.mxu0 0.0
  %112 = vmatprep.subr.mxu0 0.0
  %113 = vmatpush1.msra.mxu0 0.0
  %114 = vmatprep.subr.mxu0 0.0
  %115 = vmatpush1.msra.mxu0 0.0
  %116 = vmatprep.subr.mxu0 0.0
  %117 = vmatpush1.msra.mxu0 0.0
  %118 = vmatprep.mubr.f32.mxu0 0.0
  %119 = vmatmul.mubr.f32.gmra.mrb[0].mxu0 %v39
  %v120 = vpop.f32.mrb[0].mxu0
  %v121 = vadd.f32 %v35, %v120
  %v122 = vpop.f32.mrb[0].mxu0
  %v123 = vadd.f32 %v35, %v122
  %124 = vdwg.mxu0
  %125 = vmatprep.subr.mxu0 %v18
  %126 = vmatpush1.msra.mxu0 %v17
  %127 = vmatprep.subr.mxu0 %v22
  %128 = vmatpush1.msra.mxu0 %v21
  %129 = vmatprep.subr.mxu0 %v26
  %130 = vmatpush1.msra.mxu0 %v25
  %131 = vmatprep.subr.mxu0 %v52
  %132 = vmatpush1.msra.mxu0 %v49
  %133 = vmatprep.subr.mxu0 0.0
  %134 = vmatpush1.msra.mxu0 0.0
  %135 = vmatprep.subr.mxu0 0.0
  %136 = vmatpush1.msra.mxu0 0.0
  %137 = vmatprep.subr.mxu0 0.0
  %138 = vmatpush1.msra.mxu0 0.0
  %139 = vmatprep.subr.mxu0 0.0
  %140 = vmatpush1.msra.mxu0 0.0
  %141 = vmatprep.subr.mxu0 0.0
  %142 = vmatpush1.msra.mxu0 0.0
  %143 = vmatprep.subr.mxu0 0.0
  %144 = vmatpush1.msra.mxu0 0.0
  %145 = vmatprep.subr.mxu0 0.0
  %146 = vmatpush1.msra.mxu0 0.0
  %147 = vmatprep.subr.mxu0 0.0
  %148 = vmatpush1.msra.mxu0 0.0
  %149 = vmatprep.subr.mxu0 0.0
  %150 = vmatpush1.msra.mxu0 0.0
  %151 = vmatprep.subr.mxu0 0.0
  %152 = vmatpush1.msra.mxu0 0.0
  %153 = vmatprep.subr.mxu0 0.0
  %154 = vmatpush1.msra.mxu0 0.0
  %155 = vmatprep.subr.mxu0 0.0
  %156 = vmatpush1.msra.mxu0 0.0
  %157 = vmatprep.subr.mxu0 0.0
  %158 = vmatpush1.msra.mxu0 0.0
  %159 = vmatprep.subr.mxu0 0.0
  %160 = vmatpush1.msra.mxu0 0.0
  %161 = vmatprep.subr.mxu0 0.0
  %162 = vmatpush1.msra.mxu0 0.0
  %163 = vmatprep.subr.mxu0 0.0
  %164 = vmatpush1.msra.mxu0 0.0
  %165 = vmatprep.subr.mxu0 0.0
  %166 = vmatpush1.msra.mxu0 0.0
  %167 = vmatprep.subr.mxu0 0.0
  %168 = vmatpush1.msra.mxu0 0.0
  %169 = vmatprep.subr.mxu0 0.0
  %170 = vmatpush1.msra.mxu0 0.0
  %171 = vmatprep.subr.mxu0 0.0
  %172 = vmatpush1.msra.mxu0 0.0
  %173 = vmatprep.subr.mxu0 0.0
  %174 = vmatpush1.msra.mxu0 0.0
  %175 = vmatprep.subr.mxu0 0.0
  %176 = vmatpush1.msra.mxu0 0.0
  %177 = vmatprep.subr.mxu0 0.0
  %178 = vmatpush1.msra.mxu0 0.0
  %179 = vmatprep.subr.mxu0 0.0
  %180 = vmatpush1.msra.mxu0 0.0
  %181 = vmatprep.subr.mxu0 0.0
  %182 = vmatpush1.msra.mxu0 0.0
  %183 = vmatprep.subr.mxu0 0.0
  %184 = vmatpush1.msra.mxu0 0.0
  %185 = vmatprep.subr.mxu0 0.0
  %186 = vmatpush1.msra.mxu0 0.0
  %187 = vmatprep.subr.mxu0 0.0
  %188 = vmatpush1.msra.mxu0 0.0
  %189 = vmatprep.mubr.f32.mxu0 0.0
  %190 = vmatmul.mubr.f32.gmra.mrb[0].mxu0 %v39
  %v191 = vpop.f32.mrb[0].mxu0
  %v192 = vadd.f32 %v35, %v191
  %v193 = vpop.f32.mrb[0].mxu0
  %v194 = vadd.f32 %v35, %v193
  %195 = vdwg.mxu0
  %v200 = vcombine.low %v121, %v123
  %v201 = vcombine.low %v192, %v194
  %204 = vst [vmem:[%s3] sm:$0xff] %v200
  %205 = vst [vmem:[%s3 + $0x8] sm:$0xff] %v201
  // Predicated region
  $region14: #{safmn_forward.4} parent=0 // pred_check
    _
  $region15: #{safmn_forward.4} parent=0 // pred_check_branch
    %207 = sbr.rel (0) target = $region17
  $region16: #{safmn_forward.4} parent=0 // pred_region
    _
  $region17: #{safmn_forward.4} parent=0 // pred_fallthru
    _
  // Predicated region
  $region18: #{safmn_forward.4} parent=0 // pred_check
    _
  $region19: #{safmn_forward.4} parent=0 // pred_check_branch
    %209 = sbr.rel (0) target = $region21
  $region20: #{safmn_forward.4} parent=0 // pred_region
    _
  $region21: #{safmn_forward.4} parent=0 // pred_fallthru
    _

// kernel: safmn_forward.7
$region0: #{safmn_forward.7}
  #allocation0 [shape = 'u32[]', space=smem, size = 0x4, offset = 0x4, fixed_abs, tag = 'smem constant byte address 0x4 - core index']
  #allocation1 [shape = 'u32[144,128]{1,0:T(1,128)}', space=vmem, size = 0x12000, scoped, tag = 'internal scratch']
  %s0 = inlined_call_operand.vmem [shape: f32[16,128], index: 0, kind: input, shape index: {}]
  %s1 = inlined_call_operand.vmem [shape: f32[16,128], index: 1, kind: input, shape index: {}]
  %s2 = inlined_call_operand.vmem [shape: f32[9,12,16], index: 2, kind: input, shape index: {}]
  %s3 = inlined_call_operand.vmem [shape: f32[12,1], index: 3, kind: input, shape index: {}]
  %s4 = inlined_call_operand.vmem [shape: f32[9,128,128], index: 4, kind: input, shape index: {}]
  %s5 = inlined_call_operand.vmem [shape: f32[12,128], index: 5, kind: output, shape index: {}]
  %s6 = sld [smem:[#allocation0]]
  $region30: #{safmn_forward.7} parent=0
    _
  %s8 = ssub.s32 1, %s6
  %s9 = scalar_select 0, %s8, %s6
  // Predicated region
  $region2: #{safmn_forward.7} parent=0 // pred_check
    _
  $region3: #{safmn_forward.7} parent=0 // pred_check_branch
    %11 = sbr.rel (0) target = $region5
  $region4: #{safmn_forward.7} parent=0 // pred_region
    _
  $region5: #{safmn_forward.7} parent=0 // pred_fallthru
    _
  // Predicated region
  $region6: #{safmn_forward.7} parent=0 // pred_check
    _
  $region7: #{safmn_forward.7} parent=0 // pred_check_branch
    %13 = sbr.rel (0) target = $region9
  $region8: #{safmn_forward.7} parent=0 // pred_region
    _
  $region9: #{safmn_forward.7} parent=0 // pred_fallthru
    _
  // Predicated region
  $region10: #{safmn_forward.7} parent=0 // pred_check
    _
  $region11: #{safmn_forward.7} parent=0 // pred_check_branch
    %15 = sbr.rel (0) target = $region13
  $region12: #{safmn_forward.7} parent=0 // pred_region
    _
  $region13: #{safmn_forward.7} parent=0 // pred_fallthru
    _
  // Predicated region
  $region14: #{safmn_forward.7} parent=0 // pred_check
    _
  $region15: #{safmn_forward.7} parent=0 // pred_check_branch
    %17 = sbr.rel (0) target = $region17
  $region16: #{safmn_forward.7} parent=0 // pred_region
    _
  $region17: #{safmn_forward.7} parent=0 // pred_fallthru
    _
  // Predicated region
  $region18: #{safmn_forward.7} parent=0 // pred_check
    _
  $region19: #{safmn_forward.7} parent=0 // pred_check_branch
    %19 = sbr.rel (0) target = $region21
  $region20: #{safmn_forward.7} parent=0 // pred_region
    _
  $region21: #{safmn_forward.7} parent=0 // pred_fallthru
    _
  %v20 = vld [vmem:[%s0] sm:$0xff]
  %v21 = vld [vmem:[%s0 + $0x8] sm:$0xff]
  %v22 = vld [vmem:[%s1] sm:$0xff]
  %v23 = vld [vmem:[%s1 + $0x8] sm:$0xff]
  %v24 = vadd.f32 %v20, %v22
  %v25 = vadd.f32 %v21, %v23
  %v26 = vld [vmem:[%s2] sm:$0xff]
  %v27 = vld [vmem:[%s2 + $0x8] sm:$0xf]
  %vm28 = vcmask 130048
  %v30 = vsel %vm28, %v26, 0
  %v33 = vsel %vm28, %v27, 0
  %35 = vmatprep.subr.mxu0 0.0
  %36 = vmatpush1.msra.mxu0 %v24
  %37 = vmatprep.subr.mxu0 0.0
  %38 = vmatpush1.msra.mxu0 %v25
  %39 = vmatprep.subr.mxu0 0.0
  %40 = vmatpush1.msra.mxu0 0.0
  %41 = vmatprep.subr.mxu0 0.0
  %42 = vmatpush1.msra.mxu0 0.0
  %43 = vmatprep.subr.mxu0 0.0
  %44 = vmatpush1.msra.mxu0 0.0
  %45 = vmatprep.subr.mxu0 0.0
  %46 = vmatpush1.msra.mxu0 0.0
  %47 = vmatprep.subr.mxu0 0.0
  %48 = vmatpush1.msra.mxu0 0.0
  %49 = vmatprep.subr.mxu0 0.0
  %50 = vmatpush1.msra.mxu0 0.0
  %51 = vmatprep.subr.mxu0 0.0
  %52 = vmatpush1.msra.mxu0 0.0
  %53 = vmatprep.subr.mxu0 0.0
  %54 = vmatpush1.msra.mxu0 0.0
  %55 = vmatprep.subr.mxu0 0.0
  %56 = vmatpush1.msra.mxu0 0.0
  %57 = vmatprep.subr.mxu0 0.0
  %58 = vmatpush1.msra.mxu0 0.0
  %59 = vmatprep.subr.mxu0 0.0
  %60 = vmatpush1.msra.mxu0 0.0
  %61 = vmatprep.subr.mxu0 0.0
  %62 = vmatpush1.msra.mxu0 0.0
  %63 = vmatprep.subr.mxu0 0.0
  %64 = vmatpush1.msra.mxu0 0.0
  %65 = vmatprep.subr.mxu0 0.0
  %66 = vmatpush1.msra.mxu0 0.0
  %67 = vmatprep.subr.mxu0 0.0
  %68 = vmatpush1.msra.mxu0 0.0
  %69 = vmatprep.subr.mxu0 0.0
  %70 = vmatpush1.msra.mxu0 0.0
  %71 = vmatprep.subr.mxu0 0.0
  %72 = vmatpush1.msra.mxu0 0.0
  %73 = vmatprep.subr.mxu0 0.0
  %74 = vmatpush1.msra.mxu0 0.0
  %75 = vmatprep.subr.mxu0 0.0
  %76 = vmatpush1.msra.mxu0 0.0
  %77 = vmatprep.subr.mxu0 0.0
  %78 = vmatpush1.msra.mxu0 0.0
  %79 = vmatprep.subr.mxu0 0.0
  %80 = vmatpush1.msra.mxu0 0.0
  %81 = vmatprep.subr.mxu0 0.0
  %82 = vmatpush1.msra.mxu0 0.0
  %83 = vmatprep.subr.mxu0 0.0
  %84 = vmatpush1.msra.mxu0 0.0
  %85 = vmatprep.subr.mxu0 0.0
  %86 = vmatpush1.msra.mxu0 0.0
  %87 = vmatprep.subr.mxu0 0.0
  %88 = vmatpush1.msra.mxu0 0.0
  %89 = vmatprep.subr.mxu0 0.0
  %90 = vmatpush1.msra.mxu0 0.0
  %91 = vmatprep.subr.mxu0 0.0
  %92 = vmatpush1.msra.mxu0 0.0
  %93 = vmatprep.subr.mxu0 0.0
  %94 = vmatpush1.msra.mxu0 0.0
  %95 = vmatprep.subr.mxu0 0.0
  %96 = vmatpush1.msra.mxu0 0.0
  %97 = vmatprep.subr.mxu0 0.0
  %98 = vmatpush1.msra.mxu0 0.0
  %99 = vmatprep.mubr.f32.mxu0 0.0
  %100 = vmatmul.mubr.f32.gmra.mrb[0].mxu0 %v30
  %v101 = vpop.f32.mrb[0].mxu0
  %v102 = vadd.f32 0.0, %v101
  %v103 = vpop.f32.mrb[0].mxu0
  %104 = vmatprep.mubr.f32.mxu0 0.0
  %105 = vmatmul.mubr.f32.gmra.mrb[0].mxu0 %v33
  %v106 = vpop.f32.mrb[0].mxu0
  %v107 = vadd.f32 0.0, %v106
  %v108 = vpop.f32.mrb[0].mxu0
  %109 = vdwg.mxu0
  %v110 = vld [vmem:[%s4] sm:$0xff]
  %v111 = vld [vmem:[%s4 + $0x8] sm:$0xff]
  %v112 = vld [vmem:[%s4 + $0x10] sm:$0xff]
  %v113 = vld [vmem:[%s4 + $0x18] sm:$0xff]
  %v114 = vld [vmem:[%s4 + $0x20] sm:$0xff]
  %v115 = vld [vmem:[%s4 + $0x28] sm:$0xff]
  %v116 = vld [vmem:[%s4 + $0x30] sm:$0xff]
  %v117 = vld [vmem:[%s4 + $0x38] sm:$0xff]
  %v118 = vld [vmem:[%s4 + $0x40] sm:$0xff]
  %v119 = vld [vmem:[%s4 + $0x48] sm:$0xff]
  %v120 = vld [vmem:[%s4 + $0x50] sm:$0xff]
  %v121 = vld [vmem:[%s4 + $0x58] sm:$0xff]
  %v122 = vld [vmem:[%s4 + $0x60] sm:$0xff]
  %v123 = vld [vmem:[%s4 + $0x68] sm:$0xff]
  %v124 = vld [vmem:[%s4 + $0x70] sm:$0xff]
  %v125 = vld [vmem:[%s4 + $0x78] sm:$0xff]
  %s126 = scalar_lea.vmem %s2, 16
  %v127 = vld [vmem:[%s126] sm:$0xff]
  %v128 = vld [vmem:[%s126 + $0x8] sm:$0xf]
  %v130 = vsel %vm28, %v127, 0
  %v133 = vsel %vm28, %v128, 0
  %135 = vmatprep.subr.mxu0 0.0
  %136 = vmatpush1.msra.mxu0 %v24
  %137 = vmatprep.subr.mxu0 0.0
  %138 = vmatpush1.msra.mxu0 %v25
  %139 = vmatprep.subr.mxu0 0.0
  %140 = vmatpush1.msra.mxu0 0.0
  %141 = vmatprep.subr.mxu0 0.0
  %142 = vmatpush1.msra.mxu0 0.0
  %143 = vmatprep.subr.mxu0 0.0
  %144 = vmatpush1.msra.mxu0 0.0
  %145 = vmatprep.subr.mxu0 0.0
  %146 = vmatpush1.msra.mxu0 0.0
  %147 = vmatprep.subr.mxu0 0.0
  %148 = vmatpush1.msra.mxu0 0.0
  %149 = vmatprep.subr.mxu0 0.0
  %150 = vmatpush1.msra.mxu0 0.0
  %151 = vmatprep.subr.mxu0 0.0
  %152 = vmatpush1.msra.mxu0 0.0
  %153 = vmatprep.subr.mxu0 0.0
  %154 = vmatpush1.msra.mxu0 0.0
  %155 = vmatprep.subr.mxu0 0.0
  %156 = vmatpush1.msra.mxu0 0.0
  %157 = vmatprep.subr.mxu0 0.0
  %158 = vmatpush1.msra.mxu0 0.0
  %159 = vmatprep.subr.mxu0 0.0
  %160 = vmatpush1.msra.mxu0 0.0
  %161 = vmatprep.subr.mxu0 0.0
  %162 = vmatpush1.msra.mxu0 0.0
  %163 = vmatprep.subr.mxu0 0.0
  %164 = vmatpush1.msra.mxu0 0.0
  %165 = vmatprep.subr.mxu0 0.0
  %166 = vmatpush1.msra.mxu0 0.0
  %167 = vmatprep.subr.mxu0 0.0
  %168 = vmatpush1.msra.mxu0 0.0
  %169 = vmatprep.subr.mxu0 0.0
  %170 = vmatpush1.msra.mxu0 0.0
  %171 = vmatprep.subr.mxu0 0.0
  %172 = vmatpush1.msra.mxu0 0.0
  %173 = vmatprep.subr.mxu0 0.0
  %174 = vmatpush1.msra.mxu0 0.0
  %175 = vmatprep.subr.mxu0 0.0
  %176 = vmatpush1.msra.mxu0 0.0
  %177 = vmatprep.subr.mxu0 0.0
  %178 = vmatpush1.msra.mxu0 0.0
  %179 = vmatprep.subr.mxu0 0.0
  %180 = vmatpush1.msra.mxu0 0.0
  %181 = vmatprep.subr.mxu0 0.0
  %182 = vmatpush1.msra.mxu0 0.0
  %183 = vmatprep.subr.mxu0 0.0
  %184 = vmatpush1.msra.mxu0 0.0
  %185 = vmatprep.subr.mxu0 0.0
  %186 = vmatpush1.msra.mxu0 0.0
  %187 = vmatprep.subr.mxu0 0.0
  %188 = vmatpush1.msra.mxu0 0.0
  %189 = vmatprep.subr.mxu0 0.0
  %190 = vmatpush1.msra.mxu0 0.0
  %191 = vmatprep.subr.mxu0 0.0
  %192 = vmatpush1.msra.mxu0 0.0
  %193 = vmatprep.subr.mxu0 0.0
  %194 = vmatpush1.msra.mxu0 0.0
  %195 = vmatprep.subr.mxu0 0.0
  %196 = vmatpush1.msra.mxu0 0.0
  %197 = vmatprep.subr.mxu0 0.0
  %198 = vmatpush1.msra.mxu0 0.0
  %199 = vmatprep.mubr.f32.mxu0 0.0
  %200 = vmatmul.mubr.f32.gmra.mrb[0].mxu0 %v130
  %v201 = vpop.f32.mrb[0].mxu0
  %v202 = vadd.f32 0.0, %v201
  %v203 = vpop.f32.mrb[0].mxu0
  %204 = vmatprep.mubr.f32.mxu0 0.0
  %205 = vmatmul.mubr.f32.gmra.mrb[0].mxu0 %v133
  %v206 = vpop.f32.mrb[0].mxu0
  %v207 = vadd.f32 0.0, %v206
  %v208 = vpop.f32.mrb[0].mxu0
  %209 = vdwg.mxu0
  %s210 = scalar_lea.vmem %s4, 128
  %v211 = vld [vmem:[%s210] sm:$0xff]
  %v212 = vld [vmem:[%s210 + $0x8] sm:$0xff]
  %v213 = vld [vmem:[%s210 + $0x10] sm:$0xff]
  %v214 = vld [vmem:[%s210 + $0x18] sm:$0xff]
  %v215 = vld [vmem:[%s210 + $0x20] sm:$0xff]
  %v216 = vld [vmem:[%s210 + $0x28] sm:$0xff]
  %v217 = vld [vmem:[%s210 + $0x30] sm:$0xff]
  %v218 = vld [vmem:[%s210 + $0x38] sm:$0xff]
  %v219 = vld [vmem:[%s210 + $0x40] sm:$0xff]
  %v220 = vld [vmem:[%s210 + $0x48] sm:$0xff]
  %v221 = vld [vmem:[%s210 + $0x50] sm:$0xff]
  %v222 = vld [vmem:[%s210 + $0x58] sm:$0xff]
  %v223 = vld [vmem:[%s210 + $0x60] sm:$0xff]
  %v224 = vld [vmem:[%s210 + $0x68] sm:$0xff]
  %v225 = vld [vmem:[%s210 + $0x70] sm:$0xff]
  %v226 = vld [vmem:[%s210 + $0x78] sm:$0xff]
  %227 = vmatprep.subr.mxu0 0.0
  %228 = vmatpush1.msra.mxu0 %v211
  %229 = vmatprep.subr.mxu0 0.0
  %230 = vmatpush1.msra.mxu0 %v212
  %231 = vmatprep.subr.mxu0 0.0
  %232 = vmatpush1.msra.mxu0 %v213
  %233 = vmatprep.subr.mxu0 0.0
  %234 = vmatpush1.msra.mxu0 %v214
  %235 = vmatprep.subr.mxu0 0.0
  %236 = vmatpush1.msra.mxu0 %v215
  %237 = vmatprep.subr.mxu0 0.0
  %238 = vmatpush1.msra.mxu0 %v216
  %239 = vmatprep.subr.mxu0 0.0
  %240 = vmatpush1.msra.mxu0 %v217
  %241 = vmatprep.subr.mxu0 0.0
  %242 = vmatpush1.msra.mxu0 %v218
  %243 = vmatprep.subr.mxu0 0.0
  %244 = vmatpush1.msra.mxu0 %v219
  %245 = vmatprep.subr.mxu0 0.0
  %246 = vmatpush1.msra.mxu0 %v220
  %247 = vmatprep.subr.mxu0 0.0
  %248 = vmatpush1.msra.mxu0 %v221
  %249 = vmatprep.subr.mxu0 0.0
  %250 = vmatpush1.msra.mxu0 %v222
  %251 = vmatprep.subr.mxu0 0.0
  %252 = vmatpush1.msra.mxu0 %v223
  %253 = vmatprep.subr.mxu0 0.0
  %254 = vmatpush1.msra.mxu0 %v224
  %255 = vmatprep.subr.mxu0 0.0
  %256 = vmatpush1.msra.mxu0 %v225
  %257 = vmatprep.subr.mxu0 0.0
  %258 = vmatpush1.msra.mxu0 %v226
  %259 = vmatprep.subr.mxu0 0.0
  %260 = vmatpush1.msra.mxu0 0.0
  %261 = vmatprep.subr.mxu0 0.0
  %262 = vmatpush1.msra.mxu0 0.0
  %263 = vmatprep.subr.mxu0 0.0
  %264 = vmatpush1.msra.mxu0 0.0
  %265 = vmatprep.subr.mxu0 0.0
  %266 = vmatpush1.msra.mxu0 0.0
  %267 = vmatprep.subr.mxu0 0.0
  %268 = vmatpush1.msra.mxu0 0.0
  %269 = vmatprep.subr.mxu0 0.0
  %270 = vmatpush1.msra.mxu0 0.0
  %271 = vmatprep.subr.mxu0 0.0
  %272 = vmatpush1.msra.mxu0 0.0
  %273 = vmatprep.subr.mxu0 0.0
  %274 = vmatpush1.msra.mxu0 0.0
  %275 = vmatprep.subr.mxu0 0.0
  %276 = vmatpush1.msra.mxu0 0.0
  %277 = vmatprep.subr.mxu0 0.0
  %278 = vmatpush1.msra.mxu0 0.0
  %279 = vmatprep.subr.mxu0 0.0
  %280 = vmatpush1.msra.mxu0 0.0
  %281 = vmatprep.subr.mxu0 0.0
  %282 = vmatpush1.msra.mxu0 0.0
  %283 = vmatprep.subr.mxu0 0.0
  %284 = vmatpush1.msra.mxu0 0.0
  %285 = vmatprep.subr.mxu0 0.0
  %286 = vmatpush1.msra.mxu0 0.0
  %287 = vmatprep.subr.mxu0 0.0
  %288 = vmatpush1.msra.mxu0 0.0
  %289 = vmatprep.subr.mxu0 0.0
  %290 = vmatpush1.msra.mxu0 0.0
  %291 = vmatprep.mubr.f32.mxu0 0.0
  %292 = vmatmul.mubr.f32.gmra.mrb[0].mxu0 %v202
  %v293 = vpop.f32.mrb[0].mxu0
  %v294 = vadd.f32 0.0, %v293
  %v295 = vpop.f32.mrb[0].mxu0
  %296 = vmatprep.mubr.f32.mxu0 0.0
  %297 = vmatmul.mubr.f32.gmra.mrb[0].mxu0 %v207
  %v298 = vpop.f32.mrb[0].mxu0
  %v299 = vadd.f32 0.0, %v298
  %v300 = vpop.f32.mrb[0].mxu0
  %301 = vdwg.mxu0
  %302 = vmatprep.subr.mxu0 0.0
  %303 = vmatpush1.msra.mxu0 %v110
  %304 = vmatprep.subr.mxu0 0.0
  %305 = vmatpush1.msra.mxu0 %v111
  %306 = vmatprep.subr.mxu0 0.0
  %307 = vmatpush1.msra.mxu0 %v112
  %308 = vmatprep.subr.mxu0 0.0
  %309 = vmatpush1.msra.mxu0 %v113
  %310 = vmatprep.subr.mxu0 0.0
  %311 = vmatpush1.msra.mxu0 %v114
  %312 = vmatprep.subr.mxu0 0.0
  %313 = vmatpush1.msra.mxu0 %v115
  %314 = vmatprep.subr.mxu0 0.0
  %315 = vmatpush1.msra.mxu0 %v116
  %316 = vmatprep.subr.mxu0 0.0
  %317 = vmatpush1.msra.mxu0 %v117
  %318 = vmatprep.subr.mxu0 0.0
  %319 = vmatpush1.msra.mxu0 %v118
  %320 = vmatprep.subr.mxu0 0.0
  %321 = vmatpush1.msra.mxu0 %v119
  %322 = vmatprep.subr.mxu0 0.0
  %323 = vmatpush1.msra.mxu0 %v120
  %324 = vmatprep.subr.mxu0 0.0
  %325 = vmatpush1.msra.mxu0 %v121
  %326 = vmatprep.subr.mxu0 0.0
  %327 = vmatpush1.msra.mxu0 %v122
  %328 = vmatprep.subr.mxu0 0.0
  %329 = vmatpush1.msra.mxu0 %v123
  %330 = vmatprep.subr.mxu0 0.0
  %331 = vmatpush1.msra.mxu0 %v124
  %332 = vmatprep.subr.mxu0 0.0
  %333 = vmatpush1.msra.mxu0 %v125
  %334 = vmatprep.subr.mxu0 0.0
  %335 = vmatpush1.msra.mxu0 0.0
  %336 = vmatprep.subr.mxu0 0.0
  %337 = vmatpush1.msra.mxu0 0.0
  %338 = vmatprep.subr.mxu0 0.0
  %339 = vmatpush1.msra.mxu0 0.0
  %340 = vmatprep.subr.mxu0 0.0
  %341 = vmatpush1.msra.mxu0 0.0
  %342 = vmatprep.subr.mxu0 0.0
  %343 = vmatpush1.msra.mxu0 0.0
  %344 = vmatprep.subr.mxu0 0.0
  %345 = vmatpush1.msra.mxu0 0.0
  %346 = vmatprep.subr.mxu0 0.0
  %347 = vmatpush1.msra.mxu0 0.0
  %348 = vmatprep.subr.mxu0 0.0
  %349 = vmatpush1.msra.mxu0 0.0
  %350 = vmatprep.subr.mxu0 0.0
  %351 = vmatpush1.msra.mxu0 0.0
  %352 = vmatprep.subr.mxu0 0.0
  %353 = vmatpush1.msra.mxu0 0.0
  %354 = vmatprep.subr.mxu0 0.0
  %355 = vmatpush1.msra.mxu0 0.0
  %356 = vmatprep.subr.mxu0 0.0
  %357 = vmatpush1.msra.mxu0 0.0
  %358 = vmatprep.subr.mxu0 0.0
  %359 = vmatpush1.msra.mxu0 0.0
  %360 = vmatprep.subr.mxu0 0.0
  %361 = vmatpush1.msra.mxu0 0.0
  %362 = vmatprep.subr.mxu0 0.0
  %363 = vmatpush1.msra.mxu0 0.0
  %364 = vmatprep.subr.mxu0 0.0
  %365 = vmatpush1.msra.mxu0 0.0
  %366 = vmatprep.mubr.f32.mxu0 0.0
  %367 = vmatmul.mubr.f32.gmra.mrb[0].mxu0 %v102
  %v368 = vpop.f32.mrb[0].mxu0
  %v369 = vadd.f32 %v294, %v368
  %v370 = vpop.f32.mrb[0].mxu0
  %371 = vmatprep.mubr.f32.mxu0 0.0
  %372 = vmatmul.mubr.f32.gmra.mrb[0].mxu0 %v107
  %v373 = vpop.f32.mrb[0].mxu0
  %v374 = vadd.f32 %v299, %v373
  %v375 = vpop.f32.mrb[0].mxu0
  %376 = vdwg.mxu0
  %s377 = scalar_lea.vmem %s2, 32
  %v378 = vld [vmem:[%s377] sm:$0xff]
  %v379 = vld [vmem:[%s377 + $0x8] sm:$0xf]
  %v381 = vsel %vm28, %v378, 0
  %v384 = vsel %vm28, %v379, 0
  %386 = vmatprep.subr.mxu0 0.0
  %387 = vmatpush1.msra.mxu0 %v24
  %388 = vmatprep.subr.mxu0 0.0
  %389 = vmatpush1.msra.mxu0 %v25
  %390 = vmatprep.subr.mxu0 0.0
  %391 = vmatpush1.msra.mxu0 0.0
  %392 = vmatprep.subr.mxu0 0.0
  %393 = vmatpush1.msra.mxu0 0.0
  %394 = vmatprep.subr.mxu0 0.0
  %395 = vmatpush1.msra.mxu0 0.0
  %396 = vmatprep.subr.mxu0 0.0
  %397 = vmatpush1.msra.mxu0 0.0
  %398 = vmatprep.subr.mxu0 0.0
  %399 = vmatpush1.msra.mxu0 0.0
  %400 = vmatprep.subr.mxu0 0.0
  %401 = vmatpush1.msra.mxu0 0.0
  %402 = vmatprep.subr.mxu0 0.0
  %403 = vmatpush1.msra.mxu0 0.0
  %404 = vmatprep.subr.mxu0 0.0
  %405 = vmatpush1.msra.mxu0 0.0
  %406 = vmatprep.subr.mxu0 0.0
  %407 = vmatpush1.msra.mxu0 0.0
  %408 = vmatprep.subr.mxu0 0.0
  %409 = vmatpush1.msra.mxu0 0.0
  %410 = vmatprep.subr.mxu0 0.0
  %411 = vmatpush1.msra.mxu0 0.0
  %412 = vmatprep.subr.mxu0 0.0
  %413 = vmatpush1.msra.mxu0 0.0
  %414 = vmatprep.subr.mxu0 0.0
  %415 = vmatpush1.msra.mxu0 0.0
  %416 = vmatprep.subr.mxu0 0.0
  %417 = vmatpush1.msra.mxu0 0.0
  %418 = vmatprep.subr.mxu0 0.0
  %419 = vmatpush1.msra.mxu0 0.0
  %420 = vmatprep.subr.mxu0 0.0
  %421 = vmatpush1.msra.mxu0 0.0
  %422 = vmatprep.subr.mxu0 0.0
  %423 = vmatpush1.msra.mxu0 0.0
  %424 = vmatprep.subr.mxu0 0.0
  %425 = vmatpush1.msra.mxu0 0.0
  %426 = vmatprep.subr.mxu0 0.0
  %427 = vmatpush1.msra.mxu0 0.0
  %428 = vmatprep.subr.mxu0 0.0
  %429 = vmatpush1.msra.mxu0 0.0
  %430 = vmatprep.subr.mxu0 0.0
  %431 = vmatpush1.msra.mxu0 0.0
  %432 = vmatprep.subr.mxu0 0.0
  %433 = vmatpush1.msra.mxu0 0.0
  %434 = vmatprep.subr.mxu0 0.0
  %435 = vmatpush1.msra.mxu0 0.0
  %436 = vmatprep.subr.mxu0 0.0
  %437 = vmatpush1.msra.mxu0 0.0
  %438 = vmatprep.subr.mxu0 0.0
  %439 = vmatpush1.msra.mxu0 0.0
  %440 = vmatprep.subr.mxu0 0.0
  %441 = vmatpush1.msra.mxu0 0.0
  %442 = vmatprep.subr.mxu0 0.0
  %443 = vmatpush1.msra.mxu0 0.0
  %444 = vmatprep.subr.mxu0 0.0
  %445 = vmatpush1.msra.mxu0 0.0
  %446 = vmatprep.subr.mxu0 0.0
  %447 = vmatpush1.msra.mxu0 0.0
  %448 = vmatprep.subr.mxu0 0.0
  %449 = vmatpush1.msra.mxu0 0.0
  %450 = vmatprep.mubr.f32.mxu0 0.0
  %451 = vmatmul.mubr.f32.gmra.mrb[0].mxu0 %v381
  %v452 = vpop.f32.mrb[0].mxu0
  %v453 = vadd.f32 0.0, %v452
  %v454 = vpop.f32.mrb[0].mxu0
  %455 = vmatprep.mubr.f32.mxu0 0.0
  %456 = vmatmul.mubr.f32.gmra.mrb[0].mxu0 %v384
  %v457 = vpop.f32.mrb[0].mxu0
  %v458 = vadd.f32 0.0, %v457
  %v459 = vpop.f32.mrb[0].mxu0
  %460 = vdwg.mxu0
  %s461 = scalar_lea.vmem %s4, 256
  %v462 = vld [vmem:[%s461] sm:$0xff]
  %v463 = vld [vmem:[%s461 + $0x8] sm:$0xff]
  %v464 = vld [vmem:[%s461 + $0x10] sm:$0xff]
  %v465 = vld [vmem:[%s461 + $0x18] sm:$0xff]
  %v466 = vld [vmem:[%s461 + $0x20] sm:$0xff]
  %v467 = vld [vmem:[%s461 + $0x28] sm:$0xff]
  %v468 = vld [vmem:[%s461 + $0x30] sm:$0xff]
  %v469 = vld [vmem:[%s461 + $0x38] sm:$0xff]
  %v470 = vld [vmem:[%s461 + $0x40] sm:$0xff]
  %v471 = vld [vmem:[%s461 + $0x48] sm:$0xff]
  %v472 = vld [vmem:[%s461 + $0x50] sm:$0xff]
  %v473 = vld [vmem:[%s461 + $0x58] sm:$0xff]
  %v474 = vld [vmem:[%s461 + $0x60] sm:$0xff]
  %v475 = vld [vmem:[%s461 + $0x68] sm:$0xff]
  %v476 = vld [vmem:[%s461 + $0x70] sm:$0xff]
  %v477 = vld [vmem:[%s461 + $0x78] sm:$0xff]
  %478 = vmatprep.subr.mxu0 0.0
  %479 = vmatpush1.msra.mxu0 %v462
  %480 = vmatprep.subr.mxu0 0.0
  %481 = vmatpush1.msra.mxu0 %v463
  %482 = vmatprep.subr.mxu0 0.0
  %483 = vmatpush1.msra.mxu0 %v464
  %484 = vmatprep.subr.mxu0 0.0
  %485 = vmatpush1.msra.mxu0 %v465
  %486 = vmatprep.subr.mxu0 0.0
  %487 = vmatpush1.msra.mxu0 %v466
  %488 = vmatprep.subr.mxu0 0.0
  %489 = vmatpush1.msra.mxu0 %v467
  %490 = vmatprep.subr.mxu0 0.0
  %491 = vmatpush1.msra.mxu0 %v468
  %492 = vmatprep.subr.mxu0 0.0
  %493 = vmatpush1.msra.mxu0 %v469
  %494 = vmatprep.subr.mxu0 0.0
  %495 = vmatpush1.msra.mxu0 %v470
  %496 = vmatprep.subr.mxu0 0.0
  %497 = vmatpush1.msra.mxu0 %v471
  %498 = vmatprep.subr.mxu0 0.0
  %499 = vmatpush1.msra.mxu0 %v472
  %500 = vmatprep.subr.mxu0 0.0
  %501 = vmatpush1.msra.mxu0 %v473
  %502 = vmatprep.subr.mxu0 0.0
  %503 = vmatpush1.msra.mxu0 %v474
  %504 = vmatprep.subr.mxu0 0.0
  %505 = vmatpush1.msra.mxu0 %v475
  %506 = vmatprep.subr.mxu0 0.0
  %507 = vmatpush1.msra.mxu0 %v476
  %508 = vmatprep.subr.mxu0 0.0
  %509 = vmatpush1.msra.mxu0 %v477
  %510 = vmatprep.subr.mxu0 0.0
  %511 = vmatpush1.msra.mxu0 0.0
  %512 = vmatprep.subr.mxu0 0.0
  %513 = vmatpush1.msra.mxu0 0.0
  %514 = vmatprep.subr.mxu0 0.0
  %515 = vmatpush1.msra.mxu0 0.0
  %516 = vmatprep.subr.mxu0 0.0
  %517 = vmatpush1.msra.mxu0 0.0
  %518 = vmatprep.subr.mxu0 0.0
  %519 = vmatpush1.msra.mxu0 0.0
  %520 = vmatprep.subr.mxu0 0.0
  %521 = vmatpush1.msra.mxu0 0.0
  %522 = vmatprep.subr.mxu0 0.0
  %523 = vmatpush1.msra.mxu0 0.0
  %524 = vmatprep.subr.mxu0 0.0
  %525 = vmatpush1.msra.mxu0 0.0
  %526 = vmatprep.subr.mxu0 0.0
  %527 = vmatpush1.msra.mxu0 0.0
  %528 = vmatprep.subr.mxu0 0.0
  %529 = vmatpush1.msra.mxu0 0.0
  %530 = vmatprep.subr.mxu0 0.0
  %531 = vmatpush1.msra.mxu0 0.0
  %532 = vmatprep.subr.mxu0 0.0
  %533 = vmatpush1.msra.mxu0 0.0
  %534 = vmatprep.subr.mxu0 0.0
  %535 = vmatpush1.msra.mxu0 0.0
  %536 = vmatprep.subr.mxu0 0.0
  %537 = vmatpush1.msra.mxu0 0.0
  %538 = vmatprep.subr.mxu0 0.0
  %539 = vmatpush1.msra.mxu0 0.0
  %540 = vmatprep.subr.mxu0 0.0
  %541 = vmatpush1.msra.mxu0 0.0
  %542 = vmatprep.mubr.f32.mxu0 0.0
  %543 = vmatmul.mubr.f32.gmra.mrb[0].mxu0 %v453
  %v544 = vpop.f32.mrb[0].mxu0
  %v545 = vadd.f32 0.0, %v544
  %v546 = vpop.f32.mrb[0].mxu0
  %547 = vmatprep.mubr.f32.mxu0 0.0
  %548 = vmatmul.mubr.f32.gmra.mrb[0].mxu0 %v458
  %v549 = vpop.f32.mrb[0].mxu0
  %v550 = vadd.f32 0.0, %v549
  %v551 = vpop.f32.mrb[0].mxu0
  %552 = vdwg.mxu0
  %v553 = vadd.f32 %v369, %v545
  %v554 = vadd.f32 %v374, %v550
  %s555 = scalar_lea.vmem %s2, 48
  %v556 = vld [vmem:[%s555] sm:$0xff]
  %v557 = vld [vmem:[%s555 + $0x8] sm:$0xf]
  %v559 = vsel %vm28, %v556, 0
  %v562 = vsel %vm28, %v557, 0
  %564 = vmatprep.subr.mxu0 0.0
  %565 = vmatpush1.msra.mxu0 %v24
  %566 = vmatprep.subr.mxu0 0.0
  %567 = vmatpush1.msra.mxu0 %v25
  %568 = vmatprep.subr.mxu0 0.0
  %569 = vmatpush1.msra.mxu0 0.0
  %570 = vmatprep.subr.mxu0 0.0
  %571 = vmatpush1.msra.mxu0 0.0
  %572 = vmatprep.subr.mxu0 0.0
  %573 = vmatpush1.msra.mxu0 0.0
  %574 = vmatprep.subr.mxu0 0.0
  %575 = vmatpush1.msra.mxu0 0.0
  %576 = vmatprep.subr.mxu0 0.0
  %577 = vmatpush1.msra.mxu0 0.0
  %578 = vmatprep.subr.mxu0 0.0
  %579 = vmatpush1.msra.mxu0 0.0
  %580 = vmatprep.subr.mxu0 0.0
  %581 = vmatpush1.msra.mxu0 0.0
  %582 = vmatprep.subr.mxu0 0.0
  %583 = vmatpush1.msra.mxu0 0.0
  %584 = vmatprep.subr.mxu0 0.0
  %585 = vmatpush1.msra.mxu0 0.0
  %586 = vmatprep.subr.mxu0 0.0
  %587 = vmatpush1.msra.mxu0 0.0
  %588 = vmatprep.subr.mxu0 0.0
  %589 = vmatpush1.msra.mxu0 0.0
  %590 = vmatprep.subr.mxu0 0.0
  %591 = vmatpush1.msra.mxu0 0.0
  %592 = vmatprep.subr.mxu0 0.0
  %593 = vmatpush1.msra.mxu0 0.0
  %594 = vmatprep.subr.mxu0 0.0
  %595 = vmatpush1.msra.mxu0 0.0
  %596 = vmatprep.subr.mxu0 0.0
  %597 = vmatpush1.msra.mxu0 0.0
  %598 = vmatprep.subr.mxu0 0.0
  %599 = vmatpush1.msra.mxu0 0.0
  %600 = vmatprep.subr.mxu0 0.0
  %601 = vmatpush1.msra.mxu0 0.0
  %602 = vmatprep.subr.mxu0 0.0
  %603 = vmatpush1.msra.mxu0 0.0
  %604 = vmatprep.subr.mxu0 0.0
  %605 = vmatpush1.msra.mxu0 0.0
  %606 = vmatprep.subr.mxu0 0.0
  %607 = vmatpush1.msra.mxu0 0.0
  %608 = vmatprep.subr.mxu0 0.0
  %609 = vmatpush1.msra.mxu0 0.0
  %610 = vmatprep.subr.mxu0 0.0
  %611 = vmatpush1.msra.mxu0 0.0
  %612 = vmatprep.subr.mxu0 0.0
  %613 = vmatpush1.msra.mxu0 0.0
  %614 = vmatprep.subr.mxu0 0.0
  %615 = vmatpush1.msra.mxu0 0.0
  %616 = vmatprep.subr.mxu0 0.0
  %617 = vmatpush1.msra.mxu0 0.0
  %618 = vmatprep.subr.mxu0 0.0
  %619 = vmatpush1.msra.mxu0 0.0
  %620 = vmatprep.subr.mxu0 0.0
  %621 = vmatpush1.msra.mxu0 0.0
  %622 = vmatprep.subr.mxu0 0.0
  %623 = vmatpush1.msra.mxu0 0.0
  %624 = vmatprep.subr.mxu0 0.0
  %625 = vmatpush1.msra.mxu0 0.0
  %626 = vmatprep.subr.mxu0 0.0
  %627 = vmatpush1.msra.mxu0 0.0
  %628 = vmatprep.mubr.f32.mxu0 0.0
  %629 = vmatmul.mubr.f32.gmra.mrb[0].mxu0 %v559
  %v630 = vpop.f32.mrb[0].mxu0
  %v631 = vadd.f32 0.0, %v630
  %v632 = vpop.f32.mrb[0].mxu0
  %633 = vmatprep.mubr.f32.mxu0 0.0
  %634 = vmatmul.mubr.f32.gmra.mrb[0].mxu0 %v562
  %v635 = vpop.f32.mrb[0].mxu0
  %v636 = vadd.f32 0.0, %v635
  %v637 = vpop.f32.mrb[0].mxu0
  %638 = vdwg.mxu0
  %s639 = scalar_lea.vmem %s4, 384
  %v640 = vld [vmem:[%s639] sm:$0xff]
  %v641 = vld [vmem:[%s639 + $0x8] sm:$0xff]
  %v642 = vld [vmem:[%s639 + $0x10] sm:$0xff]
  %v643 = vld [vmem:[%s639 + $0x18] sm:$0xff]
  %v644 = vld [vmem:[%s639 + $0x20] sm:$0xff]
  %v645 = vld [vmem:[%s639 + $0x28] sm:$0xff]
  %v646 = vld [vmem:[%s639 + $0x30] sm:$0xff]
  %v647 = vld [vmem:[%s639 + $0x38] sm:$0xff]
  %v648 = vld [vmem:[%s639 + $0x40] sm:$0xff]
  %v649 = vld [vmem:[%s639 + $0x48] sm:$0xff]
  %v650 = vld [vmem:[%s639 + $0x50] sm:$0xff]
  %v651 = vld [vmem:[%s639 + $0x58] sm:$0xff]
  %v652 = vld [vmem:[%s639 + $0x60] sm:$0xff]
  %v653 = vld [vmem:[%s639 + $0x68] sm:$0xff]
  %v654 = vld [vmem:[%s639 + $0x70] sm:$0xff]
  %v655 = vld [vmem:[%s639 + $0x78] sm:$0xff]
  %656 = vmatprep.subr.mxu0 0.0
  %657 = vmatpush1.msra.mxu0 %v640
  %658 = vmatprep.subr.mxu0 0.0
  %659 = vmatpush1.msra.mxu0 %v641
  %660 = vmatprep.subr.mxu0 0.0
  %661 = vmatpush1.msra.mxu0 %v642
  %662 = vmatprep.subr.mxu0 0.0
  %663 = vmatpush1.msra.mxu0 %v643
  %664 = vmatprep.subr.mxu0 0.0
  %665 = vmatpush1.msra.mxu0 %v644
  %666 = vmatprep.subr.mxu0 0.0
  %667 = vmatpush1.msra.mxu0 %v645
  %668 = vmatprep.subr.mxu0 0.0
  %669 = vmatpush1.msra.mxu0 %v646
  %670 = vmatprep.subr.mxu0 0.0
  %671 = vmatpush1.msra.mxu0 %v647
  %672 = vmatprep.subr.mxu0 0.0
  %673 = vmatpush1.msra.mxu0 %v648
  %674 = vmatprep.subr.mxu0 0.0
  %675 = vmatpush1.msra.mxu0 %v649
  %676 = vmatprep.subr.mxu0 0.0
  %677 = vmatpush1.msra.mxu0 %v650
  %678 = vmatprep.subr.mxu0 0.0
  %679 = vmatpush1.msra.mxu0 %v651
  %680 = vmatprep.subr.mxu0 0.0
  %681 = vmatpush1.msra.mxu0 %v652
  %682 = vmatprep.subr.mxu0 0.0
  %683 = vmatpush1.msra.mxu0 %v653
  %684 = vmatprep.subr.mxu0 0.0
  %685 = vmatpush1.msra.mxu0 %v654
  %686 = vmatprep.subr.mxu0 0.0
  %687 = vmatpush1.msra.mxu0 %v655
  %688 = vmatprep.subr.mxu0 0.0
  %689 = vmatpush1.msra.mxu0 0.0
  %690 = vmatprep.subr.mxu0 0.0
  %691 = vmatpush1.msra.mxu0 0.0
  %692 = vmatprep.subr.mxu0 0.0
  %693 = vmatpush1.msra.mxu0 0.0
  %694 = vmatprep.subr.mxu0 0.0
  %695 = vmatpush1.msra.mxu0 0.0
  %696 = vmatprep.subr.mxu0 0.0
  %697 = vmatpush1.msra.mxu0 0.0
  %698 = vmatprep.subr.mxu0 0.0
  %699 = vmatpush1.msra.mxu0 0.0
  %700 = vmatprep.subr.mxu0 0.0
  %701 = vmatpush1.msra.mxu0 0.0
  %702 = vmatprep.subr.mxu0 0.0
  %703 = vmatpush1.msra.mxu0 0.0
  %704 = vmatprep.subr.mxu0 0.0
  %705 = vmatpush1.msra.mxu0 0.0
  %706 = vmatprep.subr.mxu0 0.0
  %707 = vmatpush1.msra.mxu0 0.0
  %708 = vmatprep.subr.mxu0 0.0
  %709 = vmatpush1.msra.mxu0 0.0
  %710 = vmatprep.subr.mxu0 0.0
  %711 = vmatpush1.msra.mxu0 0.0
  %712 = vmatprep.subr.mxu0 0.0
  %713 = vmatpush1.msra.mxu0 0.0
  %714 = vmatprep.subr.mxu0 0.0
  %715 = vmatpush1.msra.mxu0 0.0
  %716 = vmatprep.subr.mxu0 0.0
  %717 = vmatpush1.msra.mxu0 0.0
  %718 = vmatprep.subr.mxu0 0.0
  %719 = vmatpush1.msra.mxu0 0.0
  %720 = vmatprep.mubr.f32.mxu0 0.0
  %721 = vmatmul.mubr.f32.gmra.mrb[0].mxu0 %v631
  %v722 = vpop.f32.mrb[0].mxu0
  %v723 = vadd.f32 0.0, %v722
  %v724 = vpop.f32.mrb[0].mxu0
  %725 = vmatprep.mubr.f32.mxu0 0.0
  %726 = vmatmul.mubr.f32.gmra.mrb[0].mxu0 %v636
  %v727 = vpop.f32.mrb[0].mxu0
  %v728 = vadd.f32 0.0, %v727
  %v729 = vpop.f32.mrb[0].mxu0
  %730 = vdwg.mxu0
  %v731 = vadd.f32 %v553, %v723
  %v732 = vadd.f32 %v554, %v728
  %s733 = scalar_lea.vmem %s2, 64
  %v734 = vld [vmem:[%s733] sm:$0xff]
  %v735 = vld [vmem:[%s733 + $0x8] sm:$0xf]
  %v737 = vsel %vm28, %v734, 0
  %v740 = vsel %vm28, %v735, 0
  %742 = vmatprep.subr.mxu0 0.0
  %743 = vmatpush1.msra.mxu0 %v24
  %744 = vmatprep.subr.mxu0 0.0
  %745 = vmatpush1.msra.mxu0 %v25
  %746 = vmatprep.subr.mxu0 0.0
  %747 = vmatpush1.msra.mxu0 0.0
  %748 = vmatprep.subr.mxu0 0.0
  %749 = vmatpush1.msra.mxu0 0.0
  %750 = vmatprep.subr.mxu0 0.0
  %751 = vmatpush1.msra.mxu0 0.0
  %752 = vmatprep.subr.mxu0 0.0
  %753 = vmatpush1.msra.mxu0 0.0
  %754 = vmatprep.subr.mxu0 0.0
  %755 = vmatpush1.msra.mxu0 0.0
  %756 = vmatprep.subr.mxu0 0.0
  %757 = vmatpush1.msra.mxu0 0.0
  %758 = vmatprep.subr.mxu0 0.0
  %759 = vmatpush1.msra.mxu0 0.0
  %760 = vmatprep.subr.mxu0 0.0
  %761 = vmatpush1.msra.mxu0 0.0
  %762 = vmatprep.subr.mxu0 0.0
  %763 = vmatpush1.msra.mxu0 0.0
  %764 = vmatprep.subr.mxu0 0.0
  %765 = vmatpush1.msra.mxu0 0.0
  %766 = vmatprep.subr.mxu0 0.0
  %767 = vmatpush1.msra.mxu0 0.0
  %768 = vmatprep.subr.mxu0 0.0
  %769 = vmatpush1.msra.mxu0 0.0
  %770 = vmatprep.subr.mxu0 0.0
  %771 = vmatpush1.msra.mxu0 0.0
  %772 = vmatprep.subr.mxu0 0.0
  %773 = vmatpush1.msra.mxu0 0.0
  %774 = vmatprep.subr.mxu0 0.0
  %775 = vmatpush1.msra.mxu0 0.0
  %776 = vmatprep.subr.mxu0 0.0
  %777 = vmatpush1.msra.mxu0 0.0
  %778 = vmatprep.subr.mxu0 0.0
  %779 = vmatpush1.msra.mxu0 0.0
  %780 = vmatprep.subr.mxu0 0.0
  %781 = vmatpush1.msra.mxu0 0.0
  %782 = vmatprep.subr.mxu0 0.0
  %783 = vmatpush1.msra.mxu0 0.0
  %784 = vmatprep.subr.mxu0 0.0
  %785 = vmatpush1.msra.mxu0 0.0
  %786 = vmatprep.subr.mxu0 0.0
  %787 = vmatpush1.msra.mxu0 0.0
  %788 = vmatprep.subr.mxu0 0.0
  %789 = vmatpush1.msra.mxu0 0.0
  %790 = vmatprep.subr.mxu0 0.0
  %791 = vmatpush1.msra.mxu0 0.0
  %792 = vmatprep.subr.mxu0 0.0
  %793 = vmatpush1.msra.mxu0 0.0
  %794 = vmatprep.subr.mxu0 0.0
  %795 = vmatpush1.msra.mxu0 0.0
  %796 = vmatprep.subr.mxu0 0.0
  %797 = vmatpush1.msra.mxu0 0.0
  %798 = vmatprep.subr.mxu0 0.0
  %799 = vmatpush1.msra.mxu0 0.0
  %800 = vmatprep.subr.mxu0 0.0
  %801 = vmatpush1.msra.mxu0 0.0
  %802 = vmatprep.subr.mxu0 0.0
  %803 = vmatpush1.msra.mxu0 0.0
  %804 = vmatprep.subr.mxu0 0.0
  %805 = vmatpush1.msra.mxu0 0.0
  %806 = vmatprep.mubr.f32.mxu0 0.0
  %807 = vmatmul.mubr.f32.gmra.mrb[0].mxu0 %v737
  %v808 = vpop.f32.mrb[0].mxu0
  %v809 = vadd.f32 0.0, %v808
  %v810 = vpop.f32.mrb[0].mxu0
  %811 = vmatprep.mubr.f32.mxu0 0.0
  %812 = vmatmul.mubr.f32.gmra.mrb[0].mxu0 %v740
  %v813 = vpop.f32.mrb[0].mxu0
  %v814 = vadd.f32 0.0, %v813
  %v815 = vpop.f32.mrb[0].mxu0
  %816 = vdwg.mxu0
  %s817 = scalar_lea.vmem %s4, 512
  %v818 = vld [vmem:[%s817] sm:$0xff]
  %v819 = vld [vmem:[%s817 + $0x8] sm:$0xff]
  %v820 = vld [vmem:[%s817 + $0x10] sm:$0xff]
  %v821 = vld [vmem:[%s817 + $0x18] sm:$0xff]
  %v822 = vld [vmem:[%s817 + $0x20] sm:$0xff]
  %v823 = vld [vmem:[%s817 + $0x28] sm:$0xff]
  %v824 = vld [vmem:[%s817 + $0x30] sm:$0xff]
  %v825 = vld [vmem:[%s817 + $0x38] sm:$0xff]
  %v826 = vld [vmem:[%s817 + $0x40] sm:$0xff]
  %v827 = vld [vmem:[%s817 + $0x48] sm:$0xff]
  %v828 = vld [vmem:[%s817 + $0x50] sm:$0xff]
  %v829 = vld [vmem:[%s817 + $0x58] sm:$0xff]
  %v830 = vld [vmem:[%s817 + $0x60] sm:$0xff]
  %v831 = vld [vmem:[%s817 + $0x68] sm:$0xff]
  %v832 = vld [vmem:[%s817 + $0x70] sm:$0xff]
  %v833 = vld [vmem:[%s817 + $0x78] sm:$0xff]
  %834 = vmatprep.subr.mxu0 0.0
  %835 = vmatpush1.msra.mxu0 %v818
  %836 = vmatprep.subr.mxu0 0.0
  %837 = vmatpush1.msra.mxu0 %v819
  %838 = vmatprep.subr.mxu0 0.0
  %839 = vmatpush1.msra.mxu0 %v820
  %840 = vmatprep.subr.mxu0 0.0
  %841 = vmatpush1.msra.mxu0 %v821
  %842 = vmatprep.subr.mxu0 0.0
  %843 = vmatpush1.msra.mxu0 %v822
  %844 = vmatprep.subr.mxu0 0.0
  %845 = vmatpush1.msra.mxu0 %v823
  %846 = vmatprep.subr.mxu0 0.0
  %847 = vmatpush1.msra.mxu0 %v824
  %848 = vmatprep.subr.mxu0 0.0
  %849 = vmatpush1.msra.mxu0 %v825
  %850 = vmatprep.subr.mxu0 0.0
  %851 = vmatpush1.msra.mxu0 %v826
  %852 = vmatprep.subr.mxu0 0.0
  %853 = vmatpush1.msra.mxu0 %v827
  %854 = vmatprep.subr.mxu0 0.0
  %855 = vmatpush1.msra.mxu0 %v828
  %856 = vmatprep.subr.mxu0 0.0
  %857 = vmatpush1.msra.mxu0 %v829
  %858 = vmatprep.subr.mxu0 0.0
  %859 = vmatpush1.msra.mxu0 %v830
  %860 = vmatprep.subr.mxu0 0.0
  %861 = vmatpush1.msra.mxu0 %v831
  %862 = vmatprep.subr.mxu0 0.0
  %863 = vmatpush1.msra.mxu0 %v832
  %864 = vmatprep.subr.mxu0 0.0
  %865 = vmatpush1.msra.mxu0 %v833
  %866 = vmatprep.subr.mxu0 0.0
  %867 = vmatpush1.msra.mxu0 0.0
  %868 = vmatprep.subr.mxu0 0.0
  %869 = vmatpush1.msra.mxu0 0.0
  %870 = vmatprep.subr.mxu0 0.0
  %871 = vmatpush1.msra.mxu0 0.0
  %872 = vmatprep.subr.mxu0 0.0
  %873 = vmatpush1.msra.mxu0 0.0
  %874 = vmatprep.subr.mxu0 0.0
  %875 = vmatpush1.msra.mxu0 0.0
  %876 = vmatprep.subr.mxu0 0.0
  %877 = vmatpush1.msra.mxu0 0.0
  %878 = vmatprep.subr.mxu0 0.0
  %879 = vmatpush1.msra.mxu0 0.0
  %880 = vmatprep.subr.mxu0 0.0
  %881 = vmatpush1.msra.mxu0 0.0
  %882 = vmatprep.subr.mxu0 0.0
  %883 = vmatpush1.msra.mxu0 0.0
  %884 = vmatprep.subr.mxu0 0.0
  %885 = vmatpush1.msra.mxu0 0.0
  %886 = vmatprep.subr.mxu0 0.0
  %887 = vmatpush1.msra.mxu0 0.0
  %888 = vmatprep.subr.mxu0 0.0
  %889 = vmatpush1.msra.mxu0 0.0
  %890 = vmatprep.subr.mxu0 0.0
  %891 = vmatpush1.msra.mxu0 0.0
  %892 = vmatprep.subr.mxu0 0.0
  %893 = vmatpush1.msra.mxu0 0.0
  %894 = vmatprep.subr.mxu0 0.0
  %895 = vmatpush1.msra.mxu0 0.0
  %896 = vmatprep.subr.mxu0 0.0
  %897 = vmatpush1.msra.mxu0 0.0
  %898 = vmatprep.mubr.f32.mxu0 0.0
  %899 = vmatmul.mubr.f32.gmra.mrb[0].mxu0 %v809
  %v900 = vpop.f32.mrb[0].mxu0
  %v901 = vadd.f32 0.0, %v900
  %v902 = vpop.f32.mrb[0].mxu0
  %903 = vmatprep.mubr.f32.mxu0 0.0
  %904 = vmatmul.mubr.f32.gmra.mrb[0].mxu0 %v814
  %v905 = vpop.f32.mrb[0].mxu0
  %v906 = vadd.f32 0.0, %v905
  %v907 = vpop.f32.mrb[0].mxu0
  %908 = vdwg.mxu0
  %v909 = vadd.f32 %v731, %v901
  %v910 = vadd.f32 %v732, %v906
  %s911 = scalar_lea.vmem %s2, 80
  %v912 = vld [vmem:[%s911] sm:$0xff]
  %v913 = vld [vmem:[%s911 + $0x8] sm:$0xf]
  %v915 = vsel %vm28, %v912, 0
  %v918 = vsel %vm28, %v913, 0
  %920 = vmatprep.subr.mxu0 0.0
  %921 = vmatpush1.msra.mxu0 %v24
  %922 = vmatprep.subr.mxu0 0.0
  %923 = vmatpush1.msra.mxu0 %v25
  %924 = vmatprep.subr.mxu0 0.0
  %925 = vmatpush1.msra.mxu0 0.0
  %926 = vmatprep.subr.mxu0 0.0
  %927 = vmatpush1.msra.mxu0 0.0
  %928 = vmatprep.subr.mxu0 0.0
  %929 = vmatpush1.msra.mxu0 0.0
  %930 = vmatprep.subr.mxu0 0.0
  %931 = vmatpush1.msra.mxu0 0.0
  %932 = vmatprep.subr.mxu0 0.0
  %933 = vmatpush1.msra.mxu0 0.0
  %934 = vmatprep.subr.mxu0 0.0
  %935 = vmatpush1.msra.mxu0 0.0
  %936 = vmatprep.subr.mxu0 0.0
  %937 = vmatpush1.msra.mxu0 0.0
  %938 = vmatprep.subr.mxu0 0.0
  %939 = vmatpush1.msra.mxu0 0.0
  %940 = vmatprep.subr.mxu0 0.0
  %941 = vmatpush1.msra.mxu0 0.0
  %942 = vmatprep.subr.mxu0 0.0
  %943 = vmatpush1.msra.mxu0 0.0
  %944 = vmatprep.subr.mxu0 0.0
  %945 = vmatpush1.msra.mxu0 0.0
  %946 = vmatprep.subr.mxu0 0.0
  %947 = vmatpush1.msra.mxu0 0.0
  %948 = vmatprep.subr.mxu0 0.0
  %949 = vmatpush1.msra.mxu0 0.0
  %950 = vmatprep.subr.mxu0 0.0
  %951 = vmatpush1.msra.mxu0 0.0
  %952 = vmatprep.subr.mxu0 0.0
  %953 = vmatpush1.msra.mxu0 0.0
  %954 = vmatprep.subr.mxu0 0.0
  %955 = vmatpush1.msra.mxu0 0.0
  %956 = vmatprep.subr.mxu0 0.0
  %957 = vmatpush1.msra.mxu0 0.0
  %958 = vmatprep.subr.mxu0 0.0
  %959 = vmatpush1.msra.mxu0 0.0
  %960 = vmatprep.subr.mxu0 0.0
  %961 = vmatpush1.msra.mxu0 0.0
  %962 = vmatprep.subr.mxu0 0.0
  %963 = vmatpush1.msra.mxu0 0.0
  %964 = vmatprep.subr.mxu0 0.0
  %965 = vmatpush1.msra.mxu0 0.0
  %966 = vmatprep.subr.mxu0 0.0
  %967 = vmatpush1.msra.mxu0 0.0
  %968 = vmatprep.subr.mxu0 0.0
  %969 = vmatpush1.msra.mxu0 0.0
  %970 = vmatprep.subr.mxu0 0.0
  %971 = vmatpush1.msra.mxu0 0.0
  %972 = vmatprep.subr.mxu0 0.0
  %973 = vmatpush1.msra.mxu0 0.0
  %974 = vmatprep.subr.mxu0 0.0
  %975 = vmatpush1.msra.mxu0 0.0
  %976 = vmatprep.subr.mxu0 0.0
  %977 = vmatpush1.msra.mxu0 0.0
  %978 = vmatprep.subr.mxu0 0.0
  %979 = vmatpush1.msra.mxu0 0.0
  %980 = vmatprep.subr.mxu0 0.0
  %981 = vmatpush1.msra.mxu0 0.0
  %982 = vmatprep.subr.mxu0 0.0
  %983 = vmatpush1.msra.mxu0 0.0
  %984 = vmatprep.mubr.f32.mxu0 0.0
  %985 = vmatmul.mubr.f32.gmra.mrb[0].mxu0 %v915
  %v986 = vpop.f32.mrb[0].mxu0
  %v987 = vadd.f32 0.0, %v986
  %v988 = vpop.f32.mrb[0].mxu0
  %989 = vmatprep.mubr.f32.mxu0 0.0
  %990 = vmatmul.mubr.f32.gmra.mrb[0].mxu0 %v918
  %v991 = vpop.f32.mrb[0].mxu0
  %v992 = vadd.f32 0.0, %v991
  %v993 = vpop.f32.mrb[0].mxu0
  %994 = vdwg.mxu0
  %s995 = scalar_lea.vmem %s4, 640
  %v996 = vld [vmem:[%s995] sm:$0xff]
  %v997 = vld [vmem:[%s995 + $0x8] sm:$0xff]
  %v998 = vld [vmem:[%s995 + $0x10] sm:$0xff]
  %v999 = vld [vmem:[%s995 + $0x18] sm:$0xff]
  %v1000 = vld [vmem:[%s995 + $0x20] sm:$0xff]
  %v1001 = vld [vmem:[%s995 + $0x28] sm:$0xff]
  %v1002 = vld [vmem:[%s995 + $0x30] sm:$0xff]
  %v1003 = vld [vmem:[%s995 + $0x38] sm:$0xff]
  %v1004 = vld [vmem:[%s995 + $0x40] sm:$0xff]
  %v1005 = vld [vmem:[%s995 + $0x48] sm:$0xff]
  %v1006 = vld [vmem:[%s995 + $0x50] sm:$0xff]
  %v1007 = vld [vmem:[%s995 + $0x58] sm:$0xff]
  %v1008 = vld [vmem:[%s995 + $0x60] sm:$0xff]
  %v1009 = vld [vmem:[%s995 + $0x68] sm:$0xff]
  %v1010 = vld [vmem:[%s995 + $0x70] sm:$0xff]
  %v1011 = vld [vmem:[%s995 + $0x78] sm:$0xff]
  %1012 = vmatprep.subr.mxu0 0.0
  %1013 = vmatpush1.msra.mxu0 %v996
  %1014 = vmatprep.subr.mxu0 0.0
  %1015 = vmatpush1.msra.mxu0 %v997
  %1016 = vmatprep.subr.mxu0 0.0
  %1017 = vmatpush1.msra.mxu0 %v998
  %1018 = vmatprep.subr.mxu0 0.0
  %1019 = vmatpush1.msra.mxu0 %v999
  %1020 = vmatprep.subr.mxu0 0.0
  %1021 = vmatpush1.msra.mxu0 %v1000
  %1022 = vmatprep.subr.mxu0 0.0
  %1023 = vmatpush1.msra.mxu0 %v1001
  %1024 = vmatprep.subr.mxu0 0.0
  %1025 = vmatpush1.msra.mxu0 %v1002
  %1026 = vmatprep.subr.mxu0 0.0
  %1027 = vmatpush1.msra.mxu0 %v1003
  %1028 = vmatprep.subr.mxu0 0.0
  %1029 = vmatpush1.msra.mxu0 %v1004
  %1030 = vmatprep.subr.mxu0 0.0
  %1031 = vmatpush1.msra.mxu0 %v1005
  %1032 = vmatprep.subr.mxu0 0.0
  %1033 = vmatpush1.msra.mxu0 %v1006
  %1034 = vmatprep.subr.mxu0 0.0
  %1035 = vmatpush1.msra.mxu0 %v1007
  %1036 = vmatprep.subr.mxu0 0.0
  %1037 = vmatpush1.msra.mxu0 %v1008
  %1038 = vmatprep.subr.mxu0 0.0
  %1039 = vmatpush1.msra.mxu0 %v1009
  %1040 = vmatprep.subr.mxu0 0.0
  %1041 = vmatpush1.msra.mxu0 %v1010
  %1042 = vmatprep.subr.mxu0 0.0
  %1043 = vmatpush1.msra.mxu0 %v1011
  %1044 = vmatprep.subr.mxu0 0.0
  %1045 = vmatpush1.msra.mxu0 0.0
  %1046 = vmatprep.subr.mxu0 0.0
  %1047 = vmatpush1.msra.mxu0 0.0
  %1048 = vmatprep.subr.mxu0 0.0
  %1049 = vmatpush1.msra.mxu0 0.0
  %1050 = vmatprep.subr.mxu0 0.0
  %1051 = vmatpush1.msra.mxu0 0.0
  %1052 = vmatprep.subr.mxu0 0.0
  %1053 = vmatpush1.msra.mxu0 0.0
  %1054 = vmatprep.subr.mxu0 0.0
  %1055 = vmatpush1.msra.mxu0 0.0
  %1056 = vmatprep.subr.mxu0 0.0
  %1057 = vmatpush1.msra.mxu0 0.0
  %1058 = vmatprep.subr.mxu0 0.0
  %1059 = vmatpush1.msra.mxu0 0.0
  %1060 = vmatprep.subr.mxu0 0.0
  %1061 = vmatpush1.msra.mxu0 0.0
  %1062 = vmatprep.subr.mxu0 0.0
  %1063 = vmatpush1.msra.mxu0 0.0
  %1064 = vmatprep.subr.mxu0 0.0
  %1065 = vmatpush1.msra.mxu0 0.0
  %1066 = vmatprep.subr.mxu0 0.0
  %1067 = vmatpush1.msra.mxu0 0.0
  %1068 = vmatprep.subr.mxu0 0.0
  %1069 = vmatpush1.msra.mxu0 0.0
  %1070 = vmatprep.subr.mxu0 0.0
  %1071 = vmatpush1.msra.mxu0 0.0
  %1072 = vmatprep.subr.mxu0 0.0
  %1073 = vmatpush1.msra.mxu0 0.0
  %1074 = vmatprep.subr.mxu0 0.0
  %1075 = vmatpush1.msra.mxu0 0.0
  %1076 = vmatprep.mubr.f32.mxu0 0.0
  %1077 = vmatmul.mubr.f32.gmra.mrb[0].mxu0 %v987
  %v1078 = vpop.f32.mrb[0].mxu0
  %v1079 = vadd.f32 0.0, %v1078
  %v1080 = vpop.f32.mrb[0].mxu0
  %1081 = vmatprep.mubr.f32.mxu0 0.0
  %1082 = vmatmul.mubr.f32.gmra.mrb[0].mxu0 %v992
  %v1083 = vpop.f32.mrb[0].mxu0
  %v1084 = vadd.f32 0.0, %v1083
  %v1085 = vpop.f32.mrb[0].mxu0
  %1086 = vdwg.mxu0
  %v1087 = vadd.f32 %v909, %v1079
  %v1088 = vadd.f32 %v910, %v1084
  %s1089 = scalar_lea.vmem %s2, 96
  %v1090 = vld [vmem:[%s1089] sm:$0xff]
  %v1091 = vld [vmem:[%s1089 + $0x8] sm:$0xf]
  %v1093 = vsel %vm28, %v1090, 0
  %v1096 = vsel %vm28, %v1091, 0
  %1098 = vmatprep.subr.mxu0 0.0
  %1099 = vmatpush1.msra.mxu0 %v24
  %1100 = vmatprep.subr.mxu0 0.0
  %1101 = vmatpush1.msra.mxu0 %v25
  %1102 = vmatprep.subr.mxu0 0.0
  %1103 = vmatpush1.msra.mxu0 0.0
  %1104 = vmatprep.subr.mxu0 0.0
  %1105 = vmatpush1.msra.mxu0 0.0
  %1106 = vmatprep.subr.mxu0 0.0
  %1107 = vmatpush1.msra.mxu0 0.0
  %1108 = vmatprep.subr.mxu0 0.0
  %1109 = vmatpush1.msra.mxu0 0.0
  %1110 = vmatprep.subr.mxu0 0.0
  %1111 = vmatpush1.msra.mxu0 0.0
  %1112 = vmatprep.subr.mxu0 0.0
  %1113 = vmatpush1.msra.mxu0 0.0
  %1114 = vmatprep.subr.mxu0 0.0
  %1115 = vmatpush1.msra.mxu0 0.0
  %1116 = vmatprep.subr.mxu0 0.0
  %1117 = vmatpush1.msra.mxu0 0.0
  %1118 = vmatprep.subr.mxu0 0.0
  %1119 = vmatpush1.msra.mxu0 0.0
  %1120 = vmatprep.subr.mxu0 0.0
  %1121 = vmatpush1.msra.mxu0 0.0
  %1122 = vmatprep.subr.mxu0 0.0
  %1123 = vmatpush1.msra.mxu0 0.0
  %1124 = vmatprep.subr.mxu0 0.0
  %1125 = vmatpush1.msra.mxu0 0.0
  %1126 = vmatprep.subr.mxu0 0.0
  %1127 = vmatpush1.msra.mxu0 0.0
  %1128 = vmatprep.subr.mxu0 0.0
  %1129 = vmatpush1.msra.mxu0 0.0
  %1130 = vmatprep.subr.mxu0 0.0
  %1131 = vmatpush1.msra.mxu0 0.0
  %1132 = vmatprep.subr.mxu0 0.0
  %1133 = vmatpush1.msra.mxu0 0.0
  %1134 = vmatprep.subr.mxu0 0.0
  %1135 = vmatpush1.msra.mxu0 0.0
  %1136 = vmatprep.subr.mxu0 0.0
  %1137 = vmatpush1.msra.mxu0 0.0
  %1138 = vmatprep.subr.mxu0 0.0
  %1139 = vmatpush1.msra.mxu0 0.0
  %1140 = vmatprep.subr.mxu0 0.0
  %1141 = vmatpush1.msra.mxu0 0.0
  %1142 = vmatprep.subr.mxu0 0.0
  %1143 = vmatpush1.msra.mxu0 0.0
  %1144 = vmatprep.subr.mxu0 0.0
  %1145 = vmatpush1.msra.mxu0 0.0
  %1146 = vmatprep.subr.mxu0 0.0
  %1147 = vmatpush1.msra.mxu0 0.0
  %1148 = vmatprep.subr.mxu0 0.0
  %1149 = vmatpush1.msra.mxu0 0.0
  %1150 = vmatprep.subr.mxu0 0.0
  %1151 = vmatpush1.msra.mxu0 0.0
  %1152 = vmatprep.subr.mxu0 0.0
  %1153 = vmatpush1.msra.mxu0 0.0
  %1154 = vmatprep.subr.mxu0 0.0
  %1155 = vmatpush1.msra.mxu0 0.0
  %1156 = vmatprep.subr.mxu0 0.0
  %1157 = vmatpush1.msra.mxu0 0.0
  %1158 = vmatprep.subr.mxu0 0.0
  %1159 = vmatpush1.msra.mxu0 0.0
  %1160 = vmatprep.subr.mxu0 0.0
  %1161 = vmatpush1.msra.mxu0 0.0
  %1162 = vmatprep.mubr.f32.mxu0 0.0
  %1163 = vmatmul.mubr.f32.gmra.mrb[0].mxu0 %v1093
  %v1164 = vpop.f32.mrb[0].mxu0
  %v1165 = vadd.f32 0.0, %v1164
  %v1166 = vpop.f32.mrb[0].mxu0
  %1167 = vmatprep.mubr.f32.mxu0 0.0
  %1168 = vmatmul.mubr.f32.gmra.mrb[0].mxu0 %v1096
  %v1169 = vpop.f32.mrb[0].mxu0
  %v1170 = vadd.f32 0.0, %v1169
  %v1171 = vpop.f32.mrb[0].mxu0
  %1172 = vdwg.mxu0
  %s1173 = scalar_lea.vmem %s4, 768
  %v1174 = vld [vmem:[%s1173] sm:$0xff]
  %v1175 = vld [vmem:[%s1173 + $0x8] sm:$0xff]
  %v1176 = vld [vmem:[%s1173 + $0x10] sm:$0xff]
  %v1177 = vld [vmem:[%s1173 + $0x18] sm:$0xff]
  %v1178 = vld [vmem:[%s1173 + $0x20] sm:$0xff]
  %v1179 = vld [vmem:[%s1173 + $0x28] sm:$0xff]
  %v1180 = vld [vmem:[%s1173 + $0x30] sm:$0xff]
  %v1181 = vld [vmem:[%s1173 + $0x38] sm:$0xff]
  %v1182 = vld [vmem:[%s1173 + $0x40] sm:$0xff]
  %v1183 = vld [vmem:[%s1173 + $0x48] sm:$0xff]
  %v1184 = vld [vmem:[%s1173 + $0x50] sm:$0xff]
  %v1185 = vld [vmem:[%s1173 + $0x58] sm:$0xff]
  %v1186 = vld [vmem:[%s1173 + $0x60] sm:$0xff]
  %v1187 = vld [vmem:[%s1173 + $0x68] sm:$0xff]
  %v1188 = vld [vmem:[%s1173 + $0x70] sm:$0xff]
  %v1189 = vld [vmem:[%s1173 + $0x78] sm:$0xff]
  %1190 = vmatprep.subr.mxu0 0.0
  %1191 = vmatpush1.msra.mxu0 %v1174
  %1192 = vmatprep.subr.mxu0 0.0
  %1193 = vmatpush1.msra.mxu0 %v1175
  %1194 = vmatprep.subr.mxu0 0.0
  %1195 = vmatpush1.msra.mxu0 %v1176
  %1196 = vmatprep.subr.mxu0 0.0
  %1197 = vmatpush1.msra.mxu0 %v1177
  %1198 = vmatprep.subr.mxu0 0.0
  %1199 = vmatpush1.msra.mxu0 %v1178
  %1200 = vmatprep.subr.mxu0 0.0
  %1201 = vmatpush1.msra.mxu0 %v1179
  %1202 = vmatprep.subr.mxu0 0.0
  %1203 = vmatpush1.msra.mxu0 %v1180
  %1204 = vmatprep.subr.mxu0 0.0
  %1205 = vmatpush1.msra.mxu0 %v1181
  %1206 = vmatprep.subr.mxu0 0.0
  %1207 = vmatpush1.msra.mxu0 %v1182
  %1208 = vmatprep.subr.mxu0 0.0
  %1209 = vmatpush1.msra.mxu0 %v1183
  %1210 = vmatprep.subr.mxu0 0.0
  %1211 = vmatpush1.msra.mxu0 %v1184
  %1212 = vmatprep.subr.mxu0 0.0
  %1213 = vmatpush1.msra.mxu0 %v1185
  %1214 = vmatprep.subr.mxu0 0.0
  %1215 = vmatpush1.msra.mxu0 %v1186
  %1216 = vmatprep.subr.mxu0 0.0
  %1217 = vmatpush1.msra.mxu0 %v1187
  %1218 = vmatprep.subr.mxu0 0.0
  %1219 = vmatpush1.msra.mxu0 %v1188
  %1220 = vmatprep.subr.mxu0 0.0
  %1221 = vmatpush1.msra.mxu0 %v1189
  %1222 = vmatprep.subr.mxu0 0.0
  %1223 = vmatpush1.msra.mxu0 0.0
  %1224 = vmatprep.subr.mxu0 0.0
  %1225 = vmatpush1.msra.mxu0 0.0
  %1226 = vmatprep.subr.mxu0 0.0
  %1227 = vmatpush1.msra.mxu0 0.0
  %1228 = vmatprep.subr.mxu0 0.0
  %1229 = vmatpush1.msra.mxu0 0.0
  %1230 = vmatprep.subr.mxu0 0.0
  %1231 = vmatpush1.msra.mxu0 0.0
  %1232 = vmatprep.subr.mxu0 0.0
  %1233 = vmatpush1.msra.mxu0 0.0
  %1234 = vmatprep.subr.mxu0 0.0
  %1235 = vmatpush1.msra.mxu0 0.0
  %1236 = vmatprep.subr.mxu0 0.0
  %1237 = vmatpush1.msra.mxu0 0.0
  %1238 = vmatprep.subr.mxu0 0.0
  %1239 = vmatpush1.msra.mxu0 0.0
  %1240 = vmatprep.subr.mxu0 0.0
  %1241 = vmatpush1.msra.mxu0 0.0
  %1242 = vmatprep.subr.mxu0 0.0
  %1243 = vmatpush1.msra.mxu0 0.0
  %1244 = vmatprep.subr.mxu0 0.0
  %1245 = vmatpush1.msra.mxu0 0.0
  %1246 = vmatprep.subr.mxu0 0.0
  %1247 = vmatpush1.msra.mxu0 0.0
  %1248 = vmatprep.subr.mxu0 0.0
  %1249 = vmatpush1.msra.mxu0 0.0
  %1250 = vmatprep.subr.mxu0 0.0
  %1251 = vmatpush1.msra.mxu0 0.0
  %1252 = vmatprep.subr.mxu0 0.0
  %1253 = vmatpush1.msra.mxu0 0.0
  %1254 = vmatprep.mubr.f32.mxu0 0.0
  %1255 = vmatmul.mubr.f32.gmra.mrb[0].mxu0 %v1165
  %v1256 = vpop.f32.mrb[0].mxu0
  %v1257 = vadd.f32 0.0, %v1256
  %v1258 = vpop.f32.mrb[0].mxu0
  %1259 = vmatprep.mubr.f32.mxu0 0.0
  %1260 = vmatmul.mubr.f32.gmra.mrb[0].mxu0 %v1170
  %v1261 = vpop.f32.mrb[0].mxu0
  %v1262 = vadd.f32 0.0, %v1261
  %v1263 = vpop.f32.mrb[0].mxu0
  %1264 = vdwg.mxu0
  %v1265 = vadd.f32 %v1087, %v1257
  %v1266 = vadd.f32 %v1088, %v1262
  %s1267 = scalar_lea.vmem %s2, 112
  %v1268 = vld [vmem:[%s1267] sm:$0xff]
  %v1269 = vld [vmem:[%s1267 + $0x8] sm:$0xf]
  %v1271 = vsel %vm28, %v1268, 0
  %v1274 = vsel %vm28, %v1269, 0
  %1276 = vmatprep.subr.mxu0 0.0
  %1277 = vmatpush1.msra.mxu0 %v24
  %1278 = vmatprep.subr.mxu0 0.0
  %1279 = vmatpush1.msra.mxu0 %v25
  %1280 = vmatprep.subr.mxu0 0.0
  %1281 = vmatpush1.msra.mxu0 0.0
  %1282 = vmatprep.subr.mxu0 0.0
  %1283 = vmatpush1.msra.mxu0 0.0
  %1284 = vmatprep.subr.mxu0 0.0
  %1285 = vmatpush1.msra.mxu0 0.0
  %1286 = vmatprep.subr.mxu0 0.0
  %1287 = vmatpush1.msra.mxu0 0.0
  %1288 = vmatprep.subr.mxu0 0.0
  %1289 = vmatpush1.msra.mxu0 0.0
  %1290 = vmatprep.subr.mxu0 0.0
  %1291 = vmatpush1.msra.mxu0 0.0
  %1292 = vmatprep.subr.mxu0 0.0
  %1293 = vmatpush1.msra.mxu0 0.0
  %1294 = vmatprep.subr.mxu0 0.0
  %1295 = vmatpush1.msra.mxu0 0.0
  %1296 = vmatprep.subr.mxu0 0.0
  %1297 = vmatpush1.msra.mxu0 0.0
  %1298 = vmatprep.subr.mxu0 0.0
  %1299 = vmatpush1.msra.mxu0 0.0
  %1300 = vmatprep.subr.mxu0 0.0
  %1301 = vmatpush1.msra.mxu0 0.0
  %1302 = vmatprep.subr.mxu0 0.0
  %1303 = vmatpush1.msra.mxu0 0.0
  %1304 = vmatprep.subr.mxu0 0.0
  %1305 = vmatpush1.msra.mxu0 0.0
  %1306 = vmatprep.subr.mxu0 0.0
  %1307 = vmatpush1.msra.mxu0 0.0
  %1308 = vmatprep.subr.mxu0 0.0
  %1309 = vmatpush1.msra.mxu0 0.0
  %1310 = vmatprep.subr.mxu0 0.0
  %1311 = vmatpush1.msra.mxu0 0.0
  %1312 = vmatprep.subr.mxu0 0.0
  %1313 = vmatpush1.msra.mxu0 0.0
  %1314 = vmatprep.subr.mxu0 0.0
  %1315 = vmatpush1.msra.mxu0 0.0
  %1316 = vmatprep.subr.mxu0 0.0
  %1317 = vmatpush1.msra.mxu0 0.0
  %1318 = vmatprep.subr.mxu0 0.0
  %1319 = vmatpush1.msra.mxu0 0.0
  %1320 = vmatprep.subr.mxu0 0.0
  %1321 = vmatpush1.msra.mxu0 0.0
  %1322 = vmatprep.subr.mxu0 0.0
  %1323 = vmatpush1.msra.mxu0 0.0
  %1324 = vmatprep.subr.mxu0 0.0
  %1325 = vmatpush1.msra.mxu0 0.0
  %1326 = vmatprep.subr.mxu0 0.0
  %1327 = vmatpush1.msra.mxu0 0.0
  %1328 = vmatprep.subr.mxu0 0.0
  %1329 = vmatpush1.msra.mxu0 0.0
  %1330 = vmatprep.subr.mxu0 0.0
  %1331 = vmatpush1.msra.mxu0 0.0
  %1332 = vmatprep.subr.mxu0 0.0
  %1333 = vmatpush1.msra.mxu0 0.0
  %1334 = vmatprep.subr.mxu0 0.0
  %1335 = vmatpush1.msra.mxu0 0.0
  %1336 = vmatprep.subr.mxu0 0.0
  %1337 = vmatpush1.msra.mxu0 0.0
  %1338 = vmatprep.subr.mxu0 0.0
  %1339 = vmatpush1.msra.mxu0 0.0
  %1340 = vmatprep.mubr.f32.mxu0 0.0
  %1341 = vmatmul.mubr.f32.gmra.mrb[0].mxu0 %v1271
  %v1342 = vpop.f32.mrb[0].mxu0
  %v1343 = vadd.f32 0.0, %v1342
  %v1344 = vpop.f32.mrb[0].mxu0
  %1345 = vmatprep.mubr.f32.mxu0 0.0
  %1346 = vmatmul.mubr.f32.gmra.mrb[0].mxu0 %v1274
  %v1347 = vpop.f32.mrb[0].mxu0
  %v1348 = vadd.f32 0.0, %v1347
  %v1349 = vpop.f32.mrb[0].mxu0
  %1350 = vdwg.mxu0
  %s1351 = scalar_lea.vmem %s4, 896
  %v1352 = vld [vmem:[%s1351] sm:$0xff]
  %v1353 = vld [vmem:[%s1351 + $0x8] sm:$0xff]
  %v1354 = vld [vmem:[%s1351 + $0x10] sm:$0xff]
  %v1355 = vld [vmem:[%s1351 + $0x18] sm:$0xff]
  %v1356 = vld [vmem:[%s1351 + $0x20] sm:$0xff]
  %v1357 = vld [vmem:[%s1351 + $0x28] sm:$0xff]
  %v1358 = vld [vmem:[%s1351 + $0x30] sm:$0xff]
  %v1359 = vld [vmem:[%s1351 + $0x38] sm:$0xff]
  %v1360 = vld [vmem:[%s1351 + $0x40] sm:$0xff]
  %v1361 = vld [vmem:[%s1351 + $0x48] sm:$0xff]
  %v1362 = vld [vmem:[%s1351 + $0x50] sm:$0xff]
  %v1363 = vld [vmem:[%s1351 + $0x58] sm:$0xff]
  %v1364 = vld [vmem:[%s1351 + $0x60] sm:$0xff]
  %v1365 = vld [vmem:[%s1351 + $0x68] sm:$0xff]
  %v1366 = vld [vmem:[%s1351 + $0x70] sm:$0xff]
  %v1367 = vld [vmem:[%s1351 + $0x78] sm:$0xff]
  %1368 = vmatprep.subr.mxu0 0.0
  %1369 = vmatpush1.msra.mxu0 %v1352
  %1370 = vmatprep.subr.mxu0 0.0
  %1371 = vmatpush1.msra.mxu0 %v1353
  %1372 = vmatprep.subr.mxu0 0.0
  %1373 = vmatpush1.msra.mxu0 %v1354
  %1374 = vmatprep.subr.mxu0 0.0
  %1375 = vmatpush1.msra.mxu0 %v1355
  %1376 = vmatprep.subr.mxu0 0.0
  %1377 = vmatpush1.msra.mxu0 %v1356
  %1378 = vmatprep.subr.mxu0 0.0
  %1379 = vmatpush1.msra.mxu0 %v1357
  %1380 = vmatprep.subr.mxu0 0.0
  %1381 = vmatpush1.msra.mxu0 %v1358
  %1382 = vmatprep.subr.mxu0 0.0
  %1383 = vmatpush1.msra.mxu0 %v1359
  %1384 = vmatprep.subr.mxu0 0.0
  %1385 = vmatpush1.msra.mxu0 %v1360
  %1386 = vmatprep.subr.mxu0 0.0
  %1387 = vmatpush1.msra.mxu0 %v1361
  %1388 = vmatprep.subr.mxu0 0.0
  %1389 = vmatpush1.msra.mxu0 %v1362
  %1390 = vmatprep.subr.mxu0 0.0
  %1391 = vmatpush1.msra.mxu0 %v1363
  %1392 = vmatprep.subr.mxu0 0.0
  %1393 = vmatpush1.msra.mxu0 %v1364
  %1394 = vmatprep.subr.mxu0 0.0
  %1395 = vmatpush1.msra.mxu0 %v1365
  %1396 = vmatprep.subr.mxu0 0.0
  %1397 = vmatpush1.msra.mxu0 %v1366
  %1398 = vmatprep.subr.mxu0 0.0
  %1399 = vmatpush1.msra.mxu0 %v1367
  %1400 = vmatprep.subr.mxu0 0.0
  %1401 = vmatpush1.msra.mxu0 0.0
  %1402 = vmatprep.subr.mxu0 0.0
  %1403 = vmatpush1.msra.mxu0 0.0
  %1404 = vmatprep.subr.mxu0 0.0
  %1405 = vmatpush1.msra.mxu0 0.0
  %1406 = vmatprep.subr.mxu0 0.0
  %1407 = vmatpush1.msra.mxu0 0.0
  %1408 = vmatprep.subr.mxu0 0.0
  %1409 = vmatpush1.msra.mxu0 0.0
  %1410 = vmatprep.subr.mxu0 0.0
  %1411 = vmatpush1.msra.mxu0 0.0
  %1412 = vmatprep.subr.mxu0 0.0
  %1413 = vmatpush1.msra.mxu0 0.0
  %1414 = vmatprep.subr.mxu0 0.0
  %1415 = vmatpush1.msra.mxu0 0.0
  %1416 = vmatprep.subr.mxu0 0.0
  %1417 = vmatpush1.msra.mxu0 0.0
  %1418 = vmatprep.subr.mxu0 0.0
  %1419 = vmatpush1.msra.mxu0 0.0
  %1420 = vmatprep.subr.mxu0 0.0
  %1421 = vmatpush1.msra.mxu0 0.0
  %1422 = vmatprep.subr.mxu0 0.0
  %1423 = vmatpush1.msra.mxu0 0.0
  %1424 = vmatprep.subr.mxu0 0.0
  %1425 = vmatpush1.msra.mxu0 0.0
  %1426 = vmatprep.subr.mxu0 0.0
  %1427 = vmatpush1.msra.mxu0 0.0
  %1428 = vmatprep.subr.mxu0 0.0
  %1429 = vmatpush1.msra.mxu0 0.0
  %1430 = vmatprep.subr.mxu0 0.0
  %1431 = vmatpush1.msra.mxu0 0.0
  %1432 = vmatprep.mubr.f32.mxu0 0.0
  %1433 = vmatmul.mubr.f32.gmra.mrb[0].mxu0 %v1343
  %v1434 = vpop.f32.mrb[0].mxu0
  %v1435 = vadd.f32 0.0, %v1434
  %v1436 = vpop.f32.mrb[0].mxu0
  %1437 = vmatprep.mubr.f32.mxu0 0.0
  %1438 = vmatmul.mubr.f32.gmra.mrb[0].mxu0 %v1348
  %v1439 = vpop.f32.mrb[0].mxu0
  %v1440 = vadd.f32 0.0, %v1439
  %v1441 = vpop.f32.mrb[0].mxu0
  %1442 = vdwg.mxu0
  %v1443 = vadd.f32 %v1265, %v1435
  %v1444 = vadd.f32 %v1266, %v1440
  %s1445 = scalar_lea.vmem %s2, 128
  %v1446 = vld [vmem:[%s1445] sm:$0xff]
  %v1447 = vld [vmem:[%s1445 + $0x8] sm:$0xf]
  %v1449 = vsel %vm28, %v1446, 0
  %v1452 = vsel %vm28, %v1447, 0
  %1454 = vmatprep.subr.mxu0 0.0
  %1455 = vmatpush1.msra.mxu0 %v24
  %1456 = vmatprep.subr.mxu0 0.0
  %1457 = vmatpush1.msra.mxu0 %v25
  %1458 = vmatprep.subr.mxu0 0.0
  %1459 = vmatpush1.msra.mxu0 0.0
  %1460 = vmatprep.subr.mxu0 0.0
  %1461 = vmatpush1.msra.mxu0 0.0
  %1462 = vmatprep.subr.mxu0 0.0
  %1463 = vmatpush1.msra.mxu0 0.0
  %1464 = vmatprep.subr.mxu0 0.0
  %1465 = vmatpush1.msra.mxu0 0.0
  %1466 = vmatprep.subr.mxu0 0.0
  %1467 = vmatpush1.msra.mxu0 0.0
  %1468 = vmatprep.subr.mxu0 0.0
  %1469 = vmatpush1.msra.mxu0 0.0
  %1470 = vmatprep.subr.mxu0 0.0
  %1471 = vmatpush1.msra.mxu0 0.0
  %1472 = vmatprep.subr.mxu0 0.0
  %1473 = vmatpush1.msra.mxu0 0.0
  %1474 = vmatprep.subr.mxu0 0.0
  %1475 = vmatpush1.msra.mxu0 0.0
  %1476 = vmatprep.subr.mxu0 0.0
  %1477 = vmatpush1.msra.mxu0 0.0
  %1478 = vmatprep.subr.mxu0 0.0
  %1479 = vmatpush1.msra.mxu0 0.0
  %1480 = vmatprep.subr.mxu0 0.0
  %1481 = vmatpush1.msra.mxu0 0.0
  %1482 = vmatprep.subr.mxu0 0.0
  %1483 = vmatpush1.msra.mxu0 0.0
  %1484 = vmatprep.subr.mxu0 0.0
  %1485 = vmatpush1.msra.mxu0 0.0
  %1486 = vmatprep.subr.mxu0 0.0
  %1487 = vmatpush1.msra.mxu0 0.0
  %1488 = vmatprep.subr.mxu0 0.0
  %1489 = vmatpush1.msra.mxu0 0.0
  %1490 = vmatprep.subr.mxu0 0.0
  %1491 = vmatpush1.msra.mxu0 0.0
  %1492 = vmatprep.subr.mxu0 0.0
  %1493 = vmatpush1.msra.mxu0 0.0
  %1494 = vmatprep.subr.mxu0 0.0
  %1495 = vmatpush1.msra.mxu0 0.0
  %1496 = vmatprep.subr.mxu0 0.0
  %1497 = vmatpush1.msra.mxu0 0.0
  %1498 = vmatprep.subr.mxu0 0.0
  %1499 = vmatpush1.msra.mxu0 0.0
  %1500 = vmatprep.subr.mxu0 0.0
  %1501 = vmatpush1.msra.mxu0 0.0
  %1502 = vmatprep.subr.mxu0 0.0
  %1503 = vmatpush1.msra.mxu0 0.0
  %1504 = vmatprep.subr.mxu0 0.0
  %1505 = vmatpush1.msra.mxu0 0.0
  %1506 = vmatprep.subr.mxu0 0.0
  %1507 = vmatpush1.msra.mxu0 0.0
  %1508 = vmatprep.subr.mxu0 0.0
  %1509 = vmatpush1.msra.mxu0 0.0
  %1510 = vmatprep.subr.mxu0 0.0
  %1511 = vmatpush1.msra.mxu0 0.0
  %1512 = vmatprep.subr.mxu0 0.0
  %1513 = vmatpush1.msra.mxu0 0.0
  %1514 = vmatprep.subr.mxu0 0.0
  %1515 = vmatpush1.msra.mxu0 0.0
  %1516 = vmatprep.subr.mxu0 0.0
  %1517 = vmatpush1.msra.mxu0 0.0
  %1518 = vmatprep.mubr.f32.mxu0 0.0
  %1519 = vmatmul.mubr.f32.gmra.mrb[0].mxu0 %v1449
  %v1520 = vpop.f32.mrb[0].mxu0
  %v1521 = vadd.f32 0.0, %v1520
  %v1522 = vpop.f32.mrb[0].mxu0
  %1523 = vmatprep.mubr.f32.mxu0 0.0
  %1524 = vmatmul.mubr.f32.gmra.mrb[0].mxu0 %v1452
  %v1525 = vpop.f32.mrb[0].mxu0
  %v1526 = vadd.f32 0.0, %v1525
  %v1527 = vpop.f32.mrb[0].mxu0
  %1528 = vdwg.mxu0
  %s1529 = scalar_lea.vmem %s4, 1024
  %v1530 = vld [vmem:[%s1529] sm:$0xff]
  %v1531 = vld [vmem:[%s1529 + $0x8] sm:$0xff]
  %v1532 = vld [vmem:[%s1529 + $0x10] sm:$0xff]
  %v1533 = vld [vmem:[%s1529 + $0x18] sm:$0xff]
  %v1534 = vld [vmem:[%s1529 + $0x20] sm:$0xff]
  %v1535 = vld [vmem:[%s1529 + $0x28] sm:$0xff]
  %v1536 = vld [vmem:[%s1529 + $0x30] sm:$0xff]
  %v1537 = vld [vmem:[%s1529 + $0x38] sm:$0xff]
  %v1538 = vld [vmem:[%s1529 + $0x40] sm:$0xff]
  %v1539 = vld [vmem:[%s1529 + $0x48] sm:$0xff]
  %v1540 = vld [vmem:[%s1529 + $0x50] sm:$0xff]
  %v1541 = vld [vmem:[%s1529 + $0x58] sm:$0xff]
  %v1542 = vld [vmem:[%s1529 + $0x60] sm:$0xff]
  %v1543 = vld [vmem:[%s1529 + $0x68] sm:$0xff]
  %v1544 = vld [vmem:[%s1529 + $0x70] sm:$0xff]
  %v1545 = vld [vmem:[%s1529 + $0x78] sm:$0xff]
  %1546 = vmatprep.subr.mxu0 0.0
  %1547 = vmatpush1.msra.mxu0 %v1530
  %1548 = vmatprep.subr.mxu0 0.0
  %1549 = vmatpush1.msra.mxu0 %v1531
  %1550 = vmatprep.subr.mxu0 0.0
  %1551 = vmatpush1.msra.mxu0 %v1532
  %1552 = vmatprep.subr.mxu0 0.0
  %1553 = vmatpush1.msra.mxu0 %v1533
  %1554 = vmatprep.subr.mxu0 0.0
  %1555 = vmatpush1.msra.mxu0 %v1534
  %1556 = vmatprep.subr.mxu0 0.0
  %1557 = vmatpush1.msra.mxu0 %v1535
  %1558 = vmatprep.subr.mxu0 0.0
  %1559 = vmatpush1.msra.mxu0 %v1536
  %1560 = vmatprep.subr.mxu0 0.0
  %1561 = vmatpush1.msra.mxu0 %v1537
  %1562 = vmatprep.subr.mxu0 0.0
  %1563 = vmatpush1.msra.mxu0 %v1538
  %1564 = vmatprep.subr.mxu0 0.0
  %1565 = vmatpush1.msra.mxu0 %v1539
  %1566 = vmatprep.subr.mxu0 0.0
  %1567 = vmatpush1.msra.mxu0 %v1540
  %1568 = vmatprep.subr.mxu0 0.0
  %1569 = vmatpush1.msra.mxu0 %v1541
  %1570 = vmatprep.subr.mxu0 0.0
  %1571 = vmatpush1.msra.mxu0 %v1542
  %1572 = vmatprep.subr.mxu0 0.0
  %1573 = vmatpush1.msra.mxu0 %v1543
  %1574 = vmatprep.subr.mxu0 0.0
  %1575 = vmatpush1.msra.mxu0 %v1544
  %1576 = vmatprep.subr.mxu0 0.0
  %1577 = vmatpush1.msra.mxu0 %v1545
  %1578 = vmatprep.subr.mxu0 0.0
  %1579 = vmatpush1.msra.mxu0 0.0
  %1580 = vmatprep.subr.mxu0 0.0
  %1581 = vmatpush1.msra.mxu0 0.0
  %1582 = vmatprep.subr.mxu0 0.0
  %1583 = vmatpush1.msra.mxu0 0.0
  %1584 = vmatprep.subr.mxu0 0.0
  %1585 = vmatpush1.msra.mxu0 0.0
  %1586 = vmatprep.subr.mxu0 0.0
  %1587 = vmatpush1.msra.mxu0 0.0
  %1588 = vmatprep.subr.mxu0 0.0
  %1589 = vmatpush1.msra.mxu0 0.0
  %1590 = vmatprep.subr.mxu0 0.0
  %1591 = vmatpush1.msra.mxu0 0.0
  %1592 = vmatprep.subr.mxu0 0.0
  %1593 = vmatpush1.msra.mxu0 0.0
  %1594 = vmatprep.subr.mxu0 0.0
  %1595 = vmatpush1.msra.mxu0 0.0
  %1596 = vmatprep.subr.mxu0 0.0
  %1597 = vmatpush1.msra.mxu0 0.0
  %1598 = vmatprep.subr.mxu0 0.0
  %1599 = vmatpush1.msra.mxu0 0.0
  %1600 = vmatprep.subr.mxu0 0.0
  %1601 = vmatpush1.msra.mxu0 0.0
  %1602 = vmatprep.subr.mxu0 0.0
  %1603 = vmatpush1.msra.mxu0 0.0
  %1604 = vmatprep.subr.mxu0 0.0
  %1605 = vmatpush1.msra.mxu0 0.0
  %1606 = vmatprep.subr.mxu0 0.0
  %1607 = vmatpush1.msra.mxu0 0.0
  %1608 = vmatprep.subr.mxu0 0.0
  %1609 = vmatpush1.msra.mxu0 0.0
  %1610 = vmatprep.mubr.f32.mxu0 0.0
  %1611 = vmatmul.mubr.f32.gmra.mrb[0].mxu0 %v1521
  %v1612 = vpop.f32.mrb[0].mxu0
  %v1613 = vadd.f32 0.0, %v1612
  %v1614 = vpop.f32.mrb[0].mxu0
  %1615 = vmatprep.mubr.f32.mxu0 0.0
  %1616 = vmatmul.mubr.f32.gmra.mrb[0].mxu0 %v1526
  %v1617 = vpop.f32.mrb[0].mxu0
  %v1618 = vadd.f32 0.0, %v1617
  %v1619 = vpop.f32.mrb[0].mxu0
  %1620 = vdwg.mxu0
  %v1621 = vadd.f32 %v1443, %v1613
  %v1622 = vadd.f32 %v1444, %v1618
  %v1623 = vld [vmem:[%s3] sm:$0xff]
  %v1624 = vld [vmem:[%s3 + $0x8] sm:$0xf]
  %1626 = vset.pattern.permute.xlu0 0
  %1627 = vperm.xlu0 %1626, %v1623
  %v1628 = vpop.permute.xlu0 %1627
  %1631 = vset.pattern.permute.xlu0 0
  %1632 = vperm.xlu0 %1631, %v1624
  %v1633 = vpop.permute.xlu0 %1632
  %v1635 = vadd.f32 %v1621, %v1628
  %v1636 = vadd.f32 %v1622, %v1633
  %1637 = vst [vmem:[%s5] sm:$0xff] %v1635
  %1638 = vst [vmem:[%s5 + $0x8] sm:$0xf] %v1636
  // Predicated region
  $region22: #{safmn_forward.7} parent=0 // pred_check
    _
  $region23: #{safmn_forward.7} parent=0 // pred_check_branch
    %1640 = sbr.rel (0) target = $region25
  $region24: #{safmn_forward.7} parent=0 // pred_region
    _
  $region25: #{safmn_forward.7} parent=0 // pred_fallthru
    _
  // Predicated region
  $region26: #{safmn_forward.7} parent=0 // pred_check
    _
  $region27: #{safmn_forward.7} parent=0 // pred_check_branch
    %1642 = sbr.rel (0) target = $region29
  $region28: #{safmn_forward.7} parent=0 // pred_region
    _
  $region29: #{safmn_forward.7} parent=0 // pred_fallthru
    _

// kernel: safmn_forward.5
$region0: #{safmn_forward.5}
  #allocation0 [shape = 'u32[]', space=smem, size = 0x4, offset = 0x4, fixed_abs, tag = 'smem constant byte address 0x4 - core index']
  #allocation1 [shape = 'u32[144,128]{1,0:T(1,128)}', space=vmem, size = 0x12000, scoped, tag = 'internal scratch']
  %s0 = inlined_call_operand.vmem [shape: f32[16,128], index: 0, kind: input, shape index: {}]
  %s1 = inlined_call_operand.vmem [shape: f32[16,1], index: 1, kind: input, shape index: {}]
  %s2 = inlined_call_operand.vmem [shape: f32[16,1], index: 2, kind: input, shape index: {}]
  %s3 = inlined_call_operand.vmem [shape: f32[8,16], index: 3, kind: input, shape index: {}]
  %s4 = inlined_call_operand.vmem [shape: f32[8,1], index: 4, kind: input, shape index: {}]
  %s5 = inlined_call_operand.vmem [shape: f32[16,8], index: 5, kind: input, shape index: {}]
  %s6 = inlined_call_operand.vmem [shape: f32[16,1], index: 6, kind: input, shape index: {}]
  %s7 = inlined_call_operand.vmem [shape: f32[16,16], index: 7, kind: input, shape index: {}]
  %s8 = inlined_call_operand.vmem [shape: f32[16,1], index: 8, kind: input, shape index: {}]
  %s9 = inlined_call_operand.vmem [shape: f32[16,16], index: 9, kind: input, shape index: {}]
  %s10 = inlined_call_operand.vmem [shape: f32[16,1], index: 10, kind: input, shape index: {}]
  %s11 = inlined_call_operand.vmem [shape: f32[512,512], index: 11, kind: input, shape index: {}]
  %s12 = inlined_call_operand.vmem [shape: f32[1,512], index: 12, kind: input, shape index: {}]
  %s13 = inlined_call_operand.vmem [shape: f32[16,16], index: 13, kind: input, shape index: {}]
  %s14 = inlined_call_operand.vmem [shape: f32[16,16], index: 14, kind: input, shape index: {}]
  %s15 = inlined_call_operand.vmem [shape: f32[16,1], index: 15, kind: input, shape index: {}]
  %s16 = inlined_call_operand.vmem [shape: f32[16,1], index: 16, kind: input, shape index: {}]
  %s17 = inlined_call_operand.vmem [shape: f32[16,1], index: 17, kind: input, shape index: {}]
  %s18 = inlined_call_operand.vmem [shape: f32[9,32,16], index: 18, kind: input, shape index: {}]
  %s19 = inlined_call_operand.vmem [shape: f32[32,1], index: 19, kind: input, shape index: {}]
  %s20 = inlined_call_operand.vmem [shape: f32[16,32], index: 20, kind: input, shape index: {}]
  %s21 = inlined_call_operand.vmem [shape: f32[16,1], index: 21, kind: input, shape index: {}]
  %s22 = inlined_call_operand.vmem [shape: f32[128,2], index: 22, kind: input, shape index: {}]
  %s23 = inlined_call_operand.vmem [shape: f32[2,128], index: 23, kind: input, shape index: {}]
  %s24 = inlined_call_operand.vmem [shape: f32[128,512], index: 24, kind: input, shape index: {}]
  %s25 = inlined_call_operand.vmem [shape: f32[512,128], index: 25, kind: input, shape index: {}]
  %s26 = inlined_call_operand.vmem [shape: f32[9,128,128], index: 26, kind: input, shape index: {}]
  %s27 = inlined_call_operand.vmem [shape: f32[16,128], index: 27, kind: output, shape index: {}]
  %s28 = sld [smem:[#allocation0]]
  $region118: #{safmn_forward.5} parent=0
    _
  %s30 = ssub.s32 1, %s28
  %s31 = scalar_select 0, %s30, %s28
  // Predicated region
  $region2: #{safmn_forward.5} parent=0 // pred_check
    _
  $region3: #{safmn_forward.5} parent=0 // pred_check_branch
    %33 = sbr.rel (0) target = $region5
  $region4: #{safmn_forward.5} parent=0 // pred_region
    _
  $region5: #{safmn_forward.5} parent=0 // pred_fallthru
    _
  // Predicated region
  $region6: #{safmn_forward.5} parent=0 // pred_check
    _
  $region7: #{safmn_forward.5} parent=0 // pred_check_branch
    %35 = sbr.rel (0) target = $region9
  $region8: #{safmn_forward.5} parent=0 // pred_region
    _
  $region9: #{safmn_forward.5} parent=0 // pred_fallthru
    _
  // Predicated region
  $region10: #{safmn_forward.5} parent=0 // pred_check
    _
  $region11: #{safmn_forward.5} parent=0 // pred_check_branch
    %37 = sbr.rel (0) target = $region13
  $region12: #{safmn_forward.5} parent=0 // pred_region
    _
  $region13: #{safmn_forward.5} parent=0 // pred_fallthru
    _
  // Predicated region
  $region14: #{safmn_forward.5} parent=0 // pred_check
    _
  $region15: #{safmn_forward.5} parent=0 // pred_check_branch
    %39 = sbr.rel (0) target = $region17
  $region16: #{safmn_forward.5} parent=0 // pred_region
    _
  $region17: #{safmn_forward.5} parent=0 // pred_fallthru
    _
  // Predicated region
  $region18: #{safmn_forward.5} parent=0 // pred_check
    _
  $region19: #{safmn_forward.5} parent=0 // pred_check_branch
    %41 = sbr.rel (0) target = $region21
  $region20: #{safmn_forward.5} parent=0 // pred_region
    _
  $region21: #{safmn_forward.5} parent=0 // pred_fallthru
    _
  // Predicated region
  $region22: #{safmn_forward.5} parent=0 // pred_check
    _
  $region23: #{safmn_forward.5} parent=0 // pred_check_branch
    %43 = sbr.rel (0) target = $region25
  $region24: #{safmn_forward.5} parent=0 // pred_region
    _
  $region25: #{safmn_forward.5} parent=0 // pred_fallthru
    _
  // Predicated region
  $region26: #{safmn_forward.5} parent=0 // pred_check
    _
  $region27: #{safmn_forward.5} parent=0 // pred_check_branch
    %45 = sbr.rel (0) target = $region29
  $region28: #{safmn_forward.5} parent=0 // pred_region
    _
  $region29: #{safmn_forward.5} parent=0 // pred_fallthru
    _
  // Predicated region
  $region30: #{safmn_forward.5} parent=0 // pred_check
    _
  $region31: #{safmn_forward.5} parent=0 // pred_check_branch
    %47 = sbr.rel (0) target = $region33
  $region32: #{safmn_forward.5} parent=0 // pred_region
    _
  $region33: #{safmn_forward.5} parent=0 // pred_fallthru
    _
  // Predicated region
  $region34: #{safmn_forward.5} parent=0 // pred_check
    _
  $region35: #{safmn_forward.5} parent=0 // pred_check_branch
    %49 = sbr.rel (0) target = $region37
  $region36: #{safmn_forward.5} parent=0 // pred_region
    _
  $region37: #{safmn_forward.5} parent=0 // pred_fallthru
    _
  // Predicated region
  $region38: #{safmn_forward.5} parent=0 // pred_check
    _
  $region39: #{safmn_forward.5} parent=0 // pred_check_branch
    %51 = sbr.rel (0) target = $region41
  $region40: #{safmn_forward.5} parent=0 // pred_region
    _
  $region41: #{safmn_forward.5} parent=0 // pred_fallthru
    _
  // Predicated region
  $region42: #{safmn_forward.5} parent=0 // pred_check
    _
  $region43: #{safmn_forward.5} parent=0 // pred_check_branch
    %53 = sbr.rel (0) target = $region45
  $region44: #{safmn_forward.5} parent=0 // pred_region
    _
  $region45: #{safmn_forward.5} parent=0 // pred_fallthru
    _
  // Predicated region
  $region46: #{safmn_forward.5} parent=0 // pred_check
    _
  $region47: #{safmn_forward.5} parent=0 // pred_check_branch
    %55 = sbr.rel (0) target = $region49
  $region48: #{safmn_forward.5} parent=0 // pred_region
    _
  $region49: #{safmn_forward.5} parent=0 // pred_fallthru
    _
  // Predicated region
  $region50: #{safmn_forward.5} parent=0 // pred_check
    _
  $region51: #{safmn_forward.5} parent=0 // pred_check_branch
    %57 = sbr.rel (0) target = $region53
  $region52: #{safmn_forward.5} parent=0 // pred_region
    _
  $region53: #{safmn_forward.5} parent=0 // pred_fallthru
    _
  // Predicated region
  $region54: #{safmn_forward.5} parent=0 // pred_check
    _
  $region55: #{safmn_forward.5} parent=0 // pred_check_branch
    %59 = sbr.rel (0) target = $region57
  $region56: #{safmn_forward.5} parent=0 // pred_region
    _
  $region57: #{safmn_forward.5} parent=0 // pred_fallthru
    _
  // Predicated region
  $region58: #{safmn_forward.5} parent=0 // pred_check
    _
  $region59: #{safmn_forward.5} parent=0 // pred_check_branch
    %61 = sbr.rel (0) target = $region61
  $region60: #{safmn_forward.5} parent=0 // pred_region
    _
  $region61: #{safmn_forward.5} parent=0 // pred_fallthru
    _
  // Predicated region
  $region62: #{safmn_forward.5} parent=0 // pred_check
    _
  $region63: #{safmn_forward.5} parent=0 // pred_check_branch
    %63 = sbr.rel (0) target = $region65
  $region64: #{safmn_forward.5} parent=0 // pred_region
    _
  $region65: #{safmn_forward.5} parent=0 // pred_fallthru
    _
  // Predicated region
  $region66: #{safmn_forward.5} parent=0 // pred_check
    _
  $region67: #{safmn_forward.5} parent=0 // pred_check_branch
    %65 = sbr.rel (0) target = $region69
  $region68: #{safmn_forward.5} parent=0 // pred_region
    _
  $region69: #{safmn_forward.5} parent=0 // pred_fallthru
    _
  // Predicated region
  $region70: #{safmn_forward.5} parent=0 // pred_check
    _
  $region71: #{safmn_forward.5} parent=0 // pred_check_branch
    %67 = sbr.rel (0) target = $region73
  $region72: #{safmn_forward.5} parent=0 // pred_region
    _
  $region73: #{safmn_forward.5} parent=0 // pred_fallthru
    _
  // Predicated region
  $region74: #{safmn_forward.5} parent=0 // pred_check
    _
  $region75: #{safmn_forward.5} parent=0 // pred_check_branch
    %69 = sbr.rel (0) target = $region77
  $region76: #{safmn_forward.5} parent=0 // pred_region
    _
  $region77: #{safmn_forward.5} parent=0 // pred_fallthru
    _
  // Predicated region
  $region78: #{safmn_forward.5} parent=0 // pred_check
    _
  $region79: #{safmn_forward.5} parent=0 // pred_check_branch
    %71 = sbr.rel (0) target = $region81
  $region80: #{safmn_forward.5} parent=0 // pred_region
    _
  $region81: #{safmn_forward.5} parent=0 // pred_fallthru
    _
  // Predicated region
  $region82: #{safmn_forward.5} parent=0 // pred_check
    _
  $region83: #{safmn_forward.5} parent=0 // pred_check_branch
    %73 = sbr.rel (0) target = $region85
  $region84: #{safmn_forward.5} parent=0 // pred_region
    _
  $region85: #{safmn_forward.5} parent=0 // pred_fallthru
    _
  // Predicated region
  $region86: #{safmn_forward.5} parent=0 // pred_check
    _
  $region87: #{safmn_forward.5} parent=0 // pred_check_branch
    %75 = sbr.rel (0) target = $region89
  $region88: #{safmn_forward.5} parent=0 // pred_region
    _
  $region89: #{safmn_forward.5} parent=0 // pred_fallthru
    _
  // Predicated region
  $region90: #{safmn_forward.5} parent=0 // pred_check
    _
  $region91: #{safmn_forward.5} parent=0 // pred_check_branch
    %77 = sbr.rel (0) target = $region93
  $region92: #{safmn_forward.5} parent=0 // pred_region
    _
  $region93: #{safmn_forward.5} parent=0 // pred_fallthru
    _
  // Predicated region
  $region94: #{safmn_forward.5} parent=0 // pred_check
    _
  $region95: #{safmn_forward.5} parent=0 // pred_check_branch
    %79 = sbr.rel (0) target = $region97
  $region96: #{safmn_forward.5} parent=0 // pred_region
    _
  $region97: #{safmn_forward.5} parent=0 // pred_fallthru
    _
  // Predicated region
  $region98: #{safmn_forward.5} parent=0 // pred_check
    _
  $region99: #{safmn_forward.5} parent=0 // pred_check_branch
    %81 = sbr.rel (0) target = $region101
  $region100: #{safmn_forward.5} parent=0 // pred_region
    _
  $region101: #{safmn_forward.5} parent=0 // pred_fallthru
    _
  // Predicated region
  $region102: #{safmn_forward.5} parent=0 // pred_check
    _
  $region103: #{safmn_forward.5} parent=0 // pred_check_branch
    %83 = sbr.rel (0) target = $region105
  $region104: #{safmn_forward.5} parent=0 // pred_region
    _
  $region105: #{safmn_forward.5} parent=0 // pred_fallthru
    _
  // Predicated region
  $region106: #{safmn_forward.5} parent=0 // pred_check
    _
  $region107: #{safmn_forward.5} parent=0 // pred_check_branch
    %85 = sbr.rel (0) target = $region109
  $region108: #{safmn_forward.5} parent=0 // pred_region
    _
  $region109: #{safmn_forward.5} parent=0 // pred_fallthru
    _
  %v86 = vld [vmem:[%s0] sm:$0xff]
  %v87 = vld [vmem:[%s0 + $0x8] sm:$0xff]
  %v88 = vld [vmem:[%s1] sm:$0xff]
  %v89 = vld [vmem:[%s1 + $0x8] sm:$0xff]
  %v90 = vld [vmem:[%s2] sm:$0xff]
  %v91 = vld [vmem:[%s2 + $0x8] sm:$0xff]
  %vm92 = vcmask 130048
  %v94 = vsel %vm92, 0.0625, 0
  %96 = vmatprep.subr.mxu0 0.0
  %97 = vmatpush1.msra.mxu0 %v86
  %98 = vmatprep.subr.mxu0 0.0
  %99 = vmatpush1.msra.mxu0 %v87
  %100 = vmatprep.subr.mxu0 0.0
  %101 = vmatpush1.msra.mxu0 0.0
  %102 = vmatprep.subr.mxu0 0.0
  %103 = vmatpush1.msra.mxu0 0.0
  %104 = vmatprep.subr.mxu0 0.0
  %105 = vmatpush1.msra.mxu0 0.0
  %106 = vmatprep.subr.mxu0 0.0
  %107 = vmatpush1.msra.mxu0 0.0
  %108 = vmatprep.subr.mxu0 0.0
  %109 = vmatpush1.msra.mxu0 0.0
  %110 = vmatprep.subr.mxu0 0.0
  %111 = vmatpush1.msra.mxu0 0.0
  %112 = vmatprep.subr.mxu0 0.0
  %113 = vmatpush1.msra.mxu0 0.0
  %114 = vmatprep.subr.mxu0 0.0
  %115 = vmatpush1.msra.mxu0 0.0
  %116 = vmatprep.subr.mxu0 0.0
  %117 = vmatpush1.msra.mxu0 0.0
  %118 = vmatprep.subr.mxu0 0.0
  %119 = vmatpush1.msra.mxu0 0.0
  %120 = vmatprep.subr.mxu0 0.0
  %121 = vmatpush1.msra.mxu0 0.0
  %122 = vmatprep.subr.mxu0 0.0
  %123 = vmatpush1.msra.mxu0 0.0
  %124 = vmatprep.subr.mxu0 0.0
  %125 = vmatpush1.msra.mxu0 0.0
  %126 = vmatprep.subr.mxu0 0.0
  %127 = vmatpush1.msra.mxu0 0.0
  %128 = vmatprep.subr.mxu0 0.0
  %129 = vmatpush1.msra.mxu0 0.0
  %130 = vmatprep.subr.mxu0 0.0
  %131 = vmatpush1.msra.mxu0 0.0
  %132 = vmatprep.subr.mxu0 0.0
  %133 = vmatpush1.msra.mxu0 0.0
  %134 = vmatprep.subr.mxu0 0.0
  %135 = vmatpush1.msra.mxu0 0.0
  %136 = vmatprep.subr.mxu0 0.0
  %137 = vmatpush1.msra.mxu0 0.0
  %138 = vmatprep.subr.mxu0 0.0
  %139 = vmatpush1.msra.mxu0 0.0
  %140 = vmatprep.subr.mxu0 0.0
  %141 = vmatpush1.msra.mxu0 0.0
  %142 = vmatprep.subr.mxu0 0.0
  %143 = vmatpush1.msra.mxu0 0.0
  %144 = vmatprep.subr.mxu0 0.0
  %145 = vmatpush1.msra.mxu0 0.0
  %146 = vmatprep.subr.mxu0 0.0
  %147 = vmatpush1.msra.mxu0 0.0
  %148 = vmatprep.subr.mxu0 0.0
  %149 = vmatpush1.msra.mxu0 0.0
  %150 = vmatprep.subr.mxu0 0.0
  %151 = vmatpush1.msra.mxu0 0.0
  %152 = vmatprep.subr.mxu0 0.0
  %153 = vmatpush1.msra.mxu0 0.0
  %154 = vmatprep.subr.mxu0 0.0
  %155 = vmatpush1.msra.mxu0 0.0
  %156 = vmatprep.subr.mxu0 0.0
  %157 = vmatpush1.msra.mxu0 0.0
  %158 = vmatprep.subr.mxu0 0.0
  %159 = vmatpush1.msra.mxu0 0.0
  %160 = vmatprep.mubr.f32.mxu0 0.0
  %161 = vmatmul.mubr.f32.gmra.mrb[0].mxu0 %v94
  %v162 = vpop.f32.mrb[0].mxu0
  %v163 = vadd.f32 0.0, %v162
  %v164 = vpop.f32.mrb[0].mxu0
  %165 = vdwg.mxu0
  %v166 = vlaneseq
  %v167 = vshrl.u32 %v166, 7
  %v168 = vsub.s32 0, %v167
  %v169 = vrot.slane %v163, %v168
  %v170 = vsub.f32 %v86, %v169
  %v171 = vsub.f32 %v87, %v169
  %v172 = vmul.f32 %v170, %v170
  %v173 = vmul.f32 %v171, %v171
  %174 = vmatprep.subr.mxu0 0.0
  %175 = vmatpush1.msra.mxu0 %v172
  %176 = vmatprep.subr.mxu0 0.0
  %177 = vmatpush1.msra.mxu0 %v173
  %178 = vmatprep.subr.mxu0 0.0
  %179 = vmatpush1.msra.mxu0 0.0
  %180 = vmatprep.subr.mxu0 0.0
  %181 = vmatpush1.msra.mxu0 0.0
  %182 = vmatprep.subr.mxu0 0.0
  %183 = vmatpush1.msra.mxu0 0.0
  %184 = vmatprep.subr.mxu0 0.0
  %185 = vmatpush1.msra.mxu0 0.0
  %186 = vmatprep.subr.mxu0 0.0
  %187 = vmatpush1.msra.mxu0 0.0
  %188 = vmatprep.subr.mxu0 0.0
  %189 = vmatpush1.msra.mxu0 0.0
  %190 = vmatprep.subr.mxu0 0.0
  %191 = vmatpush1.msra.mxu0 0.0
  %192 = vmatprep.subr.mxu0 0.0
  %193 = vmatpush1.msra.mxu0 0.0
  %194 = vmatprep.subr.mxu0 0.0
  %195 = vmatpush1.msra.mxu0 0.0
  %196 = vmatprep.subr.mxu0 0.0
  %197 = vmatpush1.msra.mxu0 0.0
  %198 = vmatprep.subr.mxu0 0.0
  %199 = vmatpush1.msra.mxu0 0.0
  %200 = vmatprep.subr.mxu0 0.0
  %201 = vmatpush1.msra.mxu0 0.0
  %202 = vmatprep.subr.mxu0 0.0
  %203 = vmatpush1.msra.mxu0 0.0
  %204 = vmatprep.subr.mxu0 0.0
  %205 = vmatpush1.msra.mxu0 0.0
  %206 = vmatprep.subr.mxu0 0.0
  %207 = vmatpush1.msra.mxu0 0.0
  %208 = vmatprep.subr.mxu0 0.0
  %209 = vmatpush1.msra.mxu0 0.0
  %210 = vmatprep.subr.mxu0 0.0
  %211 = vmatpush1.msra.mxu0 0.0
  %212 = vmatprep.subr.mxu0 0.0
  %213 = vmatpush1.msra.mxu0 0.0
  %214 = vmatprep.subr.mxu0 0.0
  %215 = vmatpush1.msra.mxu0 0.0
  %216 = vmatprep.subr.mxu0 0.0
  %217 = vmatpush1.msra.mxu0 0.0
  %218 = vmatprep.subr.mxu0 0.0
  %219 = vmatpush1.msra.mxu0 0.0
  %220 = vmatprep.subr.mxu0 0.0
  %221 = vmatpush1.msra.mxu0 0.0
  %222 = vmatprep.subr.mxu0 0.0
  %223 = vmatpush1.msra.mxu0 0.0
  %224 = vmatprep.subr.mxu0 0.0
  %225 = vmatpush1.msra.mxu0 0.0
  %226 = vmatprep.subr.mxu0 0.0
  %227 = vmatpush1.msra.mxu0 0.0
  %228 = vmatprep.subr.mxu0 0.0
  %229 = vmatpush1.msra.mxu0 0.0
  %230 = vmatprep.subr.mxu0 0.0
  %231 = vmatpush1.msra.mxu0 0.0
  %232 = vmatprep.subr.mxu0 0.0
  %233 = vmatpush1.msra.mxu0 0.0
  %234 = vmatprep.subr.mxu0 0.0
  %235 = vmatpush1.msra.mxu0 0.0
  %236 = vmatprep.subr.mxu0 0.0
  %237 = vmatpush1.msra.mxu0 0.0
  %238 = vmatprep.mubr.f32.mxu0 0.0
  %239 = vmatmul.mubr.f32.gmra.mrb[0].mxu0 %v94
  %v240 = vpop.f32.mrb[0].mxu0
  %v241 = vadd.f32 1e-06, %v240
  %v242 = vpop.f32.mrb[0].mxu0
  %243 = vdwg.mxu0
  %v244 = vrsqrt.pop %v241
  %v245 = vlaneseq
  %v246 = vshrl.u32 %v245, 7
  %v247 = vsub.s32 0, %v246
  %v248 = vrot.slane %v244, %v247
  %v249 = vmul.f32 %v170, %v248
  %v250 = vmul.f32 %v171, %v248
  %252 = vset.pattern.permute.xlu0 0
  %253 = vperm.xlu0 %252, %v88
  %v254 = vpop.permute.xlu0 %253
  %257 = vset.pattern.permute.xlu0 0
  %258 = vperm.xlu0 %257, %v89
  %v259 = vpop.permute.xlu0 %258
  %v261 = vmul.f32 %v249, %v254
  %v262 = vmul.f32 %v250, %v259
  %264 = vset.pattern.permute.xlu0 0
  %265 = vperm.xlu0 %264, %v90
  %v266 = vpop.permute.xlu0 %265
  %269 = vset.pattern.permute.xlu0 0
  %270 = vperm.xlu0 %269, %v91
  %v271 = vpop.permute.xlu0 %270
  %v273 = vadd.f32 %v261, %v266
  %v274 = vadd.f32 %v262, %v271
  %v275 = vld [vmem:[%s22] sm:$0xff]
  %v276 = vld [vmem:[%s22 + $0x8] sm:$0xff]
  %v277 = vld [vmem:[%s22 + $0x10] sm:$0xff]
  %v278 = vld [vmem:[%s22 + $0x18] sm:$0xff]
  %v279 = vld [vmem:[%s22 + $0x20] sm:$0xff]
  %v280 = vld [vmem:[%s22 + $0x28] sm:$0xff]
  %v281 = vld [vmem:[%s22 + $0x30] sm:$0xff]
  %v282 = vld [vmem:[%s22 + $0x38] sm:$0xff]
  %v283 = vld [vmem:[%s22 + $0x40] sm:$0xff]
  %v284 = vld [vmem:[%s22 + $0x48] sm:$0xff]
  %v285 = vld [vmem:[%s22 + $0x50] sm:$0xff]
  %v286 = vld [vmem:[%s22 + $0x58] sm:$0xff]
  %v287 = vld [vmem:[%s22 + $0x60] sm:$0xff]
  %v288 = vld [vmem:[%s22 + $0x68] sm:$0xff]
  %v289 = vld [vmem:[%s22 + $0x70] sm:$0xff]
  %v290 = vld [vmem:[%s22 + $0x78] sm:$0xff]
  %291 = vmatprep.subr.mxu0 0.0
  %292 = vmatpush1.msra.mxu0 %v275
  %293 = vmatprep.subr.mxu0 0.0
  %294 = vmatpush1.msra.mxu0 %v276
  %295 = vmatprep.subr.mxu0 0.0
  %296 = vmatpush1.msra.mxu0 %v277
  %297 = vmatprep.subr.mxu0 0.0
  %298 = vmatpush1.msra.mxu0 %v278
  %299 = vmatprep.subr.mxu0 0.0
  %300 = vmatpush1.msra.mxu0 %v279
  %301 = vmatprep.subr.mxu0 0.0
  %302 = vmatpush1.msra.mxu0 %v280
  %303 = vmatprep.subr.mxu0 0.0
  %304 = vmatpush1.msra.mxu0 %v281
  %305 = vmatprep.subr.mxu0 0.0
  %306 = vmatpush1.msra.mxu0 %v282
  %307 = vmatprep.subr.mxu0 0.0
  %308 = vmatpush1.msra.mxu0 %v283
  %309 = vmatprep.subr.mxu0 0.0
  %310 = vmatpush1.msra.mxu0 %v284
  %311 = vmatprep.subr.mxu0 0.0
  %312 = vmatpush1.msra.mxu0 %v285
  %313 = vmatprep.subr.mxu0 0.0
  %314 = vmatpush1.msra.mxu0 %v286
  %315 = vmatprep.subr.mxu0 0.0
  %316 = vmatpush1.msra.mxu0 %v287
  %317 = vmatprep.subr.mxu0 0.0
  %318 = vmatpush1.msra.mxu0 %v288
  %319 = vmatprep.subr.mxu0 0.0
  %320 = vmatpush1.msra.mxu0 %v289
  %321 = vmatprep.subr.mxu0 0.0
  %322 = vmatpush1.msra.mxu0 %v290
  %323 = vmatprep.subr.mxu0 0.0
  %324 = vmatpush1.msra.mxu0 0.0
  %325 = vmatprep.subr.mxu0 0.0
  %326 = vmatpush1.msra.mxu0 0.0
  %327 = vmatprep.subr.mxu0 0.0
  %328 = vmatpush1.msra.mxu0 0.0
  %329 = vmatprep.subr.mxu0 0.0
  %330 = vmatpush1.msra.mxu0 0.0
  %331 = vmatprep.subr.mxu0 0.0
  %332 = vmatpush1.msra.mxu0 0.0
  %333 = vmatprep.subr.mxu0 0.0
  %334 = vmatpush1.msra.mxu0 0.0
  %335 = vmatprep.subr.mxu0 0.0
  %336 = vmatpush1.msra.mxu0 0.0
  %337 = vmatprep.subr.mxu0 0.0
  %338 = vmatpush1.msra.mxu0 0.0
  %339 = vmatprep.subr.mxu0 0.0
  %340 = vmatpush1.msra.mxu0 0.0
  %341 = vmatprep.subr.mxu0 0.0
  %342 = vmatpush1.msra.mxu0 0.0
  %343 = vmatprep.subr.mxu0 0.0
  %344 = vmatpush1.msra.mxu0 0.0
  %345 = vmatprep.subr.mxu0 0.0
  %346 = vmatpush1.msra.mxu0 0.0
  %347 = vmatprep.subr.mxu0 0.0
  %348 = vmatpush1.msra.mxu0 0.0
  %349 = vmatprep.subr.mxu0 0.0
  %350 = vmatpush1.msra.mxu0 0.0
  %351 = vmatprep.subr.mxu0 0.0
  %352 = vmatpush1.msra.mxu0 0.0
  %353 = vmatprep.subr.mxu0 0.0
  %354 = vmatpush1.msra.mxu0 0.0
  %355 = vmatprep.mubr.f32.mxu0 0.0
  %356 = vmatmul.mubr.f32.gmra.mrb[0].mxu0 %v273
  %v357 = vpop.f32.mrb[0].mxu0
  %v358 = vadd.f32 0.0, %v357
  %v359 = vpop.f32.mrb[0].mxu0
  %360 = vmatprep.mubr.f32.mxu0 0.0
  %361 = vmatmul.mubr.f32.gmra.mrb[0].mxu0 %v274
  %v362 = vpop.f32.mrb[0].mxu0
  %v363 = vadd.f32 0.0, %v362
  %v364 = vpop.f32.mrb[0].mxu0
  %365 = vdwg.mxu0
  %v366 = vld [vmem:[%s3] sm:$0xff]
  %v367 = vld [vmem:[%s4] sm:$0xff]
  %369 = vset.pattern.permute.xlu0 0
  %370 = vperm.xlu0 %369, %v367
  %v371 = vpop.permute.xlu0 %370
  %v374 = vsel %vm92, %v366, 0
  %376 = vmatprep.subr.mxu0 0.0
  %377 = vmatpush1.msra.mxu0 %v358
  %378 = vmatprep.subr.mxu0 0.0
  %379 = vmatpush1.msra.mxu0 %v363
  %380 = vmatprep.subr.mxu0 0.0
  %381 = vmatpush1.msra.mxu0 0.0
  %382 = vmatprep.subr.mxu0 0.0
  %383 = vmatpush1.msra.mxu0 0.0
  %384 = vmatprep.subr.mxu0 0.0
  %385 = vmatpush1.msra.mxu0 0.0
  %386 = vmatprep.subr.mxu0 0.0
  %387 = vmatpush1.msra.mxu0 0.0
  %388 = vmatprep.subr.mxu0 0.0
  %389 = vmatpush1.msra.mxu0 0.0
  %390 = vmatprep.subr.mxu0 0.0
  %391 = vmatpush1.msra.mxu0 0.0
  %392 = vmatprep.subr.mxu0 0.0
  %393 = vmatpush1.msra.mxu0 0.0
  %394 = vmatprep.subr.mxu0 0.0
  %395 = vmatpush1.msra.mxu0 0.0
  %396 = vmatprep.subr.mxu0 0.0
  %397 = vmatpush1.msra.mxu0 0.0
  %398 = vmatprep.subr.mxu0 0.0
  %399 = vmatpush1.msra.mxu0 0.0
  %400 = vmatprep.subr.mxu0 0.0
  %401 = vmatpush1.msra.mxu0 0.0
  %402 = vmatprep.subr.mxu0 0.0
  %403 = vmatpush1.msra.mxu0 0.0
  %404 = vmatprep.subr.mxu0 0.0
  %405 = vmatpush1.msra.mxu0 0.0
  %406 = vmatprep.subr.mxu0 0.0
  %407 = vmatpush1.msra.mxu0 0.0
  %408 = vmatprep.subr.mxu0 0.0
  %409 = vmatpush1.msra.mxu0 0.0
  %410 = vmatprep.subr.mxu0 0.0
  %411 = vmatpush1.msra.mxu0 0.0
  %412 = vmatprep.subr.mxu0 0.0
  %413 = vmatpush1.msra.mxu0 0.0
  %414 = vmatprep.subr.mxu0 0.0
  %415 = vmatpush1.msra.mxu0 0.0
  %416 = vmatprep.subr.mxu0 0.0
  %417 = vmatpush1.msra.mxu0 0.0
  %418 = vmatprep.subr.mxu0 0.0
  %419 = vmatpush1.msra.mxu0 0.0
  %420 = vmatprep.subr.mxu0 0.0
  %421 = vmatpush1.msra.mxu0 0.0
  %422 = vmatprep.subr.mxu0 0.0
  %423 = vmatpush1.msra.mxu0 0.0
  %424 = vmatprep.subr.mxu0 0.0
  %425 = vmatpush1.msra.mxu0 0.0
  %426 = vmatprep.subr.mxu0 0.0
  %427 = vmatpush1.msra.mxu0 0.0
  %428 = vmatprep.subr.mxu0 0.0
  %429 = vmatpush1.msra.mxu0 0.0
  %430 = vmatprep.subr.mxu0 0.0
  %431 = vmatpush1.msra.mxu0 0.0
  %432 = vmatprep.subr.mxu0 0.0
  %433 = vmatpush1.msra.mxu0 0.0
  %434 = vmatprep.subr.mxu0 0.0
  %435 = vmatpush1.msra.mxu0 0.0
  %436 = vmatprep.subr.mxu0 0.0
  %437 = vmatpush1.msra.mxu0 0.0
  %438 = vmatprep.subr.mxu0 0.0
  %439 = vmatpush1.msra.mxu0 0.0
  %440 = vmatprep.mubr.f32.mxu0 0.0
  %441 = vmatmul.mubr.f32.gmra.mrb[0].mxu0 %v374
  %v442 = vpop.f32.mrb[0].mxu0
  %v443 = vadd.f32 %v371, %v442
  %v444 = vpop.f32.mrb[0].mxu0
  %445 = vdwg.mxu0
  %v446 = vmax.f32 %v443, 0.0
  %v447 = vld [vmem:[%s5] sm:$0xff]
  %v448 = vld [vmem:[%s5 + $0x8] sm:$0xff]
  %v449 = vld [vmem:[%s6] sm:$0xff]
  %v450 = vld [vmem:[%s6 + $0x8] sm:$0xff]
  %452 = vset.pattern.permute.xlu0 0
  %453 = vperm.xlu0 %452, %v449
  %v454 = vpop.permute.xlu0 %453
  %457 = vset.pattern.permute.xlu0 0
  %458 = vperm.xlu0 %457, %v450
  %v459 = vpop.permute.xlu0 %458
  %vm461 = vcmask 64512
  %v463 = vsel %vm461, %v447, 0
  %v466 = vsel %vm461, %v448, 0
  %468 = vmatprep.subr.mxu0 0.0
  %469 = vmatpush1.msra.mxu0 %v446
  %470 = vmatprep.subr.mxu0 0.0
  %471 = vmatpush1.msra.mxu0 0.0
  %472 = vmatprep.subr.mxu0 0.0
  %473 = vmatpush1.msra.mxu0 0.0
  %474 = vmatprep.subr.mxu0 0.0
  %475 = vmatpush1.msra.mxu0 0.0
  %476 = vmatprep.subr.mxu0 0.0
  %477 = vmatpush1.msra.mxu0 0.0
  %478 = vmatprep.subr.mxu0 0.0
  %479 = vmatpush1.msra.mxu0 0.0
  %480 = vmatprep.subr.mxu0 0.0
  %481 = vmatpush1.msra.mxu0 0.0
  %482 = vmatprep.subr.mxu0 0.0
  %483 = vmatpush1.msra.mxu0 0.0
  %484 = vmatprep.subr.mxu0 0.0
  %485 = vmatpush1.msra.mxu0 0.0
  %486 = vmatprep.subr.mxu0 0.0
  %487 = vmatpush1.msra.mxu0 0.0
  %488 = vmatprep.subr.mxu0 0.0
  %489 = vmatpush1.msra.mxu0 0.0
  %490 = vmatprep.subr.mxu0 0.0
  %491 = vmatpush1.msra.mxu0 0.0
  %492 = vmatprep.subr.mxu0 0.0
  %493 = vmatpush1.msra.mxu0 0.0
  %494 = vmatprep.subr.mxu0 0.0
  %495 = vmatpush1.msra.mxu0 0.0
  %496 = vmatprep.subr.mxu0 0.0
  %497 = vmatpush1.msra.mxu0 0.0
  %498 = vmatprep.subr.mxu0 0.0
  %499 = vmatpush1.msra.mxu0 0.0
  %500 = vmatprep.subr.mxu0 0.0
  %501 = vmatpush1.msra.mxu0 0.0
  %502 = vmatprep.subr.mxu0 0.0
  %503 = vmatpush1.msra.mxu0 0.0
  %504 = vmatprep.subr.mxu0 0.0
  %505 = vmatpush1.msra.mxu0 0.0
  %506 = vmatprep.subr.mxu0 0.0
  %507 = vmatpush1.msra.mxu0 0.0
  %508 = vmatprep.subr.mxu0 0.0
  %509 = vmatpush1.msra.mxu0 0.0
  %510 = vmatprep.subr.mxu0 0.0
  %511 = vmatpush1.msra.mxu0 0.0
  %512 = vmatprep.subr.mxu0 0.0
  %513 = vmatpush1.msra.mxu0 0.0
  %514 = vmatprep.subr.mxu0 0.0
  %515 = vmatpush1.msra.mxu0 0.0
  %516 = vmatprep.subr.mxu0 0.0
  %517 = vmatpush1.msra.mxu0 0.0
  %518 = vmatprep.subr.mxu0 0.0
  %519 = vmatpush1.msra.mxu0 0.0
  %520 = vmatprep.subr.mxu0 0.0
  %521 = vmatpush1.msra.mxu0 0.0
  %522 = vmatprep.subr.mxu0 0.0
  %523 = vmatpush1.msra.mxu0 0.0
  %524 = vmatprep.subr.mxu0 0.0
  %525 = vmatpush1.msra.mxu0 0.0
  %526 = vmatprep.subr.mxu0 0.0
  %527 = vmatpush1.msra.mxu0 0.0
  %528 = vmatprep.subr.mxu0 0.0
  %529 = vmatpush1.msra.mxu0 0.0
  %530 = vmatprep.subr.mxu0 0.0
  %531 = vmatpush1.msra.mxu0 0.0
  %532 = vmatprep.mubr.f32.mxu0 0.0
  %533 = vmatmul.mubr.f32.gmra.mrb[0].mxu0 %v463
  %v534 = vpop.f32.mrb[0].mxu0
  %v535 = vadd.f32 %v454, %v534
  %v536 = vpop.f32.mrb[0].mxu0
  %537 = vmatprep.mubr.f32.mxu0 0.0
  %538 = vmatmul.mubr.f32.gmra.mrb[0].mxu0 %v466
  %v539 = vpop.f32.mrb[0].mxu0
  %v540 = vadd.f32 %v459, %v539
  %v541 = vpop.f32.mrb[0].mxu0
  %542 = vdwg.mxu0
  %v543 = vsub.f32 0.0, %v535
  %v544 = vsub.f32 0.0, %v540
  %v545 = vmul.f32 %v543, 1.442695
  %v546 = vpow.pop %v545
  %v547 = vmul.f32 %v544, 1.442695
  %v548 = vpow.pop %v547
  %v549 = vadd.f32 %v546, 1.0
  %v550 = vadd.f32 %v548, 1.0
  %v551 = vrcp.pop %v549
  %v552 = vmul.f32 1.0, %v551
  %v553 = vrcp.pop %v550
  %v554 = vmul.f32 1.0, %v553
  %v555 = vld [vmem:[%s23] sm:$0x3]
  %vm556 = vcmask 15360
  %v558 = vsel %vm556, %v552, 0
  %v561 = vsel %vm556, %v554, 0
  %vm563 = vcmask 1041408
  %v565 = vsel %vm563, %v555, 0
  %567 = vmatprep.subr.mxu0 0.0
  %568 = vmatpush1.msra.mxu0 %v565
  %569 = vmatprep.subr.mxu0 0.0
  %570 = vmatpush1.msra.mxu0 0.0
  %571 = vmatprep.subr.mxu0 0.0
  %572 = vmatpush1.msra.mxu0 0.0
  %573 = vmatprep.subr.mxu0 0.0
  %574 = vmatpush1.msra.mxu0 0.0
  %575 = vmatprep.subr.mxu0 0.0
  %576 = vmatpush1.msra.mxu0 0.0
  %577 = vmatprep.subr.mxu0 0.0
  %578 = vmatpush1.msra.mxu0 0.0
  %579 = vmatprep.subr.mxu0 0.0
  %580 = vmatpush1.msra.mxu0 0.0
  %581 = vmatprep.subr.mxu0 0.0
  %582 = vmatpush1.msra.mxu0 0.0
  %583 = vmatprep.subr.mxu0 0.0
  %584 = vmatpush1.msra.mxu0 0.0
  %585 = vmatprep.subr.mxu0 0.0
  %586 = vmatpush1.msra.mxu0 0.0
  %587 = vmatprep.subr.mxu0 0.0
  %588 = vmatpush1.msra.mxu0 0.0
  %589 = vmatprep.subr.mxu0 0.0
  %590 = vmatpush1.msra.mxu0 0.0
  %591 = vmatprep.subr.mxu0 0.0
  %592 = vmatpush1.msra.mxu0 0.0
  %593 = vmatprep.subr.mxu0 0.0
  %594 = vmatpush1.msra.mxu0 0.0
  %595 = vmatprep.subr.mxu0 0.0
  %596 = vmatpush1.msra.mxu0 0.0
  %597 = vmatprep.subr.mxu0 0.0
  %598 = vmatpush1.msra.mxu0 0.0
  %599 = vmatprep.subr.mxu0 0.0
  %600 = vmatpush1.msra.mxu0 0.0
  %601 = vmatprep.subr.mxu0 0.0
  %602 = vmatpush1.msra.mxu0 0.0
  %603 = vmatprep.subr.mxu0 0.0
  %604 = vmatpush1.msra.mxu0 0.0
  %605 = vmatprep.subr.mxu0 0.0
  %606 = vmatpush1.msra.mxu0 0.0
  %607 = vmatprep.subr.mxu0 0.0
  %608 = vmatpush1.msra.mxu0 0.0
  %609 = vmatprep.subr.mxu0 0.0
  %610 = vmatpush1.msra.mxu0 0.0
  %611 = vmatprep.subr.mxu0 0.0
  %612 = vmatpush1.msra.mxu0 0.0
  %613 = vmatprep.subr.mxu0 0.0
  %614 = vmatpush1.msra.mxu0 0.0
  %615 = vmatprep.subr.mxu0 0.0
  %616 = vmatpush1.msra.mxu0 0.0
  %617 = vmatprep.subr.mxu0 0.0
  %618 = vmatpush1.msra.mxu0 0.0
  %619 = vmatprep.subr.mxu0 0.0
  %620 = vmatpush1.msra.mxu0 0.0
  %621 = vmatprep.subr.mxu0 0.0
  %622 = vmatpush1.msra.mxu0 0.0
  %623 = vmatprep.subr.mxu0 0.0
  %624 = vmatpush1.msra.mxu0 0.0
  %625 = vmatprep.subr.mxu0 0.0
  %626 = vmatpush1.msra.mxu0 0.0
  %627 = vmatprep.subr.mxu0 0.0
  %628 = vmatpush1.msra.mxu0 0.0
  %629 = vmatprep.subr.mxu0 0.0
  %630 = vmatpush1.msra.mxu0 0.0
  %631 = vmatprep.mubr.f32.mxu0 0.0
  %632 = vmatmul.mubr.f32.gmra.mrb[0].mxu0 %v558
  %v633 = vpop.f32.mrb[0].mxu0
  %v634 = vadd.f32 0.0, %v633
  %v635 = vpop.f32.mrb[0].mxu0
  %636 = vmatprep.mubr.f32.mxu0 0.0
  %637 = vmatmul.mubr.f32.gmra.mrb[0].mxu0 %v561
  %v638 = vpop.f32.mrb[0].mxu0
  %v639 = vadd.f32 0.0, %v638
  %v640 = vpop.f32.mrb[0].mxu0
  %641 = vdwg.mxu0
  %v642 = vmul.f32 %v273, %v634
  %v643 = vmul.f32 %v274, %v639
  %v644 = vld [vmem:[%s24] sm:$0xff]
  %v645 = vld [vmem:[%s24 + $0x8] sm:$0xff]
  %v646 = vld [vmem:[%s24 + $0x10] sm:$0xff]
  %v647 = vld [vmem:[%s24 + $0x18] sm:$0xff]
  %v648 = vld [vmem:[%s24 + $0x20] sm:$0xff]
  %v649 = vld [vmem:[%s24 + $0x28] sm:$0xff]
  %v650 = vld [vmem:[%s24 + $0x30] sm:$0xff]
  %v651 = vld [vmem:[%s24 + $0x38] sm:$0xff]
  %v652 = vld [vmem:[%s24 + $0x40] sm:$0xff]
  %v653 = vld [vmem:[%s24 + $0x48] sm:$0xff]
  %v654 = vld [vmem:[%s24 + $0x50] sm:$0xff]
  %v655 = vld [vmem:[%s24 + $0x58] sm:$0xff]
  %v656 = vld [vmem:[%s24 + $0x60] sm:$0xff]
  %v657 = vld [vmem:[%s24 + $0x68] sm:$0xff]
  %v658 = vld [vmem:[%s24 + $0x70] sm:$0xff]
  %v659 = vld [vmem:[%s24 + $0x78] sm:$0xff]
  %v660 = vld [vmem:[%s24 + $0x80] sm:$0xff]
  %v661 = vld [vmem:[%s24 + $0x88] sm:$0xff]
  %v662 = vld [vmem:[%s24 + $0x90] sm:$0xff]
  %v663 = vld [vmem:[%s24 + $0x98] sm:$0xff]
  %v664 = vld [vmem:[%s24 + $0xa0] sm:$0xff]
  %v665 = vld [vmem:[%s24 + $0xa8] sm:$0xff]
  %v666 = vld [vmem:[%s24 + $0xb0] sm:$0xff]
  %v667 = vld [vmem:[%s24 + $0xb8] sm:$0xff]
  %v668 = vld [vmem:[%s24 + $0xc0] sm:$0xff]
  %v669 = vld [vmem:[%s24 + $0xc8] sm:$0xff]
  %v670 = vld [vmem:[%s24 + $0xd0] sm:$0xff]
  %v671 = vld [vmem:[%s24 + $0xd8] sm:$0xff]
  %v672 = vld [vmem:[%s24 + $0xe0] sm:$0xff]
  %v673 = vld [vmem:[%s24 + $0xe8] sm:$0xff]
  %v674 = vld [vmem:[%s24 + $0xf0] sm:$0xff]
  %v675 = vld [vmem:[%s24 + $0xf8] sm:$0xff]
  %v676 = vld [vmem:[%s24 + $0x100] sm:$0xff]
  %v677 = vld [vmem:[%s24 + $0x108] sm:$0xff]
  %v678 = vld [vmem:[%s24 + $0x110] sm:$0xff]
  %v679 = vld [vmem:[%s24 + $0x118] sm:$0xff]
  %v680 = vld [vmem:[%s24 + $0x120] sm:$0xff]
  %v681 = vld [vmem:[%s24 + $0x128] sm:$0xff]
  %v682 = vld [vmem:[%s24 + $0x130] sm:$0xff]
  %v683 = vld [vmem:[%s24 + $0x138] sm:$0xff]
  %v684 = vld [vmem:[%s24 + $0x140] sm:$0xff]
  %v685 = vld [vmem:[%s24 + $0x148] sm:$0xff]
  %v686 = vld [vmem:[%s24 + $0x150] sm:$0xff]
  %v687 = vld [vmem:[%s24 + $0x158] sm:$0xff]
  %v688 = vld [vmem:[%s24 + $0x160] sm:$0xff]
  %v689 = vld [vmem:[%s24 + $0x168] sm:$0xff]
  %v690 = vld [vmem:[%s24 + $0x170] sm:$0xff]
  %v691 = vld [vmem:[%s24 + $0x178] sm:$0xff]
  %v692 = vld [vmem:[%s24 + $0x180] sm:$0xff]
  %v693 = vld [vmem:[%s24 + $0x188] sm:$0xff]
  %v694 = vld [vmem:[%s24 + $0x190] sm:$0xff]
  %v695 = vld [vmem:[%s24 + $0x198] sm:$0xff]
  %v696 = vld [vmem:[%s24 + $0x1a0] sm:$0xff]
  %v697 = vld [vmem:[%s24 + $0x1a8] sm:$0xff]
  %v698 = vld [vmem:[%s24 + $0x1b0] sm:$0xff]
  %v699 = vld [vmem:[%s24 + $0x1b8] sm:$0xff]
  %v700 = vld [vmem:[%s24 + $0x1c0] sm:$0xff]
  %v701 = vld [vmem:[%s24 + $0x1c8] sm:$0xff]
  %v702 = vld [vmem:[%s24 + $0x1d0] sm:$0xff]
  %v703 = vld [vmem:[%s24 + $0x1d8] sm:$0xff]
  %v704 = vld [vmem:[%s24 + $0x1e0] sm:$0xff]
  %v705 = vld [vmem:[%s24 + $0x1e8] sm:$0xff]
  %v706 = vld [vmem:[%s24 + $0x1f0] sm:$0xff]
  %v707 = vld [vmem:[%s24 + $0x1f8] sm:$0xff]
  %708 = vmatprep.subr.mxu0 %v645
  %709 = vmatpush1.msra.mxu0 %v644
  %710 = vmatprep.subr.mxu0 %v649
  %711 = vmatpush1.msra.mxu0 %v648
  %712 = vmatprep.subr.mxu0 %v653
  %713 = vmatpush1.msra.mxu0 %v652
  %714 = vmatprep.subr.mxu0 %v657
  %715 = vmatpush1.msra.mxu0 %v656
  %716 = vmatprep.subr.mxu0 %v661
  %717 = vmatpush1.msra.mxu0 %v660
  %718 = vmatprep.subr.mxu0 %v665
  %719 = vmatpush1.msra.mxu0 %v664
  %720 = vmatprep.subr.mxu0 %v669
  %721 = vmatpush1.msra.mxu0 %v668
  %722 = vmatprep.subr.mxu0 %v673
  %723 = vmatpush1.msra.mxu0 %v672
  %724 = vmatprep.subr.mxu0 %v677
  %725 = vmatpush1.msra.mxu0 %v676
  %726 = vmatprep.subr.mxu0 %v681
  %727 = vmatpush1.msra.mxu0 %v680
  %728 = vmatprep.subr.mxu0 %v685
  %729 = vmatpush1.msra.mxu0 %v684
  %730 = vmatprep.subr.mxu0 %v689
  %731 = vmatpush1.msra.mxu0 %v688
  %732 = vmatprep.subr.mxu0 %v693
  %733 = vmatpush1.msra.mxu0 %v692
  %734 = vmatprep.subr.mxu0 %v697
  %735 = vmatpush1.msra.mxu0 %v696
  %736 = vmatprep.subr.mxu0 %v701
  %737 = vmatpush1.msra.mxu0 %v700
  %738 = vmatprep.subr.mxu0 %v705
  %739 = vmatpush1.msra.mxu0 %v704
  %740 = vmatprep.subr.mxu0 0.0
  %741 = vmatpush1.msra.mxu0 0.0
  %742 = vmatprep.subr.mxu0 0.0
  %743 = vmatpush1.msra.mxu0 0.0
  %744 = vmatprep.subr.mxu0 0.0
  %745 = vmatpush1.msra.mxu0 0.0
  %746 = vmatprep.subr.mxu0 0.0
  %747 = vmatpush1.msra.mxu0 0.0
  %748 = vmatprep.subr.mxu0 0.0
  %749 = vmatpush1.msra.mxu0 0.0
  %750 = vmatprep.subr.mxu0 0.0
  %751 = vmatpush1.msra.mxu0 0.0
  %752 = vmatprep.subr.mxu0 0.0
  %753 = vmatpush1.msra.mxu0 0.0
  %754 = vmatprep.subr.mxu0 0.0
  %755 = vmatpush1.msra.mxu0 0.0
  %756 = vmatprep.subr.mxu0 0.0
  %757 = vmatpush1.msra.mxu0 0.0
  %758 = vmatprep.subr.mxu0 0.0
  %759 = vmatpush1.msra.mxu0 0.0
  %760 = vmatprep.subr.mxu0 0.0
  %761 = vmatpush1.msra.mxu0 0.0
  %762 = vmatprep.subr.mxu0 0.0
  %763 = vmatpush1.msra.mxu0 0.0
  %764 = vmatprep.subr.mxu0 0.0
  %765 = vmatpush1.msra.mxu0 0.0
  %766 = vmatprep.subr.mxu0 0.0
  %767 = vmatpush1.msra.mxu0 0.0
  %768 = vmatprep.subr.mxu0 0.0
  %769 = vmatpush1.msra.mxu0 0.0
  %770 = vmatprep.subr.mxu0 0.0
  %771 = vmatpush1.msra.mxu0 0.0
  %772 = vmatprep.mubr.f32.mxu0 0.0
  %773 = vmatmul.mubr.f32.gmra.mrb[0].mxu0 %v273
  %v774 = vpop.f32.mrb[0].mxu0
  %v775 = vadd.f32 0.0, %v774
  %v776 = vpop.f32.mrb[0].mxu0
  %v777 = vadd.f32 0.0, %v776
  %778 = vmatprep.mubr.f32.mxu0 0.0
  %779 = vmatmul.mubr.f32.gmra.mrb[0].mxu0 %v274
  %v780 = vpop.f32.mrb[0].mxu0
  %v781 = vadd.f32 0.0, %v780
  %v782 = vpop.f32.mrb[0].mxu0
  %v783 = vadd.f32 0.0, %v782
  %784 = vdwg.mxu0
  %785 = vmatprep.subr.mxu0 %v647
  %786 = vmatpush1.msra.mxu0 %v646
  %787 = vmatprep.subr.mxu0 %v651
  %788 = vmatpush1.msra.mxu0 %v650
  %789 = vmatprep.subr.mxu0 %v655
  %790 = vmatpush1.msra.mxu0 %v654
  %791 = vmatprep.subr.mxu0 %v659
  %792 = vmatpush1.msra.mxu0 %v658
  %793 = vmatprep.subr.mxu0 %v663
  %794 = vmatpush1.msra.mxu0 %v662
  %795 = vmatprep.subr.mxu0 %v667
  %796 = vmatpush1.msra.mxu0 %v666
  %797 = vmatprep.subr.mxu0 %v671
  %798 = vmatpush1.msra.mxu0 %v670
  %799 = vmatprep.subr.mxu0 %v675
  %800 = vmatpush1.msra.mxu0 %v674
  %801 = vmatprep.subr.mxu0 %v679
  %802 = vmatpush1.msra.mxu0 %v678
  %803 = vmatprep.subr.mxu0 %v683
  %804 = vmatpush1.msra.mxu0 %v682
  %805 = vmatprep.subr.mxu0 %v687
  %806 = vmatpush1.msra.mxu0 %v686
  %807 = vmatprep.subr.mxu0 %v691
  %808 = vmatpush1.msra.mxu0 %v690
  %809 = vmatprep.subr.mxu0 %v695
  %810 = vmatpush1.msra.mxu0 %v694
  %811 = vmatprep.subr.mxu0 %v699
  %812 = vmatpush1.msra.mxu0 %v698
  %813 = vmatprep.subr.mxu0 %v703
  %814 = vmatpush1.msra.mxu0 %v702
  %815 = vmatprep.subr.mxu0 %v707
  %816 = vmatpush1.msra.mxu0 %v706
  %817 = vmatprep.subr.mxu0 0.0
  %818 = vmatpush1.msra.mxu0 0.0
  %819 = vmatprep.subr.mxu0 0.0
  %820 = vmatpush1.msra.mxu0 0.0
  %821 = vmatprep.subr.mxu0 0.0
  %822 = vmatpush1.msra.mxu0 0.0
  %823 = vmatprep.subr.mxu0 0.0
  %824 = vmatpush1.msra.mxu0 0.0
  %825 = vmatprep.subr.mxu0 0.0
  %826 = vmatpush1.msra.mxu0 0.0
  %827 = vmatprep.subr.mxu0 0.0
  %828 = vmatpush1.msra.mxu0 0.0
  %829 = vmatprep.subr.mxu0 0.0
  %830 = vmatpush1.msra.mxu0 0.0
  %831 = vmatprep.subr.mxu0 0.0
  %832 = vmatpush1.msra.mxu0 0.0
  %833 = vmatprep.subr.mxu0 0.0
  %834 = vmatpush1.msra.mxu0 0.0
  %835 = vmatprep.subr.mxu0 0.0
  %836 = vmatpush1.msra.mxu0 0.0
  %837 = vmatprep.subr.mxu0 0.0
  %838 = vmatpush1.msra.mxu0 0.0
  %839 = vmatprep.subr.mxu0 0.0
  %840 = vmatpush1.msra.mxu0 0.0
  %841 = vmatprep.subr.mxu0 0.0
  %842 = vmatpush1.msra.mxu0 0.0
  %843 = vmatprep.subr.mxu0 0.0
  %844 = vmatpush1.msra.mxu0 0.0
  %845 = vmatprep.subr.mxu0 0.0
  %846 = vmatpush1.msra.mxu0 0.0
  %847 = vmatprep.subr.mxu0 0.0
  %848 = vmatpush1.msra.mxu0 0.0
  %849 = vmatprep.mubr.f32.mxu0 0.0
  %850 = vmatmul.mubr.f32.gmra.mrb[0].mxu0 %v273
  %v851 = vpop.f32.mrb[0].mxu0
  %v852 = vadd.f32 0.0, %v851
  %v853 = vpop.f32.mrb[0].mxu0
  %v854 = vadd.f32 0.0, %v853
  %855 = vmatprep.mubr.f32.mxu0 0.0
  %856 = vmatmul.mubr.f32.gmra.mrb[0].mxu0 %v274
  %v857 = vpop.f32.mrb[0].mxu0
  %v858 = vadd.f32 0.0, %v857
  %v859 = vpop.f32.mrb[0].mxu0
  %v860 = vadd.f32 0.0, %v859
  %861 = vdwg.mxu0
  %v862 = vld [vmem:[%s7] sm:$0xff]
  %v863 = vld [vmem:[%s7 + $0x8] sm:$0xff]
  %v864 = vld [vmem:[%s8] sm:$0xff]
  %v865 = vld [vmem:[%s8 + $0x8] sm:$0xff]
  %867 = vset.pattern.permute.xlu0 0
  %868 = vperm.xlu0 %867, %v864
  %v869 = vpop.permute.xlu0 %868
  %872 = vset.pattern.permute.xlu0 0
  %873 = vperm.xlu0 %872, %v865
  %v874 = vpop.permute.xlu0 %873
  %v877 = vsel %vm92, %v862, 0
  %v880 = vsel %vm92, %v863, 0
  %882 = vmatprep.subr.mxu0 %v777
  %883 = vmatpush1.msra.mxu0 %v775
  %884 = vmatprep.subr.mxu0 %v783
  %885 = vmatpush1.msra.mxu0 %v781
  %886 = vmatprep.subr.mxu0 0.0
  %887 = vmatpush1.msra.mxu0 0.0
  %888 = vmatprep.subr.mxu0 0.0
  %889 = vmatpush1.msra.mxu0 0.0
  %890 = vmatprep.subr.mxu0 0.0
  %891 = vmatpush1.msra.mxu0 0.0
  %892 = vmatprep.subr.mxu0 0.0
  %893 = vmatpush1.msra.mxu0 0.0
  %894 = vmatprep.subr.mxu0 0.0
  %895 = vmatpush1.msra.mxu0 0.0
  %896 = vmatprep.subr.mxu0 0.0
  %897 = vmatpush1.msra.mxu0 0.0
  %898 = vmatprep.subr.mxu0 0.0
  %899 = vmatpush1.msra.mxu0 0.0
  %900 = vmatprep.subr.mxu0 0.0
  %901 = vmatpush1.msra.mxu0 0.0
  %902 = vmatprep.subr.mxu0 0.0
  %903 = vmatpush1.msra.mxu0 0.0
  %904 = vmatprep.subr.mxu0 0.0
  %905 = vmatpush1.msra.mxu0 0.0
  %906 = vmatprep.subr.mxu0 0.0
  %907 = vmatpush1.msra.mxu0 0.0
  %908 = vmatprep.subr.mxu0 0.0
  %909 = vmatpush1.msra.mxu0 0.0
  %910 = vmatprep.subr.mxu0 0.0
  %911 = vmatpush1.msra.mxu0 0.0
  %912 = vmatprep.subr.mxu0 0.0
  %913 = vmatpush1.msra.mxu0 0.0
  %914 = vmatprep.subr.mxu0 0.0
  %915 = vmatpush1.msra.mxu0 0.0
  %916 = vmatprep.subr.mxu0 0.0
  %917 = vmatpush1.msra.mxu0 0.0
  %918 = vmatprep.subr.mxu0 0.0
  %919 = vmatpush1.msra.mxu0 0.0
  %920 = vmatprep.subr.mxu0 0.0
  %921 = vmatpush1.msra.mxu0 0.0
  %922 = vmatprep.subr.mxu0 0.0
  %923 = vmatpush1.msra.mxu0 0.0
  %924 = vmatprep.subr.mxu0 0.0
  %925 = vmatpush1.msra.mxu0 0.0
  %926 = vmatprep.subr.mxu0 0.0
  %927 = vmatpush1.msra.mxu0 0.0
  %928 = vmatprep.subr.mxu0 0.0
  %929 = vmatpush1.msra.mxu0 0.0
  %930 = vmatprep.subr.mxu0 0.0
  %931 = vmatpush1.msra.mxu0 0.0
  %932 = vmatprep.subr.mxu0 0.0
  %933 = vmatpush1.msra.mxu0 0.0
  %934 = vmatprep.subr.mxu0 0.0
  %935 = vmatpush1.msra.mxu0 0.0
  %936 = vmatprep.subr.mxu0 0.0
  %937 = vmatpush1.msra.mxu0 0.0
  %938 = vmatprep.subr.mxu0 0.0
  %939 = vmatpush1.msra.mxu0 0.0
  %940 = vmatprep.subr.mxu0 0.0
  %941 = vmatpush1.msra.mxu0 0.0
  %942 = vmatprep.subr.mxu0 0.0
  %943 = vmatpush1.msra.mxu0 0.0
  %944 = vmatprep.subr.mxu0 0.0
  %945 = vmatpush1.msra.mxu0 0.0
  %946 = vmatprep.mubr.f32.mxu0 0.0
  %947 = vmatmul.mubr.f32.gmra.mrb[0].mxu0 %v877
  %v948 = vpop.f32.mrb[0].mxu0
  %v949 = vadd.f32 %v869, %v948
  %v950 = vpop.f32.mrb[0].mxu0
  %v951 = vadd.f32 %v869, %v950
  %952 = vmatprep.mubr.f32.mxu0 0.0
  %953 = vmatmul.mubr.f32.gmra.mrb[0].mxu0 %v880
  %v954 = vpop.f32.mrb[0].mxu0
  %v955 = vadd.f32 %v874, %v954
  %v956 = vpop.f32.mrb[0].mxu0
  %v957 = vadd.f32 %v874, %v956
  %958 = vdwg.mxu0
  %959 = vmatprep.subr.mxu0 %v854
  %960 = vmatpush1.msra.mxu0 %v852
  %961 = vmatprep.subr.mxu0 %v860
  %962 = vmatpush1.msra.mxu0 %v858
  %963 = vmatprep.subr.mxu0 0.0
  %964 = vmatpush1.msra.mxu0 0.0
  %965 = vmatprep.subr.mxu0 0.0
  %966 = vmatpush1.msra.mxu0 0.0
  %967 = vmatprep.subr.mxu0 0.0
  %968 = vmatpush1.msra.mxu0 0.0
  %969 = vmatprep.subr.mxu0 0.0
  %970 = vmatpush1.msra.mxu0 0.0
  %971 = vmatprep.subr.mxu0 0.0
  %972 = vmatpush1.msra.mxu0 0.0
  %973 = vmatprep.subr.mxu0 0.0
  %974 = vmatpush1.msra.mxu0 0.0
  %975 = vmatprep.subr.mxu0 0.0
  %976 = vmatpush1.msra.mxu0 0.0
  %977 = vmatprep.subr.mxu0 0.0
  %978 = vmatpush1.msra.mxu0 0.0
  %979 = vmatprep.subr.mxu0 0.0
  %980 = vmatpush1.msra.mxu0 0.0
  %981 = vmatprep.subr.mxu0 0.0
  %982 = vmatpush1.msra.mxu0 0.0
  %983 = vmatprep.subr.mxu0 0.0
  %984 = vmatpush1.msra.mxu0 0.0
  %985 = vmatprep.subr.mxu0 0.0
  %986 = vmatpush1.msra.mxu0 0.0
  %987 = vmatprep.subr.mxu0 0.0
  %988 = vmatpush1.msra.mxu0 0.0
  %989 = vmatprep.subr.mxu0 0.0
  %990 = vmatpush1.msra.mxu0 0.0
  %991 = vmatprep.subr.mxu0 0.0
  %992 = vmatpush1.msra.mxu0 0.0
  %993 = vmatprep.subr.mxu0 0.0
  %994 = vmatpush1.msra.mxu0 0.0
  %995 = vmatprep.subr.mxu0 0.0
  %996 = vmatpush1.msra.mxu0 0.0
  %997 = vmatprep.subr.mxu0 0.0
  %998 = vmatpush1.msra.mxu0 0.0
  %999 = vmatprep.subr.mxu0 0.0
  %1000 = vmatpush1.msra.mxu0 0.0
  %1001 = vmatprep.subr.mxu0 0.0
  %1002 = vmatpush1.msra.mxu0 0.0
  %1003 = vmatprep.subr.mxu0 0.0
  %1004 = vmatpush1.msra.mxu0 0.0
  %1005 = vmatprep.subr.mxu0 0.0
  %1006 = vmatpush1.msra.mxu0 0.0
  %1007 = vmatprep.subr.mxu0 0.0
  %1008 = vmatpush1.msra.mxu0 0.0
  %1009 = vmatprep.subr.mxu0 0.0
  %1010 = vmatpush1.msra.mxu0 0.0
  %1011 = vmatprep.subr.mxu0 0.0
  %1012 = vmatpush1.msra.mxu0 0.0
  %1013 = vmatprep.subr.mxu0 0.0
  %1014 = vmatpush1.msra.mxu0 0.0
  %1015 = vmatprep.subr.mxu0 0.0
  %1016 = vmatpush1.msra.mxu0 0.0
  %1017 = vmatprep.subr.mxu0 0.0
  %1018 = vmatpush1.msra.mxu0 0.0
  %1019 = vmatprep.subr.mxu0 0.0
  %1020 = vmatpush1.msra.mxu0 0.0
  %1021 = vmatprep.subr.mxu0 0.0
  %1022 = vmatpush1.msra.mxu0 0.0
  %1023 = vmatprep.mubr.f32.mxu0 0.0
  %1024 = vmatmul.mubr.f32.gmra.mrb[0].mxu0 %v877
  %v1025 = vpop.f32.mrb[0].mxu0
  %v1026 = vadd.f32 %v869, %v1025
  %v1027 = vpop.f32.mrb[0].mxu0
  %v1028 = vadd.f32 %v869, %v1027
  %1029 = vmatprep.mubr.f32.mxu0 0.0
  %1030 = vmatmul.mubr.f32.gmra.mrb[0].mxu0 %v880
  %v1031 = vpop.f32.mrb[0].mxu0
  %v1032 = vadd.f32 %v874, %v1031
  %v1033 = vpop.f32.mrb[0].mxu0
  %v1034 = vadd.f32 %v874, %v1033
  %1035 = vdwg.mxu0
  %v1036 = vmul.f32 %v949, 0.5
  %v1037 = vmul.f32 %v951, 0.5
  %v1038 = vmul.f32 %v1026, 0.5
  %v1039 = vmul.f32 %v1028, 0.5
  %v1040 = vmul.f32 %v955, 0.5
  %v1041 = vmul.f32 %v957, 0.5
  %v1042 = vmul.f32 %v1032, 0.5
  %v1043 = vmul.f32 %v1034, 0.5
  %v1044 = vmul.f32 %v949, 0.70710677
  %v1045 = vmul.f32 %v951, 0.70710677
  %v1046 = vmul.f32 %v1026, 0.70710677
  %v1047 = vmul.f32 %v1028, 0.70710677
  %v1048 = vmul.f32 %v955, 0.70710677
  %v1049 = vmul.f32 %v957, 0.70710677
  %v1050 = vmul.f32 %v1032, 0.70710677
  %v1051 = vmul.f32 %v1034, 0.70710677
  %vm1052 = vcmp.ge.f32.partialorder %v1044, 0.0
  %vm1053 = vcmp.ge.f32.partialorder %v1045, 0.0
  %vm1054 = vcmp.ge.f32.partialorder %v1046, 0.0
  %vm1055 = vcmp.ge.f32.partialorder %v1047, 0.0
  %vm1056 = vcmp.ge.f32.partialorder %v1048, 0.0
  %vm1057 = vcmp.ge.f32.partialorder %v1049, 0.0
  %vm1058 = vcmp.ge.f32.partialorder %v1050, 0.0
  %vm1059 = vcmp.ge.f32.partialorder %v1051, 0.0
  %v1060 = vsel %vm1052, 1.0, -1.0
  %v1061 = vsel %vm1053, 1.0, -1.0
  %v1062 = vsel %vm1054, 1.0, -1.0
  %v1063 = vsel %vm1055, 1.0, -1.0
  %v1064 = vsel %vm1056, 1.0, -1.0
  %v1065 = vsel %vm1057, 1.0, -1.0
  %v1066 = vsel %vm1058, 1.0, -1.0
  %v1067 = vsel %vm1059, 1.0, -1.0
  %v1068 = vand.u32 2147483647, %v1044
  %v1069 = vand.u32 2147483647, %v1045
  %v1070 = vand.u32 2147483647, %v1046
  %v1071 = vand.u32 2147483647, %v1047
  %v1072 = vand.u32 2147483647, %v1048
  %v1073 = vand.u32 2147483647, %v1049
  %v1074 = vand.u32 2147483647, %v1050
  %v1075 = vand.u32 2147483647, %v1051
  %v1076 = vmul.f32 %v1068, 0.3275911
  %v1077 = vmul.f32 %v1069, 0.3275911
  %v1078 = vmul.f32 %v1070, 0.3275911
  %v1079 = vmul.f32 %v1071, 0.3275911
  %v1080 = vmul.f32 %v1072, 0.3275911
  %v1081 = vmul.f32 %v1073, 0.3275911
  %v1082 = vmul.f32 %v1074, 0.3275911
  %v1083 = vmul.f32 %v1075, 0.3275911
  %v1084 = vadd.f32 %v1076, 1.0
  %v1085 = vadd.f32 %v1077, 1.0
  %v1086 = vadd.f32 %v1078, 1.0
  %v1087 = vadd.f32 %v1079, 1.0
  %v1088 = vadd.f32 %v1080, 1.0
  %v1089 = vadd.f32 %v1081, 1.0
  %v1090 = vadd.f32 %v1082, 1.0
  %v1091 = vadd.f32 %v1083, 1.0
  %v1092 = vrcp.pop %v1084
  %v1093 = vmul.f32 1.0, %v1092
  %v1094 = vrcp.pop %v1085
  %v1095 = vmul.f32 1.0, %v1094
  %v1096 = vrcp.pop %v1086
  %v1097 = vmul.f32 1.0, %v1096
  %v1098 = vrcp.pop %v1087
  %v1099 = vmul.f32 1.0, %v1098
  %v1100 = vrcp.pop %v1088
  %v1101 = vmul.f32 1.0, %v1100
  %v1102 = vrcp.pop %v1089
  %v1103 = vmul.f32 1.0, %v1102
  %v1104 = vrcp.pop %v1090
  %v1105 = vmul.f32 1.0, %v1104
  %v1106 = vrcp.pop %v1091
  %v1107 = vmul.f32 1.0, %v1106
  %v1108 = vmul.f32 %v1093, 1.0614054
  %v1109 = vmul.f32 %v1095, 1.0614054
  %v1110 = vmul.f32 %v1097, 1.0614054
  %v1111 = vmul.f32 %v1099, 1.0614054
  %v1112 = vmul.f32 %v1101, 1.0614054
  %v1113 = vmul.f32 %v1103, 1.0614054
  %v1114 = vmul.f32 %v1105, 1.0614054
  %v1115 = vmul.f32 %v1107, 1.0614054
  %v1116 = vadd.f32 %v1108, -1.4531521
  %v1117 = vadd.f32 %v1109, -1.4531521
  %v1118 = vadd.f32 %v1110, -1.4531521
  %v1119 = vadd.f32 %v1111, -1.4531521
  %v1120 = vadd.f32 %v1112, -1.4531521
  %v1121 = vadd.f32 %v1113, -1.4531521
  %v1122 = vadd.f32 %v1114, -1.4531521
  %v1123 = vadd.f32 %v1115, -1.4531521
  %v1124 = vmul.f32 %v1116, %v1093
  %v1125 = vmul.f32 %v1117, %v1095
  %v1126 = vmul.f32 %v1118, %v1097
  %v1127 = vmul.f32 %v1119, %v1099
  %v1128 = vmul.f32 %v1120, %v1101
  %v1129 = vmul.f32 %v1121, %v1103
  %v1130 = vmul.f32 %v1122, %v1105
  %v1131 = vmul.f32 %v1123, %v1107
  %v1132 = vadd.f32 %v1124, 1.4214138
  %v1133 = vadd.f32 %v1125, 1.4214138
  %v1134 = vadd.f32 %v1126, 1.4214138
  %v1135 = vadd.f32 %v1127, 1.4214138
  %v1136 = vadd.f32 %v1128, 1.4214138
  %v1137 = vadd.f32 %v1129, 1.4214138
  %v1138 = vadd.f32 %v1130, 1.4214138
  %v1139 = vadd.f32 %v1131, 1.4214138
  %v1140 = vmul.f32 %v1132, %v1093
  %v1141 = vmul.f32 %v1133, %v1095
  %v1142 = vmul.f32 %v1134, %v1097
  %v1143 = vmul.f32 %v1135, %v1099
  %v1144 = vmul.f32 %v1136, %v1101
  %v1145 = vmul.f32 %v1137, %v1103
  %v1146 = vmul.f32 %v1138, %v1105
  %v1147 = vmul.f32 %v1139, %v1107
  %v1148 = vadd.f32 %v1140, -0.28449672
  %v1149 = vadd.f32 %v1141, -0.28449672
  %v1150 = vadd.f32 %v1142, -0.28449672
  %v1151 = vadd.f32 %v1143, -0.28449672
  %v1152 = vadd.f32 %v1144, -0.28449672
  %v1153 = vadd.f32 %v1145, -0.28449672
  %v1154 = vadd.f32 %v1146, -0.28449672
  %v1155 = vadd.f32 %v1147, -0.28449672
  %v1156 = vmul.f32 %v1148, %v1093
  %v1157 = vmul.f32 %v1149, %v1095
  %v1158 = vmul.f32 %v1150, %v1097
  %v1159 = vmul.f32 %v1151, %v1099
  %v1160 = vmul.f32 %v1152, %v1101
  %v1161 = vmul.f32 %v1153, %v1103
  %v1162 = vmul.f32 %v1154, %v1105
  %v1163 = vmul.f32 %v1155, %v1107
  %v1164 = vadd.f32 %v1156, 0.2548296
  %v1165 = vadd.f32 %v1157, 0.2548296
  %v1166 = vadd.f32 %v1158, 0.2548296
  %v1167 = vadd.f32 %v1159, 0.2548296
  %v1168 = vadd.f32 %v1160, 0.2548296
  %v1169 = vadd.f32 %v1161, 0.2548296
  %v1170 = vadd.f32 %v1162, 0.2548296
  %v1171 = vadd.f32 %v1163, 0.2548296
  %v1172 = vmul.f32 %v1164, %v1093
  %v1173 = vmul.f32 %v1165, %v1095
  %v1174 = vmul.f32 %v1166, %v1097
  %v1175 = vmul.f32 %v1167, %v1099
  %v1176 = vmul.f32 %v1168, %v1101
  %v1177 = vmul.f32 %v1169, %v1103
  %v1178 = vmul.f32 %v1170, %v1105
  %v1179 = vmul.f32 %v1171, %v1107
  %v1180 = vsub.f32 0.0, %v1068
  %v1181 = vsub.f32 0.0, %v1069
  %v1182 = vsub.f32 0.0, %v1070
  %v1183 = vsub.f32 0.0, %v1071
  %v1184 = vsub.f32 0.0, %v1072
  %v1185 = vsub.f32 0.0, %v1073
  %v1186 = vsub.f32 0.0, %v1074
  %v1187 = vsub.f32 0.0, %v1075
  %v1188 = vmul.f32 %v1180, %v1068
  %v1189 = vmul.f32 %v1181, %v1069
  %v1190 = vmul.f32 %v1182, %v1070
  %v1191 = vmul.f32 %v1183, %v1071
  %v1192 = vmul.f32 %v1184, %v1072
  %v1193 = vmul.f32 %v1185, %v1073
  %v1194 = vmul.f32 %v1186, %v1074
  %v1195 = vmul.f32 %v1187, %v1075
  %v1196 = vmul.f32 %v1188, 1.442695
  %v1197 = vpow.pop %v1196
  %v1198 = vmul.f32 %v1189, 1.442695
  %v1199 = vpow.pop %v1198
  %v1200 = vmul.f32 %v1190, 1.442695
  %v1201 = vpow.pop %v1200
  %v1202 = vmul.f32 %v1191, 1.442695
  %v1203 = vpow.pop %v1202
  %v1204 = vmul.f32 %v1192, 1.442695
  %v1205 = vpow.pop %v1204
  %v1206 = vmul.f32 %v1193, 1.442695
  %v1207 = vpow.pop %v1206
  %v1208 = vmul.f32 %v1194, 1.442695
  %v1209 = vpow.pop %v1208
  %v1210 = vmul.f32 %v1195, 1.442695
  %v1211 = vpow.pop %v1210
  %v1212 = vmul.f32 %v1172, %v1197
  %v1213 = vmul.f32 %v1173, %v1199
  %v1214 = vmul.f32 %v1174, %v1201
  %v1215 = vmul.f32 %v1175, %v1203
  %v1216 = vmul.f32 %v1176, %v1205
  %v1217 = vmul.f32 %v1177, %v1207
  %v1218 = vmul.f32 %v1178, %v1209
  %v1219 = vmul.f32 %v1179, %v1211
  %v1220 = vsub.f32 1.0, %v1212
  %v1221 = vsub.f32 1.0, %v1213
  %v1222 = vsub.f32 1.0, %v1214
  %v1223 = vsub.f32 1.0, %v1215
  %v1224 = vsub.f32 1.0, %v1216
  %v1225 = vsub.f32 1.0, %v1217
  %v1226 = vsub.f32 1.0, %v1218
  %v1227 = vsub.f32 1.0, %v1219
  %v1228 = vmul.f32 %v1060, %v1220
  %v1229 = vmul.f32 %v1061, %v1221
  %v1230 = vmul.f32 %v1062, %v1222
  %v1231 = vmul.f32 %v1063, %v1223
  %v1232 = vmul.f32 %v1064, %v1224
  %v1233 = vmul.f32 %v1065, %v1225
  %v1234 = vmul.f32 %v1066, %v1226
  %v1235 = vmul.f32 %v1067, %v1227
  %v1236 = vadd.f32 %v1228, 1.0
  %v1237 = vadd.f32 %v1229, 1.0
  %v1238 = vadd.f32 %v1230, 1.0
  %v1239 = vadd.f32 %v1231, 1.0
  %v1240 = vadd.f32 %v1232, 1.0
  %v1241 = vadd.f32 %v1233, 1.0
  %v1242 = vadd.f32 %v1234, 1.0
  %v1243 = vadd.f32 %v1235, 1.0
  %v1244 = vmul.f32 %v1036, %v1236
  %v1245 = vmul.f32 %v1037, %v1237
  %v1246 = vmul.f32 %v1038, %v1238
  %v1247 = vmul.f32 %v1039, %v1239
  %v1248 = vmul.f32 %v1040, %v1240
  %v1249 = vmul.f32 %v1041, %v1241
  %v1250 = vmul.f32 %v1042, %v1242
  %v1251 = vmul.f32 %v1043, %v1243
  %v1252 = vld [vmem:[%s9] sm:$0xff]
  %v1253 = vld [vmem:[%s9 + $0x8] sm:$0xff]
  %v1254 = vld [vmem:[%s10] sm:$0xff]
  %v1255 = vld [vmem:[%s10 + $0x8] sm:$0xff]
  %1257 = vset.pattern.permute.xlu0 0
  %1258 = vperm.xlu0 %1257, %v1254
  %v1259 = vpop.permute.xlu0 %1258
  %1262 = vset.pattern.permute.xlu0 0
  %1263 = vperm.xlu0 %1262, %v1255
  %v1264 = vpop.permute.xlu0 %1263
  %v1267 = vsel %vm92, %v1252, 0
  %v1270 = vsel %vm92, %v1253, 0
  %1272 = vmatprep.subr.mxu0 %v1245
  %1273 = vmatpush1.msra.mxu0 %v1244
  %1274 = vmatprep.subr.mxu0 %v1249
  %1275 = vmatpush1.msra.mxu0 %v1248
  %1276 = vmatprep.subr.mxu0 0.0
  %1277 = vmatpush1.msra.mxu0 0.0
  %1278 = vmatprep.subr.mxu0 0.0
  %1279 = vmatpush1.msra.mxu0 0.0
  %1280 = vmatprep.subr.mxu0 0.0
  %1281 = vmatpush1.msra.mxu0 0.0
  %1282 = vmatprep.subr.mxu0 0.0
  %1283 = vmatpush1.msra.mxu0 0.0
  %1284 = vmatprep.subr.mxu0 0.0
  %1285 = vmatpush1.msra.mxu0 0.0
  %1286 = vmatprep.subr.mxu0 0.0
  %1287 = vmatpush1.msra.mxu0 0.0
  %1288 = vmatprep.subr.mxu0 0.0
  %1289 = vmatpush1.msra.mxu0 0.0
  %1290 = vmatprep.subr.mxu0 0.0
  %1291 = vmatpush1.msra.mxu0 0.0
  %1292 = vmatprep.subr.mxu0 0.0
  %1293 = vmatpush1.msra.mxu0 0.0
  %1294 = vmatprep.subr.mxu0 0.0
  %1295 = vmatpush1.msra.mxu0 0.0
  %1296 = vmatprep.subr.mxu0 0.0
  %1297 = vmatpush1.msra.mxu0 0.0
  %1298 = vmatprep.subr.mxu0 0.0
  %1299 = vmatpush1.msra.mxu0 0.0
  %1300 = vmatprep.subr.mxu0 0.0
  %1301 = vmatpush1.msra.mxu0 0.0
  %1302 = vmatprep.subr.mxu0 0.0
  %1303 = vmatpush1.msra.mxu0 0.0
  %1304 = vmatprep.subr.mxu0 0.0
  %1305 = vmatpush1.msra.mxu0 0.0
  %1306 = vmatprep.subr.mxu0 0.0
  %1307 = vmatpush1.msra.mxu0 0.0
  %1308 = vmatprep.subr.mxu0 0.0
  %1309 = vmatpush1.msra.mxu0 0.0
  %1310 = vmatprep.subr.mxu0 0.0
  %1311 = vmatpush1.msra.mxu0 0.0
  %1312 = vmatprep.subr.mxu0 0.0
  %1313 = vmatpush1.msra.mxu0 0.0
  %1314 = vmatprep.subr.mxu0 0.0
  %1315 = vmatpush1.msra.mxu0 0.0
  %1316 = vmatprep.subr.mxu0 0.0
  %1317 = vmatpush1.msra.mxu0 0.0
  %1318 = vmatprep.subr.mxu0 0.0
  %1319 = vmatpush1.msra.mxu0 0.0
  %1320 = vmatprep.subr.mxu0 0.0
  %1321 = vmatpush1.msra.mxu0 0.0
  %1322 = vmatprep.subr.mxu0 0.0
  %1323 = vmatpush1.msra.mxu0 0.0
  %1324 = vmatprep.subr.mxu0 0.0
  %1325 = vmatpush1.msra.mxu0 0.0
  %1326 = vmatprep.subr.mxu0 0.0
  %1327 = vmatpush1.msra.mxu0 0.0
  %1328 = vmatprep.subr.mxu0 0.0
  %1329 = vmatpush1.msra.mxu0 0.0
  %1330 = vmatprep.subr.mxu0 0.0
  %1331 = vmatpush1.msra.mxu0 0.0
  %1332 = vmatprep.subr.mxu0 0.0
  %1333 = vmatpush1.msra.mxu0 0.0
  %1334 = vmatprep.subr.mxu0 0.0
  %1335 = vmatpush1.msra.mxu0 0.0
  %1336 = vmatprep.mubr.f32.mxu0 0.0
  %1337 = vmatmul.mubr.f32.gmra.mrb[0].mxu0 %v1267
  %v1338 = vpop.f32.mrb[0].mxu0
  %v1339 = vadd.f32 %v1259, %v1338
  %v1340 = vpop.f32.mrb[0].mxu0
  %v1341 = vadd.f32 %v1259, %v1340
  %1342 = vmatprep.mubr.f32.mxu0 0.0
  %1343 = vmatmul.mubr.f32.gmra.mrb[0].mxu0 %v1270
  %v1344 = vpop.f32.mrb[0].mxu0
  %v1345 = vadd.f32 %v1264, %v1344
  %v1346 = vpop.f32.mrb[0].mxu0
  %v1347 = vadd.f32 %v1264, %v1346
  %1348 = vdwg.mxu0
  %1349 = vmatprep.subr.mxu0 %v1247
  %1350 = vmatpush1.msra.mxu0 %v1246
  %1351 = vmatprep.subr.mxu0 %v1251
  %1352 = vmatpush1.msra.mxu0 %v1250
  %1353 = vmatprep.subr.mxu0 0.0
  %1354 = vmatpush1.msra.mxu0 0.0
  %1355 = vmatprep.subr.mxu0 0.0
  %1356 = vmatpush1.msra.mxu0 0.0
  %1357 = vmatprep.subr.mxu0 0.0
  %1358 = vmatpush1.msra.mxu0 0.0
  %1359 = vmatprep.subr.mxu0 0.0
  %1360 = vmatpush1.msra.mxu0 0.0
  %1361 = vmatprep.subr.mxu0 0.0
  %1362 = vmatpush1.msra.mxu0 0.0
  %1363 = vmatprep.subr.mxu0 0.0
  %1364 = vmatpush1.msra.mxu0 0.0
  %1365 = vmatprep.subr.mxu0 0.0
  %1366 = vmatpush1.msra.mxu0 0.0
  %1367 = vmatprep.subr.mxu0 0.0
  %1368 = vmatpush1.msra.mxu0 0.0
  %1369 = vmatprep.subr.mxu0 0.0
  %1370 = vmatpush1.msra.mxu0 0.0
  %1371 = vmatprep.subr.mxu0 0.0
  %1372 = vmatpush1.msra.mxu0 0.0
  %1373 = vmatprep.subr.mxu0 0.0
  %1374 = vmatpush1.msra.mxu0 0.0
  %1375 = vmatprep.subr.mxu0 0.0
  %1376 = vmatpush1.msra.mxu0 0.0
  %1377 = vmatprep.subr.mxu0 0.0
  %1378 = vmatpush1.msra.mxu0 0.0
  %1379 = vmatprep.subr.mxu0 0.0
  %1380 = vmatpush1.msra.mxu0 0.0
  %1381 = vmatprep.subr.mxu0 0.0
  %1382 = vmatpush1.msra.mxu0 0.0
  %1383 = vmatprep.subr.mxu0 0.0
  %1384 = vmatpush1.msra.mxu0 0.0
  %1385 = vmatprep.subr.mxu0 0.0
  %1386 = vmatpush1.msra.mxu0 0.0
  %1387 = vmatprep.subr.mxu0 0.0
  %1388 = vmatpush1.msra.mxu0 0.0
  %1389 = vmatprep.subr.mxu0 0.0
  %1390 = vmatpush1.msra.mxu0 0.0
  %1391 = vmatprep.subr.mxu0 0.0
  %1392 = vmatpush1.msra.mxu0 0.0
  %1393 = vmatprep.subr.mxu0 0.0
  %1394 = vmatpush1.msra.mxu0 0.0
  %1395 = vmatprep.subr.mxu0 0.0
  %1396 = vmatpush1.msra.mxu0 0.0
  %1397 = vmatprep.subr.mxu0 0.0
  %1398 = vmatpush1.msra.mxu0 0.0
  %1399 = vmatprep.subr.mxu0 0.0
  %1400 = vmatpush1.msra.mxu0 0.0
  %1401 = vmatprep.subr.mxu0 0.0
  %1402 = vmatpush1.msra.mxu0 0.0
  %1403 = vmatprep.subr.mxu0 0.0
  %1404 = vmatpush1.msra.mxu0 0.0
  %1405 = vmatprep.subr.mxu0 0.0
  %1406 = vmatpush1.msra.mxu0 0.0
  %1407 = vmatprep.subr.mxu0 0.0
  %1408 = vmatpush1.msra.mxu0 0.0
  %1409 = vmatprep.subr.mxu0 0.0
  %1410 = vmatpush1.msra.mxu0 0.0
  %1411 = vmatprep.subr.mxu0 0.0
  %1412 = vmatpush1.msra.mxu0 0.0
  %1413 = vmatprep.mubr.f32.mxu0 0.0
  %1414 = vmatmul.mubr.f32.gmra.mrb[0].mxu0 %v1267
  %v1415 = vpop.f32.mrb[0].mxu0
  %v1416 = vadd.f32 %v1259, %v1415
  %v1417 = vpop.f32.mrb[0].mxu0
  %v1418 = vadd.f32 %v1259, %v1417
  %1419 = vmatprep.mubr.f32.mxu0 0.0
  %1420 = vmatmul.mubr.f32.gmra.mrb[0].mxu0 %v1270
  %v1421 = vpop.f32.mrb[0].mxu0
  %v1422 = vadd.f32 %v1264, %v1421
  %v1423 = vpop.f32.mrb[0].mxu0
  %v1424 = vadd.f32 %v1264, %v1423
  %1425 = vdwg.mxu0
  %v1426 = vmul.f32 %v1339, 0.5
  %v1427 = vmul.f32 %v1341, 0.5
  %v1428 = vmul.f32 %v1416, 0.5
  %v1429 = vmul.f32 %v1418, 0.5
  %v1430 = vmul.f32 %v1345, 0.5
  %v1431 = vmul.f32 %v1347, 0.5
  %v1432 = vmul.f32 %v1422, 0.5
  %v1433 = vmul.f32 %v1424, 0.5
  %v1434 = vmul.f32 %v1339, 0.70710677
  %v1435 = vmul.f32 %v1341, 0.70710677
  %v1436 = vmul.f32 %v1416, 0.70710677
  %v1437 = vmul.f32 %v1418, 0.70710677
  %v1438 = vmul.f32 %v1345, 0.70710677
  %v1439 = vmul.f32 %v1347, 0.70710677
  %v1440 = vmul.f32 %v1422, 0.70710677
  %v1441 = vmul.f32 %v1424, 0.70710677
  %vm1442 = vcmp.ge.f32.partialorder %v1434, 0.0
  %vm1443 = vcmp.ge.f32.partialorder %v1435, 0.0
  %vm1444 = vcmp.ge.f32.partialorder %v1436, 0.0
  %vm1445 = vcmp.ge.f32.partialorder %v1437, 0.0
  %vm1446 = vcmp.ge.f32.partialorder %v1438, 0.0
  %vm1447 = vcmp.ge.f32.partialorder %v1439, 0.0
  %vm1448 = vcmp.ge.f32.partialorder %v1440, 0.0
  %vm1449 = vcmp.ge.f32.partialorder %v1441, 0.0
  %v1450 = vsel %vm1442, 1.0, -1.0
  %v1451 = vsel %vm1443, 1.0, -1.0
  %v1452 = vsel %vm1444, 1.0, -1.0
  %v1453 = vsel %vm1445, 1.0, -1.0
  %v1454 = vsel %vm1446, 1.0, -1.0
  %v1455 = vsel %vm1447, 1.0, -1.0
  %v1456 = vsel %vm1448, 1.0, -1.0
  %v1457 = vsel %vm1449, 1.0, -1.0
  %v1458 = vand.u32 2147483647, %v1434
  %v1459 = vand.u32 2147483647, %v1435
  %v1460 = vand.u32 2147483647, %v1436
  %v1461 = vand.u32 2147483647, %v1437
  %v1462 = vand.u32 2147483647, %v1438
  %v1463 = vand.u32 2147483647, %v1439
  %v1464 = vand.u32 2147483647, %v1440
  %v1465 = vand.u32 2147483647, %v1441
  %v1466 = vmul.f32 %v1458, 0.3275911
  %v1467 = vmul.f32 %v1459, 0.3275911
  %v1468 = vmul.f32 %v1460, 0.3275911
  %v1469 = vmul.f32 %v1461, 0.3275911
  %v1470 = vmul.f32 %v1462, 0.3275911
  %v1471 = vmul.f32 %v1463, 0.3275911
  %v1472 = vmul.f32 %v1464, 0.3275911
  %v1473 = vmul.f32 %v1465, 0.3275911
  %v1474 = vadd.f32 %v1466, 1.0
  %v1475 = vadd.f32 %v1467, 1.0
  %v1476 = vadd.f32 %v1468, 1.0
  %v1477 = vadd.f32 %v1469, 1.0
  %v1478 = vadd.f32 %v1470, 1.0
  %v1479 = vadd.f32 %v1471, 1.0
  %v1480 = vadd.f32 %v1472, 1.0
  %v1481 = vadd.f32 %v1473, 1.0
  %v1482 = vrcp.pop %v1474
  %v1483 = vmul.f32 1.0, %v1482
  %v1484 = vrcp.pop %v1475
  %v1485 = vmul.f32 1.0, %v1484
  %v1486 = vrcp.pop %v1476
  %v1487 = vmul.f32 1.0, %v1486
  %v1488 = vrcp.pop %v1477
  %v1489 = vmul.f32 1.0, %v1488
  %v1490 = vrcp.pop %v1478
  %v1491 = vmul.f32 1.0, %v1490
  %v1492 = vrcp.pop %v1479
  %v1493 = vmul.f32 1.0, %v1492
  %v1494 = vrcp.pop %v1480
  %v1495 = vmul.f32 1.0, %v1494
  %v1496 = vrcp.pop %v1481
  %v1497 = vmul.f32 1.0, %v1496
  %v1498 = vmul.f32 %v1483, 1.0614054
  %v1499 = vmul.f32 %v1485, 1.0614054
  %v1500 = vmul.f32 %v1487, 1.0614054
  %v1501 = vmul.f32 %v1489, 1.0614054
  %v1502 = vmul.f32 %v1491, 1.0614054
  %v1503 = vmul.f32 %v1493, 1.0614054
  %v1504 = vmul.f32 %v1495, 1.0614054
  %v1505 = vmul.f32 %v1497, 1.0614054
  %v1506 = vadd.f32 %v1498, -1.4531521
  %v1507 = vadd.f32 %v1499, -1.4531521
  %v1508 = vadd.f32 %v1500, -1.4531521
  %v1509 = vadd.f32 %v1501, -1.4531521
  %v1510 = vadd.f32 %v1502, -1.4531521
  %v1511 = vadd.f32 %v1503, -1.4531521
  %v1512 = vadd.f32 %v1504, -1.4531521
  %v1513 = vadd.f32 %v1505, -1.4531521
  %v1514 = vmul.f32 %v1506, %v1483
  %v1515 = vmul.f32 %v1507, %v1485
  %v1516 = vmul.f32 %v1508, %v1487
  %v1517 = vmul.f32 %v1509, %v1489
  %v1518 = vmul.f32 %v1510, %v1491
  %v1519 = vmul.f32 %v1511, %v1493
  %v1520 = vmul.f32 %v1512, %v1495
  %v1521 = vmul.f32 %v1513, %v1497
  %v1522 = vadd.f32 %v1514, 1.4214138
  %v1523 = vadd.f32 %v1515, 1.4214138
  %v1524 = vadd.f32 %v1516, 1.4214138
  %v1525 = vadd.f32 %v1517, 1.4214138
  %v1526 = vadd.f32 %v1518, 1.4214138
  %v1527 = vadd.f32 %v1519, 1.4214138
  %v1528 = vadd.f32 %v1520, 1.4214138
  %v1529 = vadd.f32 %v1521, 1.4214138
  %v1530 = vmul.f32 %v1522, %v1483
  %v1531 = vmul.f32 %v1523, %v1485
  %v1532 = vmul.f32 %v1524, %v1487
  %v1533 = vmul.f32 %v1525, %v1489
  %v1534 = vmul.f32 %v1526, %v1491
  %v1535 = vmul.f32 %v1527, %v1493
  %v1536 = vmul.f32 %v1528, %v1495
  %v1537 = vmul.f32 %v1529, %v1497
  %v1538 = vadd.f32 %v1530, -0.28449672
  %v1539 = vadd.f32 %v1531, -0.28449672
  %v1540 = vadd.f32 %v1532, -0.28449672
  %v1541 = vadd.f32 %v1533, -0.28449672
  %v1542 = vadd.f32 %v1534, -0.28449672
  %v1543 = vadd.f32 %v1535, -0.28449672
  %v1544 = vadd.f32 %v1536, -0.28449672
  %v1545 = vadd.f32 %v1537, -0.28449672
  %v1546 = vmul.f32 %v1538, %v1483
  %v1547 = vmul.f32 %v1539, %v1485
  %v1548 = vmul.f32 %v1540, %v1487
  %v1549 = vmul.f32 %v1541, %v1489
  %v1550 = vmul.f32 %v1542, %v1491
  %v1551 = vmul.f32 %v1543, %v1493
  %v1552 = vmul.f32 %v1544, %v1495
  %v1553 = vmul.f32 %v1545, %v1497
  %v1554 = vadd.f32 %v1546, 0.2548296
  %v1555 = vadd.f32 %v1547, 0.2548296
  %v1556 = vadd.f32 %v1548, 0.2548296
  %v1557 = vadd.f32 %v1549, 0.2548296
  %v1558 = vadd.f32 %v1550, 0.2548296
  %v1559 = vadd.f32 %v1551, 0.2548296
  %v1560 = vadd.f32 %v1552, 0.2548296
  %v1561 = vadd.f32 %v1553, 0.2548296
  %v1562 = vmul.f32 %v1554, %v1483
  %v1563 = vmul.f32 %v1555, %v1485
  %v1564 = vmul.f32 %v1556, %v1487
  %v1565 = vmul.f32 %v1557, %v1489
  %v1566 = vmul.f32 %v1558, %v1491
  %v1567 = vmul.f32 %v1559, %v1493
  %v1568 = vmul.f32 %v1560, %v1495
  %v1569 = vmul.f32 %v1561, %v1497
  %v1570 = vsub.f32 0.0, %v1458
  %v1571 = vsub.f32 0.0, %v1459
  %v1572 = vsub.f32 0.0, %v1460
  %v1573 = vsub.f32 0.0, %v1461
  %v1574 = vsub.f32 0.0, %v1462
  %v1575 = vsub.f32 0.0, %v1463
  %v1576 = vsub.f32 0.0, %v1464
  %v1577 = vsub.f32 0.0, %v1465
  %v1578 = vmul.f32 %v1570, %v1458
  %v1579 = vmul.f32 %v1571, %v1459
  %v1580 = vmul.f32 %v1572, %v1460
  %v1581 = vmul.f32 %v1573, %v1461
  %v1582 = vmul.f32 %v1574, %v1462
  %v1583 = vmul.f32 %v1575, %v1463
  %v1584 = vmul.f32 %v1576, %v1464
  %v1585 = vmul.f32 %v1577, %v1465
  %v1586 = vmul.f32 %v1578, 1.442695
  %v1587 = vpow.pop %v1586
  %v1588 = vmul.f32 %v1579, 1.442695
  %v1589 = vpow.pop %v1588
  %v1590 = vmul.f32 %v1580, 1.442695
  %v1591 = vpow.pop %v1590
  %v1592 = vmul.f32 %v1581, 1.442695
  %v1593 = vpow.pop %v1592
  %v1594 = vmul.f32 %v1582, 1.442695
  %v1595 = vpow.pop %v1594
  %v1596 = vmul.f32 %v1583, 1.442695
  %v1597 = vpow.pop %v1596
  %v1598 = vmul.f32 %v1584, 1.442695
  %v1599 = vpow.pop %v1598
  %v1600 = vmul.f32 %v1585, 1.442695
  %v1601 = vpow.pop %v1600
  %v1602 = vmul.f32 %v1562, %v1587
  %v1603 = vmul.f32 %v1563, %v1589
  %v1604 = vmul.f32 %v1564, %v1591
  %v1605 = vmul.f32 %v1565, %v1593
  %v1606 = vmul.f32 %v1566, %v1595
  %v1607 = vmul.f32 %v1567, %v1597
  %v1608 = vmul.f32 %v1568, %v1599
  %v1609 = vmul.f32 %v1569, %v1601
  %v1610 = vsub.f32 1.0, %v1602
  %v1611 = vsub.f32 1.0, %v1603
  %v1612 = vsub.f32 1.0, %v1604
  %v1613 = vsub.f32 1.0, %v1605
  %v1614 = vsub.f32 1.0, %v1606
  %v1615 = vsub.f32 1.0, %v1607
  %v1616 = vsub.f32 1.0, %v1608
  %v1617 = vsub.f32 1.0, %v1609
  %v1618 = vmul.f32 %v1450, %v1610
  %v1619 = vmul.f32 %v1451, %v1611
  %v1620 = vmul.f32 %v1452, %v1612
  %v1621 = vmul.f32 %v1453, %v1613
  %v1622 = vmul.f32 %v1454, %v1614
  %v1623 = vmul.f32 %v1455, %v1615
  %v1624 = vmul.f32 %v1456, %v1616
  %v1625 = vmul.f32 %v1457, %v1617
  %v1626 = vadd.f32 %v1618, 1.0
  %v1627 = vadd.f32 %v1619, 1.0
  %v1628 = vadd.f32 %v1620, 1.0
  %v1629 = vadd.f32 %v1621, 1.0
  %v1630 = vadd.f32 %v1622, 1.0
  %v1631 = vadd.f32 %v1623, 1.0
  %v1632 = vadd.f32 %v1624, 1.0
  %v1633 = vadd.f32 %v1625, 1.0
  %v1634 = vmul.f32 %v1426, %v1626
  %v1635 = vmul.f32 %v1427, %v1627
  %v1636 = vmul.f32 %v1428, %v1628
  %v1637 = vmul.f32 %v1429, %v1629
  %v1638 = vmul.f32 %v1430, %v1630
  %v1639 = vmul.f32 %v1431, %v1631
  %v1640 = vmul.f32 %v1432, %v1632
  %v1641 = vmul.f32 %v1433, %v1633
  %v1642 = vld [vmem:[%s11] sm:$0xff]
  %v1643 = vld [vmem:[%s11 + $0x8] sm:$0xff]
  %v1644 = vld [vmem:[%s11 + $0x10] sm:$0xff]
  %v1645 = vld [vmem:[%s11 + $0x18] sm:$0xff]
  %v1646 = vld [vmem:[%s11 + $0x20] sm:$0xff]
  %v1647 = vld [vmem:[%s11 + $0x28] sm:$0xff]
  %v1648 = vld [vmem:[%s11 + $0x30] sm:$0xff]
  %v1649 = vld [vmem:[%s11 + $0x38] sm:$0xff]
  %v1650 = vld [vmem:[%s11 + $0x40] sm:$0xff]
  %v1651 = vld [vmem:[%s11 + $0x48] sm:$0xff]
  %v1652 = vld [vmem:[%s11 + $0x50] sm:$0xff]
  %v1653 = vld [vmem:[%s11 + $0x58] sm:$0xff]
  %v1654 = vld [vmem:[%s11 + $0x60] sm:$0xff]
  %v1655 = vld [vmem:[%s11 + $0x68] sm:$0xff]
  %v1656 = vld [vmem:[%s11 + $0x70] sm:$0xff]
  %v1657 = vld [vmem:[%s11 + $0x78] sm:$0xff]
  %v1658 = vld [vmem:[%s11 + $0x80] sm:$0xff]
  %v1659 = vld [vmem:[%s11 + $0x88] sm:$0xff]
  %v1660 = vld [vmem:[%s11 + $0x90] sm:$0xff]
  %v1661 = vld [vmem:[%s11 + $0x98] sm:$0xff]
  %v1662 = vld [vmem:[%s11 + $0xa0] sm:$0xff]
  %v1663 = vld [vmem:[%s11 + $0xa8] sm:$0xff]
  %v1664 = vld [vmem:[%s11 + $0xb0] sm:$0xff]
  %v1665 = vld [vmem:[%s11 + $0xb8] sm:$0xff]
  %v1666 = vld [vmem:[%s11 + $0xc0] sm:$0xff]
  %v1667 = vld [vmem:[%s11 + $0xc8] sm:$0xff]
  %v1668 = vld [vmem:[%s11 + $0xd0] sm:$0xff]
  %v1669 = vld [vmem:[%s11 + $0xd8] sm:$0xff]
  %v1670 = vld [vmem:[%s11 + $0xe0] sm:$0xff]
  %v1671 = vld [vmem:[%s11 + $0xe8] sm:$0xff]
  %v1672 = vld [vmem:[%s11 + $0xf0] sm:$0xff]
  %v1673 = vld [vmem:[%s11 + $0xf8] sm:$0xff]
  %v1674 = vld [vmem:[%s11 + $0x100] sm:$0xff]
  %v1675 = vld [vmem:[%s11 + $0x108] sm:$0xff]
  %v1676 = vld [vmem:[%s11 + $0x110] sm:$0xff]
  %v1677 = vld [vmem:[%s11 + $0x118] sm:$0xff]
  %v1678 = vld [vmem:[%s11 + $0x120] sm:$0xff]
  %v1679 = vld [vmem:[%s11 + $0x128] sm:$0xff]
  %v1680 = vld [vmem:[%s11 + $0x130] sm:$0xff]
  %v1681 = vld [vmem:[%s11 + $0x138] sm:$0xff]
  %v1682 = vld [vmem:[%s11 + $0x140] sm:$0xff]
  %v1683 = vld [vmem:[%s11 + $0x148] sm:$0xff]
  %v1684 = vld [vmem:[%s11 + $0x150] sm:$0xff]
  %v1685 = vld [vmem:[%s11 + $0x158] sm:$0xff]
  %v1686 = vld [vmem:[%s11 + $0x160] sm:$0xff]
  %v1687 = vld [vmem:[%s11 + $0x168] sm:$0xff]
  %v1688 = vld [vmem:[%s11 + $0x170] sm:$0xff]
  %v1689 = vld [vmem:[%s11 + $0x178] sm:$0xff]
  %v1690 = vld [vmem:[%s11 + $0x180] sm:$0xff]
  %v1691 = vld [vmem:[%s11 + $0x188] sm:$0xff]
  %v1692 = vld [vmem:[%s11 + $0x190] sm:$0xff]
  %v1693 = vld [vmem:[%s11 + $0x198] sm:$0xff]
  %v1694 = vld [vmem:[%s11 + $0x1a0] sm:$0xff]
  %v1695 = vld [vmem:[%s11 + $0x1a8] sm:$0xff]
  %v1696 = vld [vmem:[%s11 + $0x1b0] sm:$0xff]
  %v1697 = vld [vmem:[%s11 + $0x1b8] sm:$0xff]
  %v1698 = vld [vmem:[%s11 + $0x1c0] sm:$0xff]
  %v1699 = vld [vmem:[%s11 + $0x1c8] sm:$0xff]
  %v1700 = vld [vmem:[%s11 + $0x1d0] sm:$0xff]
  %v1701 = vld [vmem:[%s11 + $0x1d8] sm:$0xff]
  %v1702 = vld [vmem:[%s11 + $0x1e0] sm:$0xff]
  %v1703 = vld [vmem:[%s11 + $0x1e8] sm:$0xff]
  %v1704 = vld [vmem:[%s11 + $0x1f0] sm:$0xff]
  %v1705 = vld [vmem:[%s11 + $0x1f8] sm:$0xff]
  %v1706 = vld [vmem:[%s11 + $0x200] sm:$0xff]
  %v1707 = vld [vmem:[%s11 + $0x208] sm:$0xff]
  %v1708 = vld [vmem:[%s11 + $0x210] sm:$0xff]
  %v1709 = vld [vmem:[%s11 + $0x218] sm:$0xff]
  %v1710 = vld [vmem:[%s11 + $0x220] sm:$0xff]
  %v1711 = vld [vmem:[%s11 + $0x228] sm:$0xff]
  %v1712 = vld [vmem:[%s11 + $0x230] sm:$0xff]
  %v1713 = vld [vmem:[%s11 + $0x238] sm:$0xff]
  %v1714 = vld [vmem:[%s11 + $0x240] sm:$0xff]
  %v1715 = vld [vmem:[%s11 + $0x248] sm:$0xff]
  %v1716 = vld [vmem:[%s11 + $0x250] sm:$0xff]
  %v1717 = vld [vmem:[%s11 + $0x258] sm:$0xff]
  %v1718 = vld [vmem:[%s11 + $0x260] sm:$0xff]
  %v1719 = vld [vmem:[%s11 + $0x268] sm:$0xff]
  %v1720 = vld [vmem:[%s11 + $0x270] sm:$0xff]
  %v1721 = vld [vmem:[%s11 + $0x278] sm:$0xff]
  %v1722 = vld [vmem:[%s11 + $0x280] sm:$0xff]
  %v1723 = vld [vmem:[%s11 + $0x288] sm:$0xff]
  %v1724 = vld [vmem:[%s11 + $0x290] sm:$0xff]
  %v1725 = vld [vmem:[%s11 + $0x298] sm:$0xff]
  %v1726 = vld [vmem:[%s11 + $0x2a0] sm:$0xff]
  %v1727 = vld [vmem:[%s11 + $0x2a8] sm:$0xff]
  %v1728 = vld [vmem:[%s11 + $0x2b0] sm:$0xff]
  %v1729 = vld [vmem:[%s11 + $0x2b8] sm:$0xff]
  %v1730 = vld [vmem:[%s11 + $0x2c0] sm:$0xff]
  %v1731 = vld [vmem:[%s11 + $0x2c8] sm:$0xff]
  %v1732 = vld [vmem:[%s11 + $0x2d0] sm:$0xff]
  %v1733 = vld [vmem:[%s11 + $0x2d8] sm:$0xff]
  %v1734 = vld [vmem:[%s11 + $0x2e0] sm:$0xff]
  %v1735 = vld [vmem:[%s11 + $0x2e8] sm:$0xff]
  %v1736 = vld [vmem:[%s11 + $0x2f0] sm:$0xff]
  %v1737 = vld [vmem:[%s11 + $0x2f8] sm:$0xff]
  %v1738 = vld [vmem:[%s11 + $0x300] sm:$0xff]
  %v1739 = vld [vmem:[%s11 + $0x308] sm:$0xff]
  %v1740 = vld [vmem:[%s11 + $0x310] sm:$0xff]
  %v1741 = vld [vmem:[%s11 + $0x318] sm:$0xff]
  %v1742 = vld [vmem:[%s11 + $0x320] sm:$0xff]
  %v1743 = vld [vmem:[%s11 + $0x328] sm:$0xff]
  %v1744 = vld [vmem:[%s11 + $0x330] sm:$0xff]
  %v1745 = vld [vmem:[%s11 + $0x338] sm:$0xff]
  %v1746 = vld [vmem:[%s11 + $0x340] sm:$0xff]
  %v1747 = vld [vmem:[%s11 + $0x348] sm:$0xff]
  %v1748 = vld [vmem:[%s11 + $0x350] sm:$0xff]
  %v1749 = vld [vmem:[%s11 + $0x358] sm:$0xff]
  %v1750 = vld [vmem:[%s11 + $0x360] sm:$0xff]
  %v1751 = vld [vmem:[%s11 + $0x368] sm:$0xff]
  %v1752 = vld [vmem:[%s11 + $0x370] sm:$0xff]
  %v1753 = vld [vmem:[%s11 + $0x378] sm:$0xff]
  %v1754 = vld [vmem:[%s11 + $0x380] sm:$0xff]
  %v1755 = vld [vmem:[%s11 + $0x388] sm:$0xff]
  %v1756 = vld [vmem:[%s11 + $0x390] sm:$0xff]
  %v1757 = vld [vmem:[%s11 + $0x398] sm:$0xff]
  %v1758 = vld [vmem:[%s11 + $0x3a0] sm:$0xff]
  %v1759 = vld [vmem:[%s11 + $0x3a8] sm:$0xff]
  %v1760 = vld [vmem:[%s11 + $0x3b0] sm:$0xff]
  %v1761 = vld [vmem:[%s11 + $0x3b8] sm:$0xff]
  %v1762 = vld [vmem:[%s11 + $0x3c0] sm:$0xff]
  %v1763 = vld [vmem:[%s11 + $0x3c8] sm:$0xff]
  %v1764 = vld [vmem:[%s11 + $0x3d0] sm:$0xff]
  %v1765 = vld [vmem:[%s11 + $0x3d8] sm:$0xff]
  %v1766 = vld [vmem:[%s11 + $0x3e0] sm:$0xff]
  %v1767 = vld [vmem:[%s11 + $0x3e8] sm:$0xff]
  %v1768 = vld [vmem:[%s11 + $0x3f0] sm:$0xff]
  %v1769 = vld [vmem:[%s11 + $0x3f8] sm:$0xff]
  %v1770 = vld [vmem:[%s11 + $0x400] sm:$0xff]
  %v1771 = vld [vmem:[%s11 + $0x408] sm:$0xff]
  %v1772 = vld [vmem:[%s11 + $0x410] sm:$0xff]
  %v1773 = vld [vmem:[%s11 + $0x418] sm:$0xff]
  %v1774 = vld [vmem:[%s11 + $0x420] sm:$0xff]
  %v1775 = vld [vmem:[%s11 + $0x428] sm:$0xff]
  %v1776 = vld [vmem:[%s11 + $0x430] sm:$0xff]
  %v1777 = vld [vmem:[%s11 + $0x438] sm:$0xff]
  %v1778 = vld [vmem:[%s11 + $0x440] sm:$0xff]
  %v1779 = vld [vmem:[%s11 + $0x448] sm:$0xff]
  %v1780 = vld [vmem:[%s11 + $0x450] sm:$0xff]
  %v1781 = vld [vmem:[%s11 + $0x458] sm:$0xff]
  %v1782 = vld [vmem:[%s11 + $0x460] sm:$0xff]
  %v1783 = vld [vmem:[%s11 + $0x468] sm:$0xff]
  %v1784 = vld [vmem:[%s11 + $0x470] sm:$0xff]
  %v1785 = vld [vmem:[%s11 + $0x478] sm:$0xff]
  %v1786 = vld [vmem:[%s11 + $0x480] sm:$0xff]
  %v1787 = vld [vmem:[%s11 + $0x488] sm:$0xff]
  %v1788 = vld [vmem:[%s11 + $0x490] sm:$0xff]
  %v1789 = vld [vmem:[%s11 + $0x498] sm:$0xff]
  %v1790 = vld [vmem:[%s11 + $0x4a0] sm:$0xff]
  %v1791 = vld [vmem:[%s11 + $0x4a8] sm:$0xff]
  %v1792 = vld [vmem:[%s11 + $0x4b0] sm:$0xff]
  %v1793 = vld [vmem:[%s11 + $0x4b8] sm:$0xff]
  %v1794 = vld [vmem:[%s11 + $0x4c0] sm:$0xff]
  %v1795 = vld [vmem:[%s11 + $0x4c8] sm:$0xff]
  %v1796 = vld [vmem:[%s11 + $0x4d0] sm:$0xff]
  %v1797 = vld [vmem:[%s11 + $0x4d8] sm:$0xff]
  %v1798 = vld [vmem:[%s11 + $0x4e0] sm:$0xff]
  %v1799 = vld [vmem:[%s11 + $0x4e8] sm:$0xff]
  %v1800 = vld [vmem:[%s11 + $0x4f0] sm:$0xff]
  %v1801 = vld [vmem:[%s11 + $0x4f8] sm:$0xff]
  %v1802 = vld [vmem:[%s11 + $0x500] sm:$0xff]
  %v1803 = vld [vmem:[%s11 + $0x508] sm:$0xff]
  %v1804 = vld [vmem:[%s11 + $0x510] sm:$0xff]
  %v1805 = vld [vmem:[%s11 + $0x518] sm:$0xff]
  %v1806 = vld [vmem:[%s11 + $0x520] sm:$0xff]
  %v1807 = vld [vmem:[%s11 + $0x528] sm:$0xff]
  %v1808 = vld [vmem:[%s11 + $0x530] sm:$0xff]
  %v1809 = vld [vmem:[%s11 + $0x538] sm:$0xff]
  %v1810 = vld [vmem:[%s11 + $0x540] sm:$0xff]
  %v1811 = vld [vmem:[%s11 + $0x548] sm:$0xff]
  %v1812 = vld [vmem:[%s11 + $0x550] sm:$0xff]
  %v1813 = vld [vmem:[%s11 + $0x558] sm:$0xff]
  %v1814 = vld [vmem:[%s11 + $0x560] sm:$0xff]
  %v1815 = vld [vmem:[%s11 + $0x568] sm:$0xff]
  %v1816 = vld [vmem:[%s11 + $0x570] sm:$0xff]
  %v1817 = vld [vmem:[%s11 + $0x578] sm:$0xff]
  %v1818 = vld [vmem:[%s11 + $0x580] sm:$0xff]
  %v1819 = vld [vmem:[%s11 + $0x588] sm:$0xff]
  %v1820 = vld [vmem:[%s11 + $0x590] sm:$0xff]
  %v1821 = vld [vmem:[%s11 + $0x598] sm:$0xff]
  %v1822 = vld [vmem:[%s11 + $0x5a0] sm:$0xff]
  %v1823 = vld [vmem:[%s11 + $0x5a8] sm:$0xff]
  %v1824 = vld [vmem:[%s11 + $0x5b0] sm:$0xff]
  %v1825 = vld [vmem:[%s11 + $0x5b8] sm:$0xff]
  %v1826 = vld [vmem:[%s11 + $0x5c0] sm:$0xff]
  %v1827 = vld [vmem:[%s11 + $0x5c8] sm:$0xff]
  %v1828 = vld [vmem:[%s11 + $0x5d0] sm:$0xff]
  %v1829 = vld [vmem:[%s11 + $0x5d8] sm:$0xff]
  %v1830 = vld [vmem:[%s11 + $0x5e0] sm:$0xff]
  %v1831 = vld [vmem:[%s11 + $0x5e8] sm:$0xff]
  %v1832 = vld [vmem:[%s11 + $0x5f0] sm:$0xff]
  %v1833 = vld [vmem:[%s11 + $0x5f8] sm:$0xff]
  %v1834 = vld [vmem:[%s11 + $0x600] sm:$0xff]
  %v1835 = vld [vmem:[%s11 + $0x608] sm:$0xff]
  %v1836 = vld [vmem:[%s11 + $0x610] sm:$0xff]
  %v1837 = vld [vmem:[%s11 + $0x618] sm:$0xff]
  %v1838 = vld [vmem:[%s11 + $0x620] sm:$0xff]
  %v1839 = vld [vmem:[%s11 + $0x628] sm:$0xff]
  %v1840 = vld [vmem:[%s11 + $0x630] sm:$0xff]
  %v1841 = vld [vmem:[%s11 + $0x638] sm:$0xff]
  %v1842 = vld [vmem:[%s11 + $0x640] sm:$0xff]
  %v1843 = vld [vmem:[%s11 + $0x648] sm:$0xff]
  %v1844 = vld [vmem:[%s11 + $0x650] sm:$0xff]
  %v1845 = vld [vmem:[%s11 + $0x658] sm:$0xff]
  %v1846 = vld [vmem:[%s11 + $0x660] sm:$0xff]
  %v1847 = vld [vmem:[%s11 + $0x668] sm:$0xff]
  %v1848 = vld [vmem:[%s11 + $0x670] sm:$0xff]
  %v1849 = vld [vmem:[%s11 + $0x678] sm:$0xff]
  %v1850 = vld [vmem:[%s11 + $0x680] sm:$0xff]
  %v1851 = vld [vmem:[%s11 + $0x688] sm:$0xff]
  %v1852 = vld [vmem:[%s11 + $0x690] sm:$0xff]
  %v1853 = vld [vmem:[%s11 + $0x698] sm:$0xff]
  %v1854 = vld [vmem:[%s11 + $0x6a0] sm:$0xff]
  %v1855 = vld [vmem:[%s11 + $0x6a8] sm:$0xff]
  %v1856 = vld [vmem:[%s11 + $0x6b0] sm:$0xff]
  %v1857 = vld [vmem:[%s11 + $0x6b8] sm:$0xff]
  %v1858 = vld [vmem:[%s11 + $0x6c0] sm:$0xff]
  %v1859 = vld [vmem:[%s11 + $0x6c8] sm:$0xff]
  %v1860 = vld [vmem:[%s11 + $0x6d0] sm:$0xff]
  %v1861 = vld [vmem:[%s11 + $0x6d8] sm:$0xff]
  %v1862 = vld [vmem:[%s11 + $0x6e0] sm:$0xff]
  %v1863 = vld [vmem:[%s11 + $0x6e8] sm:$0xff]
  %v1864 = vld [vmem:[%s11 + $0x6f0] sm:$0xff]
  %v1865 = vld [vmem:[%s11 + $0x6f8] sm:$0xff]
  %v1866 = vld [vmem:[%s11 + $0x700] sm:$0xff]
  %v1867 = vld [vmem:[%s11 + $0x708] sm:$0xff]
  %v1868 = vld [vmem:[%s11 + $0x710] sm:$0xff]
  %v1869 = vld [vmem:[%s11 + $0x718] sm:$0xff]
  %v1870 = vld [vmem:[%s11 + $0x720] sm:$0xff]
  %v1871 = vld [vmem:[%s11 + $0x728] sm:$0xff]
  %v1872 = vld [vmem:[%s11 + $0x730] sm:$0xff]
  %v1873 = vld [vmem:[%s11 + $0x738] sm:$0xff]
  %v1874 = vld [vmem:[%s11 + $0x740] sm:$0xff]
  %v1875 = vld [vmem:[%s11 + $0x748] sm:$0xff]
  %v1876 = vld [vmem:[%s11 + $0x750] sm:$0xff]
  %v1877 = vld [vmem:[%s11 + $0x758] sm:$0xff]
  %v1878 = vld [vmem:[%s11 + $0x760] sm:$0xff]
  %v1879 = vld [vmem:[%s11 + $0x768] sm:$0xff]
  %v1880 = vld [vmem:[%s11 + $0x770] sm:$0xff]
  %v1881 = vld [vmem:[%s11 + $0x778] sm:$0xff]
  %v1882 = vld [vmem:[%s11 + $0x780] sm:$0xff]
  %v1883 = vld [vmem:[%s11 + $0x788] sm:$0xff]
  %v1884 = vld [vmem:[%s11 + $0x790] sm:$0xff]
  %v1885 = vld [vmem:[%s11 + $0x798] sm:$0xff]
  %v1886 = vld [vmem:[%s11 + $0x7a0] sm:$0xff]
  %v1887 = vld [vmem:[%s11 + $0x7a8] sm:$0xff]
  %v1888 = vld [vmem:[%s11 + $0x7b0] sm:$0xff]
  %v1889 = vld [vmem:[%s11 + $0x7b8] sm:$0xff]
  %v1890 = vld [vmem:[%s11 + $0x7c0] sm:$0xff]
  %v1891 = vld [vmem:[%s11 + $0x7c8] sm:$0xff]
  %v1892 = vld [vmem:[%s11 + $0x7d0] sm:$0xff]
  %v1893 = vld [vmem:[%s11 + $0x7d8] sm:$0xff]
  %v1894 = vld [vmem:[%s11 + $0x7e0] sm:$0xff]
  %v1895 = vld [vmem:[%s11 + $0x7e8] sm:$0xff]
  %v1896 = vld [vmem:[%s11 + $0x7f0] sm:$0xff]
  %v1897 = vld [vmem:[%s11 + $0x7f8] sm:$0xff]
  %v1898 = vld [vmem:[%s12] sm:$0xf]
  %v1900 = vlaneseq
  %v1901 = vshrl.u32 %v1900, 7
  %v1902 = vsub.s32 0, %v1901
  %v1903 = vrot.slane %v1898, %v1902
  %v1904 = vlaneseq
  %v1905 = vshrl.u32 %v1904, 7
  %v1906 = vsub.s32 1, %v1905
  %v1907 = vrot.slane %v1898, %v1906
  %v1908 = vlaneseq
  %v1909 = vshrl.u32 %v1908, 7
  %v1910 = vsub.s32 2, %v1909
  %v1911 = vrot.slane %v1898, %v1910
  %v1912 = vlaneseq
  %v1913 = vshrl.u32 %v1912, 7
  %v1914 = vsub.s32 3, %v1913
  %v1915 = vrot.slane %v1898, %v1914
  %1920 = vmatprep.subr.mxu0 %v1643
  %1921 = vmatpush1.msra.mxu0 %v1642
  %1922 = vmatprep.subr.mxu0 %v1647
  %1923 = vmatpush1.msra.mxu0 %v1646
  %1924 = vmatprep.subr.mxu0 %v1651
  %1925 = vmatpush1.msra.mxu0 %v1650
  %1926 = vmatprep.subr.mxu0 %v1655
  %1927 = vmatpush1.msra.mxu0 %v1654
  %1928 = vmatprep.subr.mxu0 %v1659
  %1929 = vmatpush1.msra.mxu0 %v1658
  %1930 = vmatprep.subr.mxu0 %v1663
  %1931 = vmatpush1.msra.mxu0 %v1662
  %1932 = vmatprep.subr.mxu0 %v1667
  %1933 = vmatpush1.msra.mxu0 %v1666
  %1934 = vmatprep.subr.mxu0 %v1671
  %1935 = vmatpush1.msra.mxu0 %v1670
  %1936 = vmatprep.subr.mxu0 %v1675
  %1937 = vmatpush1.msra.mxu0 %v1674
  %1938 = vmatprep.subr.mxu0 %v1679
  %1939 = vmatpush1.msra.mxu0 %v1678
  %1940 = vmatprep.subr.mxu0 %v1683
  %1941 = vmatpush1.msra.mxu0 %v1682
  %1942 = vmatprep.subr.mxu0 %v1687
  %1943 = vmatpush1.msra.mxu0 %v1686
  %1944 = vmatprep.subr.mxu0 %v1691
  %1945 = vmatpush1.msra.mxu0 %v1690
  %1946 = vmatprep.subr.mxu0 %v1695
  %1947 = vmatpush1.msra.mxu0 %v1694
  %1948 = vmatprep.subr.mxu0 %v1699
  %1949 = vmatpush1.msra.mxu0 %v1698
  %1950 = vmatprep.subr.mxu0 %v1703
  %1951 = vmatpush1.msra.mxu0 %v1702
  %1952 = vmatprep.subr.mxu0 %v1707
  %1953 = vmatpush1.msra.mxu0 %v1706
  %1954 = vmatprep.subr.mxu0 %v1711
  %1955 = vmatpush1.msra.mxu0 %v1710
  %1956 = vmatprep.subr.mxu0 %v1715
  %1957 = vmatpush1.msra.mxu0 %v1714
  %1958 = vmatprep.subr.mxu0 %v1719
  %1959 = vmatpush1.msra.mxu0 %v1718
  %1960 = vmatprep.subr.mxu0 %v1723
  %1961 = vmatpush1.msra.mxu0 %v1722
  %1962 = vmatprep.subr.mxu0 %v1727
  %1963 = vmatpush1.msra.mxu0 %v1726
  %1964 = vmatprep.subr.mxu0 %v1731
  %1965 = vmatpush1.msra.mxu0 %v1730
  %1966 = vmatprep.subr.mxu0 %v1735
  %1967 = vmatpush1.msra.mxu0 %v1734
  %1968 = vmatprep.subr.mxu0 %v1739
  %1969 = vmatpush1.msra.mxu0 %v1738
  %1970 = vmatprep.subr.mxu0 %v1743
  %1971 = vmatpush1.msra.mxu0 %v1742
  %1972 = vmatprep.subr.mxu0 %v1747
  %1973 = vmatpush1.msra.mxu0 %v1746
  %1974 = vmatprep.subr.mxu0 %v1751
  %1975 = vmatpush1.msra.mxu0 %v1750
  %1976 = vmatprep.subr.mxu0 %v1755
  %1977 = vmatpush1.msra.mxu0 %v1754
  %1978 = vmatprep.subr.mxu0 %v1759
  %1979 = vmatpush1.msra.mxu0 %v1758
  %1980 = vmatprep.subr.mxu0 %v1763
  %1981 = vmatpush1.msra.mxu0 %v1762
  %1982 = vmatprep.subr.mxu0 %v1767
  %1983 = vmatpush1.msra.mxu0 %v1766
  %1984 = vmatprep.mubr.f32.mxu0 %v1635
  %1985 = vmatmul.mubr.f32.gmra.mrb[0].mxu0 %v1634
  %v1986 = vpop.f32.mrb[0].mxu0
  %v1987 = vadd.f32 %v1903, %v1986
  %v1988 = vpop.f32.mrb[0].mxu0
  %v1989 = vadd.f32 %v1907, %v1988
  %1990 = vmatprep.mubr.f32.mxu0 %v1639
  %1991 = vmatmul.mubr.f32.gmra.mrb[0].mxu0 %v1638
  %v1992 = vpop.f32.mrb[0].mxu0
  %v1993 = vadd.f32 %v1903, %v1992
  %v1994 = vpop.f32.mrb[0].mxu0
  %v1995 = vadd.f32 %v1907, %v1994
  %1996 = vdwg.mxu0
  %1997 = vmatprep.subr.mxu0 %v1771
  %1998 = vmatpush1.msra.mxu0 %v1770
  %1999 = vmatprep.subr.mxu0 %v1775
  %2000 = vmatpush1.msra.mxu0 %v1774
  %2001 = vmatprep.subr.mxu0 %v1779
  %2002 = vmatpush1.msra.mxu0 %v1778
  %2003 = vmatprep.subr.mxu0 %v1783
  %2004 = vmatpush1.msra.mxu0 %v1782
  %2005 = vmatprep.subr.mxu0 %v1787
  %2006 = vmatpush1.msra.mxu0 %v1786
  %2007 = vmatprep.subr.mxu0 %v1791
  %2008 = vmatpush1.msra.mxu0 %v1790
  %2009 = vmatprep.subr.mxu0 %v1795
  %2010 = vmatpush1.msra.mxu0 %v1794
  %2011 = vmatprep.subr.mxu0 %v1799
  %2012 = vmatpush1.msra.mxu0 %v1798
  %2013 = vmatprep.subr.mxu0 %v1803
  %2014 = vmatpush1.msra.mxu0 %v1802
  %2015 = vmatprep.subr.mxu0 %v1807
  %2016 = vmatpush1.msra.mxu0 %v1806
  %2017 = vmatprep.subr.mxu0 %v1811
  %2018 = vmatpush1.msra.mxu0 %v1810
  %2019 = vmatprep.subr.mxu0 %v1815
  %2020 = vmatpush1.msra.mxu0 %v1814
  %2021 = vmatprep.subr.mxu0 %v1819
  %2022 = vmatpush1.msra.mxu0 %v1818
  %2023 = vmatprep.subr.mxu0 %v1823
  %2024 = vmatpush1.msra.mxu0 %v1822
  %2025 = vmatprep.subr.mxu0 %v1827
  %2026 = vmatpush1.msra.mxu0 %v1826
  %2027 = vmatprep.subr.mxu0 %v1831
  %2028 = vmatpush1.msra.mxu0 %v1830
  %2029 = vmatprep.subr.mxu0 %v1835
  %2030 = vmatpush1.msra.mxu0 %v1834
  %2031 = vmatprep.subr.mxu0 %v1839
  %2032 = vmatpush1.msra.mxu0 %v1838
  %2033 = vmatprep.subr.mxu0 %v1843
  %2034 = vmatpush1.msra.mxu0 %v1842
  %2035 = vmatprep.subr.mxu0 %v1847
  %2036 = vmatpush1.msra.mxu0 %v1846
  %2037 = vmatprep.subr.mxu0 %v1851
  %2038 = vmatpush1.msra.mxu0 %v1850
  %2039 = vmatprep.subr.mxu0 %v1855
  %2040 = vmatpush1.msra.mxu0 %v1854
  %2041 = vmatprep.subr.mxu0 %v1859
  %2042 = vmatpush1.msra.mxu0 %v1858
  %2043 = vmatprep.subr.mxu0 %v1863
  %2044 = vmatpush1.msra.mxu0 %v1862
  %2045 = vmatprep.subr.mxu0 %v1867
  %2046 = vmatpush1.msra.mxu0 %v1866
  %2047 = vmatprep.subr.mxu0 %v1871
  %2048 = vmatpush1.msra.mxu0 %v1870
  %2049 = vmatprep.subr.mxu0 %v1875
  %2050 = vmatpush1.msra.mxu0 %v1874
  %2051 = vmatprep.subr.mxu0 %v1879
  %2052 = vmatpush1.msra.mxu0 %v1878
  %2053 = vmatprep.subr.mxu0 %v1883
  %2054 = vmatpush1.msra.mxu0 %v1882
  %2055 = vmatprep.subr.mxu0 %v1887
  %2056 = vmatpush1.msra.mxu0 %v1886
  %2057 = vmatprep.subr.mxu0 %v1891
  %2058 = vmatpush1.msra.mxu0 %v1890
  %2059 = vmatprep.subr.mxu0 %v1895
  %2060 = vmatpush1.msra.mxu0 %v1894
  %2061 = vmatprep.mubr.f32.mxu0 %v1637
  %2062 = vmatmul.mubr.f32.gmra.mrb[0].mxu0 %v1636
  %v2063 = vpop.f32.mrb[0].mxu0
  %v2064 = vadd.f32 %v1987, %v2063
  %v2065 = vpop.f32.mrb[0].mxu0
  %v2066 = vadd.f32 %v1989, %v2065
  %2067 = vmatprep.mubr.f32.mxu0 %v1641
  %2068 = vmatmul.mubr.f32.gmra.mrb[0].mxu0 %v1640
  %v2069 = vpop.f32.mrb[0].mxu0
  %v2070 = vadd.f32 %v1993, %v2069
  %v2071 = vpop.f32.mrb[0].mxu0
  %v2072 = vadd.f32 %v1995, %v2071
  %2073 = vdwg.mxu0
  %2074 = vmatprep.subr.mxu0 %v1645
  %2075 = vmatpush1.msra.mxu0 %v1644
  %2076 = vmatprep.subr.mxu0 %v1649
  %2077 = vmatpush1.msra.mxu0 %v1648
  %2078 = vmatprep.subr.mxu0 %v1653
  %2079 = vmatpush1.msra.mxu0 %v1652
  %2080 = vmatprep.subr.mxu0 %v1657
  %2081 = vmatpush1.msra.mxu0 %v1656
  %2082 = vmatprep.subr.mxu0 %v1661
  %2083 = vmatpush1.msra.mxu0 %v1660
  %2084 = vmatprep.subr.mxu0 %v1665
  %2085 = vmatpush1.msra.mxu0 %v1664
  %2086 = vmatprep.subr.mxu0 %v1669
  %2087 = vmatpush1.msra.mxu0 %v1668
  %2088 = vmatprep.subr.mxu0 %v1673
  %2089 = vmatpush1.msra.mxu0 %v1672
  %2090 = vmatprep.subr.mxu0 %v1677
  %2091 = vmatpush1.msra.mxu0 %v1676
  %2092 = vmatprep.subr.mxu0 %v1681
  %2093 = vmatpush1.msra.mxu0 %v1680
  %2094 = vmatprep.subr.mxu0 %v1685
  %2095 = vmatpush1.msra.mxu0 %v1684
  %2096 = vmatprep.subr.mxu0 %v1689
  %2097 = vmatpush1.msra.mxu0 %v1688
  %2098 = vmatprep.subr.mxu0 %v1693
  %2099 = vmatpush1.msra.mxu0 %v1692
  %2100 = vmatprep.subr.mxu0 %v1697
  %2101 = vmatpush1.msra.mxu0 %v1696
  %2102 = vmatprep.subr.mxu0 %v1701
  %2103 = vmatpush1.msra.mxu0 %v1700
  %2104 = vmatprep.subr.mxu0 %v1705
  %2105 = vmatpush1.msra.mxu0 %v1704
  %2106 = vmatprep.subr.mxu0 %v1709
  %2107 = vmatpush1.msra.mxu0 %v1708
  %2108 = vmatprep.subr.mxu0 %v1713
  %2109 = vmatpush1.msra.mxu0 %v1712
  %2110 = vmatprep.subr.mxu0 %v1717
  %2111 = vmatpush1.msra.mxu0 %v1716
  %2112 = vmatprep.subr.mxu0 %v1721
  %2113 = vmatpush1.msra.mxu0 %v1720
  %2114 = vmatprep.subr.mxu0 %v1725
  %2115 = vmatpush1.msra.mxu0 %v1724
  %2116 = vmatprep.subr.mxu0 %v1729
  %2117 = vmatpush1.msra.mxu0 %v1728
  %2118 = vmatprep.subr.mxu0 %v1733
  %2119 = vmatpush1.msra.mxu0 %v1732
  %2120 = vmatprep.subr.mxu0 %v1737
  %2121 = vmatpush1.msra.mxu0 %v1736
  %2122 = vmatprep.subr.mxu0 %v1741
  %2123 = vmatpush1.msra.mxu0 %v1740
  %2124 = vmatprep.subr.mxu0 %v1745
  %2125 = vmatpush1.msra.mxu0 %v1744
  %2126 = vmatprep.subr.mxu0 %v1749
  %2127 = vmatpush1.msra.mxu0 %v1748
  %2128 = vmatprep.subr.mxu0 %v1753
  %2129 = vmatpush1.msra.mxu0 %v1752
  %2130 = vmatprep.subr.mxu0 %v1757
  %2131 = vmatpush1.msra.mxu0 %v1756
  %2132 = vmatprep.subr.mxu0 %v1761
  %2133 = vmatpush1.msra.mxu0 %v1760
  %2134 = vmatprep.subr.mxu0 %v1765
  %2135 = vmatpush1.msra.mxu0 %v1764
  %2136 = vmatprep.subr.mxu0 %v1769
  %2137 = vmatpush1.msra.mxu0 %v1768
  %2138 = vmatprep.mubr.f32.mxu0 %v1635
  %2139 = vmatmul.mubr.f32.gmra.mrb[0].mxu0 %v1634
  %v2140 = vpop.f32.mrb[0].mxu0
  %v2141 = vadd.f32 %v1911, %v2140
  %v2142 = vpop.f32.mrb[0].mxu0
  %v2143 = vadd.f32 %v1915, %v2142
  %2144 = vmatprep.mubr.f32.mxu0 %v1639
  %2145 = vmatmul.mubr.f32.gmra.mrb[0].mxu0 %v1638
  %v2146 = vpop.f32.mrb[0].mxu0
  %v2147 = vadd.f32 %v1911, %v2146
  %v2148 = vpop.f32.mrb[0].mxu0
  %v2149 = vadd.f32 %v1915, %v2148
  %2150 = vdwg.mxu0
  %2151 = vmatprep.subr.mxu0 %v1773
  %2152 = vmatpush1.msra.mxu0 %v1772
  %2153 = vmatprep.subr.mxu0 %v1777
  %2154 = vmatpush1.msra.mxu0 %v1776
  %2155 = vmatprep.subr.mxu0 %v1781
  %2156 = vmatpush1.msra.mxu0 %v1780
  %2157 = vmatprep.subr.mxu0 %v1785
  %2158 = vmatpush1.msra.mxu0 %v1784
  %2159 = vmatprep.subr.mxu0 %v1789
  %2160 = vmatpush1.msra.mxu0 %v1788
  %2161 = vmatprep.subr.mxu0 %v1793
  %2162 = vmatpush1.msra.mxu0 %v1792
  %2163 = vmatprep.subr.mxu0 %v1797
  %2164 = vmatpush1.msra.mxu0 %v1796
  %2165 = vmatprep.subr.mxu0 %v1801
  %2166 = vmatpush1.msra.mxu0 %v1800
  %2167 = vmatprep.subr.mxu0 %v1805
  %2168 = vmatpush1.msra.mxu0 %v1804
  %2169 = vmatprep.subr.mxu0 %v1809
  %2170 = vmatpush1.msra.mxu0 %v1808
  %2171 = vmatprep.subr.mxu0 %v1813
  %2172 = vmatpush1.msra.mxu0 %v1812
  %2173 = vmatprep.subr.mxu0 %v1817
  %2174 = vmatpush1.msra.mxu0 %v1816
  %2175 = vmatprep.subr.mxu0 %v1821
  %2176 = vmatpush1.msra.mxu0 %v1820
  %2177 = vmatprep.subr.mxu0 %v1825
  %2178 = vmatpush1.msra.mxu0 %v1824
  %2179 = vmatprep.subr.mxu0 %v1829
  %2180 = vmatpush1.msra.mxu0 %v1828
  %2181 = vmatprep.subr.mxu0 %v1833
  %2182 = vmatpush1.msra.mxu0 %v1832
  %2183 = vmatprep.subr.mxu0 %v1837
  %2184 = vmatpush1.msra.mxu0 %v1836
  %2185 = vmatprep.subr.mxu0 %v1841
  %2186 = vmatpush1.msra.mxu0 %v1840
  %2187 = vmatprep.subr.mxu0 %v1845
  %2188 = vmatpush1.msra.mxu0 %v1844
  %2189 = vmatprep.subr.mxu0 %v1849
  %2190 = vmatpush1.msra.mxu0 %v1848
  %2191 = vmatprep.subr.mxu0 %v1853
  %2192 = vmatpush1.msra.mxu0 %v1852
  %2193 = vmatprep.subr.mxu0 %v1857
  %2194 = vmatpush1.msra.mxu0 %v1856
  %2195 = vmatprep.subr.mxu0 %v1861
  %2196 = vmatpush1.msra.mxu0 %v1860
  %2197 = vmatprep.subr.mxu0 %v1865
  %2198 = vmatpush1.msra.mxu0 %v1864
  %2199 = vmatprep.subr.mxu0 %v1869
  %2200 = vmatpush1.msra.mxu0 %v1868
  %2201 = vmatprep.subr.mxu0 %v1873
  %2202 = vmatpush1.msra.mxu0 %v1872
  %2203 = vmatprep.subr.mxu0 %v1877
  %2204 = vmatpush1.msra.mxu0 %v1876
  %2205 = vmatprep.subr.mxu0 %v1881
  %2206 = vmatpush1.msra.mxu0 %v1880
  %2207 = vmatprep.subr.mxu0 %v1885
  %2208 = vmatpush1.msra.mxu0 %v1884
  %2209 = vmatprep.subr.mxu0 %v1889
  %2210 = vmatpush1.msra.mxu0 %v1888
  %2211 = vmatprep.subr.mxu0 %v1893
  %2212 = vmatpush1.msra.mxu0 %v1892
  %2213 = vmatprep.subr.mxu0 %v1897
  %2214 = vmatpush1.msra.mxu0 %v1896
  %2215 = vmatprep.mubr.f32.mxu0 %v1637
  %2216 = vmatmul.mubr.f32.gmra.mrb[0].mxu0 %v1636
  %v2217 = vpop.f32.mrb[0].mxu0
  %v2218 = vadd.f32 %v2141, %v2217
  %v2219 = vpop.f32.mrb[0].mxu0
  %v2220 = vadd.f32 %v2143, %v2219
  %2221 = vmatprep.mubr.f32.mxu0 %v1641
  %2222 = vmatmul.mubr.f32.gmra.mrb[0].mxu0 %v1640
  %v2223 = vpop.f32.mrb[0].mxu0
  %v2224 = vadd.f32 %v2147, %v2223
  %v2225 = vpop.f32.mrb[0].mxu0
  %v2226 = vadd.f32 %v2149, %v2225
  %2227 = vdwg.mxu0
  %v2228 = vsub.f32 0.0, %v2064
  %v2229 = vsub.f32 0.0, %v2066
  %v2230 = vsub.f32 0.0, %v2218
  %v2231 = vsub.f32 0.0, %v2220
  %v2232 = vsub.f32 0.0, %v2070
  %v2233 = vsub.f32 0.0, %v2072
  %v2234 = vsub.f32 0.0, %v2224
  %v2235 = vsub.f32 0.0, %v2226
  %v2236 = vmul.f32 %v2228, 1.442695
  %v2237 = vpow.pop %v2236
  %v2238 = vmul.f32 %v2229, 1.442695
  %v2239 = vpow.pop %v2238
  %v2240 = vmul.f32 %v2230, 1.442695
  %v2241 = vpow.pop %v2240
  %v2242 = vmul.f32 %v2231, 1.442695
  %v2243 = vpow.pop %v2242
  %v2244 = vmul.f32 %v2232, 1.442695
  %v2245 = vpow.pop %v2244
  %v2246 = vmul.f32 %v2233, 1.442695
  %v2247 = vpow.pop %v2246
  %v2248 = vmul.f32 %v2234, 1.442695
  %v2249 = vpow.pop %v2248
  %v2250 = vmul.f32 %v2235, 1.442695
  %v2251 = vpow.pop %v2250
  %v2252 = vadd.f32 %v2237, 1.0
  %v2253 = vadd.f32 %v2239, 1.0
  %v2254 = vadd.f32 %v2241, 1.0
  %v2255 = vadd.f32 %v2243, 1.0
  %v2256 = vadd.f32 %v2245, 1.0
  %v2257 = vadd.f32 %v2247, 1.0
  %v2258 = vadd.f32 %v2249, 1.0
  %v2259 = vadd.f32 %v2251, 1.0
  %v2260 = vrcp.pop %v2252
  %v2261 = vmul.f32 1.0, %v2260
  %v2262 = vrcp.pop %v2253
  %v2263 = vmul.f32 1.0, %v2262
  %v2264 = vrcp.pop %v2254
  %v2265 = vmul.f32 1.0, %v2264
  %v2266 = vrcp.pop %v2255
  %v2267 = vmul.f32 1.0, %v2266
  %v2268 = vrcp.pop %v2256
  %v2269 = vmul.f32 1.0, %v2268
  %v2270 = vrcp.pop %v2257
  %v2271 = vmul.f32 1.0, %v2270
  %v2272 = vrcp.pop %v2258
  %v2273 = vmul.f32 1.0, %v2272
  %v2274 = vrcp.pop %v2259
  %v2275 = vmul.f32 1.0, %v2274
  %v2276 = vld [vmem:[%s25] sm:$0xff]
  %v2277 = vld [vmem:[%s25 + $0x8] sm:$0xff]
  %v2278 = vld [vmem:[%s25 + $0x10] sm:$0xff]
  %v2279 = vld [vmem:[%s25 + $0x18] sm:$0xff]
  %v2280 = vld [vmem:[%s25 + $0x20] sm:$0xff]
  %v2281 = vld [vmem:[%s25 + $0x28] sm:$0xff]
  %v2282 = vld [vmem:[%s25 + $0x30] sm:$0xff]
  %v2283 = vld [vmem:[%s25 + $0x38] sm:$0xff]
  %v2284 = vld [vmem:[%s25 + $0x40] sm:$0xff]
  %v2285 = vld [vmem:[%s25 + $0x48] sm:$0xff]
  %v2286 = vld [vmem:[%s25 + $0x50] sm:$0xff]
  %v2287 = vld [vmem:[%s25 + $0x58] sm:$0xff]
  %v2288 = vld [vmem:[%s25 + $0x60] sm:$0xff]
  %v2289 = vld [vmem:[%s25 + $0x68] sm:$0xff]
  %v2290 = vld [vmem:[%s25 + $0x70] sm:$0xff]
  %v2291 = vld [vmem:[%s25 + $0x78] sm:$0xff]
  %v2292 = vld [vmem:[%s25 + $0x80] sm:$0xff]
  %v2293 = vld [vmem:[%s25 + $0x88] sm:$0xff]
  %v2294 = vld [vmem:[%s25 + $0x90] sm:$0xff]
  %v2295 = vld [vmem:[%s25 + $0x98] sm:$0xff]
  %v2296 = vld [vmem:[%s25 + $0xa0] sm:$0xff]
  %v2297 = vld [vmem:[%s25 + $0xa8] sm:$0xff]
  %v2298 = vld [vmem:[%s25 + $0xb0] sm:$0xff]
  %v2299 = vld [vmem:[%s25 + $0xb8] sm:$0xff]
  %v2300 = vld [vmem:[%s25 + $0xc0] sm:$0xff]
  %v2301 = vld [vmem:[%s25 + $0xc8] sm:$0xff]
  %v2302 = vld [vmem:[%s25 + $0xd0] sm:$0xff]
  %v2303 = vld [vmem:[%s25 + $0xd8] sm:$0xff]
  %v2304 = vld [vmem:[%s25 + $0xe0] sm:$0xff]
  %v2305 = vld [vmem:[%s25 + $0xe8] sm:$0xff]
  %v2306 = vld [vmem:[%s25 + $0xf0] sm:$0xff]
  %v2307 = vld [vmem:[%s25 + $0xf8] sm:$0xff]
  %v2308 = vld [vmem:[%s25 + $0x100] sm:$0xff]
  %v2309 = vld [vmem:[%s25 + $0x108] sm:$0xff]
  %v2310 = vld [vmem:[%s25 + $0x110] sm:$0xff]
  %v2311 = vld [vmem:[%s25 + $0x118] sm:$0xff]
  %v2312 = vld [vmem:[%s25 + $0x120] sm:$0xff]
  %v2313 = vld [vmem:[%s25 + $0x128] sm:$0xff]
  %v2314 = vld [vmem:[%s25 + $0x130] sm:$0xff]
  %v2315 = vld [vmem:[%s25 + $0x138] sm:$0xff]
  %v2316 = vld [vmem:[%s25 + $0x140] sm:$0xff]
  %v2317 = vld [vmem:[%s25 + $0x148] sm:$0xff]
  %v2318 = vld [vmem:[%s25 + $0x150] sm:$0xff]
  %v2319 = vld [vmem:[%s25 + $0x158] sm:$0xff]
  %v2320 = vld [vmem:[%s25 + $0x160] sm:$0xff]
  %v2321 = vld [vmem:[%s25 + $0x168] sm:$0xff]
  %v2322 = vld [vmem:[%s25 + $0x170] sm:$0xff]
  %v2323 = vld [vmem:[%s25 + $0x178] sm:$0xff]
  %v2324 = vld [vmem:[%s25 + $0x180] sm:$0xff]
  %v2325 = vld [vmem:[%s25 + $0x188] sm:$0xff]
  %v2326 = vld [vmem:[%s25 + $0x190] sm:$0xff]
  %v2327 = vld [vmem:[%s25 + $0x198] sm:$0xff]
  %v2328 = vld [vmem:[%s25 + $0x1a0] sm:$0xff]
  %v2329 = vld [vmem:[%s25 + $0x1a8] sm:$0xff]
  %v2330 = vld [vmem:[%s25 + $0x1b0] sm:$0xff]
  %v2331 = vld [vmem:[%s25 + $0x1b8] sm:$0xff]
  %v2332 = vld [vmem:[%s25 + $0x1c0] sm:$0xff]
  %v2333 = vld [vmem:[%s25 + $0x1c8] sm:$0xff]
  %v2334 = vld [vmem:[%s25 + $0x1d0] sm:$0xff]
  %v2335 = vld [vmem:[%s25 + $0x1d8] sm:$0xff]
  %v2336 = vld [vmem:[%s25 + $0x1e0] sm:$0xff]
  %v2337 = vld [vmem:[%s25 + $0x1e8] sm:$0xff]
  %v2338 = vld [vmem:[%s25 + $0x1f0] sm:$0xff]
  %v2339 = vld [vmem:[%s25 + $0x1f8] sm:$0xff]
  %2340 = vmatprep.subr.mxu0 0.0
  %2341 = vmatpush1.msra.mxu0 %v2276
  %2342 = vmatprep.subr.mxu0 0.0
  %2343 = vmatpush1.msra.mxu0 %v2277
  %2344 = vmatprep.subr.mxu0 0.0
  %2345 = vmatpush1.msra.mxu0 %v2278
  %2346 = vmatprep.subr.mxu0 0.0
  %2347 = vmatpush1.msra.mxu0 %v2279
  %2348 = vmatprep.subr.mxu0 0.0
  %2349 = vmatpush1.msra.mxu0 %v2280
  %2350 = vmatprep.subr.mxu0 0.0
  %2351 = vmatpush1.msra.mxu0 %v2281
  %2352 = vmatprep.subr.mxu0 0.0
  %2353 = vmatpush1.msra.mxu0 %v2282
  %2354 = vmatprep.subr.mxu0 0.0
  %2355 = vmatpush1.msra.mxu0 %v2283
  %2356 = vmatprep.subr.mxu0 0.0
  %2357 = vmatpush1.msra.mxu0 %v2284
  %2358 = vmatprep.subr.mxu0 0.0
  %2359 = vmatpush1.msra.mxu0 %v2285
  %2360 = vmatprep.subr.mxu0 0.0
  %2361 = vmatpush1.msra.mxu0 %v2286
  %2362 = vmatprep.subr.mxu0 0.0
  %2363 = vmatpush1.msra.mxu0 %v2287
  %2364 = vmatprep.subr.mxu0 0.0
  %2365 = vmatpush1.msra.mxu0 %v2288
  %2366 = vmatprep.subr.mxu0 0.0
  %2367 = vmatpush1.msra.mxu0 %v2289
  %2368 = vmatprep.subr.mxu0 0.0
  %2369 = vmatpush1.msra.mxu0 %v2290
  %2370 = vmatprep.subr.mxu0 0.0
  %2371 = vmatpush1.msra.mxu0 %v2291
  %2372 = vmatprep.subr.mxu0 0.0
  %2373 = vmatpush1.msra.mxu0 %v2292
  %2374 = vmatprep.subr.mxu0 0.0
  %2375 = vmatpush1.msra.mxu0 %v2293
  %2376 = vmatprep.subr.mxu0 0.0
  %2377 = vmatpush1.msra.mxu0 %v2294
  %2378 = vmatprep.subr.mxu0 0.0
  %2379 = vmatpush1.msra.mxu0 %v2295
  %2380 = vmatprep.subr.mxu0 0.0
  %2381 = vmatpush1.msra.mxu0 %v2296
  %2382 = vmatprep.subr.mxu0 0.0
  %2383 = vmatpush1.msra.mxu0 %v2297
  %2384 = vmatprep.subr.mxu0 0.0
  %2385 = vmatpush1.msra.mxu0 %v2298
  %2386 = vmatprep.subr.mxu0 0.0
  %2387 = vmatpush1.msra.mxu0 %v2299
  %2388 = vmatprep.subr.mxu0 0.0
  %2389 = vmatpush1.msra.mxu0 %v2300
  %2390 = vmatprep.subr.mxu0 0.0
  %2391 = vmatpush1.msra.mxu0 %v2301
  %2392 = vmatprep.subr.mxu0 0.0
  %2393 = vmatpush1.msra.mxu0 %v2302
  %2394 = vmatprep.subr.mxu0 0.0
  %2395 = vmatpush1.msra.mxu0 %v2303
  %2396 = vmatprep.subr.mxu0 0.0
  %2397 = vmatpush1.msra.mxu0 %v2304
  %2398 = vmatprep.subr.mxu0 0.0
  %2399 = vmatpush1.msra.mxu0 %v2305
  %2400 = vmatprep.subr.mxu0 0.0
  %2401 = vmatpush1.msra.mxu0 %v2306
  %2402 = vmatprep.subr.mxu0 0.0
  %2403 = vmatpush1.msra.mxu0 %v2307
  %2404 = vmatprep.mubr.f32.mxu0 %v2263
  %2405 = vmatmul.mubr.f32.gmra.mrb[0].mxu0 %v2261
  %v2406 = vpop.f32.mrb[0].mxu0
  %v2407 = vadd.f32 0.0, %v2406
  %v2408 = vpop.f32.mrb[0].mxu0
  %2409 = vmatprep.mubr.f32.mxu0 %v2271
  %2410 = vmatmul.mubr.f32.gmra.mrb[0].mxu0 %v2269
  %v2411 = vpop.f32.mrb[0].mxu0
  %v2412 = vadd.f32 0.0, %v2411
  %v2413 = vpop.f32.mrb[0].mxu0
  %2414 = vdwg.mxu0
  %2415 = vmatprep.subr.mxu0 0.0
  %2416 = vmatpush1.msra.mxu0 %v2308
  %2417 = vmatprep.subr.mxu0 0.0
  %2418 = vmatpush1.msra.mxu0 %v2309
  %2419 = vmatprep.subr.mxu0 0.0
  %2420 = vmatpush1.msra.mxu0 %v2310
  %2421 = vmatprep.subr.mxu0 0.0
  %2422 = vmatpush1.msra.mxu0 %v2311
  %2423 = vmatprep.subr.mxu0 0.0
  %2424 = vmatpush1.msra.mxu0 %v2312
  %2425 = vmatprep.subr.mxu0 0.0
  %2426 = vmatpush1.msra.mxu0 %v2313
  %2427 = vmatprep.subr.mxu0 0.0
  %2428 = vmatpush1.msra.mxu0 %v2314
  %2429 = vmatprep.subr.mxu0 0.0
  %2430 = vmatpush1.msra.mxu0 %v2315
  %2431 = vmatprep.subr.mxu0 0.0
  %2432 = vmatpush1.msra.mxu0 %v2316
  %2433 = vmatprep.subr.mxu0 0.0
  %2434 = vmatpush1.msra.mxu0 %v2317
  %2435 = vmatprep.subr.mxu0 0.0
  %2436 = vmatpush1.msra.mxu0 %v2318
  %2437 = vmatprep.subr.mxu0 0.0
  %2438 = vmatpush1.msra.mxu0 %v2319
  %2439 = vmatprep.subr.mxu0 0.0
  %2440 = vmatpush1.msra.mxu0 %v2320
  %2441 = vmatprep.subr.mxu0 0.0
  %2442 = vmatpush1.msra.mxu0 %v2321
  %2443 = vmatprep.subr.mxu0 0.0
  %2444 = vmatpush1.msra.mxu0 %v2322
  %2445 = vmatprep.subr.mxu0 0.0
  %2446 = vmatpush1.msra.mxu0 %v2323
  %2447 = vmatprep.subr.mxu0 0.0
  %2448 = vmatpush1.msra.mxu0 %v2324
  %2449 = vmatprep.subr.mxu0 0.0
  %2450 = vmatpush1.msra.mxu0 %v2325
  %2451 = vmatprep.subr.mxu0 0.0
  %2452 = vmatpush1.msra.mxu0 %v2326
  %2453 = vmatprep.subr.mxu0 0.0
  %2454 = vmatpush1.msra.mxu0 %v2327
  %2455 = vmatprep.subr.mxu0 0.0
  %2456 = vmatpush1.msra.mxu0 %v2328
  %2457 = vmatprep.subr.mxu0 0.0
  %2458 = vmatpush1.msra.mxu0 %v2329
  %2459 = vmatprep.subr.mxu0 0.0
  %2460 = vmatpush1.msra.mxu0 %v2330
  %2461 = vmatprep.subr.mxu0 0.0
  %2462 = vmatpush1.msra.mxu0 %v2331
  %2463 = vmatprep.subr.mxu0 0.0
  %2464 = vmatpush1.msra.mxu0 %v2332
  %2465 = vmatprep.subr.mxu0 0.0
  %2466 = vmatpush1.msra.mxu0 %v2333
  %2467 = vmatprep.subr.mxu0 0.0
  %2468 = vmatpush1.msra.mxu0 %v2334
  %2469 = vmatprep.subr.mxu0 0.0
  %2470 = vmatpush1.msra.mxu0 %v2335
  %2471 = vmatprep.subr.mxu0 0.0
  %2472 = vmatpush1.msra.mxu0 %v2336
  %2473 = vmatprep.subr.mxu0 0.0
  %2474 = vmatpush1.msra.mxu0 %v2337
  %2475 = vmatprep.subr.mxu0 0.0
  %2476 = vmatpush1.msra.mxu0 %v2338
  %2477 = vmatprep.subr.mxu0 0.0
  %2478 = vmatpush1.msra.mxu0 %v2339
  %2479 = vmatprep.mubr.f32.mxu0 %v2267
  %2480 = vmatmul.mubr.f32.gmra.mrb[0].mxu0 %v2265
  %v2481 = vpop.f32.mrb[0].mxu0
  %v2482 = vadd.f32 %v2407, %v2481
  %v2483 = vpop.f32.mrb[0].mxu0
  %2484 = vmatprep.mubr.f32.mxu0 %v2275
  %2485 = vmatmul.mubr.f32.gmra.mrb[0].mxu0 %v2273
  %v2486 = vpop.f32.mrb[0].mxu0
  %v2487 = vadd.f32 %v2412, %v2486
  %v2488 = vpop.f32.mrb[0].mxu0
  %2489 = vdwg.mxu0
  %v2490 = vmul.f32 %v273, %v2482
  %v2491 = vmul.f32 %v274, %v2487
  %v2492 = vld [vmem:[%s13] sm:$0xff]
  %v2493 = vld [vmem:[%s13 + $0x8] sm:$0xff]
  %v2494 = vld [vmem:[%s14] sm:$0xff]
  %v2495 = vld [vmem:[%s14 + $0x8] sm:$0xff]
  %v2497 = vsel %vm92, %v2494, 0
  %v2500 = vsel %vm92, %v2495, 0
  %2502 = vmatprep.subr.mxu0 0.0
  %2503 = vmatpush1.msra.mxu0 %v2490
  %2504 = vmatprep.subr.mxu0 0.0
  %2505 = vmatpush1.msra.mxu0 %v2491
  %2506 = vmatprep.subr.mxu0 0.0
  %2507 = vmatpush1.msra.mxu0 0.0
  %2508 = vmatprep.subr.mxu0 0.0
  %2509 = vmatpush1.msra.mxu0 0.0
  %2510 = vmatprep.subr.mxu0 0.0
  %2511 = vmatpush1.msra.mxu0 0.0
  %2512 = vmatprep.subr.mxu0 0.0
  %2513 = vmatpush1.msra.mxu0 0.0
  %2514 = vmatprep.subr.mxu0 0.0
  %2515 = vmatpush1.msra.mxu0 0.0
  %2516 = vmatprep.subr.mxu0 0.0
  %2517 = vmatpush1.msra.mxu0 0.0
  %2518 = vmatprep.subr.mxu0 0.0
  %2519 = vmatpush1.msra.mxu0 0.0
  %2520 = vmatprep.subr.mxu0 0.0
  %2521 = vmatpush1.msra.mxu0 0.0
  %2522 = vmatprep.subr.mxu0 0.0
  %2523 = vmatpush1.msra.mxu0 0.0
  %2524 = vmatprep.subr.mxu0 0.0
  %2525 = vmatpush1.msra.mxu0 0.0
  %2526 = vmatprep.subr.mxu0 0.0
  %2527 = vmatpush1.msra.mxu0 0.0
  %2528 = vmatprep.subr.mxu0 0.0
  %2529 = vmatpush1.msra.mxu0 0.0
  %2530 = vmatprep.subr.mxu0 0.0
  %2531 = vmatpush1.msra.mxu0 0.0
  %2532 = vmatprep.subr.mxu0 0.0
  %2533 = vmatpush1.msra.mxu0 0.0
  %2534 = vmatprep.subr.mxu0 0.0
  %2535 = vmatpush1.msra.mxu0 0.0
  %2536 = vmatprep.subr.mxu0 0.0
  %2537 = vmatpush1.msra.mxu0 0.0
  %2538 = vmatprep.subr.mxu0 0.0
  %2539 = vmatpush1.msra.mxu0 0.0
  %2540 = vmatprep.subr.mxu0 0.0
  %2541 = vmatpush1.msra.mxu0 0.0
  %2542 = vmatprep.subr.mxu0 0.0
  %2543 = vmatpush1.msra.mxu0 0.0
  %2544 = vmatprep.subr.mxu0 0.0
  %2545 = vmatpush1.msra.mxu0 0.0
  %2546 = vmatprep.subr.mxu0 0.0
  %2547 = vmatpush1.msra.mxu0 0.0
  %2548 = vmatprep.subr.mxu0 0.0
  %2549 = vmatpush1.msra.mxu0 0.0
  %2550 = vmatprep.subr.mxu0 0.0
  %2551 = vmatpush1.msra.mxu0 0.0
  %2552 = vmatprep.subr.mxu0 0.0
  %2553 = vmatpush1.msra.mxu0 0.0
  %2554 = vmatprep.subr.mxu0 0.0
  %2555 = vmatpush1.msra.mxu0 0.0
  %2556 = vmatprep.subr.mxu0 0.0
  %2557 = vmatpush1.msra.mxu0 0.0
  %2558 = vmatprep.subr.mxu0 0.0
  %2559 = vmatpush1.msra.mxu0 0.0
  %2560 = vmatprep.subr.mxu0 0.0
  %2561 = vmatpush1.msra.mxu0 0.0
  %2562 = vmatprep.subr.mxu0 0.0
  %2563 = vmatpush1.msra.mxu0 0.0
  %2564 = vmatprep.subr.mxu0 0.0
  %2565 = vmatpush1.msra.mxu0 0.0
  %2566 = vmatprep.mubr.f32.mxu0 0.0
  %2567 = vmatmul.mubr.f32.gmra.mrb[0].mxu0 %v2497
  %v2568 = vpop.f32.mrb[0].mxu0
  %v2569 = vadd.f32 0.0, %v2568
  %v2570 = vpop.f32.mrb[0].mxu0
  %2571 = vmatprep.mubr.f32.mxu0 0.0
  %2572 = vmatmul.mubr.f32.gmra.mrb[0].mxu0 %v2500
  %v2573 = vpop.f32.mrb[0].mxu0
  %v2574 = vadd.f32 0.0, %v2573
  %v2575 = vpop.f32.mrb[0].mxu0
  %2576 = vdwg.mxu0
  %v2578 = vsel %vm92, %v2492, 0
  %v2581 = vsel %vm92, %v2493, 0
  %2583 = vmatprep.subr.mxu0 0.0
  %2584 = vmatpush1.msra.mxu0 %v642
  %2585 = vmatprep.subr.mxu0 0.0
  %2586 = vmatpush1.msra.mxu0 %v643
  %2587 = vmatprep.subr.mxu0 0.0
  %2588 = vmatpush1.msra.mxu0 0.0
  %2589 = vmatprep.subr.mxu0 0.0
  %2590 = vmatpush1.msra.mxu0 0.0
  %2591 = vmatprep.subr.mxu0 0.0
  %2592 = vmatpush1.msra.mxu0 0.0
  %2593 = vmatprep.subr.mxu0 0.0
  %2594 = vmatpush1.msra.mxu0 0.0
  %2595 = vmatprep.subr.mxu0 0.0
  %2596 = vmatpush1.msra.mxu0 0.0
  %2597 = vmatprep.subr.mxu0 0.0
  %2598 = vmatpush1.msra.mxu0 0.0
  %2599 = vmatprep.subr.mxu0 0.0
  %2600 = vmatpush1.msra.mxu0 0.0
  %2601 = vmatprep.subr.mxu0 0.0
  %2602 = vmatpush1.msra.mxu0 0.0
  %2603 = vmatprep.subr.mxu0 0.0
  %2604 = vmatpush1.msra.mxu0 0.0
  %2605 = vmatprep.subr.mxu0 0.0
  %2606 = vmatpush1.msra.mxu0 0.0
  %2607 = vmatprep.subr.mxu0 0.0
  %2608 = vmatpush1.msra.mxu0 0.0
  %2609 = vmatprep.subr.mxu0 0.0
  %2610 = vmatpush1.msra.mxu0 0.0
  %2611 = vmatprep.subr.mxu0 0.0
  %2612 = vmatpush1.msra.mxu0 0.0
  %2613 = vmatprep.subr.mxu0 0.0
  %2614 = vmatpush1.msra.mxu0 0.0
  %2615 = vmatprep.subr.mxu0 0.0
  %2616 = vmatpush1.msra.mxu0 0.0
  %2617 = vmatprep.subr.mxu0 0.0
  %2618 = vmatpush1.msra.mxu0 0.0
  %2619 = vmatprep.subr.mxu0 0.0
  %2620 = vmatpush1.msra.mxu0 0.0
  %2621 = vmatprep.subr.mxu0 0.0
  %2622 = vmatpush1.msra.mxu0 0.0
  %2623 = vmatprep.subr.mxu0 0.0
  %2624 = vmatpush1.msra.mxu0 0.0
  %2625 = vmatprep.subr.mxu0 0.0
  %2626 = vmatpush1.msra.mxu0 0.0
  %2627 = vmatprep.subr.mxu0 0.0
  %2628 = vmatpush1.msra.mxu0 0.0
  %2629 = vmatprep.subr.mxu0 0.0
  %2630 = vmatpush1.msra.mxu0 0.0
  %2631 = vmatprep.subr.mxu0 0.0
  %2632 = vmatpush1.msra.mxu0 0.0
  %2633 = vmatprep.subr.mxu0 0.0
  %2634 = vmatpush1.msra.mxu0 0.0
  %2635 = vmatprep.subr.mxu0 0.0
  %2636 = vmatpush1.msra.mxu0 0.0
  %2637 = vmatprep.subr.mxu0 0.0
  %2638 = vmatpush1.msra.mxu0 0.0
  %2639 = vmatprep.subr.mxu0 0.0
  %2640 = vmatpush1.msra.mxu0 0.0
  %2641 = vmatprep.subr.mxu0 0.0
  %2642 = vmatpush1.msra.mxu0 0.0
  %2643 = vmatprep.subr.mxu0 0.0
  %2644 = vmatpush1.msra.mxu0 0.0
  %2645 = vmatprep.subr.mxu0 0.0
  %2646 = vmatpush1.msra.mxu0 0.0
  %2647 = vmatprep.mubr.f32.mxu0 0.0
  %2648 = vmatmul.mubr.f32.gmra.mrb[0].mxu0 %v2578
  %v2649 = vpop.f32.mrb[0].mxu0
  %v2650 = vadd.f32 %v2569, %v2649
  %v2651 = vpop.f32.mrb[0].mxu0
  %2652 = vmatprep.mubr.f32.mxu0 0.0
  %2653 = vmatmul.mubr.f32.gmra.mrb[0].mxu0 %v2581
  %v2654 = vpop.f32.mrb[0].mxu0
  %v2655 = vadd.f32 %v2574, %v2654
  %v2656 = vpop.f32.mrb[0].mxu0
  %2657 = vdwg.mxu0
  %v2658 = vld [vmem:[%s15] sm:$0xff]
  %v2659 = vld [vmem:[%s15 + $0x8] sm:$0xff]
  %2661 = vset.pattern.permute.xlu0 0
  %2662 = vperm.xlu0 %2661, %v2658
  %v2663 = vpop.permute.xlu0 %2662
  %2666 = vset.pattern.permute.xlu0 0
  %2667 = vperm.xlu0 %2666, %v2659
  %v2668 = vpop.permute.xlu0 %2667
  %v2670 = vadd.f32 %v2650, %v2663
  %v2671 = vadd.f32 %v2655, %v2668
  %v2672 = vadd.f32 %v2670, %v86
  %v2673 = vadd.f32 %v2671, %v87
  %v2674 = vld [vmem:[%s16] sm:$0xff]
  %v2675 = vld [vmem:[%s16 + $0x8] sm:$0xff]
  %v2676 = vld [vmem:[%s17] sm:$0xff]
  %v2677 = vld [vmem:[%s17 + $0x8] sm:$0xff]
  %2678 = vmatprep.subr.mxu0 0.0
  %2679 = vmatpush1.msra.mxu0 %v2672
  %2680 = vmatprep.subr.mxu0 0.0
  %2681 = vmatpush1.msra.mxu0 %v2673
  %2682 = vmatprep.subr.mxu0 0.0
  %2683 = vmatpush1.msra.mxu0 0.0
  %2684 = vmatprep.subr.mxu0 0.0
  %2685 = vmatpush1.msra.mxu0 0.0
  %2686 = vmatprep.subr.mxu0 0.0
  %2687 = vmatpush1.msra.mxu0 0.0
  %2688 = vmatprep.subr.mxu0 0.0
  %2689 = vmatpush1.msra.mxu0 0.0
  %2690 = vmatprep.subr.mxu0 0.0
  %2691 = vmatpush1.msra.mxu0 0.0
  %2692 = vmatprep.subr.mxu0 0.0
  %2693 = vmatpush1.msra.mxu0 0.0
  %2694 = vmatprep.subr.mxu0 0.0
  %2695 = vmatpush1.msra.mxu0 0.0
  %2696 = vmatprep.subr.mxu0 0.0
  %2697 = vmatpush1.msra.mxu0 0.0
  %2698 = vmatprep.subr.mxu0 0.0
  %2699 = vmatpush1.msra.mxu0 0.0
  %2700 = vmatprep.subr.mxu0 0.0
  %2701 = vmatpush1.msra.mxu0 0.0
  %2702 = vmatprep.subr.mxu0 0.0
  %2703 = vmatpush1.msra.mxu0 0.0
  %2704 = vmatprep.subr.mxu0 0.0
  %2705 = vmatpush1.msra.mxu0 0.0
  %2706 = vmatprep.subr.mxu0 0.0
  %2707 = vmatpush1.msra.mxu0 0.0
  %2708 = vmatprep.subr.mxu0 0.0
  %2709 = vmatpush1.msra.mxu0 0.0
  %2710 = vmatprep.subr.mxu0 0.0
  %2711 = vmatpush1.msra.mxu0 0.0
  %2712 = vmatprep.subr.mxu0 0.0
  %2713 = vmatpush1.msra.mxu0 0.0
  %2714 = vmatprep.subr.mxu0 0.0
  %2715 = vmatpush1.msra.mxu0 0.0
  %2716 = vmatprep.subr.mxu0 0.0
  %2717 = vmatpush1.msra.mxu0 0.0
  %2718 = vmatprep.subr.mxu0 0.0
  %2719 = vmatpush1.msra.mxu0 0.0
  %2720 = vmatprep.subr.mxu0 0.0
  %2721 = vmatpush1.msra.mxu0 0.0
  %2722 = vmatprep.subr.mxu0 0.0
  %2723 = vmatpush1.msra.mxu0 0.0
  %2724 = vmatprep.subr.mxu0 0.0
  %2725 = vmatpush1.msra.mxu0 0.0
  %2726 = vmatprep.subr.mxu0 0.0
  %2727 = vmatpush1.msra.mxu0 0.0
  %2728 = vmatprep.subr.mxu0 0.0
  %2729 = vmatpush1.msra.mxu0 0.0
  %2730 = vmatprep.subr.mxu0 0.0
  %2731 = vmatpush1.msra.mxu0 0.0
  %2732 = vmatprep.subr.mxu0 0.0
  %2733 = vmatpush1.msra.mxu0 0.0
  %2734 = vmatprep.subr.mxu0 0.0
  %2735 = vmatpush1.msra.mxu0 0.0
  %2736 = vmatprep.subr.mxu0 0.0
  %2737 = vmatpush1.msra.mxu0 0.0
  %2738 = vmatprep.subr.mxu0 0.0
  %2739 = vmatpush1.msra.mxu0 0.0
  %2740 = vmatprep.subr.mxu0 0.0
  %2741 = vmatpush1.msra.mxu0 0.0
  %2742 = vmatprep.mubr.f32.mxu0 0.0
  %2743 = vmatmul.mubr.f32.gmra.mrb[0].mxu0 %v94
  %v2744 = vpop.f32.mrb[0].mxu0
  %v2745 = vadd.f32 0.0, %v2744
  %v2746 = vpop.f32.mrb[0].mxu0
  %2747 = vdwg.mxu0
  %v2748 = vlaneseq
  %v2749 = vshrl.u32 %v2748, 7
  %v2750 = vsub.s32 0, %v2749
  %v2751 = vrot.slane %v2745, %v2750
  %v2752 = vsub.f32 %v2672, %v2751
  %v2753 = vsub.f32 %v2673, %v2751
  %v2754 = vmul.f32 %v2752, %v2752
  %v2755 = vmul.f32 %v2753, %v2753
  %2756 = vmatprep.subr.mxu0 0.0
  %2757 = vmatpush1.msra.mxu0 %v2754
  %2758 = vmatprep.subr.mxu0 0.0
  %2759 = vmatpush1.msra.mxu0 %v2755
  %2760 = vmatprep.subr.mxu0 0.0
  %2761 = vmatpush1.msra.mxu0 0.0
  %2762 = vmatprep.subr.mxu0 0.0
  %2763 = vmatpush1.msra.mxu0 0.0
  %2764 = vmatprep.subr.mxu0 0.0
  %2765 = vmatpush1.msra.mxu0 0.0
  %2766 = vmatprep.subr.mxu0 0.0
  %2767 = vmatpush1.msra.mxu0 0.0
  %2768 = vmatprep.subr.mxu0 0.0
  %2769 = vmatpush1.msra.mxu0 0.0
  %2770 = vmatprep.subr.mxu0 0.0
  %2771 = vmatpush1.msra.mxu0 0.0
  %2772 = vmatprep.subr.mxu0 0.0
  %2773 = vmatpush1.msra.mxu0 0.0
  %2774 = vmatprep.subr.mxu0 0.0
  %2775 = vmatpush1.msra.mxu0 0.0
  %2776 = vmatprep.subr.mxu0 0.0
  %2777 = vmatpush1.msra.mxu0 0.0
  %2778 = vmatprep.subr.mxu0 0.0
  %2779 = vmatpush1.msra.mxu0 0.0
  %2780 = vmatprep.subr.mxu0 0.0
  %2781 = vmatpush1.msra.mxu0 0.0
  %2782 = vmatprep.subr.mxu0 0.0
  %2783 = vmatpush1.msra.mxu0 0.0
  %2784 = vmatprep.subr.mxu0 0.0
  %2785 = vmatpush1.msra.mxu0 0.0
  %2786 = vmatprep.subr.mxu0 0.0
  %2787 = vmatpush1.msra.mxu0 0.0
  %2788 = vmatprep.subr.mxu0 0.0
  %2789 = vmatpush1.msra.mxu0 0.0
  %2790 = vmatprep.subr.mxu0 0.0
  %2791 = vmatpush1.msra.mxu0 0.0
  %2792 = vmatprep.subr.mxu0 0.0
  %2793 = vmatpush1.msra.mxu0 0.0
  %2794 = vmatprep.subr.mxu0 0.0
  %2795 = vmatpush1.msra.mxu0 0.0
  %2796 = vmatprep.subr.mxu0 0.0
  %2797 = vmatpush1.msra.mxu0 0.0
  %2798 = vmatprep.subr.mxu0 0.0
  %2799 = vmatpush1.msra.mxu0 0.0
  %2800 = vmatprep.subr.mxu0 0.0
  %2801 = vmatpush1.msra.mxu0 0.0
  %2802 = vmatprep.subr.mxu0 0.0
  %2803 = vmatpush1.msra.mxu0 0.0
  %2804 = vmatprep.subr.mxu0 0.0
  %2805 = vmatpush1.msra.mxu0 0.0
  %2806 = vmatprep.subr.mxu0 0.0
  %2807 = vmatpush1.msra.mxu0 0.0
  %2808 = vmatprep.subr.mxu0 0.0
  %2809 = vmatpush1.msra.mxu0 0.0
  %2810 = vmatprep.subr.mxu0 0.0
  %2811 = vmatpush1.msra.mxu0 0.0
  %2812 = vmatprep.subr.mxu0 0.0
  %2813 = vmatpush1.msra.mxu0 0.0
  %2814 = vmatprep.subr.mxu0 0.0
  %2815 = vmatpush1.msra.mxu0 0.0
  %2816 = vmatprep.subr.mxu0 0.0
  %2817 = vmatpush1.msra.mxu0 0.0
  %2818 = vmatprep.subr.mxu0 0.0
  %2819 = vmatpush1.msra.mxu0 0.0
  %2820 = vmatprep.mubr.f32.mxu0 0.0
  %2821 = vmatmul.mubr.f32.gmra.mrb[0].mxu0 %v94
  %v2822 = vpop.f32.mrb[0].mxu0
  %v2823 = vadd.f32 1e-06, %v2822
  %v2824 = vpop.f32.mrb[0].mxu0
  %2825 = vdwg.mxu0
  %v2826 = vrsqrt.pop %v2823
  %v2827 = vlaneseq
  %v2828 = vshrl.u32 %v2827, 7
  %v2829 = vsub.s32 0, %v2828
  %v2830 = vrot.slane %v2826, %v2829
  %v2831 = vmul.f32 %v2752, %v2830
  %v2832 = vmul.f32 %v2753, %v2830
  %2834 = vset.pattern.permute.xlu0 0
  %2835 = vperm.xlu0 %2834, %v2674
  %v2836 = vpop.permute.xlu0 %2835
  %2839 = vset.pattern.permute.xlu0 0
  %2840 = vperm.xlu0 %2839, %v2675
  %v2841 = vpop.permute.xlu0 %2840
  %v2843 = vmul.f32 %v2831, %v2836
  %v2844 = vmul.f32 %v2832, %v2841
  %2846 = vset.pattern.permute.xlu0 0
  %2847 = vperm.xlu0 %2846, %v2676
  %v2848 = vpop.permute.xlu0 %2847
  %2851 = vset.pattern.permute.xlu0 0
  %2852 = vperm.xlu0 %2851, %v2677
  %v2853 = vpop.permute.xlu0 %2852
  %v2855 = vadd.f32 %v2843, %v2848
  %v2856 = vadd.f32 %v2844, %v2853
  %v2857 = vld [vmem:[%s18] sm:$0xff]
  %v2858 = vld [vmem:[%s18 + $0x8] sm:$0xff]
  %v2859 = vld [vmem:[%s18 + $0x10] sm:$0xff]
  %v2860 = vld [vmem:[%s18 + $0x18] sm:$0xff]
  %v2862 = vsel %vm92, %v2857, 0
  %v2865 = vsel %vm92, %v2858, 0
  %v2868 = vsel %vm92, %v2859, 0
  %v2871 = vsel %vm92, %v2860, 0
  %2873 = vmatprep.subr.mxu0 0.0
  %2874 = vmatpush1.msra.mxu0 %v2855
  %2875 = vmatprep.subr.mxu0 0.0
  %2876 = vmatpush1.msra.mxu0 %v2856
  %2877 = vmatprep.subr.mxu0 0.0
  %2878 = vmatpush1.msra.mxu0 0.0
  %2879 = vmatprep.subr.mxu0 0.0
  %2880 = vmatpush1.msra.mxu0 0.0
  %2881 = vmatprep.subr.mxu0 0.0
  %2882 = vmatpush1.msra.mxu0 0.0
  %2883 = vmatprep.subr.mxu0 0.0
  %2884 = vmatpush1.msra.mxu0 0.0
  %2885 = vmatprep.subr.mxu0 0.0
  %2886 = vmatpush1.msra.mxu0 0.0
  %2887 = vmatprep.subr.mxu0 0.0
  %2888 = vmatpush1.msra.mxu0 0.0
  %2889 = vmatprep.subr.mxu0 0.0
  %2890 = vmatpush1.msra.mxu0 0.0
  %2891 = vmatprep.subr.mxu0 0.0
  %2892 = vmatpush1.msra.mxu0 0.0
  %2893 = vmatprep.subr.mxu0 0.0
  %2894 = vmatpush1.msra.mxu0 0.0
  %2895 = vmatprep.subr.mxu0 0.0
  %2896 = vmatpush1.msra.mxu0 0.0
  %2897 = vmatprep.subr.mxu0 0.0
  %2898 = vmatpush1.msra.mxu0 0.0
  %2899 = vmatprep.subr.mxu0 0.0
  %2900 = vmatpush1.msra.mxu0 0.0
  %2901 = vmatprep.subr.mxu0 0.0
  %2902 = vmatpush1.msra.mxu0 0.0
  %2903 = vmatprep.subr.mxu0 0.0
  %2904 = vmatpush1.msra.mxu0 0.0
  %2905 = vmatprep.subr.mxu0 0.0
  %2906 = vmatpush1.msra.mxu0 0.0
  %2907 = vmatprep.subr.mxu0 0.0
  %2908 = vmatpush1.msra.mxu0 0.0
  %2909 = vmatprep.subr.mxu0 0.0
  %2910 = vmatpush1.msra.mxu0 0.0
  %2911 = vmatprep.subr.mxu0 0.0
  %2912 = vmatpush1.msra.mxu0 0.0
  %2913 = vmatprep.subr.mxu0 0.0
  %2914 = vmatpush1.msra.mxu0 0.0
  %2915 = vmatprep.subr.mxu0 0.0
  %2916 = vmatpush1.msra.mxu0 0.0
  %2917 = vmatprep.subr.mxu0 0.0
  %2918 = vmatpush1.msra.mxu0 0.0
  %2919 = vmatprep.subr.mxu0 0.0
  %2920 = vmatpush1.msra.mxu0 0.0
  %2921 = vmatprep.subr.mxu0 0.0
  %2922 = vmatpush1.msra.mxu0 0.0
  %2923 = vmatprep.subr.mxu0 0.0
  %2924 = vmatpush1.msra.mxu0 0.0
  %2925 = vmatprep.subr.mxu0 0.0
  %2926 = vmatpush1.msra.mxu0 0.0
  %2927 = vmatprep.subr.mxu0 0.0
  %2928 = vmatpush1.msra.mxu0 0.0
  %2929 = vmatprep.subr.mxu0 0.0
  %2930 = vmatpush1.msra.mxu0 0.0
  %2931 = vmatprep.subr.mxu0 0.0
  %2932 = vmatpush1.msra.mxu0 0.0
  %2933 = vmatprep.subr.mxu0 0.0
  %2934 = vmatpush1.msra.mxu0 0.0
  %2935 = vmatprep.subr.mxu0 0.0
  %2936 = vmatpush1.msra.mxu0 0.0
  %2937 = vmatprep.mubr.f32.mxu0 0.0
  %2938 = vmatmul.mubr.f32.gmra.mrb[0].mxu0 %v2862
  %v2939 = vpop.f32.mrb[0].mxu0
  %v2940 = vadd.f32 0.0, %v2939
  %v2941 = vpop.f32.mrb[0].mxu0
  %2942 = vmatprep.mubr.f32.mxu0 0.0
  %2943 = vmatmul.mubr.f32.gmra.mrb[0].mxu0 %v2865
  %v2944 = vpop.f32.mrb[0].mxu0
  %v2945 = vadd.f32 0.0, %v2944
  %v2946 = vpop.f32.mrb[0].mxu0
  %2947 = vmatprep.mubr.f32.mxu0 0.0
  %2948 = vmatmul.mubr.f32.gmra.mrb[0].mxu0 %v2868
  %v2949 = vpop.f32.mrb[0].mxu0
  %v2950 = vadd.f32 0.0, %v2949
  %v2951 = vpop.f32.mrb[0].mxu0
  %2952 = vmatprep.mubr.f32.mxu0 0.0
  %2953 = vmatmul.mubr.f32.gmra.mrb[0].mxu0 %v2871
  %v2954 = vpop.f32.mrb[0].mxu0
  %v2955 = vadd.f32 0.0, %v2954
  %v2956 = vpop.f32.mrb[0].mxu0
  %2957 = vdwg.mxu0
  %v2958 = vld [vmem:[%s26] sm:$0xff]
  %v2959 = vld [vmem:[%s26 + $0x8] sm:$0xff]
  %v2960 = vld [vmem:[%s26 + $0x10] sm:$0xff]
  %v2961 = vld [vmem:[%s26 + $0x18] sm:$0xff]
  %v2962 = vld [vmem:[%s26 + $0x20] sm:$0xff]
  %v2963 = vld [vmem:[%s26 + $0x28] sm:$0xff]
  %v2964 = vld [vmem:[%s26 + $0x30] sm:$0xff]
  %v2965 = vld [vmem:[%s26 + $0x38] sm:$0xff]
  %v2966 = vld [vmem:[%s26 + $0x40] sm:$0xff]
  %v2967 = vld [vmem:[%s26 + $0x48] sm:$0xff]
  %v2968 = vld [vmem:[%s26 + $0x50] sm:$0xff]
  %v2969 = vld [vmem:[%s26 + $0x58] sm:$0xff]
  %v2970 = vld [vmem:[%s26 + $0x60] sm:$0xff]
  %v2971 = vld [vmem:[%s26 + $0x68] sm:$0xff]
  %v2972 = vld [vmem:[%s26 + $0x70] sm:$0xff]
  %v2973 = vld [vmem:[%s26 + $0x78] sm:$0xff]
  %s2974 = scalar_lea.vmem %s18, 32
  %v2975 = vld [vmem:[%s2974] sm:$0xff]
  %v2976 = vld [vmem:[%s2974 + $0x8] sm:$0xff]
  %v2977 = vld [vmem:[%s2974 + $0x10] sm:$0xff]
  %v2978 = vld [vmem:[%s2974 + $0x18] sm:$0xff]
  %v2980 = vsel %vm92, %v2975, 0
  %v2983 = vsel %vm92, %v2976, 0
  %v2986 = vsel %vm92, %v2977, 0
  %v2989 = vsel %vm92, %v2978, 0
  %2991 = vmatprep.subr.mxu0 0.0
  %2992 = vmatpush1.msra.mxu0 %v2855
  %2993 = vmatprep.subr.mxu0 0.0
  %2994 = vmatpush1.msra.mxu0 %v2856
  %2995 = vmatprep.subr.mxu0 0.0
  %2996 = vmatpush1.msra.mxu0 0.0
  %2997 = vmatprep.subr.mxu0 0.0
  %2998 = vmatpush1.msra.mxu0 0.0
  %2999 = vmatprep.subr.mxu0 0.0
  %3000 = vmatpush1.msra.mxu0 0.0
  %3001 = vmatprep.subr.mxu0 0.0
  %3002 = vmatpush1.msra.mxu0 0.0
  %3003 = vmatprep.subr.mxu0 0.0
  %3004 = vmatpush1.msra.mxu0 0.0
  %3005 = vmatprep.subr.mxu0 0.0
  %3006 = vmatpush1.msra.mxu0 0.0
  %3007 = vmatprep.subr.mxu0 0.0
  %3008 = vmatpush1.msra.mxu0 0.0
  %3009 = vmatprep.subr.mxu0 0.0
  %3010 = vmatpush1.msra.mxu0 0.0
  %3011 = vmatprep.subr.mxu0 0.0
  %3012 = vmatpush1.msra.mxu0 0.0
  %3013 = vmatprep.subr.mxu0 0.0
  %3014 = vmatpush1.msra.mxu0 0.0
  %3015 = vmatprep.subr.mxu0 0.0
  %3016 = vmatpush1.msra.mxu0 0.0
  %3017 = vmatprep.subr.mxu0 0.0
  %3018 = vmatpush1.msra.mxu0 0.0
  %3019 = vmatprep.subr.mxu0 0.0
  %3020 = vmatpush1.msra.mxu0 0.0
  %3021 = vmatprep.subr.mxu0 0.0
  %3022 = vmatpush1.msra.mxu0 0.0
  %3023 = vmatprep.subr.mxu0 0.0
  %3024 = vmatpush1.msra.mxu0 0.0
  %3025 = vmatprep.subr.mxu0 0.0
  %3026 = vmatpush1.msra.mxu0 0.0
  %3027 = vmatprep.subr.mxu0 0.0
  %3028 = vmatpush1.msra.mxu0 0.0
  %3029 = vmatprep.subr.mxu0 0.0
  %3030 = vmatpush1.msra.mxu0 0.0
  %3031 = vmatprep.subr.mxu0 0.0
  %3032 = vmatpush1.msra.mxu0 0.0
  %3033 = vmatprep.subr.mxu0 0.0
  %3034 = vmatpush1.msra.mxu0 0.0
  %3035 = vmatprep.subr.mxu0 0.0
  %3036 = vmatpush1.msra.mxu0 0.0
  %3037 = vmatprep.subr.mxu0 0.0
  %3038 = vmatpush1.msra.mxu0 0.0
  %3039 = vmatprep.subr.mxu0 0.0
  %3040 = vmatpush1.msra.mxu0 0.0
  %3041 = vmatprep.subr.mxu0 0.0
  %3042 = vmatpush1.msra.mxu0 0.0
  %3043 = vmatprep.subr.mxu0 0.0
  %3044 = vmatpush1.msra.mxu0 0.0
  %3045 = vmatprep.subr.mxu0 0.0
  %3046 = vmatpush1.msra.mxu0 0.0
  %3047 = vmatprep.subr.mxu0 0.0
  %3048 = vmatpush1.msra.mxu0 0.0
  %3049 = vmatprep.subr.mxu0 0.0
  %3050 = vmatpush1.msra.mxu0 0.0
  %3051 = vmatprep.subr.mxu0 0.0
  %3052 = vmatpush1.msra.mxu0 0.0
  %3053 = vmatprep.subr.mxu0 0.0
  %3054 = vmatpush1.msra.mxu0 0.0
  %3055 = vmatprep.mubr.f32.mxu0 0.0
  %3056 = vmatmul.mubr.f32.gmra.mrb[0].mxu0 %v2980
  %v3057 = vpop.f32.mrb[0].mxu0
  %v3058 = vadd.f32 0.0, %v3057
  %v3059 = vpop.f32.mrb[0].mxu0
  %3060 = vmatprep.mubr.f32.mxu0 0.0
  %3061 = vmatmul.mubr.f32.gmra.mrb[0].mxu0 %v2983
  %v3062 = vpop.f32.mrb[0].mxu0
  %v3063 = vadd.f32 0.0, %v3062
  %v3064 = vpop.f32.mrb[0].mxu0
  %3065 = vmatprep.mubr.f32.mxu0 0.0
  %3066 = vmatmul.mubr.f32.gmra.mrb[0].mxu0 %v2986
  %v3067 = vpop.f32.mrb[0].mxu0
  %v3068 = vadd.f32 0.0, %v3067
  %v3069 = vpop.f32.mrb[0].mxu0
  %3070 = vmatprep.mubr.f32.mxu0 0.0
  %3071 = vmatmul.mubr.f32.gmra.mrb[0].mxu0 %v2989
  %v3072 = vpop.f32.mrb[0].mxu0
  %v3073 = vadd.f32 0.0, %v3072
  %v3074 = vpop.f32.mrb[0].mxu0
  %3075 = vdwg.mxu0
  %s3076 = scalar_lea.vmem %s26, 128
  %v3077 = vld [vmem:[%s3076] sm:$0xff]
  %v3078 = vld [vmem:[%s3076 + $0x8] sm:$0xff]
  %v3079 = vld [vmem:[%s3076 + $0x10] sm:$0xff]
  %v3080 = vld [vmem:[%s3076 + $0x18] sm:$0xff]
  %v3081 = vld [vmem:[%s3076 + $0x20] sm:$0xff]
  %v3082 = vld [vmem:[%s3076 + $0x28] sm:$0xff]
  %v3083 = vld [vmem:[%s3076 + $0x30] sm:$0xff]
  %v3084 = vld [vmem:[%s3076 + $0x38] sm:$0xff]
  %v3085 = vld [vmem:[%s3076 + $0x40] sm:$0xff]
  %v3086 = vld [vmem:[%s3076 + $0x48] sm:$0xff]
  %v3087 = vld [vmem:[%s3076 + $0x50] sm:$0xff]
  %v3088 = vld [vmem:[%s3076 + $0x58] sm:$0xff]
  %v3089 = vld [vmem:[%s3076 + $0x60] sm:$0xff]
  %v3090 = vld [vmem:[%s3076 + $0x68] sm:$0xff]
  %v3091 = vld [vmem:[%s3076 + $0x70] sm:$0xff]
  %v3092 = vld [vmem:[%s3076 + $0x78] sm:$0xff]
  %3093 = vmatprep.subr.mxu0 0.0
  %3094 = vmatpush1.msra.mxu0 %v3077
  %3095 = vmatprep.subr.mxu0 0.0
  %3096 = vmatpush1.msra.mxu0 %v3078
  %3097 = vmatprep.subr.mxu0 0.0
  %3098 = vmatpush1.msra.mxu0 %v3079
  %3099 = vmatprep.subr.mxu0 0.0
  %3100 = vmatpush1.msra.mxu0 %v3080
  %3101 = vmatprep.subr.mxu0 0.0
  %3102 = vmatpush1.msra.mxu0 %v3081
  %3103 = vmatprep.subr.mxu0 0.0
  %3104 = vmatpush1.msra.mxu0 %v3082
  %3105 = vmatprep.subr.mxu0 0.0
  %3106 = vmatpush1.msra.mxu0 %v3083
  %3107 = vmatprep.subr.mxu0 0.0
  %3108 = vmatpush1.msra.mxu0 %v3084
  %3109 = vmatprep.subr.mxu0 0.0
  %3110 = vmatpush1.msra.mxu0 %v3085
  %3111 = vmatprep.subr.mxu0 0.0
  %3112 = vmatpush1.msra.mxu0 %v3086
  %3113 = vmatprep.subr.mxu0 0.0
  %3114 = vmatpush1.msra.mxu0 %v3087
  %3115 = vmatprep.subr.mxu0 0.0
  %3116 = vmatpush1.msra.mxu0 %v3088
  %3117 = vmatprep.subr.mxu0 0.0
  %3118 = vmatpush1.msra.mxu0 %v3089
  %3119 = vmatprep.subr.mxu0 0.0
  %3120 = vmatpush1.msra.mxu0 %v3090
  %3121 = vmatprep.subr.mxu0 0.0
  %3122 = vmatpush1.msra.mxu0 %v3091
  %3123 = vmatprep.subr.mxu0 0.0
  %3124 = vmatpush1.msra.mxu0 %v3092
  %3125 = vmatprep.subr.mxu0 0.0
  %3126 = vmatpush1.msra.mxu0 0.0
  %3127 = vmatprep.subr.mxu0 0.0
  %3128 = vmatpush1.msra.mxu0 0.0
  %3129 = vmatprep.subr.mxu0 0.0
  %3130 = vmatpush1.msra.mxu0 0.0
  %3131 = vmatprep.subr.mxu0 0.0
  %3132 = vmatpush1.msra.mxu0 0.0
  %3133 = vmatprep.subr.mxu0 0.0
  %3134 = vmatpush1.msra.mxu0 0.0
  %3135 = vmatprep.subr.mxu0 0.0
  %3136 = vmatpush1.msra.mxu0 0.0
  %3137 = vmatprep.subr.mxu0 0.0
  %3138 = vmatpush1.msra.mxu0 0.0
  %3139 = vmatprep.subr.mxu0 0.0
  %3140 = vmatpush1.msra.mxu0 0.0
  %3141 = vmatprep.subr.mxu0 0.0
  %3142 = vmatpush1.msra.mxu0 0.0
  %3143 = vmatprep.subr.mxu0 0.0
  %3144 = vmatpush1.msra.mxu0 0.0
  %3145 = vmatprep.subr.mxu0 0.0
  %3146 = vmatpush1.msra.mxu0 0.0
  %3147 = vmatprep.subr.mxu0 0.0
  %3148 = vmatpush1.msra.mxu0 0.0
  %3149 = vmatprep.subr.mxu0 0.0
  %3150 = vmatpush1.msra.mxu0 0.0
  %3151 = vmatprep.subr.mxu0 0.0
  %3152 = vmatpush1.msra.mxu0 0.0
  %3153 = vmatprep.subr.mxu0 0.0
  %3154 = vmatpush1.msra.mxu0 0.0
  %3155 = vmatprep.subr.mxu0 0.0
  %3156 = vmatpush1.msra.mxu0 0.0
  %3157 = vmatprep.mubr.f32.mxu0 0.0
  %3158 = vmatmul.mubr.f32.gmra.mrb[0].mxu0 %v3058
  %v3159 = vpop.f32.mrb[0].mxu0
  %v3160 = vadd.f32 0.0, %v3159
  %v3161 = vpop.f32.mrb[0].mxu0
  %3162 = vmatprep.mubr.f32.mxu0 0.0
  %3163 = vmatmul.mubr.f32.gmra.mrb[0].mxu0 %v3063
  %v3164 = vpop.f32.mrb[0].mxu0
  %v3165 = vadd.f32 0.0, %v3164
  %v3166 = vpop.f32.mrb[0].mxu0
  %3167 = vmatprep.mubr.f32.mxu0 0.0
  %3168 = vmatmul.mubr.f32.gmra.mrb[0].mxu0 %v3068
  %v3169 = vpop.f32.mrb[0].mxu0
  %v3170 = vadd.f32 0.0, %v3169
  %v3171 = vpop.f32.mrb[0].mxu0
  %3172 = vmatprep.mubr.f32.mxu0 0.0
  %3173 = vmatmul.mubr.f32.gmra.mrb[0].mxu0 %v3073
  %v3174 = vpop.f32.mrb[0].mxu0
  %v3175 = vadd.f32 0.0, %v3174
  %v3176 = vpop.f32.mrb[0].mxu0
  %3177 = vdwg.mxu0
  %3178 = vmatprep.subr.mxu0 0.0
  %3179 = vmatpush1.msra.mxu0 %v2958
  %3180 = vmatprep.subr.mxu0 0.0
  %3181 = vmatpush1.msra.mxu0 %v2959
  %3182 = vmatprep.subr.mxu0 0.0
  %3183 = vmatpush1.msra.mxu0 %v2960
  %3184 = vmatprep.subr.mxu0 0.0
  %3185 = vmatpush1.msra.mxu0 %v2961
  %3186 = vmatprep.subr.mxu0 0.0
  %3187 = vmatpush1.msra.mxu0 %v2962
  %3188 = vmatprep.subr.mxu0 0.0
  %3189 = vmatpush1.msra.mxu0 %v2963
  %3190 = vmatprep.subr.mxu0 0.0
  %3191 = vmatpush1.msra.mxu0 %v2964
  %3192 = vmatprep.subr.mxu0 0.0
  %3193 = vmatpush1.msra.mxu0 %v2965
  %3194 = vmatprep.subr.mxu0 0.0
  %3195 = vmatpush1.msra.mxu0 %v2966
  %3196 = vmatprep.subr.mxu0 0.0
  %3197 = vmatpush1.msra.mxu0 %v2967
  %3198 = vmatprep.subr.mxu0 0.0
  %3199 = vmatpush1.msra.mxu0 %v2968
  %3200 = vmatprep.subr.mxu0 0.0
  %3201 = vmatpush1.msra.mxu0 %v2969
  %3202 = vmatprep.subr.mxu0 0.0
  %3203 = vmatpush1.msra.mxu0 %v2970
  %3204 = vmatprep.subr.mxu0 0.0
  %3205 = vmatpush1.msra.mxu0 %v2971
  %3206 = vmatprep.subr.mxu0 0.0
  %3207 = vmatpush1.msra.mxu0 %v2972
  %3208 = vmatprep.subr.mxu0 0.0
  %3209 = vmatpush1.msra.mxu0 %v2973
  %3210 = vmatprep.subr.mxu0 0.0
  %3211 = vmatpush1.msra.mxu0 0.0
  %3212 = vmatprep.subr.mxu0 0.0
  %3213 = vmatpush1.msra.mxu0 0.0
  %3214 = vmatprep.subr.mxu0 0.0
  %3215 = vmatpush1.msra.mxu0 0.0
  %3216 = vmatprep.subr.mxu0 0.0
  %3217 = vmatpush1.msra.mxu0 0.0
  %3218 = vmatprep.subr.mxu0 0.0
  %3219 = vmatpush1.msra.mxu0 0.0
  %3220 = vmatprep.subr.mxu0 0.0
  %3221 = vmatpush1.msra.mxu0 0.0
  %3222 = vmatprep.subr.mxu0 0.0
  %3223 = vmatpush1.msra.mxu0 0.0
  %3224 = vmatprep.subr.mxu0 0.0
  %3225 = vmatpush1.msra.mxu0 0.0
  %3226 = vmatprep.subr.mxu0 0.0
  %3227 = vmatpush1.msra.mxu0 0.0
  %3228 = vmatprep.subr.mxu0 0.0
  %3229 = vmatpush1.msra.mxu0 0.0
  %3230 = vmatprep.subr.mxu0 0.0
  %3231 = vmatpush1.msra.mxu0 0.0
  %3232 = vmatprep.subr.mxu0 0.0
  %3233 = vmatpush1.msra.mxu0 0.0
  %3234 = vmatprep.subr.mxu0 0.0
  %3235 = vmatpush1.msra.mxu0 0.0
  %3236 = vmatprep.subr.mxu0 0.0
  %3237 = vmatpush1.msra.mxu0 0.0
  %3238 = vmatprep.subr.mxu0 0.0
  %3239 = vmatpush1.msra.mxu0 0.0
  %3240 = vmatprep.subr.mxu0 0.0
  %3241 = vmatpush1.msra.mxu0 0.0
  %3242 = vmatprep.mubr.f32.mxu0 0.0
  %3243 = vmatmul.mubr.f32.gmra.mrb[0].mxu0 %v2940
  %v3244 = vpop.f32.mrb[0].mxu0
  %v3245 = vadd.f32 %v3160, %v3244
  %v3246 = vpop.f32.mrb[0].mxu0
  %3247 = vmatprep.mubr.f32.mxu0 0.0
  %3248 = vmatmul.mubr.f32.gmra.mrb[0].mxu0 %v2945
  %v3249 = vpop.f32.mrb[0].mxu0
  %v3250 = vadd.f32 %v3165, %v3249
  %v3251 = vpop.f32.mrb[0].mxu0
  %3252 = vmatprep.mubr.f32.mxu0 0.0
  %3253 = vmatmul.mubr.f32.gmra.mrb[0].mxu0 %v2950
  %v3254 = vpop.f32.mrb[0].mxu0
  %v3255 = vadd.f32 %v3170, %v3254
  %v3256 = vpop.f32.mrb[0].mxu0
  %3257 = vmatprep.mubr.f32.mxu0 0.0
  %3258 = vmatmul.mubr.f32.gmra.mrb[0].mxu0 %v2955
  %v3259 = vpop.f32.mrb[0].mxu0
  %v3260 = vadd.f32 %v3175, %v3259
  %v3261 = vpop.f32.mrb[0].mxu0
  %3262 = vdwg.mxu0
  %s3263 = scalar_lea.vmem %s18, 64
  %v3264 = vld [vmem:[%s3263] sm:$0xff]
  %v3265 = vld [vmem:[%s3263 + $0x8] sm:$0xff]
  %v3266 = vld [vmem:[%s3263 + $0x10] sm:$0xff]
  %v3267 = vld [vmem:[%s3263 + $0x18] sm:$0xff]
  %v3269 = vsel %vm92, %v3264, 0
  %v3272 = vsel %vm92, %v3265, 0
  %v3275 = vsel %vm92, %v3266, 0
  %v3278 = vsel %vm92, %v3267, 0
  %3280 = vmatprep.subr.mxu0 0.0
  %3281 = vmatpush1.msra.mxu0 %v2855
  %3282 = vmatprep.subr.mxu0 0.0
  %3283 = vmatpush1.msra.mxu0 %v2856
  %3284 = vmatprep.subr.mxu0 0.0
  %3285 = vmatpush1.msra.mxu0 0.0
  %3286 = vmatprep.subr.mxu0 0.0
  %3287 = vmatpush1.msra.mxu0 0.0
  %3288 = vmatprep.subr.mxu0 0.0
  %3289 = vmatpush1.msra.mxu0 0.0
  %3290 = vmatprep.subr.mxu0 0.0
  %3291 = vmatpush1.msra.mxu0 0.0
  %3292 = vmatprep.subr.mxu0 0.0
  %3293 = vmatpush1.msra.mxu0 0.0
  %3294 = vmatprep.subr.mxu0 0.0
  %3295 = vmatpush1.msra.mxu0 0.0
  %3296 = vmatprep.subr.mxu0 0.0
  %3297 = vmatpush1.msra.mxu0 0.0
  %3298 = vmatprep.subr.mxu0 0.0
  %3299 = vmatpush1.msra.mxu0 0.0
  %3300 = vmatprep.subr.mxu0 0.0
  %3301 = vmatpush1.msra.mxu0 0.0
  %3302 = vmatprep.subr.mxu0 0.0
  %3303 = vmatpush1.msra.mxu0 0.0
  %3304 = vmatprep.subr.mxu0 0.0
  %3305 = vmatpush1.msra.mxu0 0.0
  %3306 = vmatprep.subr.mxu0 0.0
  %3307 = vmatpush1.msra.mxu0 0.0
  %3308 = vmatprep.subr.mxu0 0.0
  %3309 = vmatpush1.msra.mxu0 0.0
  %3310 = vmatprep.subr.mxu0 0.0
  %3311 = vmatpush1.msra.mxu0 0.0
  %3312 = vmatprep.subr.mxu0 0.0
  %3313 = vmatpush1.msra.mxu0 0.0
  %3314 = vmatprep.subr.mxu0 0.0
  %3315 = vmatpush1.msra.mxu0 0.0
  %3316 = vmatprep.subr.mxu0 0.0
  %3317 = vmatpush1.msra.mxu0 0.0
  %3318 = vmatprep.subr.mxu0 0.0
  %3319 = vmatpush1.msra.mxu0 0.0
  %3320 = vmatprep.subr.mxu0 0.0
  %3321 = vmatpush1.msra.mxu0 0.0
  %3322 = vmatprep.subr.mxu0 0.0
  %3323 = vmatpush1.msra.mxu0 0.0
  %3324 = vmatprep.subr.mxu0 0.0
  %3325 = vmatpush1.msra.mxu0 0.0
  %3326 = vmatprep.subr.mxu0 0.0
  %3327 = vmatpush1.msra.mxu0 0.0
  %3328 = vmatprep.subr.mxu0 0.0
  %3329 = vmatpush1.msra.mxu0 0.0
  %3330 = vmatprep.subr.mxu0 0.0
  %3331 = vmatpush1.msra.mxu0 0.0
  %3332 = vmatprep.subr.mxu0 0.0
  %3333 = vmatpush1.msra.mxu0 0.0
  %3334 = vmatprep.subr.mxu0 0.0
  %3335 = vmatpush1.msra.mxu0 0.0
  %3336 = vmatprep.subr.mxu0 0.0
  %3337 = vmatpush1.msra.mxu0 0.0
  %3338 = vmatprep.subr.mxu0 0.0
  %3339 = vmatpush1.msra.mxu0 0.0
  %3340 = vmatprep.subr.mxu0 0.0
  %3341 = vmatpush1.msra.mxu0 0.0
  %3342 = vmatprep.subr.mxu0 0.0
  %3343 = vmatpush1.msra.mxu0 0.0
  %3344 = vmatprep.mubr.f32.mxu0 0.0
  %3345 = vmatmul.mubr.f32.gmra.mrb[0].mxu0 %v3269
  %v3346 = vpop.f32.mrb[0].mxu0
  %v3347 = vadd.f32 0.0, %v3346
  %v3348 = vpop.f32.mrb[0].mxu0
  %3349 = vmatprep.mubr.f32.mxu0 0.0
  %3350 = vmatmul.mubr.f32.gmra.mrb[0].mxu0 %v3272
  %v3351 = vpop.f32.mrb[0].mxu0
  %v3352 = vadd.f32 0.0, %v3351
  %v3353 = vpop.f32.mrb[0].mxu0
  %3354 = vmatprep.mubr.f32.mxu0 0.0
  %3355 = vmatmul.mubr.f32.gmra.mrb[0].mxu0 %v3275
  %v3356 = vpop.f32.mrb[0].mxu0
  %v3357 = vadd.f32 0.0, %v3356
  %v3358 = vpop.f32.mrb[0].mxu0
  %3359 = vmatprep.mubr.f32.mxu0 0.0
  %3360 = vmatmul.mubr.f32.gmra.mrb[0].mxu0 %v3278
  %v3361 = vpop.f32.mrb[0].mxu0
  %v3362 = vadd.f32 0.0, %v3361
  %v3363 = vpop.f32.mrb[0].mxu0
  %3364 = vdwg.mxu0
  %s3365 = scalar_lea.vmem %s26, 256
  %v3366 = vld [vmem:[%s3365] sm:$0xff]
  %v3367 = vld [vmem:[%s3365 + $0x8] sm:$0xff]
  %v3368 = vld [vmem:[%s3365 + $0x10] sm:$0xff]
  %v3369 = vld [vmem:[%s3365 + $0x18] sm:$0xff]
  %v3370 = vld [vmem:[%s3365 + $0x20] sm:$0xff]
  %v3371 = vld [vmem:[%s3365 + $0x28] sm:$0xff]
  %v3372 = vld [vmem:[%s3365 + $0x30] sm:$0xff]
  %v3373 = vld [vmem:[%s3365 + $0x38] sm:$0xff]
  %v3374 = vld [vmem:[%s3365 + $0x40] sm:$0xff]
  %v3375 = vld [vmem:[%s3365 + $0x48] sm:$0xff]
  %v3376 = vld [vmem:[%s3365 + $0x50] sm:$0xff]
  %v3377 = vld [vmem:[%s3365 + $0x58] sm:$0xff]
  %v3378 = vld [vmem:[%s3365 + $0x60] sm:$0xff]
  %v3379 = vld [vmem:[%s3365 + $0x68] sm:$0xff]
  %v3380 = vld [vmem:[%s3365 + $0x70] sm:$0xff]
  %v3381 = vld [vmem:[%s3365 + $0x78] sm:$0xff]
  %3382 = vmatprep.subr.mxu0 0.0
  %3383 = vmatpush1.msra.mxu0 %v3366
  %3384 = vmatprep.subr.mxu0 0.0
  %3385 = vmatpush1.msra.mxu0 %v3367
  %3386 = vmatprep.subr.mxu0 0.0
  %3387 = vmatpush1.msra.mxu0 %v3368
  %3388 = vmatprep.subr.mxu0 0.0
  %3389 = vmatpush1.msra.mxu0 %v3369
  %3390 = vmatprep.subr.mxu0 0.0
  %3391 = vmatpush1.msra.mxu0 %v3370
  %3392 = vmatprep.subr.mxu0 0.0
  %3393 = vmatpush1.msra.mxu0 %v3371
  %3394 = vmatprep.subr.mxu0 0.0
  %3395 = vmatpush1.msra.mxu0 %v3372
  %3396 = vmatprep.subr.mxu0 0.0
  %3397 = vmatpush1.msra.mxu0 %v3373
  %3398 = vmatprep.subr.mxu0 0.0
  %3399 = vmatpush1.msra.mxu0 %v3374
  %3400 = vmatprep.subr.mxu0 0.0
  %3401 = vmatpush1.msra.mxu0 %v3375
  %3402 = vmatprep.subr.mxu0 0.0
  %3403 = vmatpush1.msra.mxu0 %v3376
  %3404 = vmatprep.subr.mxu0 0.0
  %3405 = vmatpush1.msra.mxu0 %v3377
  %3406 = vmatprep.subr.mxu0 0.0
  %3407 = vmatpush1.msra.mxu0 %v3378
  %3408 = vmatprep.subr.mxu0 0.0
  %3409 = vmatpush1.msra.mxu0 %v3379
  %3410 = vmatprep.subr.mxu0 0.0
  %3411 = vmatpush1.msra.mxu0 %v3380
  %3412 = vmatprep.subr.mxu0 0.0
  %3413 = vmatpush1.msra.mxu0 %v3381
  %3414 = vmatprep.subr.mxu0 0.0
  %3415 = vmatpush1.msra.mxu0 0.0
  %3416 = vmatprep.subr.mxu0 0.0
  %3417 = vmatpush1.msra.mxu0 0.0
  %3418 = vmatprep.subr.mxu0 0.0
  %3419 = vmatpush1.msra.mxu0 0.0
  %3420 = vmatprep.subr.mxu0 0.0
  %3421 = vmatpush1.msra.mxu0 0.0
  %3422 = vmatprep.subr.mxu0 0.0
  %3423 = vmatpush1.msra.mxu0 0.0
  %3424 = vmatprep.subr.mxu0 0.0
  %3425 = vmatpush1.msra.mxu0 0.0
  %3426 = vmatprep.subr.mxu0 0.0
  %3427 = vmatpush1.msra.mxu0 0.0
  %3428 = vmatprep.subr.mxu0 0.0
  %3429 = vmatpush1.msra.mxu0 0.0
  %3430 = vmatprep.subr.mxu0 0.0
  %3431 = vmatpush1.msra.mxu0 0.0
  %3432 = vmatprep.subr.mxu0 0.0
  %3433 = vmatpush1.msra.mxu0 0.0
  %3434 = vmatprep.subr.mxu0 0.0
  %3435 = vmatpush1.msra.mxu0 0.0
  %3436 = vmatprep.subr.mxu0 0.0
  %3437 = vmatpush1.msra.mxu0 0.0
  %3438 = vmatprep.subr.mxu0 0.0
  %3439 = vmatpush1.msra.mxu0 0.0
  %3440 = vmatprep.subr.mxu0 0.0
  %3441 = vmatpush1.msra.mxu0 0.0
  %3442 = vmatprep.subr.mxu0 0.0
  %3443 = vmatpush1.msra.mxu0 0.0
  %3444 = vmatprep.subr.mxu0 0.0
  %3445 = vmatpush1.msra.mxu0 0.0
  %3446 = vmatprep.mubr.f32.mxu0 0.0
  %3447 = vmatmul.mubr.f32.gmra.mrb[0].mxu0 %v3347
  %v3448 = vpop.f32.mrb[0].mxu0
  %v3449 = vadd.f32 0.0, %v3448
  %v3450 = vpop.f32.mrb[0].mxu0
  %3451 = vmatprep.mubr.f32.mxu0 0.0
  %3452 = vmatmul.mubr.f32.gmra.mrb[0].mxu0 %v3352
  %v3453 = vpop.f32.mrb[0].mxu0
  %v3454 = vadd.f32 0.0, %v3453
  %v3455 = vpop.f32.mrb[0].mxu0
  %3456 = vmatprep.mubr.f32.mxu0 0.0
  %3457 = vmatmul.mubr.f32.gmra.mrb[0].mxu0 %v3357
  %v3458 = vpop.f32.mrb[0].mxu0
  %v3459 = vadd.f32 0.0, %v3458
  %v3460 = vpop.f32.mrb[0].mxu0
  %3461 = vmatprep.mubr.f32.mxu0 0.0
  %3462 = vmatmul.mubr.f32.gmra.mrb[0].mxu0 %v3362
  %v3463 = vpop.f32.mrb[0].mxu0
  %v3464 = vadd.f32 0.0, %v3463
  %v3465 = vpop.f32.mrb[0].mxu0
  %3466 = vdwg.mxu0
  %v3467 = vadd.f32 %v3245, %v3449
  %v3468 = vadd.f32 %v3250, %v3454
  %v3469 = vadd.f32 %v3255, %v3459
  %v3470 = vadd.f32 %v3260, %v3464
  %s3471 = scalar_lea.vmem %s18, 96
  %v3472 = vld [vmem:[%s3471] sm:$0xff]
  %v3473 = vld [vmem:[%s3471 + $0x8] sm:$0xff]
  %v3474 = vld [vmem:[%s3471 + $0x10] sm:$0xff]
  %v3475 = vld [vmem:[%s3471 + $0x18] sm:$0xff]
  %v3477 = vsel %vm92, %v3472, 0
  %v3480 = vsel %vm92, %v3473, 0
  %v3483 = vsel %vm92, %v3474, 0
  %v3486 = vsel %vm92, %v3475, 0
  %3488 = vmatprep.subr.mxu0 0.0
  %3489 = vmatpush1.msra.mxu0 %v2855
  %3490 = vmatprep.subr.mxu0 0.0
  %3491 = vmatpush1.msra.mxu0 %v2856
  %3492 = vmatprep.subr.mxu0 0.0
  %3493 = vmatpush1.msra.mxu0 0.0
  %3494 = vmatprep.subr.mxu0 0.0
  %3495 = vmatpush1.msra.mxu0 0.0
  %3496 = vmatprep.subr.mxu0 0.0
  %3497 = vmatpush1.msra.mxu0 0.0
  %3498 = vmatprep.subr.mxu0 0.0
  %3499 = vmatpush1.msra.mxu0 0.0
  %3500 = vmatprep.subr.mxu0 0.0
  %3501 = vmatpush1.msra.mxu0 0.0
  %3502 = vmatprep.subr.mxu0 0.0
  %3503 = vmatpush1.msra.mxu0 0.0
  %3504 = vmatprep.subr.mxu0 0.0
  %3505 = vmatpush1.msra.mxu0 0.0
  %3506 = vmatprep.subr.mxu0 0.0
  %3507 = vmatpush1.msra.mxu0 0.0
  %3508 = vmatprep.subr.mxu0 0.0
  %3509 = vmatpush1.msra.mxu0 0.0
  %3510 = vmatprep.subr.mxu0 0.0
  %3511 = vmatpush1.msra.mxu0 0.0
  %3512 = vmatprep.subr.mxu0 0.0
  %3513 = vmatpush1.msra.mxu0 0.0
  %3514 = vmatprep.subr.mxu0 0.0
  %3515 = vmatpush1.msra.mxu0 0.0
  %3516 = vmatprep.subr.mxu0 0.0
  %3517 = vmatpush1.msra.mxu0 0.0
  %3518 = vmatprep.subr.mxu0 0.0
  %3519 = vmatpush1.msra.mxu0 0.0
  %3520 = vmatprep.subr.mxu0 0.0
  %3521 = vmatpush1.msra.mxu0 0.0
  %3522 = vmatprep.subr.mxu0 0.0
  %3523 = vmatpush1.msra.mxu0 0.0
  %3524 = vmatprep.subr.mxu0 0.0
  %3525 = vmatpush1.msra.mxu0 0.0
  %3526 = vmatprep.subr.mxu0 0.0
  %3527 = vmatpush1.msra.mxu0 0.0
  %3528 = vmatprep.subr.mxu0 0.0
  %3529 = vmatpush1.msra.mxu0 0.0
  %3530 = vmatprep.subr.mxu0 0.0
  %3531 = vmatpush1.msra.mxu0 0.0
  %3532 = vmatprep.subr.mxu0 0.0
  %3533 = vmatpush1.msra.mxu0 0.0
  %3534 = vmatprep.subr.mxu0 0.0
  %3535 = vmatpush1.msra.mxu0 0.0
  %3536 = vmatprep.subr.mxu0 0.0
  %3537 = vmatpush1.msra.mxu0 0.0
  %3538 = vmatprep.subr.mxu0 0.0
  %3539 = vmatpush1.msra.mxu0 0.0
  %3540 = vmatprep.subr.mxu0 0.0
  %3541 = vmatpush1.msra.mxu0 0.0
  %3542 = vmatprep.subr.mxu0 0.0
  %3543 = vmatpush1.msra.mxu0 0.0
  %3544 = vmatprep.subr.mxu0 0.0
  %3545 = vmatpush1.msra.mxu0 0.0
  %3546 = vmatprep.subr.mxu0 0.0
  %3547 = vmatpush1.msra.mxu0 0.0
  %3548 = vmatprep.subr.mxu0 0.0
  %3549 = vmatpush1.msra.mxu0 0.0
  %3550 = vmatprep.subr.mxu0 0.0
  %3551 = vmatpush1.msra.mxu0 0.0
  %3552 = vmatprep.mubr.f32.mxu0 0.0
  %3553 = vmatmul.mubr.f32.gmra.mrb[0].mxu0 %v3477
  %v3554 = vpop.f32.mrb[0].mxu0
  %v3555 = vadd.f32 0.0, %v3554
  %v3556 = vpop.f32.mrb[0].mxu0
  %3557 = vmatprep.mubr.f32.mxu0 0.0
  %3558 = vmatmul.mubr.f32.gmra.mrb[0].mxu0 %v3480
  %v3559 = vpop.f32.mrb[0].mxu0
  %v3560 = vadd.f32 0.0, %v3559
  %v3561 = vpop.f32.mrb[0].mxu0
  %3562 = vmatprep.mubr.f32.mxu0 0.0
  %3563 = vmatmul.mubr.f32.gmra.mrb[0].mxu0 %v3483
  %v3564 = vpop.f32.mrb[0].mxu0
  %v3565 = vadd.f32 0.0, %v3564
  %v3566 = vpop.f32.mrb[0].mxu0
  %3567 = vmatprep.mubr.f32.mxu0 0.0
  %3568 = vmatmul.mubr.f32.gmra.mrb[0].mxu0 %v3486
  %v3569 = vpop.f32.mrb[0].mxu0
  %v3570 = vadd.f32 0.0, %v3569
  %v3571 = vpop.f32.mrb[0].mxu0
  %3572 = vdwg.mxu0
  %s3573 = scalar_lea.vmem %s26, 384
  %v3574 = vld [vmem:[%s3573] sm:$0xff]
  %v3575 = vld [vmem:[%s3573 + $0x8] sm:$0xff]
  %v3576 = vld [vmem:[%s3573 + $0x10] sm:$0xff]
  %v3577 = vld [vmem:[%s3573 + $0x18] sm:$0xff]
  %v3578 = vld [vmem:[%s3573 + $0x20] sm:$0xff]
  %v3579 = vld [vmem:[%s3573 + $0x28] sm:$0xff]
  %v3580 = vld [vmem:[%s3573 + $0x30] sm:$0xff]
  %v3581 = vld [vmem:[%s3573 + $0x38] sm:$0xff]
  %v3582 = vld [vmem:[%s3573 + $0x40] sm:$0xff]
  %v3583 = vld [vmem:[%s3573 + $0x48] sm:$0xff]
  %v3584 = vld [vmem:[%s3573 + $0x50] sm:$0xff]
  %v3585 = vld [vmem:[%s3573 + $0x58] sm:$0xff]
  %v3586 = vld [vmem:[%s3573 + $0x60] sm:$0xff]
  %v3587 = vld [vmem:[%s3573 + $0x68] sm:$0xff]
  %v3588 = vld [vmem:[%s3573 + $0x70] sm:$0xff]
  %v3589 = vld [vmem:[%s3573 + $0x78] sm:$0xff]
  %3590 = vmatprep.subr.mxu0 0.0
  %3591 = vmatpush1.msra.mxu0 %v3574
  %3592 = vmatprep.subr.mxu0 0.0
  %3593 = vmatpush1.msra.mxu0 %v3575
  %3594 = vmatprep.subr.mxu0 0.0
  %3595 = vmatpush1.msra.mxu0 %v3576
  %3596 = vmatprep.subr.mxu0 0.0
  %3597 = vmatpush1.msra.mxu0 %v3577
  %3598 = vmatprep.subr.mxu0 0.0
  %3599 = vmatpush1.msra.mxu0 %v3578
  %3600 = vmatprep.subr.mxu0 0.0
  %3601 = vmatpush1.msra.mxu0 %v3579
  %3602 = vmatprep.subr.mxu0 0.0
  %3603 = vmatpush1.msra.mxu0 %v3580
  %3604 = vmatprep.subr.mxu0 0.0
  %3605 = vmatpush1.msra.mxu0 %v3581
  %3606 = vmatprep.subr.mxu0 0.0
  %3607 = vmatpush1.msra.mxu0 %v3582
  %3608 = vmatprep.subr.mxu0 0.0
  %3609 = vmatpush1.msra.mxu0 %v3583
  %3610 = vmatprep.subr.mxu0 0.0
  %3611 = vmatpush1.msra.mxu0 %v3584
  %3612 = vmatprep.subr.mxu0 0.0
  %3613 = vmatpush1.msra.mxu0 %v3585
  %3614 = vmatprep.subr.mxu0 0.0
  %3615 = vmatpush1.msra.mxu0 %v3586
  %3616 = vmatprep.subr.mxu0 0.0
  %3617 = vmatpush1.msra.mxu0 %v3587
  %3618 = vmatprep.subr.mxu0 0.0
  %3619 = vmatpush1.msra.mxu0 %v3588
  %3620 = vmatprep.subr.mxu0 0.0
  %3621 = vmatpush1.msra.mxu0 %v3589
  %3622 = vmatprep.subr.mxu0 0.0
  %3623 = vmatpush1.msra.mxu0 0.0
  %3624 = vmatprep.subr.mxu0 0.0
  %3625 = vmatpush1.msra.mxu0 0.0
  %3626 = vmatprep.subr.mxu0 0.0
  %3627 = vmatpush1.msra.mxu0 0.0
  %3628 = vmatprep.subr.mxu0 0.0
  %3629 = vmatpush1.msra.mxu0 0.0
  %3630 = vmatprep.subr.mxu0 0.0
  %3631 = vmatpush1.msra.mxu0 0.0
  %3632 = vmatprep.subr.mxu0 0.0
  %3633 = vmatpush1.msra.mxu0 0.0
  %3634 = vmatprep.subr.mxu0 0.0
  %3635 = vmatpush1.msra.mxu0 0.0
  %3636 = vmatprep.subr.mxu0 0.0
  %3637 = vmatpush1.msra.mxu0 0.0
  %3638 = vmatprep.subr.mxu0 0.0
  %3639 = vmatpush1.msra.mxu0 0.0
  %3640 = vmatprep.subr.mxu0 0.0
  %3641 = vmatpush1.msra.mxu0 0.0
  %3642 = vmatprep.subr.mxu0 0.0
  %3643 = vmatpush1.msra.mxu0 0.0
  %3644 = vmatprep.subr.mxu0 0.0
  %3645 = vmatpush1.msra.mxu0 0.0
  %3646 = vmatprep.subr.mxu0 0.0
  %3647 = vmatpush1.msra.mxu0 0.0
  %3648 = vmatprep.subr.mxu0 0.0
  %3649 = vmatpush1.msra.mxu0 0.0
  %3650 = vmatprep.subr.mxu0 0.0
  %3651 = vmatpush1.msra.mxu0 0.0
  %3652 = vmatprep.subr.mxu0 0.0
  %3653 = vmatpush1.msra.mxu0 0.0
  %3654 = vmatprep.mubr.f32.mxu0 0.0
  %3655 = vmatmul.mubr.f32.gmra.mrb[0].mxu0 %v3555
  %v3656 = vpop.f32.mrb[0].mxu0
  %v3657 = vadd.f32 0.0, %v3656
  %v3658 = vpop.f32.mrb[0].mxu0
  %3659 = vmatprep.mubr.f32.mxu0 0.0
  %3660 = vmatmul.mubr.f32.gmra.mrb[0].mxu0 %v3560
  %v3661 = vpop.f32.mrb[0].mxu0
  %v3662 = vadd.f32 0.0, %v3661
  %v3663 = vpop.f32.mrb[0].mxu0
  %3664 = vmatprep.mubr.f32.mxu0 0.0
  %3665 = vmatmul.mubr.f32.gmra.mrb[0].mxu0 %v3565
  %v3666 = vpop.f32.mrb[0].mxu0
  %v3667 = vadd.f32 0.0, %v3666
  %v3668 = vpop.f32.mrb[0].mxu0
  %3669 = vmatprep.mubr.f32.mxu0 0.0
  %3670 = vmatmul.mubr.f32.gmra.mrb[0].mxu0 %v3570
  %v3671 = vpop.f32.mrb[0].mxu0
  %v3672 = vadd.f32 0.0, %v3671
  %v3673 = vpop.f32.mrb[0].mxu0
  %3674 = vdwg.mxu0
  %v3675 = vadd.f32 %v3467, %v3657
  %v3676 = vadd.f32 %v3468, %v3662
  %v3677 = vadd.f32 %v3469, %v3667
  %v3678 = vadd.f32 %v3470, %v3672
  %s3679 = scalar_lea.vmem %s18, 128
  %v3680 = vld [vmem:[%s3679] sm:$0xff]
  %v3681 = vld [vmem:[%s3679 + $0x8] sm:$0xff]
  %v3682 = vld [vmem:[%s3679 + $0x10] sm:$0xff]
  %v3683 = vld [vmem:[%s3679 + $0x18] sm:$0xff]
  %v3685 = vsel %vm92, %v3680, 0
  %v3688 = vsel %vm92, %v3681, 0
  %v3691 = vsel %vm92, %v3682, 0
  %v3694 = vsel %vm92, %v3683, 0
  %3696 = vmatprep.subr.mxu0 0.0
  %3697 = vmatpush1.msra.mxu0 %v2855
  %3698 = vmatprep.subr.mxu0 0.0
  %3699 = vmatpush1.msra.mxu0 %v2856
  %3700 = vmatprep.subr.mxu0 0.0
  %3701 = vmatpush1.msra.mxu0 0.0
  %3702 = vmatprep.subr.mxu0 0.0
  %3703 = vmatpush1.msra.mxu0 0.0
  %3704 = vmatprep.subr.mxu0 0.0
  %3705 = vmatpush1.msra.mxu0 0.0
  %3706 = vmatprep.subr.mxu0 0.0
  %3707 = vmatpush1.msra.mxu0 0.0
  %3708 = vmatprep.subr.mxu0 0.0
  %3709 = vmatpush1.msra.mxu0 0.0
  %3710 = vmatprep.subr.mxu0 0.0
  %3711 = vmatpush1.msra.mxu0 0.0
  %3712 = vmatprep.subr.mxu0 0.0
  %3713 = vmatpush1.msra.mxu0 0.0
  %3714 = vmatprep.subr.mxu0 0.0
  %3715 = vmatpush1.msra.mxu0 0.0
  %3716 = vmatprep.subr.mxu0 0.0
  %3717 = vmatpush1.msra.mxu0 0.0
  %3718 = vmatprep.subr.mxu0 0.0
  %3719 = vmatpush1.msra.mxu0 0.0
  %3720 = vmatprep.subr.mxu0 0.0
  %3721 = vmatpush1.msra.mxu0 0.0
  %3722 = vmatprep.subr.mxu0 0.0
  %3723 = vmatpush1.msra.mxu0 0.0
  %3724 = vmatprep.subr.mxu0 0.0
  %3725 = vmatpush1.msra.mxu0 0.0
  %3726 = vmatprep.subr.mxu0 0.0
  %3727 = vmatpush1.msra.mxu0 0.0
  %3728 = vmatprep.subr.mxu0 0.0
  %3729 = vmatpush1.msra.mxu0 0.0
  %3730 = vmatprep.subr.mxu0 0.0
  %3731 = vmatpush1.msra.mxu0 0.0
  %3732 = vmatprep.subr.mxu0 0.0
  %3733 = vmatpush1.msra.mxu0 0.0
  %3734 = vmatprep.subr.mxu0 0.0
  %3735 = vmatpush1.msra.mxu0 0.0
  %3736 = vmatprep.subr.mxu0 0.0
  %3737 = vmatpush1.msra.mxu0 0.0
  %3738 = vmatprep.subr.mxu0 0.0
  %3739 = vmatpush1.msra.mxu0 0.0
  %3740 = vmatprep.subr.mxu0 0.0
  %3741 = vmatpush1.msra.mxu0 0.0
  %3742 = vmatprep.subr.mxu0 0.0
  %3743 = vmatpush1.msra.mxu0 0.0
  %3744 = vmatprep.subr.mxu0 0.0
  %3745 = vmatpush1.msra.mxu0 0.0
  %3746 = vmatprep.subr.mxu0 0.0
  %3747 = vmatpush1.msra.mxu0 0.0
  %3748 = vmatprep.subr.mxu0 0.0
  %3749 = vmatpush1.msra.mxu0 0.0
  %3750 = vmatprep.subr.mxu0 0.0
  %3751 = vmatpush1.msra.mxu0 0.0
  %3752 = vmatprep.subr.mxu0 0.0
  %3753 = vmatpush1.msra.mxu0 0.0
  %3754 = vmatprep.subr.mxu0 0.0
  %3755 = vmatpush1.msra.mxu0 0.0
  %3756 = vmatprep.subr.mxu0 0.0
  %3757 = vmatpush1.msra.mxu0 0.0
  %3758 = vmatprep.subr.mxu0 0.0
  %3759 = vmatpush1.msra.mxu0 0.0
  %3760 = vmatprep.mubr.f32.mxu0 0.0
  %3761 = vmatmul.mubr.f32.gmra.mrb[0].mxu0 %v3685
  %v3762 = vpop.f32.mrb[0].mxu0
  %v3763 = vadd.f32 0.0, %v3762
  %v3764 = vpop.f32.mrb[0].mxu0
  %3765 = vmatprep.mubr.f32.mxu0 0.0
  %3766 = vmatmul.mubr.f32.gmra.mrb[0].mxu0 %v3688
  %v3767 = vpop.f32.mrb[0].mxu0
  %v3768 = vadd.f32 0.0, %v3767
  %v3769 = vpop.f32.mrb[0].mxu0
  %3770 = vmatprep.mubr.f32.mxu0 0.0
  %3771 = vmatmul.mubr.f32.gmra.mrb[0].mxu0 %v3691
  %v3772 = vpop.f32.mrb[0].mxu0
  %v3773 = vadd.f32 0.0, %v3772
  %v3774 = vpop.f32.mrb[0].mxu0
  %3775 = vmatprep.mubr.f32.mxu0 0.0
  %3776 = vmatmul.mubr.f32.gmra.mrb[0].mxu0 %v3694
  %v3777 = vpop.f32.mrb[0].mxu0
  %v3778 = vadd.f32 0.0, %v3777
  %v3779 = vpop.f32.mrb[0].mxu0
  %3780 = vdwg.mxu0
  %s3781 = scalar_lea.vmem %s26, 512
  %v3782 = vld [vmem:[%s3781] sm:$0xff]
  %v3783 = vld [vmem:[%s3781 + $0x8] sm:$0xff]
  %v3784 = vld [vmem:[%s3781 + $0x10] sm:$0xff]
  %v3785 = vld [vmem:[%s3781 + $0x18] sm:$0xff]
  %v3786 = vld [vmem:[%s3781 + $0x20] sm:$0xff]
  %v3787 = vld [vmem:[%s3781 + $0x28] sm:$0xff]
  %v3788 = vld [vmem:[%s3781 + $0x30] sm:$0xff]
  %v3789 = vld [vmem:[%s3781 + $0x38] sm:$0xff]
  %v3790 = vld [vmem:[%s3781 + $0x40] sm:$0xff]
  %v3791 = vld [vmem:[%s3781 + $0x48] sm:$0xff]
  %v3792 = vld [vmem:[%s3781 + $0x50] sm:$0xff]
  %v3793 = vld [vmem:[%s3781 + $0x58] sm:$0xff]
  %v3794 = vld [vmem:[%s3781 + $0x60] sm:$0xff]
  %v3795 = vld [vmem:[%s3781 + $0x68] sm:$0xff]
  %v3796 = vld [vmem:[%s3781 + $0x70] sm:$0xff]
  %v3797 = vld [vmem:[%s3781 + $0x78] sm:$0xff]
  %3798 = vmatprep.subr.mxu0 0.0
  %3799 = vmatpush1.msra.mxu0 %v3782
  %3800 = vmatprep.subr.mxu0 0.0
  %3801 = vmatpush1.msra.mxu0 %v3783
  %3802 = vmatprep.subr.mxu0 0.0
  %3803 = vmatpush1.msra.mxu0 %v3784
  %3804 = vmatprep.subr.mxu0 0.0
  %3805 = vmatpush1.msra.mxu0 %v3785
  %3806 = vmatprep.subr.mxu0 0.0
  %3807 = vmatpush1.msra.mxu0 %v3786
  %3808 = vmatprep.subr.mxu0 0.0
  %3809 = vmatpush1.msra.mxu0 %v3787
  %3810 = vmatprep.subr.mxu0 0.0
  %3811 = vmatpush1.msra.mxu0 %v3788
  %3812 = vmatprep.subr.mxu0 0.0
  %3813 = vmatpush1.msra.mxu0 %v3789
  %3814 = vmatprep.subr.mxu0 0.0
  %3815 = vmatpush1.msra.mxu0 %v3790
  %3816 = vmatprep.subr.mxu0 0.0
  %3817 = vmatpush1.msra.mxu0 %v3791
  %3818 = vmatprep.subr.mxu0 0.0
  %3819 = vmatpush1.msra.mxu0 %v3792
  %3820 = vmatprep.subr.mxu0 0.0
  %3821 = vmatpush1.msra.mxu0 %v3793
  %3822 = vmatprep.subr.mxu0 0.0
  %3823 = vmatpush1.msra.mxu0 %v3794
  %3824 = vmatprep.subr.mxu0 0.0
  %3825 = vmatpush1.msra.mxu0 %v3795
  %3826 = vmatprep.subr.mxu0 0.0
  %3827 = vmatpush1.msra.mxu0 %v3796
  %3828 = vmatprep.subr.mxu0 0.0
  %3829 = vmatpush1.msra.mxu0 %v3797
  %3830 = vmatprep.subr.mxu0 0.0
  %3831 = vmatpush1.msra.mxu0 0.0
  %3832 = vmatprep.subr.mxu0 0.0
  %3833 = vmatpush1.msra.mxu0 0.0
  %3834 = vmatprep.subr.mxu0 0.0
  %3835 = vmatpush1.msra.mxu0 0.0
  %3836 = vmatprep.subr.mxu0 0.0
  %3837 = vmatpush1.msra.mxu0 0.0
  %3838 = vmatprep.subr.mxu0 0.0
  %3839 = vmatpush1.msra.mxu0 0.0
  %3840 = vmatprep.subr.mxu0 0.0
  %3841 = vmatpush1.msra.mxu0 0.0
  %3842 = vmatprep.subr.mxu0 0.0
  %3843 = vmatpush1.msra.mxu0 0.0
  %3844 = vmatprep.subr.mxu0 0.0
  %3845 = vmatpush1.msra.mxu0 0.0
  %3846 = vmatprep.subr.mxu0 0.0
  %3847 = vmatpush1.msra.mxu0 0.0
  %3848 = vmatprep.subr.mxu0 0.0
  %3849 = vmatpush1.msra.mxu0 0.0
  %3850 = vmatprep.subr.mxu0 0.0
  %3851 = vmatpush1.msra.mxu0 0.0
  %3852 = vmatprep.subr.mxu0 0.0
  %3853 = vmatpush1.msra.mxu0 0.0
  %3854 = vmatprep.subr.mxu0 0.0
  %3855 = vmatpush1.msra.mxu0 0.0
  %3856 = vmatprep.subr.mxu0 0.0
  %3857 = vmatpush1.msra.mxu0 0.0
  %3858 = vmatprep.subr.mxu0 0.0
  %3859 = vmatpush1.msra.mxu0 0.0
  %3860 = vmatprep.subr.mxu0 0.0
  %3861 = vmatpush1.msra.mxu0 0.0
  %3862 = vmatprep.mubr.f32.mxu0 0.0
  %3863 = vmatmul.mubr.f32.gmra.mrb[0].mxu0 %v3763
  %v3864 = vpop.f32.mrb[0].mxu0
  %v3865 = vadd.f32 0.0, %v3864
  %v3866 = vpop.f32.mrb[0].mxu0
  %3867 = vmatprep.mubr.f32.mxu0 0.0
  %3868 = vmatmul.mubr.f32.gmra.mrb[0].mxu0 %v3768
  %v3869 = vpop.f32.mrb[0].mxu0
  %v3870 = vadd.f32 0.0, %v3869
  %v3871 = vpop.f32.mrb[0].mxu0
  %3872 = vmatprep.mubr.f32.mxu0 0.0
  %3873 = vmatmul.mubr.f32.gmra.mrb[0].mxu0 %v3773
  %v3874 = vpop.f32.mrb[0].mxu0
  %v3875 = vadd.f32 0.0, %v3874
  %v3876 = vpop.f32.mrb[0].mxu0
  %3877 = vmatprep.mubr.f32.mxu0 0.0
  %3878 = vmatmul.mubr.f32.gmra.mrb[0].mxu0 %v3778
  %v3879 = vpop.f32.mrb[0].mxu0
  %v3880 = vadd.f32 0.0, %v3879
  %v3881 = vpop.f32.mrb[0].mxu0
  %3882 = vdwg.mxu0
  %v3883 = vadd.f32 %v3675, %v3865
  %v3884 = vadd.f32 %v3676, %v3870
  %v3885 = vadd.f32 %v3677, %v3875
  %v3886 = vadd.f32 %v3678, %v3880
  %s3887 = scalar_lea.vmem %s18, 160
  %v3888 = vld [vmem:[%s3887] sm:$0xff]
  %v3889 = vld [vmem:[%s3887 + $0x8] sm:$0xff]
  %v3890 = vld [vmem:[%s3887 + $0x10] sm:$0xff]
  %v3891 = vld [vmem:[%s3887 + $0x18] sm:$0xff]
  %v3893 = vsel %vm92, %v3888, 0
  %v3896 = vsel %vm92, %v3889, 0
  %v3899 = vsel %vm92, %v3890, 0
  %v3902 = vsel %vm92, %v3891, 0
  %3904 = vmatprep.subr.mxu0 0.0
  %3905 = vmatpush1.msra.mxu0 %v2855
  %3906 = vmatprep.subr.mxu0 0.0
  %3907 = vmatpush1.msra.mxu0 %v2856
  %3908 = vmatprep.subr.mxu0 0.0
  %3909 = vmatpush1.msra.mxu0 0.0
  %3910 = vmatprep.subr.mxu0 0.0
  %3911 = vmatpush1.msra.mxu0 0.0
  %3912 = vmatprep.subr.mxu0 0.0
  %3913 = vmatpush1.msra.mxu0 0.0
  %3914 = vmatprep.subr.mxu0 0.0
  %3915 = vmatpush1.msra.mxu0 0.0
  %3916 = vmatprep.subr.mxu0 0.0
  %3917 = vmatpush1.msra.mxu0 0.0
  %3918 = vmatprep.subr.mxu0 0.0
  %3919 = vmatpush1.msra.mxu0 0.0
  %3920 = vmatprep.subr.mxu0 0.0
  %3921 = vmatpush1.msra.mxu0 0.0
  %3922 = vmatprep.subr.mxu0 0.0
  %3923 = vmatpush1.msra.mxu0 0.0
  %3924 = vmatprep.subr.mxu0 0.0
  %3925 = vmatpush1.msra.mxu0 0.0
  %3926 = vmatprep.subr.mxu0 0.0
  %3927 = vmatpush1.msra.mxu0 0.0
  %3928 = vmatprep.subr.mxu0 0.0
  %3929 = vmatpush1.msra.mxu0 0.0
  %3930 = vmatprep.subr.mxu0 0.0
  %3931 = vmatpush1.msra.mxu0 0.0
  %3932 = vmatprep.subr.mxu0 0.0
  %3933 = vmatpush1.msra.mxu0 0.0
  %3934 = vmatprep.subr.mxu0 0.0
  %3935 = vmatpush1.msra.mxu0 0.0
  %3936 = vmatprep.subr.mxu0 0.0
  %3937 = vmatpush1.msra.mxu0 0.0
  %3938 = vmatprep.subr.mxu0 0.0
  %3939 = vmatpush1.msra.mxu0 0.0
  %3940 = vmatprep.subr.mxu0 0.0
  %3941 = vmatpush1.msra.mxu0 0.0
  %3942 = vmatprep.subr.mxu0 0.0
  %3943 = vmatpush1.msra.mxu0 0.0
  %3944 = vmatprep.subr.mxu0 0.0
  %3945 = vmatpush1.msra.mxu0 0.0
  %3946 = vmatprep.subr.mxu0 0.0
  %3947 = vmatpush1.msra.mxu0 0.0
  %3948 = vmatprep.subr.mxu0 0.0
  %3949 = vmatpush1.msra.mxu0 0.0
  %3950 = vmatprep.subr.mxu0 0.0
  %3951 = vmatpush1.msra.mxu0 0.0
  %3952 = vmatprep.subr.mxu0 0.0
  %3953 = vmatpush1.msra.mxu0 0.0
  %3954 = vmatprep.subr.mxu0 0.0
  %3955 = vmatpush1.msra.mxu0 0.0
  %3956 = vmatprep.subr.mxu0 0.0
  %3957 = vmatpush1.msra.mxu0 0.0
  %3958 = vmatprep.subr.mxu0 0.0
  %3959 = vmatpush1.msra.mxu0 0.0
  %3960 = vmatprep.subr.mxu0 0.0
  %3961 = vmatpush1.msra.mxu0 0.0
  %3962 = vmatprep.subr.mxu0 0.0
  %3963 = vmatpush1.msra.mxu0 0.0
  %3964 = vmatprep.subr.mxu0 0.0
  %3965 = vmatpush1.msra.mxu0 0.0
  %3966 = vmatprep.subr.mxu0 0.0
  %3967 = vmatpush1.msra.mxu0 0.0
  %3968 = vmatprep.mubr.f32.mxu0 0.0
  %3969 = vmatmul.mubr.f32.gmra.mrb[0].mxu0 %v3893
  %v3970 = vpop.f32.mrb[0].mxu0
  %v3971 = vadd.f32 0.0, %v3970
  %v3972 = vpop.f32.mrb[0].mxu0
  %3973 = vmatprep.mubr.f32.mxu0 0.0
  %3974 = vmatmul.mubr.f32.gmra.mrb[0].mxu0 %v3896
  %v3975 = vpop.f32.mrb[0].mxu0
  %v3976 = vadd.f32 0.0, %v3975
  %v3977 = vpop.f32.mrb[0].mxu0
  %3978 = vmatprep.mubr.f32.mxu0 0.0
  %3979 = vmatmul.mubr.f32.gmra.mrb[0].mxu0 %v3899
  %v3980 = vpop.f32.mrb[0].mxu0
  %v3981 = vadd.f32 0.0, %v3980
  %v3982 = vpop.f32.mrb[0].mxu0
  %3983 = vmatprep.mubr.f32.mxu0 0.0
  %3984 = vmatmul.mubr.f32.gmra.mrb[0].mxu0 %v3902
  %v3985 = vpop.f32.mrb[0].mxu0
  %v3986 = vadd.f32 0.0, %v3985
  %v3987 = vpop.f32.mrb[0].mxu0
  %3988 = vdwg.mxu0
  %s3989 = scalar_lea.vmem %s26, 640
  %v3990 = vld [vmem:[%s3989] sm:$0xff]
  %v3991 = vld [vmem:[%s3989 + $0x8] sm:$0xff]
  %v3992 = vld [vmem:[%s3989 + $0x10] sm:$0xff]
  %v3993 = vld [vmem:[%s3989 + $0x18] sm:$0xff]
  %v3994 = vld [vmem:[%s3989 + $0x20] sm:$0xff]
  %v3995 = vld [vmem:[%s3989 + $0x28] sm:$0xff]
  %v3996 = vld [vmem:[%s3989 + $0x30] sm:$0xff]
  %v3997 = vld [vmem:[%s3989 + $0x38] sm:$0xff]
  %v3998 = vld [vmem:[%s3989 + $0x40] sm:$0xff]
  %v3999 = vld [vmem:[%s3989 + $0x48] sm:$0xff]
  %v4000 = vld [vmem:[%s3989 + $0x50] sm:$0xff]
  %v4001 = vld [vmem:[%s3989 + $0x58] sm:$0xff]
  %v4002 = vld [vmem:[%s3989 + $0x60] sm:$0xff]
  %v4003 = vld [vmem:[%s3989 + $0x68] sm:$0xff]
  %v4004 = vld [vmem:[%s3989 + $0x70] sm:$0xff]
  %v4005 = vld [vmem:[%s3989 + $0x78] sm:$0xff]
  %4006 = vmatprep.subr.mxu0 0.0
  %4007 = vmatpush1.msra.mxu0 %v3990
  %4008 = vmatprep.subr.mxu0 0.0
  %4009 = vmatpush1.msra.mxu0 %v3991
  %4010 = vmatprep.subr.mxu0 0.0
  %4011 = vmatpush1.msra.mxu0 %v3992
  %4012 = vmatprep.subr.mxu0 0.0
  %4013 = vmatpush1.msra.mxu0 %v3993
  %4014 = vmatprep.subr.mxu0 0.0
  %4015 = vmatpush1.msra.mxu0 %v3994
  %4016 = vmatprep.subr.mxu0 0.0
  %4017 = vmatpush1.msra.mxu0 %v3995
  %4018 = vmatprep.subr.mxu0 0.0
  %4019 = vmatpush1.msra.mxu0 %v3996
  %4020 = vmatprep.subr.mxu0 0.0
  %4021 = vmatpush1.msra.mxu0 %v3997
  %4022 = vmatprep.subr.mxu0 0.0
  %4023 = vmatpush1.msra.mxu0 %v3998
  %4024 = vmatprep.subr.mxu0 0.0
  %4025 = vmatpush1.msra.mxu0 %v3999
  %4026 = vmatprep.subr.mxu0 0.0
  %4027 = vmatpush1.msra.mxu0 %v4000
  %4028 = vmatprep.subr.mxu0 0.0
  %4029 = vmatpush1.msra.mxu0 %v4001
  %4030 = vmatprep.subr.mxu0 0.0
  %4031 = vmatpush1.msra.mxu0 %v4002
  %4032 = vmatprep.subr.mxu0 0.0
  %4033 = vmatpush1.msra.mxu0 %v4003
  %4034 = vmatprep.subr.mxu0 0.0
  %4035 = vmatpush1.msra.mxu0 %v4004
  %4036 = vmatprep.subr.mxu0 0.0
  %4037 = vmatpush1.msra.mxu0 %v4005
  %4038 = vmatprep.subr.mxu0 0.0
  %4039 = vmatpush1.msra.mxu0 0.0
  %4040 = vmatprep.subr.mxu0 0.0
  %4041 = vmatpush1.msra.mxu0 0.0
  %4042 = vmatprep.subr.mxu0 0.0
  %4043 = vmatpush1.msra.mxu0 0.0
  %4044 = vmatprep.subr.mxu0 0.0
  %4045 = vmatpush1.msra.mxu0 0.0
  %4046 = vmatprep.subr.mxu0 0.0
  %4047 = vmatpush1.msra.mxu0 0.0
  %4048 = vmatprep.subr.mxu0 0.0
  %4049 = vmatpush1.msra.mxu0 0.0
  %4050 = vmatprep.subr.mxu0 0.0
  %4051 = vmatpush1.msra.mxu0 0.0
  %4052 = vmatprep.subr.mxu0 0.0
  %4053 = vmatpush1.msra.mxu0 0.0
  %4054 = vmatprep.subr.mxu0 0.0
  %4055 = vmatpush1.msra.mxu0 0.0
  %4056 = vmatprep.subr.mxu0 0.0
  %4057 = vmatpush1.msra.mxu0 0.0
  %4058 = vmatprep.subr.mxu0 0.0
  %4059 = vmatpush1.msra.mxu0 0.0
  %4060 = vmatprep.subr.mxu0 0.0
  %4061 = vmatpush1.msra.mxu0 0.0
  %4062 = vmatprep.subr.mxu0 0.0
  %4063 = vmatpush1.msra.mxu0 0.0
  %4064 = vmatprep.subr.mxu0 0.0
  %4065 = vmatpush1.msra.mxu0 0.0
  %4066 = vmatprep.subr.mxu0 0.0
  %4067 = vmatpush1.msra.mxu0 0.0
  %4068 = vmatprep.subr.mxu0 0.0
  %4069 = vmatpush1.msra.mxu0 0.0
  %4070 = vmatprep.mubr.f32.mxu0 0.0
  %4071 = vmatmul.mubr.f32.gmra.mrb[0].mxu0 %v3971
  %v4072 = vpop.f32.mrb[0].mxu0
  %v4073 = vadd.f32 0.0, %v4072
  %v4074 = vpop.f32.mrb[0].mxu0
  %4075 = vmatprep.mubr.f32.mxu0 0.0
  %4076 = vmatmul.mubr.f32.gmra.mrb[0].mxu0 %v3976
  %v4077 = vpop.f32.mrb[0].mxu0
  %v4078 = vadd.f32 0.0, %v4077
  %v4079 = vpop.f32.mrb[0].mxu0
  %4080 = vmatprep.mubr.f32.mxu0 0.0
  %4081 = vmatmul.mubr.f32.gmra.mrb[0].mxu0 %v3981
  %v4082 = vpop.f32.mrb[0].mxu0
  %v4083 = vadd.f32 0.0, %v4082
  %v4084 = vpop.f32.mrb[0].mxu0
  %4085 = vmatprep.mubr.f32.mxu0 0.0
  %4086 = vmatmul.mubr.f32.gmra.mrb[0].mxu0 %v3986
  %v4087 = vpop.f32.mrb[0].mxu0
  %v4088 = vadd.f32 0.0, %v4087
  %v4089 = vpop.f32.mrb[0].mxu0
  %4090 = vdwg.mxu0
  %v4091 = vadd.f32 %v3883, %v4073
  %v4092 = vadd.f32 %v3884, %v4078
  %v4093 = vadd.f32 %v3885, %v4083
  %v4094 = vadd.f32 %v3886, %v4088
  %s4095 = scalar_lea.vmem %s18, 192
  %v4096 = vld [vmem:[%s4095] sm:$0xff]
  %v4097 = vld [vmem:[%s4095 + $0x8] sm:$0xff]
  %v4098 = vld [vmem:[%s4095 + $0x10] sm:$0xff]
  %v4099 = vld [vmem:[%s4095 + $0x18] sm:$0xff]
  %v4101 = vsel %vm92, %v4096, 0
  %v4104 = vsel %vm92, %v4097, 0
  %v4107 = vsel %vm92, %v4098, 0
  %v4110 = vsel %vm92, %v4099, 0
  %4112 = vmatprep.subr.mxu0 0.0
  %4113 = vmatpush1.msra.mxu0 %v2855
  %4114 = vmatprep.subr.mxu0 0.0
  %4115 = vmatpush1.msra.mxu0 %v2856
  %4116 = vmatprep.subr.mxu0 0.0
  %4117 = vmatpush1.msra.mxu0 0.0
  %4118 = vmatprep.subr.mxu0 0.0
  %4119 = vmatpush1.msra.mxu0 0.0
  %4120 = vmatprep.subr.mxu0 0.0
  %4121 = vmatpush1.msra.mxu0 0.0
  %4122 = vmatprep.subr.mxu0 0.0
  %4123 = vmatpush1.msra.mxu0 0.0
  %4124 = vmatprep.subr.mxu0 0.0
  %4125 = vmatpush1.msra.mxu0 0.0
  %4126 = vmatprep.subr.mxu0 0.0
  %4127 = vmatpush1.msra.mxu0 0.0
  %4128 = vmatprep.subr.mxu0 0.0
  %4129 = vmatpush1.msra.mxu0 0.0
  %4130 = vmatprep.subr.mxu0 0.0
  %4131 = vmatpush1.msra.mxu0 0.0
  %4132 = vmatprep.subr.mxu0 0.0
  %4133 = vmatpush1.msra.mxu0 0.0
  %4134 = vmatprep.subr.mxu0 0.0
  %4135 = vmatpush1.msra.mxu0 0.0
  %4136 = vmatprep.subr.mxu0 0.0
  %4137 = vmatpush1.msra.mxu0 0.0
  %4138 = vmatprep.subr.mxu0 0.0
  %4139 = vmatpush1.msra.mxu0 0.0
  %4140 = vmatprep.subr.mxu0 0.0
  %4141 = vmatpush1.msra.mxu0 0.0
  %4142 = vmatprep.subr.mxu0 0.0
  %4143 = vmatpush1.msra.mxu0 0.0
  %4144 = vmatprep.subr.mxu0 0.0
  %4145 = vmatpush1.msra.mxu0 0.0
  %4146 = vmatprep.subr.mxu0 0.0
  %4147 = vmatpush1.msra.mxu0 0.0
  %4148 = vmatprep.subr.mxu0 0.0
  %4149 = vmatpush1.msra.mxu0 0.0
  %4150 = vmatprep.subr.mxu0 0.0
  %4151 = vmatpush1.msra.mxu0 0.0
  %4152 = vmatprep.subr.mxu0 0.0
  %4153 = vmatpush1.msra.mxu0 0.0
  %4154 = vmatprep.subr.mxu0 0.0
  %4155 = vmatpush1.msra.mxu0 0.0
  %4156 = vmatprep.subr.mxu0 0.0
  %4157 = vmatpush1.msra.mxu0 0.0
  %4158 = vmatprep.subr.mxu0 0.0
  %4159 = vmatpush1.msra.mxu0 0.0
  %4160 = vmatprep.subr.mxu0 0.0
  %4161 = vmatpush1.msra.mxu0 0.0
  %4162 = vmatprep.subr.mxu0 0.0
  %4163 = vmatpush1.msra.mxu0 0.0
  %4164 = vmatprep.subr.mxu0 0.0
  %4165 = vmatpush1.msra.mxu0 0.0
  %4166 = vmatprep.subr.mxu0 0.0
  %4167 = vmatpush1.msra.mxu0 0.0
  %4168 = vmatprep.subr.mxu0 0.0
  %4169 = vmatpush1.msra.mxu0 0.0
  %4170 = vmatprep.subr.mxu0 0.0
  %4171 = vmatpush1.msra.mxu0 0.0
  %4172 = vmatprep.subr.mxu0 0.0
  %4173 = vmatpush1.msra.mxu0 0.0
  %4174 = vmatprep.subr.mxu0 0.0
  %4175 = vmatpush1.msra.mxu0 0.0
  %4176 = vmatprep.mubr.f32.mxu0 0.0
  %4177 = vmatmul.mubr.f32.gmra.mrb[0].mxu0 %v4101
  %v4178 = vpop.f32.mrb[0].mxu0
  %v4179 = vadd.f32 0.0, %v4178
  %v4180 = vpop.f32.mrb[0].mxu0
  %4181 = vmatprep.mubr.f32.mxu0 0.0
  %4182 = vmatmul.mubr.f32.gmra.mrb[0].mxu0 %v4104
  %v4183 = vpop.f32.mrb[0].mxu0
  %v4184 = vadd.f32 0.0, %v4183
  %v4185 = vpop.f32.mrb[0].mxu0
  %4186 = vmatprep.mubr.f32.mxu0 0.0
  %4187 = vmatmul.mubr.f32.gmra.mrb[0].mxu0 %v4107
  %v4188 = vpop.f32.mrb[0].mxu0
  %v4189 = vadd.f32 0.0, %v4188
  %v4190 = vpop.f32.mrb[0].mxu0
  %4191 = vmatprep.mubr.f32.mxu0 0.0
  %4192 = vmatmul.mubr.f32.gmra.mrb[0].mxu0 %v4110
  %v4193 = vpop.f32.mrb[0].mxu0
  %v4194 = vadd.f32 0.0, %v4193
  %v4195 = vpop.f32.mrb[0].mxu0
  %4196 = vdwg.mxu0
  %s4197 = scalar_lea.vmem %s26, 768
  %v4198 = vld [vmem:[%s4197] sm:$0xff]
  %v4199 = vld [vmem:[%s4197 + $0x8] sm:$0xff]
  %v4200 = vld [vmem:[%s4197 + $0x10] sm:$0xff]
  %v4201 = vld [vmem:[%s4197 + $0x18] sm:$0xff]
  %v4202 = vld [vmem:[%s4197 + $0x20] sm:$0xff]
  %v4203 = vld [vmem:[%s4197 + $0x28] sm:$0xff]
  %v4204 = vld [vmem:[%s4197 + $0x30] sm:$0xff]
  %v4205 = vld [vmem:[%s4197 + $0x38] sm:$0xff]
  %v4206 = vld [vmem:[%s4197 + $0x40] sm:$0xff]
  %v4207 = vld [vmem:[%s4197 + $0x48] sm:$0xff]
  %v4208 = vld [vmem:[%s4197 + $0x50] sm:$0xff]
  %v4209 = vld [vmem:[%s4197 + $0x58] sm:$0xff]
  %v4210 = vld [vmem:[%s4197 + $0x60] sm:$0xff]
  %v4211 = vld [vmem:[%s4197 + $0x68] sm:$0xff]
  %v4212 = vld [vmem:[%s4197 + $0x70] sm:$0xff]
  %v4213 = vld [vmem:[%s4197 + $0x78] sm:$0xff]
  %4214 = vmatprep.subr.mxu0 0.0
  %4215 = vmatpush1.msra.mxu0 %v4198
  %4216 = vmatprep.subr.mxu0 0.0
  %4217 = vmatpush1.msra.mxu0 %v4199
  %4218 = vmatprep.subr.mxu0 0.0
  %4219 = vmatpush1.msra.mxu0 %v4200
  %4220 = vmatprep.subr.mxu0 0.0
  %4221 = vmatpush1.msra.mxu0 %v4201
  %4222 = vmatprep.subr.mxu0 0.0
  %4223 = vmatpush1.msra.mxu0 %v4202
  %4224 = vmatprep.subr.mxu0 0.0
  %4225 = vmatpush1.msra.mxu0 %v4203
  %4226 = vmatprep.subr.mxu0 0.0
  %4227 = vmatpush1.msra.mxu0 %v4204
  %4228 = vmatprep.subr.mxu0 0.0
  %4229 = vmatpush1.msra.mxu0 %v4205
  %4230 = vmatprep.subr.mxu0 0.0
  %4231 = vmatpush1.msra.mxu0 %v4206
  %4232 = vmatprep.subr.mxu0 0.0
  %4233 = vmatpush1.msra.mxu0 %v4207
  %4234 = vmatprep.subr.mxu0 0.0
  %4235 = vmatpush1.msra.mxu0 %v4208
  %4236 = vmatprep.subr.mxu0 0.0
  %4237 = vmatpush1.msra.mxu0 %v4209
  %4238 = vmatprep.subr.mxu0 0.0
  %4239 = vmatpush1.msra.mxu0 %v4210
  %4240 = vmatprep.subr.mxu0 0.0
  %4241 = vmatpush1.msra.mxu0 %v4211
  %4242 = vmatprep.subr.mxu0 0.0
  %4243 = vmatpush1.msra.mxu0 %v4212
  %4244 = vmatprep.subr.mxu0 0.0
  %4245 = vmatpush1.msra.mxu0 %v4213
  %4246 = vmatprep.subr.mxu0 0.0
  %4247 = vmatpush1.msra.mxu0 0.0
  %4248 = vmatprep.subr.mxu0 0.0
  %4249 = vmatpush1.msra.mxu0 0.0
  %4250 = vmatprep.subr.mxu0 0.0
  %4251 = vmatpush1.msra.mxu0 0.0
  %4252 = vmatprep.subr.mxu0 0.0
  %4253 = vmatpush1.msra.mxu0 0.0
  %4254 = vmatprep.subr.mxu0 0.0
  %4255 = vmatpush1.msra.mxu0 0.0
  %4256 = vmatprep.subr.mxu0 0.0
  %4257 = vmatpush1.msra.mxu0 0.0
  %4258 = vmatprep.subr.mxu0 0.0
  %4259 = vmatpush1.msra.mxu0 0.0
  %4260 = vmatprep.subr.mxu0 0.0
  %4261 = vmatpush1.msra.mxu0 0.0
  %4262 = vmatprep.subr.mxu0 0.0
  %4263 = vmatpush1.msra.mxu0 0.0
  %4264 = vmatprep.subr.mxu0 0.0
  %4265 = vmatpush1.msra.mxu0 0.0
  %4266 = vmatprep.subr.mxu0 0.0
  %4267 = vmatpush1.msra.mxu0 0.0
  %4268 = vmatprep.subr.mxu0 0.0
  %4269 = vmatpush1.msra.mxu0 0.0
  %4270 = vmatprep.subr.mxu0 0.0
  %4271 = vmatpush1.msra.mxu0 0.0
  %4272 = vmatprep.subr.mxu0 0.0
  %4273 = vmatpush1.msra.mxu0 0.0
  %4274 = vmatprep.subr.mxu0 0.0
  %4275 = vmatpush1.msra.mxu0 0.0
  %4276 = vmatprep.subr.mxu0 0.0
  %4277 = vmatpush1.msra.mxu0 0.0
  %4278 = vmatprep.mubr.f32.mxu0 0.0
  %4279 = vmatmul.mubr.f32.gmra.mrb[0].mxu0 %v4179
  %v4280 = vpop.f32.mrb[0].mxu0
  %v4281 = vadd.f32 0.0, %v4280
  %v4282 = vpop.f32.mrb[0].mxu0
  %4283 = vmatprep.mubr.f32.mxu0 0.0
  %4284 = vmatmul.mubr.f32.gmra.mrb[0].mxu0 %v4184
  %v4285 = vpop.f32.mrb[0].mxu0
  %v4286 = vadd.f32 0.0, %v4285
  %v4287 = vpop.f32.mrb[0].mxu0
  %4288 = vmatprep.mubr.f32.mxu0 0.0
  %4289 = vmatmul.mubr.f32.gmra.mrb[0].mxu0 %v4189
  %v4290 = vpop.f32.mrb[0].mxu0
  %v4291 = vadd.f32 0.0, %v4290
  %v4292 = vpop.f32.mrb[0].mxu0
  %4293 = vmatprep.mubr.f32.mxu0 0.0
  %4294 = vmatmul.mubr.f32.gmra.mrb[0].mxu0 %v4194
  %v4295 = vpop.f32.mrb[0].mxu0
  %v4296 = vadd.f32 0.0, %v4295
  %v4297 = vpop.f32.mrb[0].mxu0
  %4298 = vdwg.mxu0
  %v4299 = vadd.f32 %v4091, %v4281
  %v4300 = vadd.f32 %v4092, %v4286
  %v4301 = vadd.f32 %v4093, %v4291
  %v4302 = vadd.f32 %v4094, %v4296
  %s4303 = scalar_lea.vmem %s18, 224
  %v4304 = vld [vmem:[%s4303] sm:$0xff]
  %v4305 = vld [vmem:[%s4303 + $0x8] sm:$0xff]
  %v4306 = vld [vmem:[%s4303 + $0x10] sm:$0xff]
  %v4307 = vld [vmem:[%s4303 + $0x18] sm:$0xff]
  %v4309 = vsel %vm92, %v4304, 0
  %v4312 = vsel %vm92, %v4305, 0
  %v4315 = vsel %vm92, %v4306, 0
  %v4318 = vsel %vm92, %v4307, 0
  %4320 = vmatprep.subr.mxu0 0.0
  %4321 = vmatpush1.msra.mxu0 %v2855
  %4322 = vmatprep.subr.mxu0 0.0
  %4323 = vmatpush1.msra.mxu0 %v2856
  %4324 = vmatprep.subr.mxu0 0.0
  %4325 = vmatpush1.msra.mxu0 0.0
  %4326 = vmatprep.subr.mxu0 0.0
  %4327 = vmatpush1.msra.mxu0 0.0
  %4328 = vmatprep.subr.mxu0 0.0
  %4329 = vmatpush1.msra.mxu0 0.0
  %4330 = vmatprep.subr.mxu0 0.0
  %4331 = vmatpush1.msra.mxu0 0.0
  %4332 = vmatprep.subr.mxu0 0.0
  %4333 = vmatpush1.msra.mxu0 0.0
  %4334 = vmatprep.subr.mxu0 0.0
  %4335 = vmatpush1.msra.mxu0 0.0
  %4336 = vmatprep.subr.mxu0 0.0
  %4337 = vmatpush1.msra.mxu0 0.0
  %4338 = vmatprep.subr.mxu0 0.0
  %4339 = vmatpush1.msra.mxu0 0.0
  %4340 = vmatprep.subr.mxu0 0.0
  %4341 = vmatpush1.msra.mxu0 0.0
  %4342 = vmatprep.subr.mxu0 0.0
  %4343 = vmatpush1.msra.mxu0 0.0
  %4344 = vmatprep.subr.mxu0 0.0
  %4345 = vmatpush1.msra.mxu0 0.0
  %4346 = vmatprep.subr.mxu0 0.0
  %4347 = vmatpush1.msra.mxu0 0.0
  %4348 = vmatprep.subr.mxu0 0.0
  %4349 = vmatpush1.msra.mxu0 0.0
  %4350 = vmatprep.subr.mxu0 0.0
  %4351 = vmatpush1.msra.mxu0 0.0
  %4352 = vmatprep.subr.mxu0 0.0
  %4353 = vmatpush1.msra.mxu0 0.0
  %4354 = vmatprep.subr.mxu0 0.0
  %4355 = vmatpush1.msra.mxu0 0.0
  %4356 = vmatprep.subr.mxu0 0.0
  %4357 = vmatpush1.msra.mxu0 0.0
  %4358 = vmatprep.subr.mxu0 0.0
  %4359 = vmatpush1.msra.mxu0 0.0
  %4360 = vmatprep.subr.mxu0 0.0
  %4361 = vmatpush1.msra.mxu0 0.0
  %4362 = vmatprep.subr.mxu0 0.0
  %4363 = vmatpush1.msra.mxu0 0.0
  %4364 = vmatprep.subr.mxu0 0.0
  %4365 = vmatpush1.msra.mxu0 0.0
  %4366 = vmatprep.subr.mxu0 0.0
  %4367 = vmatpush1.msra.mxu0 0.0
  %4368 = vmatprep.subr.mxu0 0.0
  %4369 = vmatpush1.msra.mxu0 0.0
  %4370 = vmatprep.subr.mxu0 0.0
  %4371 = vmatpush1.msra.mxu0 0.0
  %4372 = vmatprep.subr.mxu0 0.0
  %4373 = vmatpush1.msra.mxu0 0.0
  %4374 = vmatprep.subr.mxu0 0.0
  %4375 = vmatpush1.msra.mxu0 0.0
  %4376 = vmatprep.subr.mxu0 0.0
  %4377 = vmatpush1.msra.mxu0 0.0
  %4378 = vmatprep.subr.mxu0 0.0
  %4379 = vmatpush1.msra.mxu0 0.0
  %4380 = vmatprep.subr.mxu0 0.0
  %4381 = vmatpush1.msra.mxu0 0.0
  %4382 = vmatprep.subr.mxu0 0.0
  %4383 = vmatpush1.msra.mxu0 0.0
  %4384 = vmatprep.mubr.f32.mxu0 0.0
  %4385 = vmatmul.mubr.f32.gmra.mrb[0].mxu0 %v4309
  %v4386 = vpop.f32.mrb[0].mxu0
  %v4387 = vadd.f32 0.0, %v4386
  %v4388 = vpop.f32.mrb[0].mxu0
  %4389 = vmatprep.mubr.f32.mxu0 0.0
  %4390 = vmatmul.mubr.f32.gmra.mrb[0].mxu0 %v4312
  %v4391 = vpop.f32.mrb[0].mxu0
  %v4392 = vadd.f32 0.0, %v4391
  %v4393 = vpop.f32.mrb[0].mxu0
  %4394 = vmatprep.mubr.f32.mxu0 0.0
  %4395 = vmatmul.mubr.f32.gmra.mrb[0].mxu0 %v4315
  %v4396 = vpop.f32.mrb[0].mxu0
  %v4397 = vadd.f32 0.0, %v4396
  %v4398 = vpop.f32.mrb[0].mxu0
  %4399 = vmatprep.mubr.f32.mxu0 0.0
  %4400 = vmatmul.mubr.f32.gmra.mrb[0].mxu0 %v4318
  %v4401 = vpop.f32.mrb[0].mxu0
  %v4402 = vadd.f32 0.0, %v4401
  %v4403 = vpop.f32.mrb[0].mxu0
  %4404 = vdwg.mxu0
  %s4405 = scalar_lea.vmem %s26, 896
  %v4406 = vld [vmem:[%s4405] sm:$0xff]
  %v4407 = vld [vmem:[%s4405 + $0x8] sm:$0xff]
  %v4408 = vld [vmem:[%s4405 + $0x10] sm:$0xff]
  %v4409 = vld [vmem:[%s4405 + $0x18] sm:$0xff]
  %v4410 = vld [vmem:[%s4405 + $0x20] sm:$0xff]
  %v4411 = vld [vmem:[%s4405 + $0x28] sm:$0xff]
  %v4412 = vld [vmem:[%s4405 + $0x30] sm:$0xff]
  %v4413 = vld [vmem:[%s4405 + $0x38] sm:$0xff]
  %v4414 = vld [vmem:[%s4405 + $0x40] sm:$0xff]
  %v4415 = vld [vmem:[%s4405 + $0x48] sm:$0xff]
  %v4416 = vld [vmem:[%s4405 + $0x50] sm:$0xff]
  %v4417 = vld [vmem:[%s4405 + $0x58] sm:$0xff]
  %v4418 = vld [vmem:[%s4405 + $0x60] sm:$0xff]
  %v4419 = vld [vmem:[%s4405 + $0x68] sm:$0xff]
  %v4420 = vld [vmem:[%s4405 + $0x70] sm:$0xff]
  %v4421 = vld [vmem:[%s4405 + $0x78] sm:$0xff]
  %4422 = vmatprep.subr.mxu0 0.0
  %4423 = vmatpush1.msra.mxu0 %v4406
  %4424 = vmatprep.subr.mxu0 0.0
  %4425 = vmatpush1.msra.mxu0 %v4407
  %4426 = vmatprep.subr.mxu0 0.0
  %4427 = vmatpush1.msra.mxu0 %v4408
  %4428 = vmatprep.subr.mxu0 0.0
  %4429 = vmatpush1.msra.mxu0 %v4409
  %4430 = vmatprep.subr.mxu0 0.0
  %4431 = vmatpush1.msra.mxu0 %v4410
  %4432 = vmatprep.subr.mxu0 0.0
  %4433 = vmatpush1.msra.mxu0 %v4411
  %4434 = vmatprep.subr.mxu0 0.0
  %4435 = vmatpush1.msra.mxu0 %v4412
  %4436 = vmatprep.subr.mxu0 0.0
  %4437 = vmatpush1.msra.mxu0 %v4413
  %4438 = vmatprep.subr.mxu0 0.0
  %4439 = vmatpush1.msra.mxu0 %v4414
  %4440 = vmatprep.subr.mxu0 0.0
  %4441 = vmatpush1.msra.mxu0 %v4415
  %4442 = vmatprep.subr.mxu0 0.0
  %4443 = vmatpush1.msra.mxu0 %v4416
  %4444 = vmatprep.subr.mxu0 0.0
  %4445 = vmatpush1.msra.mxu0 %v4417
  %4446 = vmatprep.subr.mxu0 0.0
  %4447 = vmatpush1.msra.mxu0 %v4418
  %4448 = vmatprep.subr.mxu0 0.0
  %4449 = vmatpush1.msra.mxu0 %v4419
  %4450 = vmatprep.subr.mxu0 0.0
  %4451 = vmatpush1.msra.mxu0 %v4420
  %4452 = vmatprep.subr.mxu0 0.0
  %4453 = vmatpush1.msra.mxu0 %v4421
  %4454 = vmatprep.subr.mxu0 0.0
  %4455 = vmatpush1.msra.mxu0 0.0
  %4456 = vmatprep.subr.mxu0 0.0
  %4457 = vmatpush1.msra.mxu0 0.0
  %4458 = vmatprep.subr.mxu0 0.0
  %4459 = vmatpush1.msra.mxu0 0.0
  %4460 = vmatprep.subr.mxu0 0.0
  %4461 = vmatpush1.msra.mxu0 0.0
  %4462 = vmatprep.subr.mxu0 0.0
  %4463 = vmatpush1.msra.mxu0 0.0
  %4464 = vmatprep.subr.mxu0 0.0
  %4465 = vmatpush1.msra.mxu0 0.0
  %4466 = vmatprep.subr.mxu0 0.0
  %4467 = vmatpush1.msra.mxu0 0.0
  %4468 = vmatprep.subr.mxu0 0.0
  %4469 = vmatpush1.msra.mxu0 0.0
  %4470 = vmatprep.subr.mxu0 0.0
  %4471 = vmatpush1.msra.mxu0 0.0
  %4472 = vmatprep.subr.mxu0 0.0
  %4473 = vmatpush1.msra.mxu0 0.0
  %4474 = vmatprep.subr.mxu0 0.0
  %4475 = vmatpush1.msra.mxu0 0.0
  %4476 = vmatprep.subr.mxu0 0.0
  %4477 = vmatpush1.msra.mxu0 0.0
  %4478 = vmatprep.subr.mxu0 0.0
  %4479 = vmatpush1.msra.mxu0 0.0
  %4480 = vmatprep.subr.mxu0 0.0
  %4481 = vmatpush1.msra.mxu0 0.0
  %4482 = vmatprep.subr.mxu0 0.0
  %4483 = vmatpush1.msra.mxu0 0.0
  %4484 = vmatprep.subr.mxu0 0.0
  %4485 = vmatpush1.msra.mxu0 0.0
  %4486 = vmatprep.mubr.f32.mxu0 0.0
  %4487 = vmatmul.mubr.f32.gmra.mrb[0].mxu0 %v4387
  %v4488 = vpop.f32.mrb[0].mxu0
  %v4489 = vadd.f32 0.0, %v4488
  %v4490 = vpop.f32.mrb[0].mxu0
  %4491 = vmatprep.mubr.f32.mxu0 0.0
  %4492 = vmatmul.mubr.f32.gmra.mrb[0].mxu0 %v4392
  %v4493 = vpop.f32.mrb[0].mxu0
  %v4494 = vadd.f32 0.0, %v4493
  %v4495 = vpop.f32.mrb[0].mxu0
  %4496 = vmatprep.mubr.f32.mxu0 0.0
  %4497 = vmatmul.mubr.f32.gmra.mrb[0].mxu0 %v4397
  %v4498 = vpop.f32.mrb[0].mxu0
  %v4499 = vadd.f32 0.0, %v4498
  %v4500 = vpop.f32.mrb[0].mxu0
  %4501 = vmatprep.mubr.f32.mxu0 0.0
  %4502 = vmatmul.mubr.f32.gmra.mrb[0].mxu0 %v4402
  %v4503 = vpop.f32.mrb[0].mxu0
  %v4504 = vadd.f32 0.0, %v4503
  %v4505 = vpop.f32.mrb[0].mxu0
  %4506 = vdwg.mxu0
  %v4507 = vadd.f32 %v4299, %v4489
  %v4508 = vadd.f32 %v4300, %v4494
  %v4509 = vadd.f32 %v4301, %v4499
  %v4510 = vadd.f32 %v4302, %v4504
  %s4511 = scalar_lea.vmem %s18, 256
  %v4512 = vld [vmem:[%s4511] sm:$0xff]
  %v4513 = vld [vmem:[%s4511 + $0x8] sm:$0xff]
  %v4514 = vld [vmem:[%s4511 + $0x10] sm:$0xff]
  %v4515 = vld [vmem:[%s4511 + $0x18] sm:$0xff]
  %v4517 = vsel %vm92, %v4512, 0
  %v4520 = vsel %vm92, %v4513, 0
  %v4523 = vsel %vm92, %v4514, 0
  %v4526 = vsel %vm92, %v4515, 0
  %4528 = vmatprep.subr.mxu0 0.0
  %4529 = vmatpush1.msra.mxu0 %v2855
  %4530 = vmatprep.subr.mxu0 0.0
  %4531 = vmatpush1.msra.mxu0 %v2856
  %4532 = vmatprep.subr.mxu0 0.0
  %4533 = vmatpush1.msra.mxu0 0.0
  %4534 = vmatprep.subr.mxu0 0.0
  %4535 = vmatpush1.msra.mxu0 0.0
  %4536 = vmatprep.subr.mxu0 0.0
  %4537 = vmatpush1.msra.mxu0 0.0
  %4538 = vmatprep.subr.mxu0 0.0
  %4539 = vmatpush1.msra.mxu0 0.0
  %4540 = vmatprep.subr.mxu0 0.0
  %4541 = vmatpush1.msra.mxu0 0.0
  %4542 = vmatprep.subr.mxu0 0.0
  %4543 = vmatpush1.msra.mxu0 0.0
  %4544 = vmatprep.subr.mxu0 0.0
  %4545 = vmatpush1.msra.mxu0 0.0
  %4546 = vmatprep.subr.mxu0 0.0
  %4547 = vmatpush1.msra.mxu0 0.0
  %4548 = vmatprep.subr.mxu0 0.0
  %4549 = vmatpush1.msra.mxu0 0.0
  %4550 = vmatprep.subr.mxu0 0.0
  %4551 = vmatpush1.msra.mxu0 0.0
  %4552 = vmatprep.subr.mxu0 0.0
  %4553 = vmatpush1.msra.mxu0 0.0
  %4554 = vmatprep.subr.mxu0 0.0
  %4555 = vmatpush1.msra.mxu0 0.0
  %4556 = vmatprep.subr.mxu0 0.0
  %4557 = vmatpush1.msra.mxu0 0.0
  %4558 = vmatprep.subr.mxu0 0.0
  %4559 = vmatpush1.msra.mxu0 0.0
  %4560 = vmatprep.subr.mxu0 0.0
  %4561 = vmatpush1.msra.mxu0 0.0
  %4562 = vmatprep.subr.mxu0 0.0
  %4563 = vmatpush1.msra.mxu0 0.0
  %4564 = vmatprep.subr.mxu0 0.0
  %4565 = vmatpush1.msra.mxu0 0.0
  %4566 = vmatprep.subr.mxu0 0.0
  %4567 = vmatpush1.msra.mxu0 0.0
  %4568 = vmatprep.subr.mxu0 0.0
  %4569 = vmatpush1.msra.mxu0 0.0
  %4570 = vmatprep.subr.mxu0 0.0
  %4571 = vmatpush1.msra.mxu0 0.0
  %4572 = vmatprep.subr.mxu0 0.0
  %4573 = vmatpush1.msra.mxu0 0.0
  %4574 = vmatprep.subr.mxu0 0.0
  %4575 = vmatpush1.msra.mxu0 0.0
  %4576 = vmatprep.subr.mxu0 0.0
  %4577 = vmatpush1.msra.mxu0 0.0
  %4578 = vmatprep.subr.mxu0 0.0
  %4579 = vmatpush1.msra.mxu0 0.0
  %4580 = vmatprep.subr.mxu0 0.0
  %4581 = vmatpush1.msra.mxu0 0.0
  %4582 = vmatprep.subr.mxu0 0.0
  %4583 = vmatpush1.msra.mxu0 0.0
  %4584 = vmatprep.subr.mxu0 0.0
  %4585 = vmatpush1.msra.mxu0 0.0
  %4586 = vmatprep.subr.mxu0 0.0
  %4587 = vmatpush1.msra.mxu0 0.0
  %4588 = vmatprep.subr.mxu0 0.0
  %4589 = vmatpush1.msra.mxu0 0.0
  %4590 = vmatprep.subr.mxu0 0.0
  %4591 = vmatpush1.msra.mxu0 0.0
  %4592 = vmatprep.mubr.f32.mxu0 0.0
  %4593 = vmatmul.mubr.f32.gmra.mrb[0].mxu0 %v4517
  %v4594 = vpop.f32.mrb[0].mxu0
  %v4595 = vadd.f32 0.0, %v4594
  %v4596 = vpop.f32.mrb[0].mxu0
  %4597 = vmatprep.mubr.f32.mxu0 0.0
  %4598 = vmatmul.mubr.f32.gmra.mrb[0].mxu0 %v4520
  %v4599 = vpop.f32.mrb[0].mxu0
  %v4600 = vadd.f32 0.0, %v4599
  %v4601 = vpop.f32.mrb[0].mxu0
  %4602 = vmatprep.mubr.f32.mxu0 0.0
  %4603 = vmatmul.mubr.f32.gmra.mrb[0].mxu0 %v4523
  %v4604 = vpop.f32.mrb[0].mxu0
  %v4605 = vadd.f32 0.0, %v4604
  %v4606 = vpop.f32.mrb[0].mxu0
  %4607 = vmatprep.mubr.f32.mxu0 0.0
  %4608 = vmatmul.mubr.f32.gmra.mrb[0].mxu0 %v4526
  %v4609 = vpop.f32.mrb[0].mxu0
  %v4610 = vadd.f32 0.0, %v4609
  %v4611 = vpop.f32.mrb[0].mxu0
  %4612 = vdwg.mxu0
  %s4613 = scalar_lea.vmem %s26, 1024
  %v4614 = vld [vmem:[%s4613] sm:$0xff]
  %v4615 = vld [vmem:[%s4613 + $0x8] sm:$0xff]
  %v4616 = vld [vmem:[%s4613 + $0x10] sm:$0xff]
  %v4617 = vld [vmem:[%s4613 + $0x18] sm:$0xff]
  %v4618 = vld [vmem:[%s4613 + $0x20] sm:$0xff]
  %v4619 = vld [vmem:[%s4613 + $0x28] sm:$0xff]
  %v4620 = vld [vmem:[%s4613 + $0x30] sm:$0xff]
  %v4621 = vld [vmem:[%s4613 + $0x38] sm:$0xff]
  %v4622 = vld [vmem:[%s4613 + $0x40] sm:$0xff]
  %v4623 = vld [vmem:[%s4613 + $0x48] sm:$0xff]
  %v4624 = vld [vmem:[%s4613 + $0x50] sm:$0xff]
  %v4625 = vld [vmem:[%s4613 + $0x58] sm:$0xff]
  %v4626 = vld [vmem:[%s4613 + $0x60] sm:$0xff]
  %v4627 = vld [vmem:[%s4613 + $0x68] sm:$0xff]
  %v4628 = vld [vmem:[%s4613 + $0x70] sm:$0xff]
  %v4629 = vld [vmem:[%s4613 + $0x78] sm:$0xff]
  %4630 = vmatprep.subr.mxu0 0.0
  %4631 = vmatpush1.msra.mxu0 %v4614
  %4632 = vmatprep.subr.mxu0 0.0
  %4633 = vmatpush1.msra.mxu0 %v4615
  %4634 = vmatprep.subr.mxu0 0.0
  %4635 = vmatpush1.msra.mxu0 %v4616
  %4636 = vmatprep.subr.mxu0 0.0
  %4637 = vmatpush1.msra.mxu0 %v4617
  %4638 = vmatprep.subr.mxu0 0.0
  %4639 = vmatpush1.msra.mxu0 %v4618
  %4640 = vmatprep.subr.mxu0 0.0
  %4641 = vmatpush1.msra.mxu0 %v4619
  %4642 = vmatprep.subr.mxu0 0.0
  %4643 = vmatpush1.msra.mxu0 %v4620
  %4644 = vmatprep.subr.mxu0 0.0
  %4645 = vmatpush1.msra.mxu0 %v4621
  %4646 = vmatprep.subr.mxu0 0.0
  %4647 = vmatpush1.msra.mxu0 %v4622
  %4648 = vmatprep.subr.mxu0 0.0
  %4649 = vmatpush1.msra.mxu0 %v4623
  %4650 = vmatprep.subr.mxu0 0.0
  %4651 = vmatpush1.msra.mxu0 %v4624
  %4652 = vmatprep.subr.mxu0 0.0
  %4653 = vmatpush1.msra.mxu0 %v4625
  %4654 = vmatprep.subr.mxu0 0.0
  %4655 = vmatpush1.msra.mxu0 %v4626
  %4656 = vmatprep.subr.mxu0 0.0
  %4657 = vmatpush1.msra.mxu0 %v4627
  %4658 = vmatprep.subr.mxu0 0.0
  %4659 = vmatpush1.msra.mxu0 %v4628
  %4660 = vmatprep.subr.mxu0 0.0
  %4661 = vmatpush1.msra.mxu0 %v4629
  %4662 = vmatprep.subr.mxu0 0.0
  %4663 = vmatpush1.msra.mxu0 0.0
  %4664 = vmatprep.subr.mxu0 0.0
  %4665 = vmatpush1.msra.mxu0 0.0
  %4666 = vmatprep.subr.mxu0 0.0
  %4667 = vmatpush1.msra.mxu0 0.0
  %4668 = vmatprep.subr.mxu0 0.0
  %4669 = vmatpush1.msra.mxu0 0.0
  %4670 = vmatprep.subr.mxu0 0.0
  %4671 = vmatpush1.msra.mxu0 0.0
  %4672 = vmatprep.subr.mxu0 0.0
  %4673 = vmatpush1.msra.mxu0 0.0
  %4674 = vmatprep.subr.mxu0 0.0
  %4675 = vmatpush1.msra.mxu0 0.0
  %4676 = vmatprep.subr.mxu0 0.0
  %4677 = vmatpush1.msra.mxu0 0.0
  %4678 = vmatprep.subr.mxu0 0.0
  %4679 = vmatpush1.msra.mxu0 0.0
  %4680 = vmatprep.subr.mxu0 0.0
  %4681 = vmatpush1.msra.mxu0 0.0
  %4682 = vmatprep.subr.mxu0 0.0
  %4683 = vmatpush1.msra.mxu0 0.0
  %4684 = vmatprep.subr.mxu0 0.0
  %4685 = vmatpush1.msra.mxu0 0.0
  %4686 = vmatprep.subr.mxu0 0.0
  %4687 = vmatpush1.msra.mxu0 0.0
  %4688 = vmatprep.subr.mxu0 0.0
  %4689 = vmatpush1.msra.mxu0 0.0
  %4690 = vmatprep.subr.mxu0 0.0
  %4691 = vmatpush1.msra.mxu0 0.0
  %4692 = vmatprep.subr.mxu0 0.0
  %4693 = vmatpush1.msra.mxu0 0.0
  %4694 = vmatprep.mubr.f32.mxu0 0.0
  %4695 = vmatmul.mubr.f32.gmra.mrb[0].mxu0 %v4595
  %v4696 = vpop.f32.mrb[0].mxu0
  %v4697 = vadd.f32 0.0, %v4696
  %v4698 = vpop.f32.mrb[0].mxu0
  %4699 = vmatprep.mubr.f32.mxu0 0.0
  %4700 = vmatmul.mubr.f32.gmra.mrb[0].mxu0 %v4600
  %v4701 = vpop.f32.mrb[0].mxu0
  %v4702 = vadd.f32 0.0, %v4701
  %v4703 = vpop.f32.mrb[0].mxu0
  %4704 = vmatprep.mubr.f32.mxu0 0.0
  %4705 = vmatmul.mubr.f32.gmra.mrb[0].mxu0 %v4605
  %v4706 = vpop.f32.mrb[0].mxu0
  %v4707 = vadd.f32 0.0, %v4706
  %v4708 = vpop.f32.mrb[0].mxu0
  %4709 = vmatprep.mubr.f32.mxu0 0.0
  %4710 = vmatmul.mubr.f32.gmra.mrb[0].mxu0 %v4610
  %v4711 = vpop.f32.mrb[0].mxu0
  %v4712 = vadd.f32 0.0, %v4711
  %v4713 = vpop.f32.mrb[0].mxu0
  %4714 = vdwg.mxu0
  %v4715 = vadd.f32 %v4507, %v4697
  %v4716 = vadd.f32 %v4508, %v4702
  %v4717 = vadd.f32 %v4509, %v4707
  %v4718 = vadd.f32 %v4510, %v4712
  %v4719 = vld [vmem:[%s19] sm:$0xff]
  %v4720 = vld [vmem:[%s19 + $0x8] sm:$0xff]
  %v4721 = vld [vmem:[%s19 + $0x10] sm:$0xff]
  %v4722 = vld [vmem:[%s19 + $0x18] sm:$0xff]
  %4724 = vset.pattern.permute.xlu0 0
  %4725 = vperm.xlu0 %4724, %v4719
  %v4726 = vpop.permute.xlu0 %4725
  %4729 = vset.pattern.permute.xlu0 0
  %4730 = vperm.xlu0 %4729, %v4720
  %v4731 = vpop.permute.xlu0 %4730
  %4734 = vset.pattern.permute.xlu0 0
  %4735 = vperm.xlu0 %4734, %v4721
  %v4736 = vpop.permute.xlu0 %4735
  %4739 = vset.pattern.permute.xlu0 0
  %4740 = vperm.xlu0 %4739, %v4722
  %v4741 = vpop.permute.xlu0 %4740
  %v4743 = vadd.f32 %v4715, %v4726
  %v4744 = vadd.f32 %v4716, %v4731
  %v4745 = vadd.f32 %v4717, %v4736
  %v4746 = vadd.f32 %v4718, %v4741
  %v4747 = vmul.f32 %v4743, 0.5
  %v4748 = vmul.f32 %v4744, 0.5
  %v4749 = vmul.f32 %v4745, 0.5
  %v4750 = vmul.f32 %v4746, 0.5
  %v4751 = vmul.f32 %v4743, 0.70710677
  %v4752 = vmul.f32 %v4744, 0.70710677
  %v4753 = vmul.f32 %v4745, 0.70710677
  %v4754 = vmul.f32 %v4746, 0.70710677
  %vm4755 = vcmp.ge.f32.partialorder %v4751, 0.0
  %vm4756 = vcmp.ge.f32.partialorder %v4752, 0.0
  %vm4757 = vcmp.ge.f32.partialorder %v4753, 0.0
  %vm4758 = vcmp.ge.f32.partialorder %v4754, 0.0
  %v4759 = vsel %vm4755, 1.0, -1.0
  %v4760 = vsel %vm4756, 1.0, -1.0
  %v4761 = vsel %vm4757, 1.0, -1.0
  %v4762 = vsel %vm4758, 1.0, -1.0
  %v4763 = vand.u32 2147483647, %v4751
  %v4764 = vand.u32 2147483647, %v4752
  %v4765 = vand.u32 2147483647, %v4753
  %v4766 = vand.u32 2147483647, %v4754
  %v4767 = vmul.f32 %v4763, 0.3275911
  %v4768 = vmul.f32 %v4764, 0.3275911
  %v4769 = vmul.f32 %v4765, 0.3275911
  %v4770 = vmul.f32 %v4766, 0.3275911
  %v4771 = vadd.f32 %v4767, 1.0
  %v4772 = vadd.f32 %v4768, 1.0
  %v4773 = vadd.f32 %v4769, 1.0
  %v4774 = vadd.f32 %v4770, 1.0
  %v4775 = vrcp.pop %v4771
  %v4776 = vmul.f32 1.0, %v4775
  %v4777 = vrcp.pop %v4772
  %v4778 = vmul.f32 1.0, %v4777
  %v4779 = vrcp.pop %v4773
  %v4780 = vmul.f32 1.0, %v4779
  %v4781 = vrcp.pop %v4774
  %v4782 = vmul.f32 1.0, %v4781
  %v4783 = vmul.f32 %v4776, 1.0614054
  %v4784 = vmul.f32 %v4778, 1.0614054
  %v4785 = vmul.f32 %v4780, 1.0614054
  %v4786 = vmul.f32 %v4782, 1.0614054
  %v4787 = vadd.f32 %v4783, -1.4531521
  %v4788 = vadd.f32 %v4784, -1.4531521
  %v4789 = vadd.f32 %v4785, -1.4531521
  %v4790 = vadd.f32 %v4786, -1.4531521
  %v4791 = vmul.f32 %v4787, %v4776
  %v4792 = vmul.f32 %v4788, %v4778
  %v4793 = vmul.f32 %v4789, %v4780
  %v4794 = vmul.f32 %v4790, %v4782
  %v4795 = vadd.f32 %v4791, 1.4214138
  %v4796 = vadd.f32 %v4792, 1.4214138
  %v4797 = vadd.f32 %v4793, 1.4214138
  %v4798 = vadd.f32 %v4794, 1.4214138
  %v4799 = vmul.f32 %v4795, %v4776
  %v4800 = vmul.f32 %v4796, %v4778
  %v4801 = vmul.f32 %v4797, %v4780
  %v4802 = vmul.f32 %v4798, %v4782
  %v4803 = vadd.f32 %v4799, -0.28449672
  %v4804 = vadd.f32 %v4800, -0.28449672
  %v4805 = vadd.f32 %v4801, -0.28449672
  %v4806 = vadd.f32 %v4802, -0.28449672
  %v4807 = vmul.f32 %v4803, %v4776
  %v4808 = vmul.f32 %v4804, %v4778
  %v4809 = vmul.f32 %v4805, %v4780
  %v4810 = vmul.f32 %v4806, %v4782
  %v4811 = vadd.f32 %v4807, 0.2548296
  %v4812 = vadd.f32 %v4808, 0.2548296
  %v4813 = vadd.f32 %v4809, 0.2548296
  %v4814 = vadd.f32 %v4810, 0.2548296
  %v4815 = vmul.f32 %v4811, %v4776
  %v4816 = vmul.f32 %v4812, %v4778
  %v4817 = vmul.f32 %v4813, %v4780
  %v4818 = vmul.f32 %v4814, %v4782
  %v4819 = vsub.f32 0.0, %v4763
  %v4820 = vsub.f32 0.0, %v4764
  %v4821 = vsub.f32 0.0, %v4765
  %v4822 = vsub.f32 0.0, %v4766
  %v4823 = vmul.f32 %v4819, %v4763
  %v4824 = vmul.f32 %v4820, %v4764
  %v4825 = vmul.f32 %v4821, %v4765
  %v4826 = vmul.f32 %v4822, %v4766
  %v4827 = vmul.f32 %v4823, 1.442695
  %v4828 = vpow.pop %v4827
  %v4829 = vmul.f32 %v4824, 1.442695
  %v4830 = vpow.pop %v4829
  %v4831 = vmul.f32 %v4825, 1.442695
  %v4832 = vpow.pop %v4831
  %v4833 = vmul.f32 %v4826, 1.442695
  %v4834 = vpow.pop %v4833
  %v4835 = vmul.f32 %v4815, %v4828
  %v4836 = vmul.f32 %v4816, %v4830
  %v4837 = vmul.f32 %v4817, %v4832
  %v4838 = vmul.f32 %v4818, %v4834
  %v4839 = vsub.f32 1.0, %v4835
  %v4840 = vsub.f32 1.0, %v4836
  %v4841 = vsub.f32 1.0, %v4837
  %v4842 = vsub.f32 1.0, %v4838
  %v4843 = vmul.f32 %v4759, %v4839
  %v4844 = vmul.f32 %v4760, %v4840
  %v4845 = vmul.f32 %v4761, %v4841
  %v4846 = vmul.f32 %v4762, %v4842
  %v4847 = vadd.f32 %v4843, 1.0
  %v4848 = vadd.f32 %v4844, 1.0
  %v4849 = vadd.f32 %v4845, 1.0
  %v4850 = vadd.f32 %v4846, 1.0
  %v4851 = vmul.f32 %v4747, %v4847
  %v4852 = vmul.f32 %v4748, %v4848
  %v4853 = vmul.f32 %v4749, %v4849
  %v4854 = vmul.f32 %v4750, %v4850
  %v4855 = vld [vmem:[%s20] sm:$0xff]
  %v4856 = vld [vmem:[%s20 + $0x8] sm:$0xff]
  %v4857 = vld [vmem:[%s21] sm:$0xff]
  %v4858 = vld [vmem:[%s21 + $0x8] sm:$0xff]
  %4860 = vset.pattern.permute.xlu0 0
  %4861 = vperm.xlu0 %4860, %v4857
  %v4862 = vpop.permute.xlu0 %4861
  %4865 = vset.pattern.permute.xlu0 0
  %4866 = vperm.xlu0 %4865, %v4858
  %v4867 = vpop.permute.xlu0 %4866
  %vm4869 = vcmask 261120
  %v4871 = vsel %vm4869, %v4855, 0
  %v4874 = vsel %vm4869, %v4856, 0
  %4876 = vmatprep.subr.mxu0 0.0
  %4877 = vmatpush1.msra.mxu0 %v4851
  %4878 = vmatprep.subr.mxu0 0.0
  %4879 = vmatpush1.msra.mxu0 %v4852
  %4880 = vmatprep.subr.mxu0 0.0
  %4881 = vmatpush1.msra.mxu0 %v4853
  %4882 = vmatprep.subr.mxu0 0.0
  %4883 = vmatpush1.msra.mxu0 %v4854
  %4884 = vmatprep.subr.mxu0 0.0
  %4885 = vmatpush1.msra.mxu0 0.0
  %4886 = vmatprep.subr.mxu0 0.0
  %4887 = vmatpush1.msra.mxu0 0.0
  %4888 = vmatprep.subr.mxu0 0.0
  %4889 = vmatpush1.msra.mxu0 0.0
  %4890 = vmatprep.subr.mxu0 0.0
  %4891 = vmatpush1.msra.mxu0 0.0
  %4892 = vmatprep.subr.mxu0 0.0
  %4893 = vmatpush1.msra.mxu0 0.0
  %4894 = vmatprep.subr.mxu0 0.0
  %4895 = vmatpush1.msra.mxu0 0.0
  %4896 = vmatprep.subr.mxu0 0.0
  %4897 = vmatpush1.msra.mxu0 0.0
  %4898 = vmatprep.subr.mxu0 0.0
  %4899 = vmatpush1.msra.mxu0 0.0
  %4900 = vmatprep.subr.mxu0 0.0
  %4901 = vmatpush1.msra.mxu0 0.0
  %4902 = vmatprep.subr.mxu0 0.0
  %4903 = vmatpush1.msra.mxu0 0.0
  %4904 = vmatprep.subr.mxu0 0.0
  %4905 = vmatpush1.msra.mxu0 0.0
  %4906 = vmatprep.subr.mxu0 0.0
  %4907 = vmatpush1.msra.mxu0 0.0
  %4908 = vmatprep.subr.mxu0 0.0
  %4909 = vmatpush1.msra.mxu0 0.0
  %4910 = vmatprep.subr.mxu0 0.0
  %4911 = vmatpush1.msra.mxu0 0.0
  %4912 = vmatprep.subr.mxu0 0.0
  %4913 = vmatpush1.msra.mxu0 0.0
  %4914 = vmatprep.subr.mxu0 0.0
  %4915 = vmatpush1.msra.mxu0 0.0
  %4916 = vmatprep.subr.mxu0 0.0
  %4917 = vmatpush1.msra.mxu0 0.0
  %4918 = vmatprep.subr.mxu0 0.0
  %4919 = vmatpush1.msra.mxu0 0.0
  %4920 = vmatprep.subr.mxu0 0.0
  %4921 = vmatpush1.msra.mxu0 0.0
  %4922 = vmatprep.subr.mxu0 0.0
  %4923 = vmatpush1.msra.mxu0 0.0
  %4924 = vmatprep.subr.mxu0 0.0
  %4925 = vmatpush1.msra.mxu0 0.0
  %4926 = vmatprep.subr.mxu0 0.0
  %4927 = vmatpush1.msra.mxu0 0.0
  %4928 = vmatprep.subr.mxu0 0.0
  %4929 = vmatpush1.msra.mxu0 0.0
  %4930 = vmatprep.subr.mxu0 0.0
  %4931 = vmatpush1.msra.mxu0 0.0
  %4932 = vmatprep.subr.mxu0 0.0
  %4933 = vmatpush1.msra.mxu0 0.0
  %4934 = vmatprep.subr.mxu0 0.0
  %4935 = vmatpush1.msra.mxu0 0.0
  %4936 = vmatprep.subr.mxu0 0.0
  %4937 = vmatpush1.msra.mxu0 0.0
  %4938 = vmatprep.subr.mxu0 0.0
  %4939 = vmatpush1.msra.mxu0 0.0
  %4940 = vmatprep.mubr.f32.mxu0 0.0
  %4941 = vmatmul.mubr.f32.gmra.mrb[0].mxu0 %v4871
  %v4942 = vpop.f32.mrb[0].mxu0
  %v4943 = vadd.f32 %v4862, %v4942
  %v4944 = vpop.f32.mrb[0].mxu0
  %4945 = vmatprep.mubr.f32.mxu0 0.0
  %4946 = vmatmul.mubr.f32.gmra.mrb[0].mxu0 %v4874
  %v4947 = vpop.f32.mrb[0].mxu0
  %v4948 = vadd.f32 %v4867, %v4947
  %v4949 = vpop.f32.mrb[0].mxu0
  %4950 = vdwg.mxu0
  %v4951 = vadd.f32 %v4943, %v2672
  %v4952 = vadd.f32 %v4948, %v2673
  %4953 = vst [vmem:[%s27] sm:$0xff] %v4951
  %4954 = vst [vmem:[%s27 + $0x8] sm:$0xff] %v4952
  // Predicated region
  $region110: #{safmn_forward.5} parent=0 // pred_check
    _
  $region111: #{safmn_forward.5} parent=0 // pred_check_branch
    %4956 = sbr.rel (0) target = $region113
  $region112: #{safmn_forward.5} parent=0 // pred_region
    _
  $region113: #{safmn_forward.5} parent=0 // pred_fallthru
    _
  // Predicated region
  $region114: #{safmn_forward.5} parent=0 // pred_check
    _
  $region115: #{safmn_forward.5} parent=0 // pred_check_branch
    %4958 = sbr.rel (0) target = $region117
  $region116: #{safmn_forward.5} parent=0 // pred_region
    _
  $region117: #{safmn_forward.5} parent=0 // pred_fallthru
    _

</llo_original>
